<compile_context>
chip_gen: v5e
topology: v5e:2x2
jax: 0.10.0
libtpu: 0.0.40
codegen_flags: <defaults>
</compile_context>

<pallas_src>
import jax
import jax.numpy as jnp
from jax.experimental import pallas as pl
from jax.experimental.pallas import tpu as pltpu

DIM = 32                 # GIN hidden dim in the reference
DIM_PAD = 128            # lane-dense padded GIN dim
NUM_FEATURES_XD = 78
OUTPUT_DIM = 512
BN_EPS = 1e-5
NUM_GIN_LAYERS = 5
PROT_IN = 25 * 25        # 625 protein features
VMEM_LIMIT = 32 * 1024 * 1024


# ------------------- Kernel 1: fused 5-layer GIN + global_add_pool -------------------

def _gin_fused_kernel(*refs):
    # refs = [adj, x, pool, (w1, b1, w2, b2, scale, shift) * 5, out]
    adj_ref, x_ref, pool_ref = refs[:3]
    o_ref = refs[-1]
    layer_refs = refs[3:-1]

    adj = adj_ref[...]                      # (N, N) bf16, 0/1 exact
    h = x_ref[...]                          # (N, 128) f32, cols >= 78 are zero
    for l in range(NUM_GIN_LAYERS):
        w1, b1, w2, b2, scale, shift = layer_refs[6 * l: 6 * l + 6]
        # GINConv (eps = 0): x_i + sum_{j in N(i)} x_j ; A[dst, src] = 1.
        # bf16 x bf16 MXU matmul on the only O(N^2) contraction, f32 accumulate.
        neigh = jnp.dot(adj, h.astype(jnp.bfloat16),
                        preferred_element_type=jnp.float32)
        agg = neigh + h
        # MLP: Linear -> ReLU -> Linear  (lane-dense 128-wide, zero-padded)
        z = jnp.dot(agg, w1[...], preferred_element_type=jnp.float32) + b1[...]
        z = jnp.maximum(z, 0.0)
        z = jnp.dot(z, w2[...], preferred_element_type=jnp.float32) + b2[...]
        # F.relu(conv(x, edge_index))
        z = jnp.maximum(z, 0.0)
        # BatchNorm1d (eval), exactly folded; padded lanes stay 0 (shift pad = 0)
        h = z * scale[...] + shift[...]
    # global_add_pool as a one-hot (G, N) matmul
    o_ref[...] = jnp.dot(pool_ref[...], h, preferred_element_type=jnp.float32)


def gin_pool(adj, x_pad, pool, gin_layers):
    args = [adj, x_pad, pool]
    for g in gin_layers:
        args += [g["w1"], g["b1"], g["w2"], g["b2"], g["scale"], g["shift"]]
    num_graphs = pool.shape[0]
    return pl.pallas_call(
        _gin_fused_kernel,
        out_shape=jax.ShapeDtypeStruct((num_graphs, DIM_PAD), jnp.float32),
        compiler_params=pltpu.CompilerParams(vmem_limit_bytes=VMEM_LIMIT),
    )(*args)


# ------------------- Kernel 2: fused FC head -------------------

def _head_kernel(hg_ref, tgt_ref,
                 xdw_ref, xdb_ref,
                 w1t_ref, wt1_ref, b1_ref,
                 w2_ref, b2_ref, w3_ref, b3_ref,
                 wo_ref, bo_ref, o_ref):
    f32, bf16 = jnp.float32, jnp.bfloat16

    def bdot(a, w_ref):
        # bf16 x bf16 MXU matmul, f32 accumulation
        return jnp.dot(a.astype(bf16), w_ref[...], preferred_element_type=f32)

    # graph branch: ReLU(fc1_xd(hg)); dropout -> identity (eval).
    # hg is (G, 128) with lanes >= 32 zero; xdw's padded rows are zero.
    a = jnp.maximum(bdot(hg_ref[...], xdw_ref) + xdb_ref[...], 0.0)        # (G, 512)
    # fc1 on torch.cat((graph, protein), 1) WITHOUT materializing the concat:
    #   top rows of fc1_w multiply the graph half; the protein half
    #   (conv1 o conv2 o fc1_xt o fc1_bottom) is a single folded (625,1024) map.
    h = bdot(a, w1t_ref) + bdot(tgt_ref[...], wt1_ref) + b1_ref[...]
    h = jnp.maximum(h, 0.0)                                                 # (G, 1024)
    h = jnp.maximum(bdot(h, w2_ref) + b2_ref[...], 0.0)                     # fc2 + ReLU
    h = jnp.maximum(bdot(h, w3_ref) + b3_ref[...], 0.0)                     # fc3 + ReLU
    # final (512, 1) projection as a free epilogue of the same kernel
    o_ref[...] = bdot(h, wo_ref) + bo_ref[...]                              # (G, 1)


def head_forward(hg, target, p):
    g = hg.shape[0]
    return pl.pallas_call(
        _head_kernel,
        out_shape=jax.ShapeDtypeStruct((g, 1), jnp.float32),
        compiler_params=pltpu.CompilerParams(vmem_limit_bytes=VMEM_LIMIT),
    )(hg, target,
      p["fc1_xd_w"], p["fc1_xd_b"],
      p["fc1_w_top"], p["tgt_w"], p["fc1_b"],
      p["fc2_w"], p["fc2_b"], p["fc3_w"], p["fc3_b"],
      p["out_w"], p["out_b"])


# ------------------- Param-prep-time reference of the protein branch -------------------
# (only used once, outside the hot path, to fold the branch into one affine map)

def _im2col(x_nchw, k):
    b, c, h, w = x_nchw.shape
    ho, wo = h - k + 1, w - k + 1
    cols = []
    for ki in range(k):
        for kj in range(k):
            cols.append(x_nchw[:, :, ki:ki + ho, kj:kj + wo])     # (B, C, Ho, Wo)
    patches = jnp.stack(cols, axis=2)                              # (B, C, k*k, Ho, Wo)
    patches = patches.transpose(0, 3, 4, 1, 2)                     # (B, Ho, Wo, C, k*k)
    return patches.reshape(b * ho * wo, c * k * k), ho, wo


def _protein_branch_ref(t_flat, cw1, cb1, cw2, cb2, fw, fb):
    """Exact f32 replica of conv_xt_1 -> conv_xt_2 -> flatten(NCHW) -> fc1_xt."""
    b = t_flat.shape[0]
    x = t_flat.reshape(b, 1, 25, 25)
    p1, _, _ = _im2col(x, 4)                                       # (B*484, 16)
    c1 = p1 @ cw1 + cb1                                            # (B*484, 8)
    c1 = c1.reshape(b, 22, 22, 8).transpose(0, 3, 1, 2)            # NCHW (B, 8, 22, 22)
    p2, _, _ = _im2col(c1, 2)                                      # (B*441, 32)
    c2 = p2 @ cw2 + cb2                                            # (B*441, 8)
    c2 = c2.reshape(b, 21, 21, 8).transpose(0, 3, 1, 2)            # (B, 8, 21, 21)
    flat = c2.reshape(b, 8 * 21 * 21)                              # NCHW flatten (c, i, j)
    return flat @ fw + fb                                          # (B, 512)


# ------------------- Parameters -------------------

def init_params(key):
    keys = iter(jax.random.split(key, 80))

    def rnd(shape, scale=0.1):
        return jax.random.normal(next(keys), shape, jnp.float32) * scale

    params = {"gin": []}
    in_dim = NUM_FEATURES_XD
    for _ in range(NUM_GIN_LAYERS):
        params["gin"].append(dict(
            w1=rnd((in_dim, DIM)), b1=rnd((DIM,)),
            w2=rnd((DIM, DIM)), b2=rnd((DIM,)),
            gamma=1.0 + rnd((DIM,), 0.05), beta=rnd((DIM,), 0.05),
            mean=rnd((DIM,), 0.05), var=1.0 + jnp.abs(rnd((DIM,), 0.05)),
        ))
        in_dim = DIM

    params["fc1_xd_w"] = rnd((DIM, OUTPUT_DIM)); params["fc1_xd_b"] = rnd((OUTPUT_DIM,))
    params["cxt1_w"] = rnd((1 * 4 * 4, 8));      params["cxt1_b"] = rnd((8,))
    params["cxt2_w"] = rnd((8 * 2 * 2, 8));      params["cxt2_b"] = rnd((8,))
    params["fc1_xt_w"] = rnd((8 * 21 * 21, OUTPUT_DIM)); params["fc1_xt_b"] = rnd((OUTPUT_DIM,))
    params["fc1_w"] = rnd((1024, 1024)); params["fc1_b"] = rnd((1024,))
    params["fc2_w"] = rnd((1024, 1024)); params["fc2_b"] = rnd((1024,))
    params["fc3_w"] = rnd((1024, 512));  params["fc3_b"] = rnd((512,))
    params["out_w"] = rnd((512, 1));     params["out_b"] = rnd((1,))
    return params


def _pad2(a, rows, cols):
    return jnp.pad(a, ((0, rows - a.shape[0]), (0, cols - a.shape[1])))


def _pad_row(v, cols, fill=0.0):
    v = v.reshape(1, -1)
    return jnp.pad(v, ((0, 0), (0, cols - v.shape[1])), constant_values=fill)


def prepare_params(params):
    """One-time packing: BN folding, lane padding to 128, protein-branch fold,
    fc1 concat split, bf16 casts for the streamed FC-head weights."""
    bf16 = jnp.bfloat16
    packed = {"gin": []}

    # --- GIN layers: fold BN, zero-pad channel dim 32 -> 128 (lane dense) ---
    for g in params["gin"]:
        inv_std = jax.lax.rsqrt(g["var"] + BN_EPS)
        scale = g["gamma"] * inv_std
        shift = g["beta"] - g["mean"] * scale
        packed["gin"].append(dict(
            w1=_pad2(g["w1"], DIM_PAD, DIM_PAD),
            b1=_pad_row(g["b1"], DIM_PAD),
            w2=_pad2(g["w2"], DIM_PAD, DIM_PAD),
            b2=_pad_row(g["b2"], DIM_PAD),
            scale=_pad_row(scale, DIM_PAD, fill=1.0),
            shift=_pad_row(shift, DIM_PAD),          # pad 0 so padded lanes stay 0
        ))

    # fc1_xd: pad input rows to 128 (hg's padded lanes are exactly zero)
    packed["fc1_xd_w"] = _pad2(params["fc1_xd_w"], DIM_PAD, OUTPUT_DIM).astype(bf16)
    packed["fc1_xd_b"] = params["fc1_xd_b"].reshape(1, -1)

    # --- full algebraic fold of the activation-free protein branch ---
    # conv1 -> conv2 -> flatten -> fc1_xt is affine in the 625 input features;
    # probe with the identity (one-time, outside the hot path) to recover it,
    # then compose with fc1's bottom (protein) half of the concat.
    def branch(t_flat):
        return _protein_branch_ref(
            t_flat,
            params["cxt1_w"], params["cxt1_b"],
            params["cxt2_w"], params["cxt2_b"],
            params["fc1_xt_w"], params["fc1_xt_b"])

    b_eff = branch(jnp.zeros((1, PROT_IN), jnp.float32))[0]          # (512,)
    w_eff = branch(jnp.eye(PROT_IN, dtype=jnp.float32)) - b_eff      # (625, 512)

    w1_top = params["fc1_w"][:OUTPUT_DIM]                            # graph half
    w1_bot = params["fc1_w"][OUTPUT_DIM:]                            # protein half
    packed["fc1_w_top"] = w1_top.astype(bf16)                        # (512, 1024)
    packed["tgt_w"] = jnp.dot(w_eff, w1_bot).astype(bf16)            # (625, 1024)
    packed["fc1_b"] = (params["fc1_b"] + jnp.dot(b_eff, w1_bot)).reshape(1, -1)

    packed["fc2_w"] = params["fc2_w"].astype(bf16); packed["fc2_b"] = params["fc2_b"].reshape(1, -1)
    packed["fc3_w"] = params["fc3_w"].astype(bf16); packed["fc3_b"] = params["fc3_b"].reshape(1, -1)
    packed["out_w"] = params["out_w"].astype(bf16); packed["out_b"] = params["out_b"].reshape(1, -1)
    return packed


# ------------------- Graph operands (built ONCE, outside the jitted hot path) -------------------

def build_graph_operands(edge_index, batch, num_nodes, num_graphs):
    # Dense adjacency, message direction src -> dst (A[dst, src] = 1); bf16 is exact
    # for small integer multiplicities and halves the only O(N^2) HBM stream.
    adj = jnp.zeros((num_nodes, num_nodes), jnp.float32)
    adj = adj.at[edge_index[1], edge_index[0]].add(1.0)
    pool = (batch[None, :] == jnp.arange(num_graphs)[:, None]).astype(jnp.float32)
    return adj.astype(jnp.bfloat16), pool


# ------------------- Forward pass -------------------

@jax.jit
def forward(packed, x, adj, pool, target):
    # Lane-pad node features 78 -> 128 (zero pad; padded weight rows are zero).
    x_pad = jnp.pad(x, ((0, 0), (0, DIM_PAD - NUM_FEATURES_XD)))
    hg = gin_pool(adj, x_pad, pool, packed["gin"])     # (G, 128), lanes >= 32 are zero
    return head_forward(hg, target, packed)            # (G, 1)


# ------------------- Main -------------------

if __name__ == "__main__":
    key = jax.random.PRNGKey(0)
    k_par, k_x, k_t = jax.random.split(key, 3)

    params = init_params(k_par)
    packed = prepare_params(params)

    # Two graphs of 5 nodes each (ring topology, both edge directions).
    num_nodes, num_graphs = 10, 2
    x = jax.random.normal(k_x, (num_nodes, NUM_FEATURES_XD), jnp.float32)

    edges = []
    for g in range(num_graphs):
        base = g * 5
        for i in range(5):
            j = (i + 1) % 5
            edges.append((base + i, base + j))
            edges.append((base + j, base + i))
    edge_index = jnp.array(edges, dtype=jnp.int32).T                 # (2, E)
    batch = jnp.repeat(jnp.arange(num_graphs, dtype=jnp.int32), 5)   # (10,)

    target = jax.random.normal(k_t, (num_graphs, PROT_IN), jnp.float32)

    # adjacency / pool built once, outside the jitted hot path.
    adj, pool = build_graph_operands(edge_index, batch, num_nodes, num_graphs)

    out = forward(packed, x, adj, pool, target)
    out = jax.block_until_ready(out)
    assert out.shape == (num_graphs, 1)
    print("KERNEL_OK")
</pallas_src>

<mosaic_0001>
module attributes {stable_mosaic.version = 11 : i64} {
  func.func @_gin_fused_kernel(%arg0: memref<10x10xbf16, #tpu.memory_space<vmem>>, %arg1: memref<10x128xf32, #tpu.memory_space<vmem>>, %arg2: memref<2x10xf32, #tpu.memory_space<vmem>>, %arg3: memref<128x128xf32, #tpu.memory_space<vmem>>, %arg4: memref<1x128xf32, #tpu.memory_space<vmem>>, %arg5: memref<128x128xf32, #tpu.memory_space<vmem>>, %arg6: memref<1x128xf32, #tpu.memory_space<vmem>>, %arg7: memref<1x128xf32, #tpu.memory_space<vmem>>, %arg8: memref<1x128xf32, #tpu.memory_space<vmem>>, %arg9: memref<128x128xf32, #tpu.memory_space<vmem>>, %arg10: memref<1x128xf32, #tpu.memory_space<vmem>>, %arg11: memref<128x128xf32, #tpu.memory_space<vmem>>, %arg12: memref<1x128xf32, #tpu.memory_space<vmem>>, %arg13: memref<1x128xf32, #tpu.memory_space<vmem>>, %arg14: memref<1x128xf32, #tpu.memory_space<vmem>>, %arg15: memref<128x128xf32, #tpu.memory_space<vmem>>, %arg16: memref<1x128xf32, #tpu.memory_space<vmem>>, %arg17: memref<128x128xf32, #tpu.memory_space<vmem>>, %arg18: memref<1x128xf32, #tpu.memory_space<vmem>>, %arg19: memref<1x128xf32, #tpu.memory_space<vmem>>, %arg20: memref<1x128xf32, #tpu.memory_space<vmem>>, %arg21: memref<128x128xf32, #tpu.memory_space<vmem>>, %arg22: memref<1x128xf32, #tpu.memory_space<vmem>>, %arg23: memref<128x128xf32, #tpu.memory_space<vmem>>, %arg24: memref<1x128xf32, #tpu.memory_space<vmem>>, %arg25: memref<1x128xf32, #tpu.memory_space<vmem>>, %arg26: memref<1x128xf32, #tpu.memory_space<vmem>>, %arg27: memref<128x128xf32, #tpu.memory_space<vmem>>, %arg28: memref<1x128xf32, #tpu.memory_space<vmem>>, %arg29: memref<128x128xf32, #tpu.memory_space<vmem>>, %arg30: memref<1x128xf32, #tpu.memory_space<vmem>>, %arg31: memref<1x128xf32, #tpu.memory_space<vmem>>, %arg32: memref<1x128xf32, #tpu.memory_space<vmem>>, %arg33: memref<2x128xf32, #tpu.memory_space<vmem>>) attributes {dimension_semantics = [], scalar_prefetch = 0 : i64, scratch_operands = 0 : i64, tpu.core_type = #tpu.core_type<tc>} {
    %c0 = arith.constant 0 : index
    %c0_0 = arith.constant 0 : index
    %0 = vector.load %arg0[%c0, %c0_0] : memref<10x10xbf16, #tpu.memory_space<vmem>>, vector<10x10xbf16>
    %c0_1 = arith.constant 0 : index
    %c0_2 = arith.constant 0 : index
    %1 = vector.load %arg1[%c0_1, %c0_2] : memref<10x128xf32, #tpu.memory_space<vmem>>, vector<10x128xf32>
    %2 = arith.truncf %1 : vector<10x128xf32> to vector<10x128xbf16>
    %cst = arith.constant dense<0.000000e+00> : vector<10x128xf32>
    %3 = tpu.matmul %0, %2, %cst {dimension_numbers = #tpu.dot_dimension_numbers<[1], [0], [0], [1], [0, 0, 1, 1], [], []>} : vector<10x10xbf16>, vector<10x128xbf16>, vector<10x128xf32> -> vector<10x128xf32>
    %4 = arith.addf %3, %1 : vector<10x128xf32>
    %c0_3 = arith.constant 0 : index
    %c0_4 = arith.constant 0 : index
    %5 = vector.load %arg3[%c0_3, %c0_4] : memref<128x128xf32, #tpu.memory_space<vmem>>, vector<128x128xf32>
    %cst_5 = arith.constant dense<0.000000e+00> : vector<10x128xf32>
    %6 = tpu.matmul %4, %5, %cst_5 {dimension_numbers = #tpu.dot_dimension_numbers<[1], [0], [0], [1], [0, 0, 1, 1], [], []>} : vector<10x128xf32>, vector<128x128xf32>, vector<10x128xf32> -> vector<10x128xf32>
    %c0_6 = arith.constant 0 : index
    %c0_7 = arith.constant 0 : index
    %7 = vector.load %arg4[%c0_6, %c0_7] : memref<1x128xf32, #tpu.memory_space<vmem>>, vector<1x128xf32>
    %8 = vector.broadcast %7 : vector<1x128xf32> to vector<10x128xf32>
    %9 = arith.addf %6, %8 : vector<10x128xf32>
    %cst_8 = arith.constant 0.000000e+00 : f32
    %10 = vector.broadcast %cst_8 : f32 to vector<10x128xf32>
    %11 = arith.maximumf %9, %10 : vector<10x128xf32>
    %c0_9 = arith.constant 0 : index
    %c0_10 = arith.constant 0 : index
    %12 = vector.load %arg5[%c0_9, %c0_10] : memref<128x128xf32, #tpu.memory_space<vmem>>, vector<128x128xf32>
    %cst_11 = arith.constant dense<0.000000e+00> : vector<10x128xf32>
    %13 = tpu.matmul %11, %12, %cst_11 {dimension_numbers = #tpu.dot_dimension_numbers<[1], [0], [0], [1], [0, 0, 1, 1], [], []>} : vector<10x128xf32>, vector<128x128xf32>, vector<10x128xf32> -> vector<10x128xf32>
    %c0_12 = arith.constant 0 : index
    %c0_13 = arith.constant 0 : index
    %14 = vector.load %arg6[%c0_12, %c0_13] : memref<1x128xf32, #tpu.memory_space<vmem>>, vector<1x128xf32>
    %15 = vector.broadcast %14 : vector<1x128xf32> to vector<10x128xf32>
    %16 = arith.addf %13, %15 : vector<10x128xf32>
    %cst_14 = arith.constant 0.000000e+00 : f32
    %17 = vector.broadcast %cst_14 : f32 to vector<10x128xf32>
    %18 = arith.maximumf %16, %17 : vector<10x128xf32>
    %c0_15 = arith.constant 0 : index
    %c0_16 = arith.constant 0 : index
    %19 = vector.load %arg7[%c0_15, %c0_16] : memref<1x128xf32, #tpu.memory_space<vmem>>, vector<1x128xf32>
    %20 = vector.broadcast %19 : vector<1x128xf32> to vector<10x128xf32>
    %21 = arith.mulf %18, %20 : vector<10x128xf32>
    %c0_17 = arith.constant 0 : index
    %c0_18 = arith.constant 0 : index
    %22 = vector.load %arg8[%c0_17, %c0_18] : memref<1x128xf32, #tpu.memory_space<vmem>>, vector<1x128xf32>
    %23 = vector.broadcast %22 : vector<1x128xf32> to vector<10x128xf32>
    %24 = arith.addf %21, %23 : vector<10x128xf32>
    %25 = arith.truncf %24 : vector<10x128xf32> to vector<10x128xbf16>
    %cst_19 = arith.constant dense<0.000000e+00> : vector<10x128xf32>
    %26 = tpu.matmul %0, %25, %cst_19 {dimension_numbers = #tpu.dot_dimension_numbers<[1], [0], [0], [1], [0, 0, 1, 1], [], []>} : vector<10x10xbf16>, vector<10x128xbf16>, vector<10x128xf32> -> vector<10x128xf32>
    %27 = arith.addf %26, %24 : vector<10x128xf32>
    %c0_20 = arith.constant 0 : index
    %c0_21 = arith.constant 0 : index
    %28 = vector.load %arg9[%c0_20, %c0_21] : memref<128x128xf32, #tpu.memory_space<vmem>>, vector<128x128xf32>
    %cst_22 = arith.constant dense<0.000000e+00> : vector<10x128xf32>
    %29 = tpu.matmul %27, %28, %cst_22 {dimension_numbers = #tpu.dot_dimension_numbers<[1], [0], [0], [1], [0, 0, 1, 1], [], []>} : vector<10x128xf32>, vector<128x128xf32>, vector<10x128xf32> -> vector<10x128xf32>
    %c0_23 = arith.constant 0 : index
    %c0_24 = arith.constant 0 : index
    %30 = vector.load %arg10[%c0_23, %c0_24] : memref<1x128xf32, #tpu.memory_space<vmem>>, vector<1x128xf32>
    %31 = vector.broadcast %30 : vector<1x128xf32> to vector<10x128xf32>
    %32 = arith.addf %29, %31 : vector<10x128xf32>
    %cst_25 = arith.constant 0.000000e+00 : f32
    %33 = vector.broadcast %cst_25 : f32 to vector<10x128xf32>
    %34 = arith.maximumf %32, %33 : vector<10x128xf32>
    %c0_26 = arith.constant 0 : index
    %c0_27 = arith.constant 0 : index
    %35 = vector.load %arg11[%c0_26, %c0_27] : memref<128x128xf32, #tpu.memory_space<vmem>>, vector<128x128xf32>
    %cst_28 = arith.constant dense<0.000000e+00> : vector<10x128xf32>
    %36 = tpu.matmul %34, %35, %cst_28 {dimension_numbers = #tpu.dot_dimension_numbers<[1], [0], [0], [1], [0, 0, 1, 1], [], []>} : vector<10x128xf32>, vector<128x128xf32>, vector<10x128xf32> -> vector<10x128xf32>
    %c0_29 = arith.constant 0 : index
    %c0_30 = arith.constant 0 : index
    %37 = vector.load %arg12[%c0_29, %c0_30] : memref<1x128xf32, #tpu.memory_space<vmem>>, vector<1x128xf32>
    %38 = vector.broadcast %37 : vector<1x128xf32> to vector<10x128xf32>
    %39 = arith.addf %36, %38 : vector<10x128xf32>
    %cst_31 = arith.constant 0.000000e+00 : f32
    %40 = vector.broadcast %cst_31 : f32 to vector<10x128xf32>
    %41 = arith.maximumf %39, %40 : vector<10x128xf32>
    %c0_32 = arith.constant 0 : index
    %c0_33 = arith.constant 0 : index
    %42 = vector.load %arg13[%c0_32, %c0_33] : memref<1x128xf32, #tpu.memory_space<vmem>>, vector<1x128xf32>
    %43 = vector.broadcast %42 : vector<1x128xf32> to vector<10x128xf32>
    %44 = arith.mulf %41, %43 : vector<10x128xf32>
    %c0_34 = arith.constant 0 : index
    %c0_35 = arith.constant 0 : index
    %45 = vector.load %arg14[%c0_34, %c0_35] : memref<1x128xf32, #tpu.memory_space<vmem>>, vector<1x128xf32>
    %46 = vector.broadcast %45 : vector<1x128xf32> to vector<10x128xf32>
    %47 = arith.addf %44, %46 : vector<10x128xf32>
    %48 = arith.truncf %47 : vector<10x128xf32> to vector<10x128xbf16>
    %cst_36 = arith.constant dense<0.000000e+00> : vector<10x128xf32>
    %49 = tpu.matmul %0, %48, %cst_36 {dimension_numbers = #tpu.dot_dimension_numbers<[1], [0], [0], [1], [0, 0, 1, 1], [], []>} : vector<10x10xbf16>, vector<10x128xbf16>, vector<10x128xf32> -> vector<10x128xf32>
    %50 = arith.addf %49, %47 : vector<10x128xf32>
    %c0_37 = arith.constant 0 : index
    %c0_38 = arith.constant 0 : index
    %51 = vector.load %arg15[%c0_37, %c0_38] : memref<128x128xf32, #tpu.memory_space<vmem>>, vector<128x128xf32>
    %cst_39 = arith.constant dense<0.000000e+00> : vector<10x128xf32>
    %52 = tpu.matmul %50, %51, %cst_39 {dimension_numbers = #tpu.dot_dimension_numbers<[1], [0], [0], [1], [0, 0, 1, 1], [], []>} : vector<10x128xf32>, vector<128x128xf32>, vector<10x128xf32> -> vector<10x128xf32>
    %c0_40 = arith.constant 0 : index
    %c0_41 = arith.constant 0 : index
    %53 = vector.load %arg16[%c0_40, %c0_41] : memref<1x128xf32, #tpu.memory_space<vmem>>, vector<1x128xf32>
    %54 = vector.broadcast %53 : vector<1x128xf32> to vector<10x128xf32>
    %55 = arith.addf %52, %54 : vector<10x128xf32>
    %cst_42 = arith.constant 0.000000e+00 : f32
    %56 = vector.broadcast %cst_42 : f32 to vector<10x128xf32>
    %57 = arith.maximumf %55, %56 : vector<10x128xf32>
    %c0_43 = arith.constant 0 : index
    %c0_44 = arith.constant 0 : index
    %58 = vector.load %arg17[%c0_43, %c0_44] : memref<128x128xf32, #tpu.memory_space<vmem>>, vector<128x128xf32>
    %cst_45 = arith.constant dense<0.000000e+00> : vector<10x128xf32>
    %59 = tpu.matmul %57, %58, %cst_45 {dimension_numbers = #tpu.dot_dimension_numbers<[1], [0], [0], [1], [0, 0, 1, 1], [], []>} : vector<10x128xf32>, vector<128x128xf32>, vector<10x128xf32> -> vector<10x128xf32>
    %c0_46 = arith.constant 0 : index
    %c0_47 = arith.constant 0 : index
    %60 = vector.load %arg18[%c0_46, %c0_47] : memref<1x128xf32, #tpu.memory_space<vmem>>, vector<1x128xf32>
    %61 = vector.broadcast %60 : vector<1x128xf32> to vector<10x128xf32>
    %62 = arith.addf %59, %61 : vector<10x128xf32>
    %cst_48 = arith.constant 0.000000e+00 : f32
    %63 = vector.broadcast %cst_48 : f32 to vector<10x128xf32>
    %64 = arith.maximumf %62, %63 : vector<10x128xf32>
    %c0_49 = arith.constant 0 : index
    %c0_50 = arith.constant 0 : index
    %65 = vector.load %arg19[%c0_49, %c0_50] : memref<1x128xf32, #tpu.memory_space<vmem>>, vector<1x128xf32>
    %66 = vector.broadcast %65 : vector<1x128xf32> to vector<10x128xf32>
    %67 = arith.mulf %64, %66 : vector<10x128xf32>
    %c0_51 = arith.constant 0 : index
    %c0_52 = arith.constant 0 : index
    %68 = vector.load %arg20[%c0_51, %c0_52] : memref<1x128xf32, #tpu.memory_space<vmem>>, vector<1x128xf32>
    %69 = vector.broadcast %68 : vector<1x128xf32> to vector<10x128xf32>
    %70 = arith.addf %67, %69 : vector<10x128xf32>
    %71 = arith.truncf %70 : vector<10x128xf32> to vector<10x128xbf16>
    %cst_53 = arith.constant dense<0.000000e+00> : vector<10x128xf32>
    %72 = tpu.matmul %0, %71, %cst_53 {dimension_numbers = #tpu.dot_dimension_numbers<[1], [0], [0], [1], [0, 0, 1, 1], [], []>} : vector<10x10xbf16>, vector<10x128xbf16>, vector<10x128xf32> -> vector<10x128xf32>
    %73 = arith.addf %72, %70 : vector<10x128xf32>
    %c0_54 = arith.constant 0 : index
    %c0_55 = arith.constant 0 : index
    %74 = vector.load %arg21[%c0_54, %c0_55] : memref<128x128xf32, #tpu.memory_space<vmem>>, vector<128x128xf32>
    %cst_56 = arith.constant dense<0.000000e+00> : vector<10x128xf32>
    %75 = tpu.matmul %73, %74, %cst_56 {dimension_numbers = #tpu.dot_dimension_numbers<[1], [0], [0], [1], [0, 0, 1, 1], [], []>} : vector<10x128xf32>, vector<128x128xf32>, vector<10x128xf32> -> vector<10x128xf32>
    %c0_57 = arith.constant 0 : index
    %c0_58 = arith.constant 0 : index
    %76 = vector.load %arg22[%c0_57, %c0_58] : memref<1x128xf32, #tpu.memory_space<vmem>>, vector<1x128xf32>
    %77 = vector.broadcast %76 : vector<1x128xf32> to vector<10x128xf32>
    %78 = arith.addf %75, %77 : vector<10x128xf32>
    %cst_59 = arith.constant 0.000000e+00 : f32
    %79 = vector.broadcast %cst_59 : f32 to vector<10x128xf32>
    %80 = arith.maximumf %78, %79 : vector<10x128xf32>
    %c0_60 = arith.constant 0 : index
    %c0_61 = arith.constant 0 : index
    %81 = vector.load %arg23[%c0_60, %c0_61] : memref<128x128xf32, #tpu.memory_space<vmem>>, vector<128x128xf32>
    %cst_62 = arith.constant dense<0.000000e+00> : vector<10x128xf32>
    %82 = tpu.matmul %80, %81, %cst_62 {dimension_numbers = #tpu.dot_dimension_numbers<[1], [0], [0], [1], [0, 0, 1, 1], [], []>} : vector<10x128xf32>, vector<128x128xf32>, vector<10x128xf32> -> vector<10x128xf32>
    %c0_63 = arith.constant 0 : index
    %c0_64 = arith.constant 0 : index
    %83 = vector.load %arg24[%c0_63, %c0_64] : memref<1x128xf32, #tpu.memory_space<vmem>>, vector<1x128xf32>
    %84 = vector.broadcast %83 : vector<1x128xf32> to vector<10x128xf32>
    %85 = arith.addf %82, %84 : vector<10x128xf32>
    %cst_65 = arith.constant 0.000000e+00 : f32
    %86 = vector.broadcast %cst_65 : f32 to vector<10x128xf32>
    %87 = arith.maximumf %85, %86 : vector<10x128xf32>
    %c0_66 = arith.constant 0 : index
    %c0_67 = arith.constant 0 : index
    %88 = vector.load %arg25[%c0_66, %c0_67] : memref<1x128xf32, #tpu.memory_space<vmem>>, vector<1x128xf32>
    %89 = vector.broadcast %88 : vector<1x128xf32> to vector<10x128xf32>
    %90 = arith.mulf %87, %89 : vector<10x128xf32>
    %c0_68 = arith.constant 0 : index
    %c0_69 = arith.constant 0 : index
    %91 = vector.load %arg26[%c0_68, %c0_69] : memref<1x128xf32, #tpu.memory_space<vmem>>, vector<1x128xf32>
    %92 = vector.broadcast %91 : vector<1x128xf32> to vector<10x128xf32>
    %93 = arith.addf %90, %92 : vector<10x128xf32>
    %94 = arith.truncf %93 : vector<10x128xf32> to vector<10x128xbf16>
    %cst_70 = arith.constant dense<0.000000e+00> : vector<10x128xf32>
    %95 = tpu.matmul %0, %94, %cst_70 {dimension_numbers = #tpu.dot_dimension_numbers<[1], [0], [0], [1], [0, 0, 1, 1], [], []>} : vector<10x10xbf16>, vector<10x128xbf16>, vector<10x128xf32> -> vector<10x128xf32>
    %96 = arith.addf %95, %93 : vector<10x128xf32>
    %c0_71 = arith.constant 0 : index
    %c0_72 = arith.constant 0 : index
    %97 = vector.load %arg27[%c0_71, %c0_72] : memref<128x128xf32, #tpu.memory_space<vmem>>, vector<128x128xf32>
    %cst_73 = arith.constant dense<0.000000e+00> : vector<10x128xf32>
    %98 = tpu.matmul %96, %97, %cst_73 {dimension_numbers = #tpu.dot_dimension_numbers<[1], [0], [0], [1], [0, 0, 1, 1], [], []>} : vector<10x128xf32>, vector<128x128xf32>, vector<10x128xf32> -> vector<10x128xf32>
    %c0_74 = arith.constant 0 : index
    %c0_75 = arith.constant 0 : index
    %99 = vector.load %arg28[%c0_74, %c0_75] : memref<1x128xf32, #tpu.memory_space<vmem>>, vector<1x128xf32>
    %100 = vector.broadcast %99 : vector<1x128xf32> to vector<10x128xf32>
    %101 = arith.addf %98, %100 : vector<10x128xf32>
    %cst_76 = arith.constant 0.000000e+00 : f32
    %102 = vector.broadcast %cst_76 : f32 to vector<10x128xf32>
    %103 = arith.maximumf %101, %102 : vector<10x128xf32>
    %c0_77 = arith.constant 0 : index
    %c0_78 = arith.constant 0 : index
    %104 = vector.load %arg29[%c0_77, %c0_78] : memref<128x128xf32, #tpu.memory_space<vmem>>, vector<128x128xf32>
    %cst_79 = arith.constant dense<0.000000e+00> : vector<10x128xf32>
    %105 = tpu.matmul %103, %104, %cst_79 {dimension_numbers = #tpu.dot_dimension_numbers<[1], [0], [0], [1], [0, 0, 1, 1], [], []>} : vector<10x128xf32>, vector<128x128xf32>, vector<10x128xf32> -> vector<10x128xf32>
    %c0_80 = arith.constant 0 : index
    %c0_81 = arith.constant 0 : index
    %106 = vector.load %arg30[%c0_80, %c0_81] : memref<1x128xf32, #tpu.memory_space<vmem>>, vector<1x128xf32>
    %107 = vector.broadcast %106 : vector<1x128xf32> to vector<10x128xf32>
    %108 = arith.addf %105, %107 : vector<10x128xf32>
    %cst_82 = arith.constant 0.000000e+00 : f32
    %109 = vector.broadcast %cst_82 : f32 to vector<10x128xf32>
    %110 = arith.maximumf %108, %109 : vector<10x128xf32>
    %c0_83 = arith.constant 0 : index
    %c0_84 = arith.constant 0 : index
    %111 = vector.load %arg31[%c0_83, %c0_84] : memref<1x128xf32, #tpu.memory_space<vmem>>, vector<1x128xf32>
    %112 = vector.broadcast %111 : vector<1x128xf32> to vector<10x128xf32>
    %113 = arith.mulf %110, %112 : vector<10x128xf32>
    %c0_85 = arith.constant 0 : index
    %c0_86 = arith.constant 0 : index
    %114 = vector.load %arg32[%c0_85, %c0_86] : memref<1x128xf32, #tpu.memory_space<vmem>>, vector<1x128xf32>
    %115 = vector.broadcast %114 : vector<1x128xf32> to vector<10x128xf32>
    %116 = arith.addf %113, %115 : vector<10x128xf32>
    %c0_87 = arith.constant 0 : index
    %c0_88 = arith.constant 0 : index
    %117 = vector.load %arg2[%c0_87, %c0_88] : memref<2x10xf32, #tpu.memory_space<vmem>>, vector<2x10xf32>
    %cst_89 = arith.constant dense<0.000000e+00> : vector<2x128xf32>
    %118 = tpu.matmul %117, %116, %cst_89 {dimension_numbers = #tpu.dot_dimension_numbers<[1], [0], [0], [1], [0, 0, 1, 1], [], []>} : vector<2x10xf32>, vector<10x128xf32>, vector<2x128xf32> -> vector<2x128xf32>
    %c0_90 = arith.constant 0 : index
    %c0_91 = arith.constant 0 : index
    %119 = vector.load %arg33[%c0_90, %c0_91] : memref<2x128xf32, #tpu.memory_space<vmem>>, vector<2x128xf32>
    tpu.vector_store %arg33[%c0_90, %c0_91], %118 {strides = array<i32>} : memref<2x128xf32, #tpu.memory_space<vmem>>, vector<2x128xf32>,
    return
  }
}

module attributes {stable_mosaic.version = 11 : i64} {
  func.func @_head_kernel(%arg0: memref<2x128xf32, #tpu.memory_space<vmem>>, %arg1: memref<2x625xf32, #tpu.memory_space<vmem>>, %arg2: memref<128x512xbf16, #tpu.memory_space<vmem>>, %arg3: memref<1x512xf32, #tpu.memory_space<vmem>>, %arg4: memref<512x1024xbf16, #tpu.memory_space<vmem>>, %arg5: memref<625x1024xbf16, #tpu.memory_space<vmem>>, %arg6: memref<1x1024xf32, #tpu.memory_space<vmem>>, %arg7: memref<1024x1024xbf16, #tpu.memory_space<vmem>>, %arg8: memref<1x1024xf32, #tpu.memory_space<vmem>>, %arg9: memref<1024x512xbf16, #tpu.memory_space<vmem>>, %arg10: memref<1x512xf32, #tpu.memory_space<vmem>>, %arg11: memref<512x1xbf16, #tpu.memory_space<vmem>>, %arg12: memref<1x1xf32, #tpu.memory_space<vmem>>, %arg13: memref<2x1xf32, #tpu.memory_space<vmem>>) attributes {dimension_semantics = [], scalar_prefetch = 0 : i64, scratch_operands = 0 : i64, tpu.core_type = #tpu.core_type<tc>} {
    %c0 = arith.constant 0 : index
    %c0_0 = arith.constant 0 : index
    %0 = vector.load %arg0[%c0, %c0_0] : memref<2x128xf32, #tpu.memory_space<vmem>>, vector<2x128xf32>
    %1 = arith.truncf %0 : vector<2x128xf32> to vector<2x128xbf16>
    %c0_1 = arith.constant 0 : index
    %c0_2 = arith.constant 0 : index
    %2 = vector.load %arg2[%c0_1, %c0_2] : memref<128x512xbf16, #tpu.memory_space<vmem>>, vector<128x512xbf16>
    %cst = arith.constant dense<0.000000e+00> : vector<2x512xf32>
    %3 = tpu.matmul %1, %2, %cst {dimension_numbers = #tpu.dot_dimension_numbers<[1], [0], [0], [1], [0, 0, 1, 1], [], []>} : vector<2x128xbf16>, vector<128x512xbf16>, vector<2x512xf32> -> vector<2x512xf32>
    %c0_3 = arith.constant 0 : index
    %c0_4 = arith.constant 0 : index
    %4 = vector.load %arg3[%c0_3, %c0_4] : memref<1x512xf32, #tpu.memory_space<vmem>>, vector<1x512xf32>
    %5 = vector.broadcast %4 : vector<1x512xf32> to vector<2x512xf32>
    %6 = arith.addf %3, %5 : vector<2x512xf32>
    %cst_5 = arith.constant 0.000000e+00 : f32
    %7 = vector.broadcast %cst_5 : f32 to vector<2x512xf32>
    %8 = arith.maximumf %6, %7 : vector<2x512xf32>
    %9 = arith.truncf %8 : vector<2x512xf32> to vector<2x512xbf16>
    %c0_6 = arith.constant 0 : index
    %c0_7 = arith.constant 0 : index
    %10 = vector.load %arg4[%c0_6, %c0_7] : memref<512x1024xbf16, #tpu.memory_space<vmem>>, vector<512x1024xbf16>
    %cst_8 = arith.constant dense<0.000000e+00> : vector<2x1024xf32>
    %11 = tpu.matmul %9, %10, %cst_8 {dimension_numbers = #tpu.dot_dimension_numbers<[1], [0], [0], [1], [0, 0, 1, 1], [], []>} : vector<2x512xbf16>, vector<512x1024xbf16>, vector<2x1024xf32> -> vector<2x1024xf32>
    %c0_9 = arith.constant 0 : index
    %c0_10 = arith.constant 0 : index
    %12 = vector.load %arg1[%c0_9, %c0_10] : memref<2x625xf32, #tpu.memory_space<vmem>>, vector<2x625xf32>
    %13 = arith.truncf %12 : vector<2x625xf32> to vector<2x625xbf16>
    %c0_11 = arith.constant 0 : index
    %c0_12 = arith.constant 0 : index
    %14 = vector.load %arg5[%c0_11, %c0_12] : memref<625x1024xbf16, #tpu.memory_space<vmem>>, vector<625x1024xbf16>
    %cst_13 = arith.constant dense<0.000000e+00> : vector<2x1024xf32>
    %15 = tpu.matmul %13, %14, %cst_13 {dimension_numbers = #tpu.dot_dimension_numbers<[1], [0], [0], [1], [0, 0, 1, 1], [], []>} : vector<2x625xbf16>, vector<625x1024xbf16>, vector<2x1024xf32> -> vector<2x1024xf32>
    %16 = arith.addf %11, %15 : vector<2x1024xf32>
    %c0_14 = arith.constant 0 : index
    %c0_15 = arith.constant 0 : index
    %17 = vector.load %arg6[%c0_14, %c0_15] : memref<1x1024xf32, #tpu.memory_space<vmem>>, vector<1x1024xf32>
    %18 = vector.broadcast %17 : vector<1x1024xf32> to vector<2x1024xf32>
    %19 = arith.addf %16, %18 : vector<2x1024xf32>
    %cst_16 = arith.constant 0.000000e+00 : f32
    %20 = vector.broadcast %cst_16 : f32 to vector<2x1024xf32>
    %21 = arith.maximumf %19, %20 : vector<2x1024xf32>
    %22 = arith.truncf %21 : vector<2x1024xf32> to vector<2x1024xbf16>
    %c0_17 = arith.constant 0 : index
    %c0_18 = arith.constant 0 : index
    %23 = vector.load %arg7[%c0_17, %c0_18] : memref<1024x1024xbf16, #tpu.memory_space<vmem>>, vector<1024x1024xbf16>
    %cst_19 = arith.constant dense<0.000000e+00> : vector<2x1024xf32>
    %24 = tpu.matmul %22, %23, %cst_19 {dimension_numbers = #tpu.dot_dimension_numbers<[1], [0], [0], [1], [0, 0, 1, 1], [], []>} : vector<2x1024xbf16>, vector<1024x1024xbf16>, vector<2x1024xf32> -> vector<2x1024xf32>
    %c0_20 = arith.constant 0 : index
    %c0_21 = arith.constant 0 : index
    %25 = vector.load %arg8[%c0_20, %c0_21] : memref<1x1024xf32, #tpu.memory_space<vmem>>, vector<1x1024xf32>
    %26 = vector.broadcast %25 : vector<1x1024xf32> to vector<2x1024xf32>
    %27 = arith.addf %24, %26 : vector<2x1024xf32>
    %cst_22 = arith.constant 0.000000e+00 : f32
    %28 = vector.broadcast %cst_22 : f32 to vector<2x1024xf32>
    %29 = arith.maximumf %27, %28 : vector<2x1024xf32>
    %30 = arith.truncf %29 : vector<2x1024xf32> to vector<2x1024xbf16>
    %c0_23 = arith.constant 0 : index
    %c0_24 = arith.constant 0 : index
    %31 = vector.load %arg9[%c0_23, %c0_24] : memref<1024x512xbf16, #tpu.memory_space<vmem>>, vector<1024x512xbf16>
    %cst_25 = arith.constant dense<0.000000e+00> : vector<2x512xf32>
    %32 = tpu.matmul %30, %31, %cst_25 {dimension_numbers = #tpu.dot_dimension_numbers<[1], [0], [0], [1], [0, 0, 1, 1], [], []>} : vector<2x1024xbf16>, vector<1024x512xbf16>, vector<2x512xf32> -> vector<2x512xf32>
    %c0_26 = arith.constant 0 : index
    %c0_27 = arith.constant 0 : index
    %33 = vector.load %arg10[%c0_26, %c0_27] : memref<1x512xf32, #tpu.memory_space<vmem>>, vector<1x512xf32>
    %34 = vector.broadcast %33 : vector<1x512xf32> to vector<2x512xf32>
    %35 = arith.addf %32, %34 : vector<2x512xf32>
    %cst_28 = arith.constant 0.000000e+00 : f32
    %36 = vector.broadcast %cst_28 : f32 to vector<2x512xf32>
    %37 = arith.maximumf %35, %36 : vector<2x512xf32>
    %38 = arith.truncf %37 : vector<2x512xf32> to vector<2x512xbf16>
    %c0_29 = arith.constant 0 : index
    %c0_30 = arith.constant 0 : index
    %39 = vector.load %arg11[%c0_29, %c0_30] : memref<512x1xbf16, #tpu.memory_space<vmem>>, vector<512x1xbf16>
    %cst_31 = arith.constant dense<0.000000e+00> : vector<2x1xf32>
    %40 = tpu.matmul %38, %39, %cst_31 {dimension_numbers = #tpu.dot_dimension_numbers<[1], [0], [0], [1], [0, 0, 1, 1], [], []>} : vector<2x512xbf16>, vector<512x1xbf16>, vector<2x1xf32> -> vector<2x1xf32>
    %c0_32 = arith.constant 0 : index
    %c0_33 = arith.constant 0 : index
    %41 = vector.load %arg12[%c0_32, %c0_33] : memref<1x1xf32, #tpu.memory_space<vmem>>, vector<1x1xf32>
    %42 = vector.broadcast %41 : vector<1x1xf32> to vector<2x1xf32>
    %43 = arith.addf %40, %42 : vector<2x1xf32>
    %c0_34 = arith.constant 0 : index
    %c0_35 = arith.constant 0 : index
    %44 = vector.load %arg13[%c0_34, %c0_35] : memref<2x1xf32, #tpu.memory_space<vmem>>, vector<2x1xf32>
    tpu.vector_store %arg13[%c0_34, %c0_35], %43 {strides = array<i32>} : memref<2x1xf32, #tpu.memory_space<vmem>>, vector<2x1xf32>,
    return
  }
}

</mosaic_0001>

<llo_original>
// kernel: forward.2
$region0: #{forward.2}
  #allocation0 [shape = 'u32[]', space=smem, size = 0x4, offset = 0x4, fixed_abs, tag = 'smem constant byte address 0x4 - core index']
  #allocation1 [shape = 'u32[72,128]{1,0:T(1,128)}', space=vmem, size = 0x9000, scoped, tag = 'internal scratch']
  %s0 = inlined_call_operand.smem [shape: u32[34], index: -1, kind: input, shape index: {}]
  %s1 = sld [smem:[%s0]]
  %s2 = scalar_lea.smem %s0, 1
  %s3 = sld [smem:[%s2]]
  %s4 = scalar_lea.smem %s0, 2
  %s5 = sld [smem:[%s4]]
  %s6 = scalar_lea.smem %s0, 3
  %s7 = sld [smem:[%s6]]
  %s8 = scalar_lea.smem %s0, 4
  %s9 = sld [smem:[%s8]]
  %s10 = scalar_lea.smem %s0, 5
  %s11 = sld [smem:[%s10]]
  %s12 = scalar_lea.smem %s0, 6
  %s13 = sld [smem:[%s12]]
  %s14 = scalar_lea.smem %s0, 7
  %s15 = sld [smem:[%s14]]
  %s16 = scalar_lea.smem %s0, 8
  %s17 = sld [smem:[%s16]]
  %s18 = scalar_lea.smem %s0, 9
  %s19 = sld [smem:[%s18]]
  %s20 = scalar_lea.smem %s0, 10
  %s21 = sld [smem:[%s20]]
  %s22 = scalar_lea.smem %s0, 11
  %s23 = sld [smem:[%s22]]
  %s24 = scalar_lea.smem %s0, 12
  %s25 = sld [smem:[%s24]]
  %s26 = scalar_lea.smem %s0, 13
  %s27 = sld [smem:[%s26]]
  %s28 = scalar_lea.smem %s0, 14
  %s29 = sld [smem:[%s28]]
  %s30 = scalar_lea.smem %s0, 15
  %s31 = sld [smem:[%s30]]
  %s32 = scalar_lea.smem %s0, 16
  %s33 = sld [smem:[%s32]]
  %s34 = scalar_lea.smem %s0, 17
  %s35 = sld [smem:[%s34]]
  %s36 = scalar_lea.smem %s0, 18
  %s37 = sld [smem:[%s36]]
  %s38 = scalar_lea.smem %s0, 19
  %s39 = sld [smem:[%s38]]
  %s40 = scalar_lea.smem %s0, 20
  %s41 = sld [smem:[%s40]]
  %s42 = scalar_lea.smem %s0, 21
  %s43 = sld [smem:[%s42]]
  %s44 = scalar_lea.smem %s0, 22
  %s45 = sld [smem:[%s44]]
  %s46 = scalar_lea.smem %s0, 23
  %s47 = sld [smem:[%s46]]
  %s48 = scalar_lea.smem %s0, 24
  %s49 = sld [smem:[%s48]]
  %s50 = scalar_lea.smem %s0, 25
  %s51 = sld [smem:[%s50]]
  %s52 = scalar_lea.smem %s0, 26
  %s53 = sld [smem:[%s52]]
  %s54 = scalar_lea.smem %s0, 27
  %s55 = sld [smem:[%s54]]
  %s56 = scalar_lea.smem %s0, 28
  %s57 = sld [smem:[%s56]]
  %s58 = scalar_lea.smem %s0, 29
  %s59 = sld [smem:[%s58]]
  %s60 = scalar_lea.smem %s0, 30
  %s61 = sld [smem:[%s60]]
  %s62 = scalar_lea.smem %s0, 31
  %s63 = sld [smem:[%s62]]
  %s64 = scalar_lea.smem %s0, 32
  %s65 = sld [smem:[%s64]]
  %s66 = scalar_lea.smem %s0, 33
  %s67 = sld [smem:[%s66]]
  %s68 = sld [smem:[#allocation0]]
  $region270: #{forward.2} parent=0
    _
  %s70 = ssub.s32 1, %s68
  %s71 = scalar_select 0, %s70, %s68
  $region1: #{forward.2} parent=0
    #allocation2 [shape = 'u8[4096]{0}', space=vmem, size = 0x1000, scoped, tag = 'input window, operand 0, single buffered']
    #allocation3 [shape = 's32[1]{0}', space=sflag, size = 0x4, scoped, tag = 'scoped memory for forward.2']
    #allocation4 [shape = 'u8[1024]{0}', space=vmem, size = 0x400, scoped, tag = 'input window, operand 2, single buffered']
    #allocation5 [shape = 's32[1]{0}', space=sflag, size = 0x4, scoped, tag = 'scoped memory for forward.2']
    #allocation6 [shape = 'u8[65536]{0}', space=vmem, size = 0x10000, scoped, tag = 'input window, operand 3, single buffered']
    #allocation7 [shape = 'u8[512]{0}', space=vmem, size = 0x400, scoped, tag = 'input window, operand 4, single buffered']
    #allocation8 [shape = 's32[1]{0}', space=sflag, size = 0x4, scoped, tag = 'scoped memory for forward.2']
    #allocation9 [shape = 'u8[65536]{0}', space=vmem, size = 0x10000, scoped, tag = 'input window, operand 5, single buffered']
    #allocation10 [shape = 'u8[512]{0}', space=vmem, size = 0x400, scoped, tag = 'input window, operand 6, single buffered']
    #allocation11 [shape = 's32[1]{0}', space=sflag, size = 0x4, scoped, tag = 'scoped memory for forward.2']
    #allocation12 [shape = 'u8[512]{0}', space=vmem, size = 0x400, scoped, tag = 'input window, operand 7, single buffered']
    #allocation13 [shape = 'u8[512]{0}', space=vmem, size = 0x400, scoped, tag = 'input window, operand 8, single buffered']
    #allocation14 [shape = 's32[1]{0}', space=sflag, size = 0x4, scoped, tag = 'scoped memory for forward.2']
    #allocation15 [shape = 'u8[65536]{0}', space=vmem, size = 0x10000, scoped, tag = 'input window, operand 9, single buffered']
    #allocation16 [shape = 'u8[512]{0}', space=vmem, size = 0x400, scoped, tag = 'input window, operand 10, single buffered']
    #allocation17 [shape = 's32[1]{0}', space=sflag, size = 0x4, scoped, tag = 'scoped memory for forward.2']
    #allocation18 [shape = 'u8[65536]{0}', space=vmem, size = 0x10000, scoped, tag = 'input window, operand 11, single buffered']
    #allocation19 [shape = 'u8[512]{0}', space=vmem, size = 0x400, scoped, tag = 'input window, operand 12, single buffered']
    #allocation20 [shape = 's32[1]{0}', space=sflag, size = 0x4, scoped, tag = 'scoped memory for forward.2']
    #allocation21 [shape = 'u8[512]{0}', space=vmem, size = 0x400, scoped, tag = 'input window, operand 13, single buffered']
    #allocation22 [shape = 'u8[512]{0}', space=vmem, size = 0x400, scoped, tag = 'input window, operand 14, single buffered']
    #allocation23 [shape = 's32[1]{0}', space=sflag, size = 0x4, scoped, tag = 'scoped memory for forward.2']
    #allocation24 [shape = 'u8[65536]{0}', space=vmem, size = 0x10000, scoped, tag = 'input window, operand 15, single buffered']
    #allocation25 [shape = 'u8[512]{0}', space=vmem, size = 0x400, scoped, tag = 'input window, operand 16, single buffered']
    #allocation26 [shape = 's32[1]{0}', space=sflag, size = 0x4, scoped, tag = 'scoped memory for forward.2']
    #allocation27 [shape = 'u8[65536]{0}', space=vmem, size = 0x10000, scoped, tag = 'input window, operand 17, single buffered']
    #allocation28 [shape = 'u8[512]{0}', space=vmem, size = 0x400, scoped, tag = 'input window, operand 18, single buffered']
    #allocation29 [shape = 's32[1]{0}', space=sflag, size = 0x4, scoped, tag = 'scoped memory for forward.2']
    #allocation30 [shape = 'u8[512]{0}', space=vmem, size = 0x400, scoped, tag = 'input window, operand 19, single buffered']
    #allocation31 [shape = 'u8[512]{0}', space=vmem, size = 0x400, scoped, tag = 'input window, operand 20, single buffered']
    #allocation32 [shape = 's32[1]{0}', space=sflag, size = 0x4, scoped, tag = 'scoped memory for forward.2']
    #allocation33 [shape = 'u8[65536]{0}', space=vmem, size = 0x10000, scoped, tag = 'input window, operand 21, single buffered']
    #allocation34 [shape = 'u8[512]{0}', space=vmem, size = 0x400, scoped, tag = 'input window, operand 22, single buffered']
    #allocation35 [shape = 's32[1]{0}', space=sflag, size = 0x4, scoped, tag = 'scoped memory for forward.2']
    #allocation36 [shape = 'u8[65536]{0}', space=vmem, size = 0x10000, scoped, tag = 'input window, operand 23, single buffered']
    #allocation37 [shape = 'u8[512]{0}', space=vmem, size = 0x400, scoped, tag = 'input window, operand 24, single buffered']
    #allocation38 [shape = 's32[1]{0}', space=sflag, size = 0x4, scoped, tag = 'scoped memory for forward.2']
    #allocation39 [shape = 'u8[512]{0}', space=vmem, size = 0x400, scoped, tag = 'input window, operand 25, single buffered']
    #allocation40 [shape = 'u8[512]{0}', space=vmem, size = 0x400, scoped, tag = 'input window, operand 26, single buffered']
    #allocation41 [shape = 's32[1]{0}', space=sflag, size = 0x4, scoped, tag = 'scoped memory for forward.2']
    #allocation42 [shape = 'u8[65536]{0}', space=vmem, size = 0x10000, scoped, tag = 'input window, operand 27, single buffered']
    #allocation43 [shape = 'u8[512]{0}', space=vmem, size = 0x400, scoped, tag = 'input window, operand 28, single buffered']
    #allocation44 [shape = 's32[1]{0}', space=sflag, size = 0x4, scoped, tag = 'scoped memory for forward.2']
    #allocation45 [shape = 'u8[65536]{0}', space=vmem, size = 0x10000, scoped, tag = 'input window, operand 29, single buffered']
    #allocation46 [shape = 'u8[512]{0}', space=vmem, size = 0x400, scoped, tag = 'input window, operand 30, single buffered']
    #allocation47 [shape = 's32[1]{0}', space=sflag, size = 0x4, scoped, tag = 'scoped memory for forward.2']
    #allocation48 [shape = 'u8[512]{0}', space=vmem, size = 0x400, scoped, tag = 'input window, operand 31, single buffered']
    #allocation49 [shape = 'u8[512]{0}', space=vmem, size = 0x400, scoped, tag = 'input window, operand 32, single buffered']
    #allocation50 [shape = 's32[1]{0}', space=sflag, size = 0x4, scoped, tag = 'scoped memory for forward.2']
    %72 = vsyncpa [#allocation3], 0
    %73 = vsyncpa [#allocation5], 0
    %74 = vsyncpa [#allocation8], 0
    %75 = vsyncpa [#allocation11], 0
    %76 = vsyncpa [#allocation14], 0
    %77 = vsyncpa [#allocation17], 0
    %78 = vsyncpa [#allocation20], 0
    %79 = vsyncpa [#allocation23], 0
    %80 = vsyncpa [#allocation26], 0
    %81 = vsyncpa [#allocation29], 0
    %82 = vsyncpa [#allocation32], 0
    %83 = vsyncpa [#allocation35], 0
    %84 = vsyncpa [#allocation38], 0
    %85 = vsyncpa [#allocation41], 0
    %86 = vsyncpa [#allocation44], 0
    %87 = vsyncpa [#allocation47], 0
    %88 = vsyncpa [#allocation50], 0
    // Predicated region
    $region2: #{forward.2} parent=1 // pred_check
      _
    $region3: #{forward.2} parent=1 // pred_check_branch
      %90 = sbr.rel (0) target = $region5
    $region4: #{forward.2} parent=1 // pred_region
      %92 = vsyncadd [#allocation3], 0
      %s93 = sshll.u32 %s1, 4
      %s94 = int_to_ptr.hbm [resolvable:$true] %s93
      %s95 = sshll.u32 [#allocation2], 4
      %s96 = int_to_ptr.vmem [resolvable:$true] %s95
      %101 = dma.hbm_to_vmem [thread:$0]  %s94, 128, %s96, [#allocation3], 64, 64, 4
    $region5: #{forward.2} parent=1 // pred_fallthru
      _
    // Predicated region
    $region6: #{forward.2} parent=1 // pred_check
      _
    $region7: #{forward.2} parent=1 // pred_check_branch
      %103 = sbr.rel (0) target = $region9
    $region8: #{forward.2} parent=1 // pred_region
      _
    $region9: #{forward.2} parent=1 // pred_fallthru
      _
    // Predicated region
    $region10: #{forward.2} parent=1 // pred_check
      _
    $region11: #{forward.2} parent=1 // pred_check_branch
      %105 = sbr.rel (0) target = $region13
    $region12: #{forward.2} parent=1 // pred_region
      %107 = vsyncadd [#allocation5], 0
      %s109 = sshll.u32 %s5, 4
      %s110 = int_to_ptr.hbm [resolvable:$true] %s109
      %s111 = sshll.u32 [#allocation4], 4
      %s112 = int_to_ptr.vmem [resolvable:$true] %s111
      %114 = dma.hbm_to_vmem [thread:$0]  %s110, 32, %s112, [#allocation5]
    $region13: #{forward.2} parent=1 // pred_fallthru
      _
    // Predicated region
    $region14: #{forward.2} parent=1 // pred_check
      _
    $region15: #{forward.2} parent=1 // pred_check_branch
      %116 = sbr.rel (0) target = $region17
    $region16: #{forward.2} parent=1 // pred_region
      %118 = vsyncadd [#allocation5], 0
      %s119 = sshll.u32 %s7, 4
      %s120 = int_to_ptr.hbm [resolvable:$true] %s119
      %s121 = sshll.u32 [#allocation6], 4
      %s122 = int_to_ptr.vmem [resolvable:$true] %s121
      %127 = dma.hbm_to_vmem [thread:$0]  %s120, 2048, %s122, [#allocation5], 128, 128, 8
    $region17: #{forward.2} parent=1 // pred_fallthru
      _
    // Predicated region
    $region18: #{forward.2} parent=1 // pred_check
      _
    $region19: #{forward.2} parent=1 // pred_check_branch
      %129 = sbr.rel (0) target = $region21
    $region20: #{forward.2} parent=1 // pred_region
      %131 = vsyncadd [#allocation8], 0
      %s133 = sshll.u32 %s9, 4
      %s134 = int_to_ptr.hbm [resolvable:$true] %s133
      %s135 = sshll.u32 [#allocation7], 4
      %s136 = int_to_ptr.vmem [resolvable:$true] %s135
      %138 = dma.hbm_to_vmem [thread:$0]  %s134, 16, %s136, [#allocation8]
    $region21: #{forward.2} parent=1 // pred_fallthru
      _
    // Predicated region
    $region22: #{forward.2} parent=1 // pred_check
      _
    $region23: #{forward.2} parent=1 // pred_check_branch
      %140 = sbr.rel (0) target = $region25
    $region24: #{forward.2} parent=1 // pred_region
      %142 = vsyncadd [#allocation8], 0
      %s143 = sshll.u32 %s11, 4
      %s144 = int_to_ptr.hbm [resolvable:$true] %s143
      %s145 = sshll.u32 [#allocation9], 4
      %s146 = int_to_ptr.vmem [resolvable:$true] %s145
      %151 = dma.hbm_to_vmem [thread:$0]  %s144, 2048, %s146, [#allocation8], 128, 128, 8
    $region25: #{forward.2} parent=1 // pred_fallthru
      _
    // Predicated region
    $region26: #{forward.2} parent=1 // pred_check
      _
    $region27: #{forward.2} parent=1 // pred_check_branch
      %153 = sbr.rel (0) target = $region29
    $region28: #{forward.2} parent=1 // pred_region
      %155 = vsyncadd [#allocation11], 0
      %s157 = sshll.u32 %s13, 4
      %s158 = int_to_ptr.hbm [resolvable:$true] %s157
      %s159 = sshll.u32 [#allocation10], 4
      %s160 = int_to_ptr.vmem [resolvable:$true] %s159
      %162 = dma.hbm_to_vmem [thread:$0]  %s158, 16, %s160, [#allocation11]
    $region29: #{forward.2} parent=1 // pred_fallthru
      _
    // Predicated region
    $region30: #{forward.2} parent=1 // pred_check
      _
    $region31: #{forward.2} parent=1 // pred_check_branch
      %164 = sbr.rel (0) target = $region33
    $region32: #{forward.2} parent=1 // pred_region
      %166 = vsyncadd [#allocation11], 0
      %s168 = sshll.u32 %s15, 4
      %s169 = int_to_ptr.hbm [resolvable:$true] %s168
      %s170 = sshll.u32 [#allocation12], 4
      %s171 = int_to_ptr.vmem [resolvable:$true] %s170
      %173 = dma.hbm_to_vmem [thread:$0]  %s169, 16, %s171, [#allocation11]
    $region33: #{forward.2} parent=1 // pred_fallthru
      _
    // Predicated region
    $region34: #{forward.2} parent=1 // pred_check
      _
    $region35: #{forward.2} parent=1 // pred_check_branch
      %175 = sbr.rel (0) target = $region37
    $region36: #{forward.2} parent=1 // pred_region
      %177 = vsyncadd [#allocation14], 0
      %s179 = sshll.u32 %s17, 4
      %s180 = int_to_ptr.hbm [resolvable:$true] %s179
      %s181 = sshll.u32 [#allocation13], 4
      %s182 = int_to_ptr.vmem [resolvable:$true] %s181
      %184 = dma.hbm_to_vmem [thread:$0]  %s180, 16, %s182, [#allocation14]
    $region37: #{forward.2} parent=1 // pred_fallthru
      _
    // Predicated region
    $region38: #{forward.2} parent=1 // pred_check
      _
    $region39: #{forward.2} parent=1 // pred_check_branch
      %186 = sbr.rel (0) target = $region41
    $region40: #{forward.2} parent=1 // pred_region
      %188 = vsyncadd [#allocation14], 0
      %s189 = sshll.u32 %s19, 4
      %s190 = int_to_ptr.hbm [resolvable:$true] %s189
      %s191 = sshll.u32 [#allocation15], 4
      %s192 = int_to_ptr.vmem [resolvable:$true] %s191
      %197 = dma.hbm_to_vmem [thread:$0]  %s190, 2048, %s192, [#allocation14], 128, 128, 8
    $region41: #{forward.2} parent=1 // pred_fallthru
      _
    // Predicated region
    $region42: #{forward.2} parent=1 // pred_check
      _
    $region43: #{forward.2} parent=1 // pred_check_branch
      %199 = sbr.rel (0) target = $region45
    $region44: #{forward.2} parent=1 // pred_region
      %201 = vsyncadd [#allocation17], 0
      %s203 = sshll.u32 %s21, 4
      %s204 = int_to_ptr.hbm [resolvable:$true] %s203
      %s205 = sshll.u32 [#allocation16], 4
      %s206 = int_to_ptr.vmem [resolvable:$true] %s205
      %208 = dma.hbm_to_vmem [thread:$0]  %s204, 16, %s206, [#allocation17]
    $region45: #{forward.2} parent=1 // pred_fallthru
      _
    // Predicated region
    $region46: #{forward.2} parent=1 // pred_check
      _
    $region47: #{forward.2} parent=1 // pred_check_branch
      %210 = sbr.rel (0) target = $region49
    $region48: #{forward.2} parent=1 // pred_region
      %212 = vsyncadd [#allocation17], 0
      %s213 = sshll.u32 %s23, 4
      %s214 = int_to_ptr.hbm [resolvable:$true] %s213
      %s215 = sshll.u32 [#allocation18], 4
      %s216 = int_to_ptr.vmem [resolvable:$true] %s215
      %221 = dma.hbm_to_vmem [thread:$0]  %s214, 2048, %s216, [#allocation17], 128, 128, 8
    $region49: #{forward.2} parent=1 // pred_fallthru
      _
    // Predicated region
    $region50: #{forward.2} parent=1 // pred_check
      _
    $region51: #{forward.2} parent=1 // pred_check_branch
      %223 = sbr.rel (0) target = $region53
    $region52: #{forward.2} parent=1 // pred_region
      %225 = vsyncadd [#allocation20], 0
      %s227 = sshll.u32 %s25, 4
      %s228 = int_to_ptr.hbm [resolvable:$true] %s227
      %s229 = sshll.u32 [#allocation19], 4
      %s230 = int_to_ptr.vmem [resolvable:$true] %s229
      %232 = dma.hbm_to_vmem [thread:$0]  %s228, 16, %s230, [#allocation20]
    $region53: #{forward.2} parent=1 // pred_fallthru
      _
    // Predicated region
    $region54: #{forward.2} parent=1 // pred_check
      _
    $region55: #{forward.2} parent=1 // pred_check_branch
      %234 = sbr.rel (0) target = $region57
    $region56: #{forward.2} parent=1 // pred_region
      %236 = vsyncadd [#allocation20], 0
      %s238 = sshll.u32 %s27, 4
      %s239 = int_to_ptr.hbm [resolvable:$true] %s238
      %s240 = sshll.u32 [#allocation21], 4
      %s241 = int_to_ptr.vmem [resolvable:$true] %s240
      %243 = dma.hbm_to_vmem [thread:$0]  %s239, 16, %s241, [#allocation20]
    $region57: #{forward.2} parent=1 // pred_fallthru
      _
    // Predicated region
    $region58: #{forward.2} parent=1 // pred_check
      _
    $region59: #{forward.2} parent=1 // pred_check_branch
      %245 = sbr.rel (0) target = $region61
    $region60: #{forward.2} parent=1 // pred_region
      %247 = vsyncadd [#allocation23], 0
      %s249 = sshll.u32 %s29, 4
      %s250 = int_to_ptr.hbm [resolvable:$true] %s249
      %s251 = sshll.u32 [#allocation22], 4
      %s252 = int_to_ptr.vmem [resolvable:$true] %s251
      %254 = dma.hbm_to_vmem [thread:$0]  %s250, 16, %s252, [#allocation23]
    $region61: #{forward.2} parent=1 // pred_fallthru
      _
    // Predicated region
    $region62: #{forward.2} parent=1 // pred_check
      _
    $region63: #{forward.2} parent=1 // pred_check_branch
      %256 = sbr.rel (0) target = $region65
    $region64: #{forward.2} parent=1 // pred_region
      %258 = vsyncadd [#allocation23], 0
      %s259 = sshll.u32 %s31, 4
      %s260 = int_to_ptr.hbm [resolvable:$true] %s259
      %s261 = sshll.u32 [#allocation24], 4
      %s262 = int_to_ptr.vmem [resolvable:$true] %s261
      %267 = dma.hbm_to_vmem [thread:$0]  %s260, 2048, %s262, [#allocation23], 128, 128, 8
    $region65: #{forward.2} parent=1 // pred_fallthru
      _
    // Predicated region
    $region66: #{forward.2} parent=1 // pred_check
      _
    $region67: #{forward.2} parent=1 // pred_check_branch
      %269 = sbr.rel (0) target = $region69
    $region68: #{forward.2} parent=1 // pred_region
      %271 = vsyncadd [#allocation26], 0
      %s273 = sshll.u32 %s33, 4
      %s274 = int_to_ptr.hbm [resolvable:$true] %s273
      %s275 = sshll.u32 [#allocation25], 4
      %s276 = int_to_ptr.vmem [resolvable:$true] %s275
      %278 = dma.hbm_to_vmem [thread:$0]  %s274, 16, %s276, [#allocation26]
    $region69: #{forward.2} parent=1 // pred_fallthru
      _
    // Predicated region
    $region70: #{forward.2} parent=1 // pred_check
      _
    $region71: #{forward.2} parent=1 // pred_check_branch
      %280 = sbr.rel (0) target = $region73
    $region72: #{forward.2} parent=1 // pred_region
      %282 = vsyncadd [#allocation26], 0
      %s283 = sshll.u32 %s35, 4
      %s284 = int_to_ptr.hbm [resolvable:$true] %s283
      %s285 = sshll.u32 [#allocation27], 4
      %s286 = int_to_ptr.vmem [resolvable:$true] %s285
      %291 = dma.hbm_to_vmem [thread:$0]  %s284, 2048, %s286, [#allocation26], 128, 128, 8
    $region73: #{forward.2} parent=1 // pred_fallthru
      _
    // Predicated region
    $region74: #{forward.2} parent=1 // pred_check
      _
    $region75: #{forward.2} parent=1 // pred_check_branch
      %293 = sbr.rel (0) target = $region77
    $region76: #{forward.2} parent=1 // pred_region
      %295 = vsyncadd [#allocation29], 0
      %s297 = sshll.u32 %s37, 4
      %s298 = int_to_ptr.hbm [resolvable:$true] %s297
      %s299 = sshll.u32 [#allocation28], 4
      %s300 = int_to_ptr.vmem [resolvable:$true] %s299
      %302 = dma.hbm_to_vmem [thread:$0]  %s298, 16, %s300, [#allocation29]
    $region77: #{forward.2} parent=1 // pred_fallthru
      _
    // Predicated region
    $region78: #{forward.2} parent=1 // pred_check
      _
    $region79: #{forward.2} parent=1 // pred_check_branch
      %304 = sbr.rel (0) target = $region81
    $region80: #{forward.2} parent=1 // pred_region
      %306 = vsyncadd [#allocation29], 0
      %s308 = sshll.u32 %s39, 4
      %s309 = int_to_ptr.hbm [resolvable:$true] %s308
      %s310 = sshll.u32 [#allocation30], 4
      %s311 = int_to_ptr.vmem [resolvable:$true] %s310
      %313 = dma.hbm_to_vmem [thread:$0]  %s309, 16, %s311, [#allocation29]
    $region81: #{forward.2} parent=1 // pred_fallthru
      _
    // Predicated region
    $region82: #{forward.2} parent=1 // pred_check
      _
    $region83: #{forward.2} parent=1 // pred_check_branch
      %315 = sbr.rel (0) target = $region85
    $region84: #{forward.2} parent=1 // pred_region
      %317 = vsyncadd [#allocation32], 0
      %s319 = sshll.u32 %s41, 4
      %s320 = int_to_ptr.hbm [resolvable:$true] %s319
      %s321 = sshll.u32 [#allocation31], 4
      %s322 = int_to_ptr.vmem [resolvable:$true] %s321
      %324 = dma.hbm_to_vmem [thread:$0]  %s320, 16, %s322, [#allocation32]
    $region85: #{forward.2} parent=1 // pred_fallthru
      _
    // Predicated region
    $region86: #{forward.2} parent=1 // pred_check
      _
    $region87: #{forward.2} parent=1 // pred_check_branch
      %326 = sbr.rel (0) target = $region89
    $region88: #{forward.2} parent=1 // pred_region
      %328 = vsyncadd [#allocation32], 0
      %s329 = sshll.u32 %s43, 4
      %s330 = int_to_ptr.hbm [resolvable:$true] %s329
      %s331 = sshll.u32 [#allocation33], 4
      %s332 = int_to_ptr.vmem [resolvable:$true] %s331
      %337 = dma.hbm_to_vmem [thread:$0]  %s330, 2048, %s332, [#allocation32], 128, 128, 8
    $region89: #{forward.2} parent=1 // pred_fallthru
      _
    // Predicated region
    $region90: #{forward.2} parent=1 // pred_check
      _
    $region91: #{forward.2} parent=1 // pred_check_branch
      %339 = sbr.rel (0) target = $region93
    $region92: #{forward.2} parent=1 // pred_region
      %341 = vsyncadd [#allocation35], 0
      %s343 = sshll.u32 %s45, 4
      %s344 = int_to_ptr.hbm [resolvable:$true] %s343
      %s345 = sshll.u32 [#allocation34], 4
      %s346 = int_to_ptr.vmem [resolvable:$true] %s345
      %348 = dma.hbm_to_vmem [thread:$0]  %s344, 16, %s346, [#allocation35]
    $region93: #{forward.2} parent=1 // pred_fallthru
      _
    // Predicated region
    $region94: #{forward.2} parent=1 // pred_check
      _
    $region95: #{forward.2} parent=1 // pred_check_branch
      %350 = sbr.rel (0) target = $region97
    $region96: #{forward.2} parent=1 // pred_region
      %352 = vsyncadd [#allocation35], 0
      %s353 = sshll.u32 %s47, 4
      %s354 = int_to_ptr.hbm [resolvable:$true] %s353
      %s355 = sshll.u32 [#allocation36], 4
      %s356 = int_to_ptr.vmem [resolvable:$true] %s355
      %361 = dma.hbm_to_vmem [thread:$0]  %s354, 2048, %s356, [#allocation35], 128, 128, 8
    $region97: #{forward.2} parent=1 // pred_fallthru
      _
    // Predicated region
    $region98: #{forward.2} parent=1 // pred_check
      _
    $region99: #{forward.2} parent=1 // pred_check_branch
      %363 = sbr.rel (0) target = $region101
    $region100: #{forward.2} parent=1 // pred_region
      %365 = vsyncadd [#allocation38], 0
      %s367 = sshll.u32 %s49, 4
      %s368 = int_to_ptr.hbm [resolvable:$true] %s367
      %s369 = sshll.u32 [#allocation37], 4
      %s370 = int_to_ptr.vmem [resolvable:$true] %s369
      %372 = dma.hbm_to_vmem [thread:$0]  %s368, 16, %s370, [#allocation38]
    $region101: #{forward.2} parent=1 // pred_fallthru
      _
    // Predicated region
    $region102: #{forward.2} parent=1 // pred_check
      _
    $region103: #{forward.2} parent=1 // pred_check_branch
      %374 = sbr.rel (0) target = $region105
    $region104: #{forward.2} parent=1 // pred_region
      %376 = vsyncadd [#allocation38], 0
      %s378 = sshll.u32 %s51, 4
      %s379 = int_to_ptr.hbm [resolvable:$true] %s378
      %s380 = sshll.u32 [#allocation39], 4
      %s381 = int_to_ptr.vmem [resolvable:$true] %s380
      %383 = dma.hbm_to_vmem [thread:$0]  %s379, 16, %s381, [#allocation38]
    $region105: #{forward.2} parent=1 // pred_fallthru
      _
    // Predicated region
    $region106: #{forward.2} parent=1 // pred_check
      _
    $region107: #{forward.2} parent=1 // pred_check_branch
      %385 = sbr.rel (0) target = $region109
    $region108: #{forward.2} parent=1 // pred_region
      %387 = vsyncadd [#allocation41], 0
      %s389 = sshll.u32 %s53, 4
      %s390 = int_to_ptr.hbm [resolvable:$true] %s389
      %s391 = sshll.u32 [#allocation40], 4
      %s392 = int_to_ptr.vmem [resolvable:$true] %s391
      %394 = dma.hbm_to_vmem [thread:$0]  %s390, 16, %s392, [#allocation41]
    $region109: #{forward.2} parent=1 // pred_fallthru
      _
    // Predicated region
    $region110: #{forward.2} parent=1 // pred_check
      _
    $region111: #{forward.2} parent=1 // pred_check_branch
      %396 = sbr.rel (0) target = $region113
    $region112: #{forward.2} parent=1 // pred_region
      %398 = vsyncadd [#allocation41], 0
      %s399 = sshll.u32 %s55, 4
      %s400 = int_to_ptr.hbm [resolvable:$true] %s399
      %s401 = sshll.u32 [#allocation42], 4
      %s402 = int_to_ptr.vmem [resolvable:$true] %s401
      %407 = dma.hbm_to_vmem [thread:$0]  %s400, 2048, %s402, [#allocation41], 128, 128, 8
    $region113: #{forward.2} parent=1 // pred_fallthru
      _
    // Predicated region
    $region114: #{forward.2} parent=1 // pred_check
      _
    $region115: #{forward.2} parent=1 // pred_check_branch
      %409 = sbr.rel (0) target = $region117
    $region116: #{forward.2} parent=1 // pred_region
      %411 = vsyncadd [#allocation44], 0
      %s413 = sshll.u32 %s57, 4
      %s414 = int_to_ptr.hbm [resolvable:$true] %s413
      %s415 = sshll.u32 [#allocation43], 4
      %s416 = int_to_ptr.vmem [resolvable:$true] %s415
      %418 = dma.hbm_to_vmem [thread:$0]  %s414, 16, %s416, [#allocation44]
    $region117: #{forward.2} parent=1 // pred_fallthru
      _
    // Predicated region
    $region118: #{forward.2} parent=1 // pred_check
      _
    $region119: #{forward.2} parent=1 // pred_check_branch
      %420 = sbr.rel (0) target = $region121
    $region120: #{forward.2} parent=1 // pred_region
      %422 = vsyncadd [#allocation44], 0
      %s423 = sshll.u32 %s59, 4
      %s424 = int_to_ptr.hbm [resolvable:$true] %s423
      %s425 = sshll.u32 [#allocation45], 4
      %s426 = int_to_ptr.vmem [resolvable:$true] %s425
      %431 = dma.hbm_to_vmem [thread:$0]  %s424, 2048, %s426, [#allocation44], 128, 128, 8
    $region121: #{forward.2} parent=1 // pred_fallthru
      _
    // Predicated region
    $region122: #{forward.2} parent=1 // pred_check
      _
    $region123: #{forward.2} parent=1 // pred_check_branch
      %433 = sbr.rel (0) target = $region125
    $region124: #{forward.2} parent=1 // pred_region
      %435 = vsyncadd [#allocation47], 0
      %s437 = sshll.u32 %s61, 4
      %s438 = int_to_ptr.hbm [resolvable:$true] %s437
      %s439 = sshll.u32 [#allocation46], 4
      %s440 = int_to_ptr.vmem [resolvable:$true] %s439
      %442 = dma.hbm_to_vmem [thread:$0]  %s438, 16, %s440, [#allocation47]
    $region125: #{forward.2} parent=1 // pred_fallthru
      _
    // Predicated region
    $region126: #{forward.2} parent=1 // pred_check
      _
    $region127: #{forward.2} parent=1 // pred_check_branch
      %444 = sbr.rel (0) target = $region129
    $region128: #{forward.2} parent=1 // pred_region
      %446 = vsyncadd [#allocation47], 0
      %s448 = sshll.u32 %s63, 4
      %s449 = int_to_ptr.hbm [resolvable:$true] %s448
      %s450 = sshll.u32 [#allocation48], 4
      %s451 = int_to_ptr.vmem [resolvable:$true] %s450
      %453 = dma.hbm_to_vmem [thread:$0]  %s449, 16, %s451, [#allocation47]
    $region129: #{forward.2} parent=1 // pred_fallthru
      _
    // Predicated region
    $region130: #{forward.2} parent=1 // pred_check
      _
    $region131: #{forward.2} parent=1 // pred_check_branch
      %455 = sbr.rel (0) target = $region133
    $region132: #{forward.2} parent=1 // pred_region
      %457 = vsyncadd [#allocation50], 0
      %s459 = sshll.u32 %s65, 4
      %s460 = int_to_ptr.hbm [resolvable:$true] %s459
      %s461 = sshll.u32 [#allocation49], 4
      %s462 = int_to_ptr.vmem [resolvable:$true] %s461
      %464 = dma.hbm_to_vmem [thread:$0]  %s460, 16, %s462, [#allocation50]
    $region133: #{forward.2} parent=1 // pred_fallthru
      _
    // Predicated region
    $region134: #{forward.2} parent=1 // pred_check
      _
    $region135: #{forward.2} parent=1 // pred_check_branch
      %466 = sbr.rel (0) target = $region137
    $region136: #{forward.2} parent=1 // pred_region
      %468 = dma.done [#allocation3], 128
    $region137: #{forward.2} parent=1 // pred_fallthru
      _
    // Predicated region
    $region138: #{forward.2} parent=1 // pred_check
      _
    $region139: #{forward.2} parent=1 // pred_check_branch
      %470 = sbr.rel (0) target = $region141
    $region140: #{forward.2} parent=1 // pred_region
      %472 = dma.done [#allocation5], 32
    $region141: #{forward.2} parent=1 // pred_fallthru
      _
    // Predicated region
    $region142: #{forward.2} parent=1 // pred_check
      _
    $region143: #{forward.2} parent=1 // pred_check_branch
      %474 = sbr.rel (0) target = $region145
    $region144: #{forward.2} parent=1 // pred_region
      %476 = dma.done [#allocation5], 2048
    $region145: #{forward.2} parent=1 // pred_fallthru
      _
    // Predicated region
    $region146: #{forward.2} parent=1 // pred_check
      _
    $region147: #{forward.2} parent=1 // pred_check_branch
      %478 = sbr.rel (0) target = $region149
    $region148: #{forward.2} parent=1 // pred_region
      %480 = dma.done [#allocation8], 16
    $region149: #{forward.2} parent=1 // pred_fallthru
      _
    // Predicated region
    $region150: #{forward.2} parent=1 // pred_check
      _
    $region151: #{forward.2} parent=1 // pred_check_branch
      %482 = sbr.rel (0) target = $region153
    $region152: #{forward.2} parent=1 // pred_region
      %484 = dma.done [#allocation8], 2048
    $region153: #{forward.2} parent=1 // pred_fallthru
      _
    // Predicated region
    $region154: #{forward.2} parent=1 // pred_check
      _
    $region155: #{forward.2} parent=1 // pred_check_branch
      %486 = sbr.rel (0) target = $region157
    $region156: #{forward.2} parent=1 // pred_region
      %488 = dma.done [#allocation11], 16
    $region157: #{forward.2} parent=1 // pred_fallthru
      _
    // Predicated region
    $region158: #{forward.2} parent=1 // pred_check
      _
    $region159: #{forward.2} parent=1 // pred_check_branch
      %490 = sbr.rel (0) target = $region161
    $region160: #{forward.2} parent=1 // pred_region
      %492 = dma.done [#allocation11], 16
    $region161: #{forward.2} parent=1 // pred_fallthru
      _
    // Predicated region
    $region162: #{forward.2} parent=1 // pred_check
      _
    $region163: #{forward.2} parent=1 // pred_check_branch
      %494 = sbr.rel (0) target = $region165
    $region164: #{forward.2} parent=1 // pred_region
      %496 = dma.done [#allocation14], 16
    $region165: #{forward.2} parent=1 // pred_fallthru
      _
    // Predicated region
    $region166: #{forward.2} parent=1 // pred_check
      _
    $region167: #{forward.2} parent=1 // pred_check_branch
      %498 = sbr.rel (0) target = $region169
    $region168: #{forward.2} parent=1 // pred_region
      %500 = dma.done [#allocation14], 2048
    $region169: #{forward.2} parent=1 // pred_fallthru
      _
    // Predicated region
    $region170: #{forward.2} parent=1 // pred_check
      _
    $region171: #{forward.2} parent=1 // pred_check_branch
      %502 = sbr.rel (0) target = $region173
    $region172: #{forward.2} parent=1 // pred_region
      %504 = dma.done [#allocation17], 16
    $region173: #{forward.2} parent=1 // pred_fallthru
      _
    // Predicated region
    $region174: #{forward.2} parent=1 // pred_check
      _
    $region175: #{forward.2} parent=1 // pred_check_branch
      %506 = sbr.rel (0) target = $region177
    $region176: #{forward.2} parent=1 // pred_region
      %508 = dma.done [#allocation17], 2048
    $region177: #{forward.2} parent=1 // pred_fallthru
      _
    // Predicated region
    $region178: #{forward.2} parent=1 // pred_check
      _
    $region179: #{forward.2} parent=1 // pred_check_branch
      %510 = sbr.rel (0) target = $region181
    $region180: #{forward.2} parent=1 // pred_region
      %512 = dma.done [#allocation20], 16
    $region181: #{forward.2} parent=1 // pred_fallthru
      _
    // Predicated region
    $region182: #{forward.2} parent=1 // pred_check
      _
    $region183: #{forward.2} parent=1 // pred_check_branch
      %514 = sbr.rel (0) target = $region185
    $region184: #{forward.2} parent=1 // pred_region
      %516 = dma.done [#allocation20], 16
    $region185: #{forward.2} parent=1 // pred_fallthru
      _
    // Predicated region
    $region186: #{forward.2} parent=1 // pred_check
      _
    $region187: #{forward.2} parent=1 // pred_check_branch
      %518 = sbr.rel (0) target = $region189
    $region188: #{forward.2} parent=1 // pred_region
      %520 = dma.done [#allocation23], 16
    $region189: #{forward.2} parent=1 // pred_fallthru
      _
    // Predicated region
    $region190: #{forward.2} parent=1 // pred_check
      _
    $region191: #{forward.2} parent=1 // pred_check_branch
      %522 = sbr.rel (0) target = $region193
    $region192: #{forward.2} parent=1 // pred_region
      %524 = dma.done [#allocation23], 2048
    $region193: #{forward.2} parent=1 // pred_fallthru
      _
    // Predicated region
    $region194: #{forward.2} parent=1 // pred_check
      _
    $region195: #{forward.2} parent=1 // pred_check_branch
      %526 = sbr.rel (0) target = $region197
    $region196: #{forward.2} parent=1 // pred_region
      %528 = dma.done [#allocation26], 16
    $region197: #{forward.2} parent=1 // pred_fallthru
      _
    // Predicated region
    $region198: #{forward.2} parent=1 // pred_check
      _
    $region199: #{forward.2} parent=1 // pred_check_branch
      %530 = sbr.rel (0) target = $region201
    $region200: #{forward.2} parent=1 // pred_region
      %532 = dma.done [#allocation26], 2048
    $region201: #{forward.2} parent=1 // pred_fallthru
      _
    // Predicated region
    $region202: #{forward.2} parent=1 // pred_check
      _
    $region203: #{forward.2} parent=1 // pred_check_branch
      %534 = sbr.rel (0) target = $region205
    $region204: #{forward.2} parent=1 // pred_region
      %536 = dma.done [#allocation29], 16
    $region205: #{forward.2} parent=1 // pred_fallthru
      _
    // Predicated region
    $region206: #{forward.2} parent=1 // pred_check
      _
    $region207: #{forward.2} parent=1 // pred_check_branch
      %538 = sbr.rel (0) target = $region209
    $region208: #{forward.2} parent=1 // pred_region
      %540 = dma.done [#allocation29], 16
    $region209: #{forward.2} parent=1 // pred_fallthru
      _
    // Predicated region
    $region210: #{forward.2} parent=1 // pred_check
      _
    $region211: #{forward.2} parent=1 // pred_check_branch
      %542 = sbr.rel (0) target = $region213
    $region212: #{forward.2} parent=1 // pred_region
      %544 = dma.done [#allocation32], 16
    $region213: #{forward.2} parent=1 // pred_fallthru
      _
    // Predicated region
    $region214: #{forward.2} parent=1 // pred_check
      _
    $region215: #{forward.2} parent=1 // pred_check_branch
      %546 = sbr.rel (0) target = $region217
    $region216: #{forward.2} parent=1 // pred_region
      %548 = dma.done [#allocation32], 2048
    $region217: #{forward.2} parent=1 // pred_fallthru
      _
    // Predicated region
    $region218: #{forward.2} parent=1 // pred_check
      _
    $region219: #{forward.2} parent=1 // pred_check_branch
      %550 = sbr.rel (0) target = $region221
    $region220: #{forward.2} parent=1 // pred_region
      %552 = dma.done [#allocation35], 16
    $region221: #{forward.2} parent=1 // pred_fallthru
      _
    // Predicated region
    $region222: #{forward.2} parent=1 // pred_check
      _
    $region223: #{forward.2} parent=1 // pred_check_branch
      %554 = sbr.rel (0) target = $region225
    $region224: #{forward.2} parent=1 // pred_region
      %556 = dma.done [#allocation35], 2048
    $region225: #{forward.2} parent=1 // pred_fallthru
      _
    // Predicated region
    $region226: #{forward.2} parent=1 // pred_check
      _
    $region227: #{forward.2} parent=1 // pred_check_branch
      %558 = sbr.rel (0) target = $region229
    $region228: #{forward.2} parent=1 // pred_region
      %560 = dma.done [#allocation38], 16
    $region229: #{forward.2} parent=1 // pred_fallthru
      _
    // Predicated region
    $region230: #{forward.2} parent=1 // pred_check
      _
    $region231: #{forward.2} parent=1 // pred_check_branch
      %562 = sbr.rel (0) target = $region233
    $region232: #{forward.2} parent=1 // pred_region
      %564 = dma.done [#allocation38], 16
    $region233: #{forward.2} parent=1 // pred_fallthru
      _
    // Predicated region
    $region234: #{forward.2} parent=1 // pred_check
      _
    $region235: #{forward.2} parent=1 // pred_check_branch
      %566 = sbr.rel (0) target = $region237
    $region236: #{forward.2} parent=1 // pred_region
      %568 = dma.done [#allocation41], 16
    $region237: #{forward.2} parent=1 // pred_fallthru
      _
    // Predicated region
    $region238: #{forward.2} parent=1 // pred_check
      _
    $region239: #{forward.2} parent=1 // pred_check_branch
      %570 = sbr.rel (0) target = $region241
    $region240: #{forward.2} parent=1 // pred_region
      %572 = dma.done [#allocation41], 2048
    $region241: #{forward.2} parent=1 // pred_fallthru
      _
    // Predicated region
    $region242: #{forward.2} parent=1 // pred_check
      _
    $region243: #{forward.2} parent=1 // pred_check_branch
      %574 = sbr.rel (0) target = $region245
    $region244: #{forward.2} parent=1 // pred_region
      %576 = dma.done [#allocation44], 16
    $region245: #{forward.2} parent=1 // pred_fallthru
      _
    // Predicated region
    $region246: #{forward.2} parent=1 // pred_check
      _
    $region247: #{forward.2} parent=1 // pred_check_branch
      %578 = sbr.rel (0) target = $region249
    $region248: #{forward.2} parent=1 // pred_region
      %580 = dma.done [#allocation44], 2048
    $region249: #{forward.2} parent=1 // pred_fallthru
      _
    // Predicated region
    $region250: #{forward.2} parent=1 // pred_check
      _
    $region251: #{forward.2} parent=1 // pred_check_branch
      %582 = sbr.rel (0) target = $region253
    $region252: #{forward.2} parent=1 // pred_region
      %584 = dma.done [#allocation47], 16
    $region253: #{forward.2} parent=1 // pred_fallthru
      _
    // Predicated region
    $region254: #{forward.2} parent=1 // pred_check
      _
    $region255: #{forward.2} parent=1 // pred_check_branch
      %586 = sbr.rel (0) target = $region257
    $region256: #{forward.2} parent=1 // pred_region
      %588 = dma.done [#allocation47], 16
    $region257: #{forward.2} parent=1 // pred_fallthru
      _
    // Predicated region
    $region258: #{forward.2} parent=1 // pred_check
      _
    $region259: #{forward.2} parent=1 // pred_check_branch
      %590 = sbr.rel (0) target = $region261
    $region260: #{forward.2} parent=1 // pred_region
      %592 = dma.done [#allocation50], 16
    $region261: #{forward.2} parent=1 // pred_fallthru
      _
    %v594 = vld [vmem:[#allocation2] sm:$0xf]
    %v595 = vld [vmem:[#allocation2 + $0x4] sm:$0x1]
    %v596 = vld [vmem:[%s3] sm:$0xff]
    %v597 = vld [vmem:[%s3 + $0x8] sm:$0x3]
    %v598 = vpack.c.bf16 %v597, %v596
    %v601 = vunpack.c.l.b16 %v594
    %v602 = vunpack.c.l.b16 %v595
    %v603 = vpack.c.b16 %v602, %v601
    %vm604 = vcmask 80896
    %v606 = vsel %vm604, %v603, 0
    %vm608 = vcmask 1044480
    %v610 = vsel %vm608, %v598, 0
    %612 = vmatpush.bf16.msra.mxu0 0
    %613 = vmatpush.bf16.msra.mxu0 0
    %614 = vmatpush.bf16.msra.mxu0 0
    %615 = vmatpush.bf16.msra.mxu0 0
    %616 = vmatpush.bf16.msra.mxu0 0
    %617 = vmatpush.bf16.msra.mxu0 0
    %618 = vmatpush.bf16.msra.mxu0 0
    %619 = vmatpush.bf16.msra.mxu0 %v610
    %620 = vmatmul.bf16.gmra.mxu0 %v606
    %v621 = vpop.f32.mrf.mxu0
    %v622 = vadd.f32 %v596, %v621
    %v623 = vpop.f32.mrf.mxu0
    %v624 = vadd.f32 %v597, %v623
    %625 = vdwg.mxu0
    %v626 = vld [vmem:[#allocation6] sm:$0xff]
    %v627 = vld [vmem:[#allocation6 + $0x8] sm:$0xff]
    %v628 = vld [vmem:[#allocation6 + $0x10] sm:$0xff]
    %v629 = vld [vmem:[#allocation6 + $0x18] sm:$0xff]
    %v630 = vld [vmem:[#allocation6 + $0x20] sm:$0xff]
    %v631 = vld [vmem:[#allocation6 + $0x28] sm:$0xff]
    %v632 = vld [vmem:[#allocation6 + $0x30] sm:$0xff]
    %v633 = vld [vmem:[#allocation6 + $0x38] sm:$0xff]
    %v634 = vld [vmem:[#allocation6 + $0x40] sm:$0xff]
    %v635 = vld [vmem:[#allocation6 + $0x48] sm:$0xff]
    %v636 = vld [vmem:[#allocation6 + $0x50] sm:$0xff]
    %v637 = vld [vmem:[#allocation6 + $0x58] sm:$0xff]
    %v638 = vld [vmem:[#allocation6 + $0x60] sm:$0xff]
    %v639 = vld [vmem:[#allocation6 + $0x68] sm:$0xff]
    %v640 = vld [vmem:[#allocation6 + $0x70] sm:$0xff]
    %v641 = vld [vmem:[#allocation6 + $0x78] sm:$0xff]
    %v642 = vld [vmem:[#allocation7] sm:$0x1]
    %v644 = vperm.slane %v642, 0
    %646 = vmatpush.msra.mxu0 %v641
    %647 = vmatpush.msra.mxu0 %v640
    %648 = vmatpush.msra.mxu0 %v639
    %649 = vmatpush.msra.mxu0 %v638
    %650 = vmatpush.msra.mxu0 %v637
    %651 = vmatpush.msra.mxu0 %v636
    %652 = vmatpush.msra.mxu0 %v635
    %653 = vmatpush.msra.mxu0 %v634
    %654 = vmatpush.msra.mxu0 %v633
    %655 = vmatpush.msra.mxu0 %v632
    %656 = vmatpush.msra.mxu0 %v631
    %657 = vmatpush.msra.mxu0 %v630
    %658 = vmatpush.msra.mxu0 %v629
    %659 = vmatpush.msra.mxu0 %v628
    %660 = vmatpush.msra.mxu0 %v627
    %661 = vmatpush.msra.mxu0 %v626
    %662 = vmatmul.f32.gmra.mxu0 %v622
    %v663 = vpop.f32.mrf.mxu0
    %v664 = vadd.f32 %v644, %v663
    %665 = vmatmul.f32.gmra.mxu0 %v624
    %v666 = vpop.f32.mrf.mxu0
    %v667 = vadd.f32 %v644, %v666
    %668 = vdwg.mxu0
    %v669 = vmax.f32 %v664, 0.0
    %v670 = vmax.f32 %v667, 0.0
    %v671 = vld [vmem:[#allocation9] sm:$0xff]
    %v672 = vld [vmem:[#allocation9 + $0x8] sm:$0xff]
    %v673 = vld [vmem:[#allocation9 + $0x10] sm:$0xff]
    %v674 = vld [vmem:[#allocation9 + $0x18] sm:$0xff]
    %v675 = vld [vmem:[#allocation9 + $0x20] sm:$0xff]
    %v676 = vld [vmem:[#allocation9 + $0x28] sm:$0xff]
    %v677 = vld [vmem:[#allocation9 + $0x30] sm:$0xff]
    %v678 = vld [vmem:[#allocation9 + $0x38] sm:$0xff]
    %v679 = vld [vmem:[#allocation9 + $0x40] sm:$0xff]
    %v680 = vld [vmem:[#allocation9 + $0x48] sm:$0xff]
    %v681 = vld [vmem:[#allocation9 + $0x50] sm:$0xff]
    %v682 = vld [vmem:[#allocation9 + $0x58] sm:$0xff]
    %v683 = vld [vmem:[#allocation9 + $0x60] sm:$0xff]
    %v684 = vld [vmem:[#allocation9 + $0x68] sm:$0xff]
    %v685 = vld [vmem:[#allocation9 + $0x70] sm:$0xff]
    %v686 = vld [vmem:[#allocation9 + $0x78] sm:$0xff]
    %v687 = vld [vmem:[#allocation10] sm:$0x1]
    %v689 = vperm.slane %v687, 0
    %691 = vmatpush.msra.mxu0 %v686
    %692 = vmatpush.msra.mxu0 %v685
    %693 = vmatpush.msra.mxu0 %v684
    %694 = vmatpush.msra.mxu0 %v683
    %695 = vmatpush.msra.mxu0 %v682
    %696 = vmatpush.msra.mxu0 %v681
    %697 = vmatpush.msra.mxu0 %v680
    %698 = vmatpush.msra.mxu0 %v679
    %699 = vmatpush.msra.mxu0 %v678
    %700 = vmatpush.msra.mxu0 %v677
    %701 = vmatpush.msra.mxu0 %v676
    %702 = vmatpush.msra.mxu0 %v675
    %703 = vmatpush.msra.mxu0 %v674
    %704 = vmatpush.msra.mxu0 %v673
    %705 = vmatpush.msra.mxu0 %v672
    %706 = vmatpush.msra.mxu0 %v671
    %707 = vmatmul.f32.gmra.mxu0 %v669
    %v708 = vpop.f32.mrf.mxu0
    %v709 = vadd.f32 %v689, %v708
    %710 = vmatmul.f32.gmra.mxu0 %v670
    %v711 = vpop.f32.mrf.mxu0
    %v712 = vadd.f32 %v689, %v711
    %713 = vdwg.mxu0
    %v714 = vmax.f32 %v709, 0.0
    %v715 = vmax.f32 %v712, 0.0
    %v716 = vld [vmem:[#allocation12] sm:$0x1]
    %v718 = vperm.slane %v716, 0
    %v720 = vmul.f32 %v714, %v718
    %v721 = vmul.f32 %v715, %v718
    %v722 = vld [vmem:[#allocation13] sm:$0x1]
    %v724 = vperm.slane %v722, 0
    %v726 = vadd.f32 %v720, %v724
    %v727 = vadd.f32 %v721, %v724
    %v728 = vpack.c.bf16 %v727, %v726
    %v730 = vsel %vm608, %v728, 0
    %732 = vmatpush.bf16.msra.mxu0 0
    %733 = vmatpush.bf16.msra.mxu0 0
    %734 = vmatpush.bf16.msra.mxu0 0
    %735 = vmatpush.bf16.msra.mxu0 0
    %736 = vmatpush.bf16.msra.mxu0 0
    %737 = vmatpush.bf16.msra.mxu0 0
    %738 = vmatpush.bf16.msra.mxu0 0
    %739 = vmatpush.bf16.msra.mxu0 %v730
    %740 = vmatmul.bf16.gmra.mxu0 %v606
    %v741 = vpop.f32.mrf.mxu0
    %v742 = vadd.f32 %v726, %v741
    %v743 = vpop.f32.mrf.mxu0
    %v744 = vadd.f32 %v727, %v743
    %745 = vdwg.mxu0
    %v746 = vld [vmem:[#allocation15] sm:$0xff]
    %v747 = vld [vmem:[#allocation15 + $0x8] sm:$0xff]
    %v748 = vld [vmem:[#allocation15 + $0x10] sm:$0xff]
    %v749 = vld [vmem:[#allocation15 + $0x18] sm:$0xff]
    %v750 = vld [vmem:[#allocation15 + $0x20] sm:$0xff]
    %v751 = vld [vmem:[#allocation15 + $0x28] sm:$0xff]
    %v752 = vld [vmem:[#allocation15 + $0x30] sm:$0xff]
    %v753 = vld [vmem:[#allocation15 + $0x38] sm:$0xff]
    %v754 = vld [vmem:[#allocation15 + $0x40] sm:$0xff]
    %v755 = vld [vmem:[#allocation15 + $0x48] sm:$0xff]
    %v756 = vld [vmem:[#allocation15 + $0x50] sm:$0xff]
    %v757 = vld [vmem:[#allocation15 + $0x58] sm:$0xff]
    %v758 = vld [vmem:[#allocation15 + $0x60] sm:$0xff]
    %v759 = vld [vmem:[#allocation15 + $0x68] sm:$0xff]
    %v760 = vld [vmem:[#allocation15 + $0x70] sm:$0xff]
    %v761 = vld [vmem:[#allocation15 + $0x78] sm:$0xff]
    %v762 = vld [vmem:[#allocation16] sm:$0x1]
    %v764 = vperm.slane %v762, 0
    %766 = vmatpush.msra.mxu0 %v761
    %767 = vmatpush.msra.mxu0 %v760
    %768 = vmatpush.msra.mxu0 %v759
    %769 = vmatpush.msra.mxu0 %v758
    %770 = vmatpush.msra.mxu0 %v757
    %771 = vmatpush.msra.mxu0 %v756
    %772 = vmatpush.msra.mxu0 %v755
    %773 = vmatpush.msra.mxu0 %v754
    %774 = vmatpush.msra.mxu0 %v753
    %775 = vmatpush.msra.mxu0 %v752
    %776 = vmatpush.msra.mxu0 %v751
    %777 = vmatpush.msra.mxu0 %v750
    %778 = vmatpush.msra.mxu0 %v749
    %779 = vmatpush.msra.mxu0 %v748
    %780 = vmatpush.msra.mxu0 %v747
    %781 = vmatpush.msra.mxu0 %v746
    %782 = vmatmul.f32.gmra.mxu0 %v742
    %v783 = vpop.f32.mrf.mxu0
    %v784 = vadd.f32 %v764, %v783
    %785 = vmatmul.f32.gmra.mxu0 %v744
    %v786 = vpop.f32.mrf.mxu0
    %v787 = vadd.f32 %v764, %v786
    %788 = vdwg.mxu0
    %v789 = vmax.f32 %v784, 0.0
    %v790 = vmax.f32 %v787, 0.0
    %v791 = vld [vmem:[#allocation18] sm:$0xff]
    %v792 = vld [vmem:[#allocation18 + $0x8] sm:$0xff]
    %v793 = vld [vmem:[#allocation18 + $0x10] sm:$0xff]
    %v794 = vld [vmem:[#allocation18 + $0x18] sm:$0xff]
    %v795 = vld [vmem:[#allocation18 + $0x20] sm:$0xff]
    %v796 = vld [vmem:[#allocation18 + $0x28] sm:$0xff]
    %v797 = vld [vmem:[#allocation18 + $0x30] sm:$0xff]
    %v798 = vld [vmem:[#allocation18 + $0x38] sm:$0xff]
    %v799 = vld [vmem:[#allocation18 + $0x40] sm:$0xff]
    %v800 = vld [vmem:[#allocation18 + $0x48] sm:$0xff]
    %v801 = vld [vmem:[#allocation18 + $0x50] sm:$0xff]
    %v802 = vld [vmem:[#allocation18 + $0x58] sm:$0xff]
    %v803 = vld [vmem:[#allocation18 + $0x60] sm:$0xff]
    %v804 = vld [vmem:[#allocation18 + $0x68] sm:$0xff]
    %v805 = vld [vmem:[#allocation18 + $0x70] sm:$0xff]
    %v806 = vld [vmem:[#allocation18 + $0x78] sm:$0xff]
    %v807 = vld [vmem:[#allocation19] sm:$0x1]
    %v809 = vperm.slane %v807, 0
    %811 = vmatpush.msra.mxu0 %v806
    %812 = vmatpush.msra.mxu0 %v805
    %813 = vmatpush.msra.mxu0 %v804
    %814 = vmatpush.msra.mxu0 %v803
    %815 = vmatpush.msra.mxu0 %v802
    %816 = vmatpush.msra.mxu0 %v801
    %817 = vmatpush.msra.mxu0 %v800
    %818 = vmatpush.msra.mxu0 %v799
    %819 = vmatpush.msra.mxu0 %v798
    %820 = vmatpush.msra.mxu0 %v797
    %821 = vmatpush.msra.mxu0 %v796
    %822 = vmatpush.msra.mxu0 %v795
    %823 = vmatpush.msra.mxu0 %v794
    %824 = vmatpush.msra.mxu0 %v793
    %825 = vmatpush.msra.mxu0 %v792
    %826 = vmatpush.msra.mxu0 %v791
    %827 = vmatmul.f32.gmra.mxu0 %v789
    %v828 = vpop.f32.mrf.mxu0
    %v829 = vadd.f32 %v809, %v828
    %830 = vmatmul.f32.gmra.mxu0 %v790
    %v831 = vpop.f32.mrf.mxu0
    %v832 = vadd.f32 %v809, %v831
    %833 = vdwg.mxu0
    %v834 = vmax.f32 %v829, 0.0
    %v835 = vmax.f32 %v832, 0.0
    %v836 = vld [vmem:[#allocation21] sm:$0x1]
    %v838 = vperm.slane %v836, 0
    %v840 = vmul.f32 %v834, %v838
    %v841 = vmul.f32 %v835, %v838
    %v842 = vld [vmem:[#allocation22] sm:$0x1]
    %v844 = vperm.slane %v842, 0
    %v846 = vadd.f32 %v840, %v844
    %v847 = vadd.f32 %v841, %v844
    %v848 = vpack.c.bf16 %v847, %v846
    %v850 = vsel %vm608, %v848, 0
    %852 = vmatpush.bf16.msra.mxu0 0
    %853 = vmatpush.bf16.msra.mxu0 0
    %854 = vmatpush.bf16.msra.mxu0 0
    %855 = vmatpush.bf16.msra.mxu0 0
    %856 = vmatpush.bf16.msra.mxu0 0
    %857 = vmatpush.bf16.msra.mxu0 0
    %858 = vmatpush.bf16.msra.mxu0 0
    %859 = vmatpush.bf16.msra.mxu0 %v850
    %860 = vmatmul.bf16.gmra.mxu0 %v606
    %v861 = vpop.f32.mrf.mxu0
    %v862 = vadd.f32 %v846, %v861
    %v863 = vpop.f32.mrf.mxu0
    %v864 = vadd.f32 %v847, %v863
    %865 = vdwg.mxu0
    %v866 = vld [vmem:[#allocation24] sm:$0xff]
    %v867 = vld [vmem:[#allocation24 + $0x8] sm:$0xff]
    %v868 = vld [vmem:[#allocation24 + $0x10] sm:$0xff]
    %v869 = vld [vmem:[#allocation24 + $0x18] sm:$0xff]
    %v870 = vld [vmem:[#allocation24 + $0x20] sm:$0xff]
    %v871 = vld [vmem:[#allocation24 + $0x28] sm:$0xff]
    %v872 = vld [vmem:[#allocation24 + $0x30] sm:$0xff]
    %v873 = vld [vmem:[#allocation24 + $0x38] sm:$0xff]
    %v874 = vld [vmem:[#allocation24 + $0x40] sm:$0xff]
    %v875 = vld [vmem:[#allocation24 + $0x48] sm:$0xff]
    %v876 = vld [vmem:[#allocation24 + $0x50] sm:$0xff]
    %v877 = vld [vmem:[#allocation24 + $0x58] sm:$0xff]
    %v878 = vld [vmem:[#allocation24 + $0x60] sm:$0xff]
    %v879 = vld [vmem:[#allocation24 + $0x68] sm:$0xff]
    %v880 = vld [vmem:[#allocation24 + $0x70] sm:$0xff]
    %v881 = vld [vmem:[#allocation24 + $0x78] sm:$0xff]
    %v882 = vld [vmem:[#allocation25] sm:$0x1]
    %v884 = vperm.slane %v882, 0
    %886 = vmatpush.msra.mxu0 %v881
    %887 = vmatpush.msra.mxu0 %v880
    %888 = vmatpush.msra.mxu0 %v879
    %889 = vmatpush.msra.mxu0 %v878
    %890 = vmatpush.msra.mxu0 %v877
    %891 = vmatpush.msra.mxu0 %v876
    %892 = vmatpush.msra.mxu0 %v875
    %893 = vmatpush.msra.mxu0 %v874
    %894 = vmatpush.msra.mxu0 %v873
    %895 = vmatpush.msra.mxu0 %v872
    %896 = vmatpush.msra.mxu0 %v871
    %897 = vmatpush.msra.mxu0 %v870
    %898 = vmatpush.msra.mxu0 %v869
    %899 = vmatpush.msra.mxu0 %v868
    %900 = vmatpush.msra.mxu0 %v867
    %901 = vmatpush.msra.mxu0 %v866
    %902 = vmatmul.f32.gmra.mxu0 %v862
    %v903 = vpop.f32.mrf.mxu0
    %v904 = vadd.f32 %v884, %v903
    %905 = vmatmul.f32.gmra.mxu0 %v864
    %v906 = vpop.f32.mrf.mxu0
    %v907 = vadd.f32 %v884, %v906
    %908 = vdwg.mxu0
    %v909 = vmax.f32 %v904, 0.0
    %v910 = vmax.f32 %v907, 0.0
    %v911 = vld [vmem:[#allocation27] sm:$0xff]
    %v912 = vld [vmem:[#allocation27 + $0x8] sm:$0xff]
    %v913 = vld [vmem:[#allocation27 + $0x10] sm:$0xff]
    %v914 = vld [vmem:[#allocation27 + $0x18] sm:$0xff]
    %v915 = vld [vmem:[#allocation27 + $0x20] sm:$0xff]
    %v916 = vld [vmem:[#allocation27 + $0x28] sm:$0xff]
    %v917 = vld [vmem:[#allocation27 + $0x30] sm:$0xff]
    %v918 = vld [vmem:[#allocation27 + $0x38] sm:$0xff]
    %v919 = vld [vmem:[#allocation27 + $0x40] sm:$0xff]
    %v920 = vld [vmem:[#allocation27 + $0x48] sm:$0xff]
    %v921 = vld [vmem:[#allocation27 + $0x50] sm:$0xff]
    %v922 = vld [vmem:[#allocation27 + $0x58] sm:$0xff]
    %v923 = vld [vmem:[#allocation27 + $0x60] sm:$0xff]
    %v924 = vld [vmem:[#allocation27 + $0x68] sm:$0xff]
    %v925 = vld [vmem:[#allocation27 + $0x70] sm:$0xff]
    %v926 = vld [vmem:[#allocation27 + $0x78] sm:$0xff]
    %v927 = vld [vmem:[#allocation28] sm:$0x1]
    %v929 = vperm.slane %v927, 0
    %931 = vmatpush.msra.mxu0 %v926
    %932 = vmatpush.msra.mxu0 %v925
    %933 = vmatpush.msra.mxu0 %v924
    %934 = vmatpush.msra.mxu0 %v923
    %935 = vmatpush.msra.mxu0 %v922
    %936 = vmatpush.msra.mxu0 %v921
    %937 = vmatpush.msra.mxu0 %v920
    %938 = vmatpush.msra.mxu0 %v919
    %939 = vmatpush.msra.mxu0 %v918
    %940 = vmatpush.msra.mxu0 %v917
    %941 = vmatpush.msra.mxu0 %v916
    %942 = vmatpush.msra.mxu0 %v915
    %943 = vmatpush.msra.mxu0 %v914
    %944 = vmatpush.msra.mxu0 %v913
    %945 = vmatpush.msra.mxu0 %v912
    %946 = vmatpush.msra.mxu0 %v911
    %947 = vmatmul.f32.gmra.mxu0 %v909
    %v948 = vpop.f32.mrf.mxu0
    %v949 = vadd.f32 %v929, %v948
    %950 = vmatmul.f32.gmra.mxu0 %v910
    %v951 = vpop.f32.mrf.mxu0
    %v952 = vadd.f32 %v929, %v951
    %953 = vdwg.mxu0
    %v954 = vmax.f32 %v949, 0.0
    %v955 = vmax.f32 %v952, 0.0
    %v956 = vld [vmem:[#allocation30] sm:$0x1]
    %v958 = vperm.slane %v956, 0
    %v960 = vmul.f32 %v954, %v958
    %v961 = vmul.f32 %v955, %v958
    %v962 = vld [vmem:[#allocation31] sm:$0x1]
    %v964 = vperm.slane %v962, 0
    %v966 = vadd.f32 %v960, %v964
    %v967 = vadd.f32 %v961, %v964
    %v968 = vpack.c.bf16 %v967, %v966
    %v970 = vsel %vm608, %v968, 0
    %972 = vmatpush.bf16.msra.mxu0 0
    %973 = vmatpush.bf16.msra.mxu0 0
    %974 = vmatpush.bf16.msra.mxu0 0
    %975 = vmatpush.bf16.msra.mxu0 0
    %976 = vmatpush.bf16.msra.mxu0 0
    %977 = vmatpush.bf16.msra.mxu0 0
    %978 = vmatpush.bf16.msra.mxu0 0
    %979 = vmatpush.bf16.msra.mxu0 %v970
    %980 = vmatmul.bf16.gmra.mxu0 %v606
    %v981 = vpop.f32.mrf.mxu0
    %v982 = vadd.f32 %v966, %v981
    %v983 = vpop.f32.mrf.mxu0
    %v984 = vadd.f32 %v967, %v983
    %985 = vdwg.mxu0
    %v986 = vld [vmem:[#allocation33] sm:$0xff]
    %v987 = vld [vmem:[#allocation33 + $0x8] sm:$0xff]
    %v988 = vld [vmem:[#allocation33 + $0x10] sm:$0xff]
    %v989 = vld [vmem:[#allocation33 + $0x18] sm:$0xff]
    %v990 = vld [vmem:[#allocation33 + $0x20] sm:$0xff]
    %v991 = vld [vmem:[#allocation33 + $0x28] sm:$0xff]
    %v992 = vld [vmem:[#allocation33 + $0x30] sm:$0xff]
    %v993 = vld [vmem:[#allocation33 + $0x38] sm:$0xff]
    %v994 = vld [vmem:[#allocation33 + $0x40] sm:$0xff]
    %v995 = vld [vmem:[#allocation33 + $0x48] sm:$0xff]
    %v996 = vld [vmem:[#allocation33 + $0x50] sm:$0xff]
    %v997 = vld [vmem:[#allocation33 + $0x58] sm:$0xff]
    %v998 = vld [vmem:[#allocation33 + $0x60] sm:$0xff]
    %v999 = vld [vmem:[#allocation33 + $0x68] sm:$0xff]
    %v1000 = vld [vmem:[#allocation33 + $0x70] sm:$0xff]
    %v1001 = vld [vmem:[#allocation33 + $0x78] sm:$0xff]
    %v1002 = vld [vmem:[#allocation34] sm:$0x1]
    %v1004 = vperm.slane %v1002, 0
    %1006 = vmatpush.msra.mxu0 %v1001
    %1007 = vmatpush.msra.mxu0 %v1000
    %1008 = vmatpush.msra.mxu0 %v999
    %1009 = vmatpush.msra.mxu0 %v998
    %1010 = vmatpush.msra.mxu0 %v997
    %1011 = vmatpush.msra.mxu0 %v996
    %1012 = vmatpush.msra.mxu0 %v995
    %1013 = vmatpush.msra.mxu0 %v994
    %1014 = vmatpush.msra.mxu0 %v993
    %1015 = vmatpush.msra.mxu0 %v992
    %1016 = vmatpush.msra.mxu0 %v991
    %1017 = vmatpush.msra.mxu0 %v990
    %1018 = vmatpush.msra.mxu0 %v989
    %1019 = vmatpush.msra.mxu0 %v988
    %1020 = vmatpush.msra.mxu0 %v987
    %1021 = vmatpush.msra.mxu0 %v986
    %1022 = vmatmul.f32.gmra.mxu0 %v982
    %v1023 = vpop.f32.mrf.mxu0
    %v1024 = vadd.f32 %v1004, %v1023
    %1025 = vmatmul.f32.gmra.mxu0 %v984
    %v1026 = vpop.f32.mrf.mxu0
    %v1027 = vadd.f32 %v1004, %v1026
    %1028 = vdwg.mxu0
    %v1029 = vmax.f32 %v1024, 0.0
    %v1030 = vmax.f32 %v1027, 0.0
    %v1031 = vld [vmem:[#allocation36] sm:$0xff]
    %v1032 = vld [vmem:[#allocation36 + $0x8] sm:$0xff]
    %v1033 = vld [vmem:[#allocation36 + $0x10] sm:$0xff]
    %v1034 = vld [vmem:[#allocation36 + $0x18] sm:$0xff]
    %v1035 = vld [vmem:[#allocation36 + $0x20] sm:$0xff]
    %v1036 = vld [vmem:[#allocation36 + $0x28] sm:$0xff]
    %v1037 = vld [vmem:[#allocation36 + $0x30] sm:$0xff]
    %v1038 = vld [vmem:[#allocation36 + $0x38] sm:$0xff]
    %v1039 = vld [vmem:[#allocation36 + $0x40] sm:$0xff]
    %v1040 = vld [vmem:[#allocation36 + $0x48] sm:$0xff]
    %v1041 = vld [vmem:[#allocation36 + $0x50] sm:$0xff]
    %v1042 = vld [vmem:[#allocation36 + $0x58] sm:$0xff]
    %v1043 = vld [vmem:[#allocation36 + $0x60] sm:$0xff]
    %v1044 = vld [vmem:[#allocation36 + $0x68] sm:$0xff]
    %v1045 = vld [vmem:[#allocation36 + $0x70] sm:$0xff]
    %v1046 = vld [vmem:[#allocation36 + $0x78] sm:$0xff]
    %v1047 = vld [vmem:[#allocation37] sm:$0x1]
    %v1049 = vperm.slane %v1047, 0
    %1051 = vmatpush.msra.mxu0 %v1046
    %1052 = vmatpush.msra.mxu0 %v1045
    %1053 = vmatpush.msra.mxu0 %v1044
    %1054 = vmatpush.msra.mxu0 %v1043
    %1055 = vmatpush.msra.mxu0 %v1042
    %1056 = vmatpush.msra.mxu0 %v1041
    %1057 = vmatpush.msra.mxu0 %v1040
    %1058 = vmatpush.msra.mxu0 %v1039
    %1059 = vmatpush.msra.mxu0 %v1038
    %1060 = vmatpush.msra.mxu0 %v1037
    %1061 = vmatpush.msra.mxu0 %v1036
    %1062 = vmatpush.msra.mxu0 %v1035
    %1063 = vmatpush.msra.mxu0 %v1034
    %1064 = vmatpush.msra.mxu0 %v1033
    %1065 = vmatpush.msra.mxu0 %v1032
    %1066 = vmatpush.msra.mxu0 %v1031
    %1067 = vmatmul.f32.gmra.mxu0 %v1029
    %v1068 = vpop.f32.mrf.mxu0
    %v1069 = vadd.f32 %v1049, %v1068
    %1070 = vmatmul.f32.gmra.mxu0 %v1030
    %v1071 = vpop.f32.mrf.mxu0
    %v1072 = vadd.f32 %v1049, %v1071
    %1073 = vdwg.mxu0
    %v1074 = vmax.f32 %v1069, 0.0
    %v1075 = vmax.f32 %v1072, 0.0
    %v1076 = vld [vmem:[#allocation39] sm:$0x1]
    %v1078 = vperm.slane %v1076, 0
    %v1080 = vmul.f32 %v1074, %v1078
    %v1081 = vmul.f32 %v1075, %v1078
    %v1082 = vld [vmem:[#allocation40] sm:$0x1]
    %v1084 = vperm.slane %v1082, 0
    %v1086 = vadd.f32 %v1080, %v1084
    %v1087 = vadd.f32 %v1081, %v1084
    %v1088 = vpack.c.bf16 %v1087, %v1086
    %v1090 = vsel %vm608, %v1088, 0
    %1092 = vmatpush.bf16.msra.mxu0 0
    %1093 = vmatpush.bf16.msra.mxu0 0
    %1094 = vmatpush.bf16.msra.mxu0 0
    %1095 = vmatpush.bf16.msra.mxu0 0
    %1096 = vmatpush.bf16.msra.mxu0 0
    %1097 = vmatpush.bf16.msra.mxu0 0
    %1098 = vmatpush.bf16.msra.mxu0 0
    %1099 = vmatpush.bf16.msra.mxu0 %v1090
    %1100 = vmatmul.bf16.gmra.mxu0 %v606
    %v1101 = vpop.f32.mrf.mxu0
    %v1102 = vadd.f32 %v1086, %v1101
    %v1103 = vpop.f32.mrf.mxu0
    %v1104 = vadd.f32 %v1087, %v1103
    %1105 = vdwg.mxu0
    %v1106 = vld [vmem:[#allocation42] sm:$0xff]
    %v1107 = vld [vmem:[#allocation42 + $0x8] sm:$0xff]
    %v1108 = vld [vmem:[#allocation42 + $0x10] sm:$0xff]
    %v1109 = vld [vmem:[#allocation42 + $0x18] sm:$0xff]
    %v1110 = vld [vmem:[#allocation42 + $0x20] sm:$0xff]
    %v1111 = vld [vmem:[#allocation42 + $0x28] sm:$0xff]
    %v1112 = vld [vmem:[#allocation42 + $0x30] sm:$0xff]
    %v1113 = vld [vmem:[#allocation42 + $0x38] sm:$0xff]
    %v1114 = vld [vmem:[#allocation42 + $0x40] sm:$0xff]
    %v1115 = vld [vmem:[#allocation42 + $0x48] sm:$0xff]
    %v1116 = vld [vmem:[#allocation42 + $0x50] sm:$0xff]
    %v1117 = vld [vmem:[#allocation42 + $0x58] sm:$0xff]
    %v1118 = vld [vmem:[#allocation42 + $0x60] sm:$0xff]
    %v1119 = vld [vmem:[#allocation42 + $0x68] sm:$0xff]
    %v1120 = vld [vmem:[#allocation42 + $0x70] sm:$0xff]
    %v1121 = vld [vmem:[#allocation42 + $0x78] sm:$0xff]
    %v1122 = vld [vmem:[#allocation43] sm:$0x1]
    %v1124 = vperm.slane %v1122, 0
    %1126 = vmatpush.msra.mxu0 %v1121
    %1127 = vmatpush.msra.mxu0 %v1120
    %1128 = vmatpush.msra.mxu0 %v1119
    %1129 = vmatpush.msra.mxu0 %v1118
    %1130 = vmatpush.msra.mxu0 %v1117
    %1131 = vmatpush.msra.mxu0 %v1116
    %1132 = vmatpush.msra.mxu0 %v1115
    %1133 = vmatpush.msra.mxu0 %v1114
    %1134 = vmatpush.msra.mxu0 %v1113
    %1135 = vmatpush.msra.mxu0 %v1112
    %1136 = vmatpush.msra.mxu0 %v1111
    %1137 = vmatpush.msra.mxu0 %v1110
    %1138 = vmatpush.msra.mxu0 %v1109
    %1139 = vmatpush.msra.mxu0 %v1108
    %1140 = vmatpush.msra.mxu0 %v1107
    %1141 = vmatpush.msra.mxu0 %v1106
    %1142 = vmatmul.f32.gmra.mxu0 %v1102
    %v1143 = vpop.f32.mrf.mxu0
    %v1144 = vadd.f32 %v1124, %v1143
    %1145 = vmatmul.f32.gmra.mxu0 %v1104
    %v1146 = vpop.f32.mrf.mxu0
    %v1147 = vadd.f32 %v1124, %v1146
    %1148 = vdwg.mxu0
    %v1149 = vmax.f32 %v1144, 0.0
    %v1150 = vmax.f32 %v1147, 0.0
    %v1151 = vld [vmem:[#allocation45] sm:$0xff]
    %v1152 = vld [vmem:[#allocation45 + $0x8] sm:$0xff]
    %v1153 = vld [vmem:[#allocation45 + $0x10] sm:$0xff]
    %v1154 = vld [vmem:[#allocation45 + $0x18] sm:$0xff]
    %v1155 = vld [vmem:[#allocation45 + $0x20] sm:$0xff]
    %v1156 = vld [vmem:[#allocation45 + $0x28] sm:$0xff]
    %v1157 = vld [vmem:[#allocation45 + $0x30] sm:$0xff]
    %v1158 = vld [vmem:[#allocation45 + $0x38] sm:$0xff]
    %v1159 = vld [vmem:[#allocation45 + $0x40] sm:$0xff]
    %v1160 = vld [vmem:[#allocation45 + $0x48] sm:$0xff]
    %v1161 = vld [vmem:[#allocation45 + $0x50] sm:$0xff]
    %v1162 = vld [vmem:[#allocation45 + $0x58] sm:$0xff]
    %v1163 = vld [vmem:[#allocation45 + $0x60] sm:$0xff]
    %v1164 = vld [vmem:[#allocation45 + $0x68] sm:$0xff]
    %v1165 = vld [vmem:[#allocation45 + $0x70] sm:$0xff]
    %v1166 = vld [vmem:[#allocation45 + $0x78] sm:$0xff]
    %v1167 = vld [vmem:[#allocation46] sm:$0x1]
    %v1169 = vperm.slane %v1167, 0
    %1171 = vmatpush.msra.mxu0 %v1166
    %1172 = vmatpush.msra.mxu0 %v1165
    %1173 = vmatpush.msra.mxu0 %v1164
    %1174 = vmatpush.msra.mxu0 %v1163
    %1175 = vmatpush.msra.mxu0 %v1162
    %1176 = vmatpush.msra.mxu0 %v1161
    %1177 = vmatpush.msra.mxu0 %v1160
    %1178 = vmatpush.msra.mxu0 %v1159
    %1179 = vmatpush.msra.mxu0 %v1158
    %1180 = vmatpush.msra.mxu0 %v1157
    %1181 = vmatpush.msra.mxu0 %v1156
    %1182 = vmatpush.msra.mxu0 %v1155
    %1183 = vmatpush.msra.mxu0 %v1154
    %1184 = vmatpush.msra.mxu0 %v1153
    %1185 = vmatpush.msra.mxu0 %v1152
    %1186 = vmatpush.msra.mxu0 %v1151
    %1187 = vmatmul.f32.gmra.mxu0 %v1149
    %v1188 = vpop.f32.mrf.mxu0
    %v1189 = vadd.f32 %v1169, %v1188
    %1190 = vmatmul.f32.gmra.mxu0 %v1150
    %v1191 = vpop.f32.mrf.mxu0
    %v1192 = vadd.f32 %v1169, %v1191
    %1193 = vdwg.mxu0
    %v1194 = vmax.f32 %v1189, 0.0
    %v1195 = vmax.f32 %v1192, 0.0
    %v1196 = vld [vmem:[#allocation48] sm:$0x1]
    %v1198 = vperm.slane %v1196, 0
    %v1200 = vmul.f32 %v1194, %v1198
    %v1201 = vmul.f32 %v1195, %v1198
    %v1202 = vld [vmem:[#allocation49] sm:$0x1]
    %v1204 = vperm.slane %v1202, 0
    %v1206 = vadd.f32 %v1200, %v1204
    %v1207 = vadd.f32 %v1201, %v1204
    %v1208 = vld [vmem:[#allocation4] sm:$0x3]
    %v1210 = vsel %vm604, %v1208, 0
    %vm1212 = vcmask 1041408
    %v1214 = vsel %vm1212, %v1207, 0
    %1216 = vmatpush.msra.mxu0 0.0
    %1217 = vmatpush.msra.mxu0 0.0
    %1218 = vmatpush.msra.mxu0 0.0
    %1219 = vmatpush.msra.mxu0 0.0
    %1220 = vmatpush.msra.mxu0 0.0
    %1221 = vmatpush.msra.mxu0 0.0
    %1222 = vmatpush.msra.mxu0 0.0
    %1223 = vmatpush.msra.mxu0 0.0
    %1224 = vmatpush.msra.mxu0 0.0
    %1225 = vmatpush.msra.mxu0 0.0
    %1226 = vmatpush.msra.mxu0 0.0
    %1227 = vmatpush.msra.mxu0 0.0
    %1228 = vmatpush.msra.mxu0 0.0
    %1229 = vmatpush.msra.mxu0 0.0
    %1230 = vmatpush.msra.mxu0 %v1214
    %1231 = vmatpush.msra.mxu0 %v1206
    %1232 = vmatmul.f32.gmra.mxu0 %v1210
    %v1233 = vpop.f32.mrf.mxu0
    %v1234 = vadd.f32 0.0, %v1233
    %1235 = vdwg.mxu0
    %1236 = vst [vmem:[%s67] sm:$0x3] %v1234
    // Predicated region
    $region262: #{forward.2} parent=1 // pred_check
      _
    $region263: #{forward.2} parent=1 // pred_check_branch
      %1238 = sbr.rel (0) target = $region265
    $region264: #{forward.2} parent=1 // pred_region
      _
    $region265: #{forward.2} parent=1 // pred_fallthru
      _
    // Predicated region
    $region266: #{forward.2} parent=1 // pred_check
      _
    $region267: #{forward.2} parent=1 // pred_check_branch
      %1240 = sbr.rel (0) target = $region269
    $region268: #{forward.2} parent=1 // pred_region
      _
    $region269: #{forward.2} parent=1 // pred_fallthru
      _
    %1241 = vsyncpa [#allocation3], 1
    %1242 = vsyncpa [#allocation5], 1
    %1243 = vsyncpa [#allocation8], 1
    %1244 = vsyncpa [#allocation11], 1
    %1245 = vsyncpa [#allocation14], 1
    %1246 = vsyncpa [#allocation17], 1
    %1247 = vsyncpa [#allocation20], 1
    %1248 = vsyncpa [#allocation23], 1
    %1249 = vsyncpa [#allocation26], 1
    %1250 = vsyncpa [#allocation29], 1
    %1251 = vsyncpa [#allocation32], 1
    %1252 = vsyncpa [#allocation35], 1
    %1253 = vsyncpa [#allocation38], 1
    %1254 = vsyncpa [#allocation41], 1
    %1255 = vsyncpa [#allocation44], 1
    %1256 = vsyncpa [#allocation47], 1
    %1257 = vsyncpa [#allocation50], 1

// kernel: forward.3
$region0: #{forward.3}
  #allocation0 [shape = 'u32[]', space=smem, size = 0x4, offset = 0x4, fixed_abs, tag = 'smem constant byte address 0x4 - core index']
  #allocation1 [shape = 'u32[72,128]{1,0:T(1,128)}', space=vmem, size = 0x9000, scoped, tag = 'internal scratch']
  #allocation2 [shape = 'f32[1,1]{1,0:T(1,128)S(1)}', space=vmem, size = 0x200, scoped, tag = 'scoped memory for forward.3']
  %s0 = inlined_call_operand.vmem [shape: f32[2,128], index: 0, kind: input, shape index: {}]
  %s1 = inlined_call_operand.hbm [shape: f32[2,625], index: 1, kind: input, shape index: {}]
  %s2 = inlined_call_operand.hbm [shape: bf16[128,512], index: 2, kind: input, shape index: {}]
  %s3 = inlined_call_operand.hbm [shape: f32[1,512], index: 3, kind: input, shape index: {}]
  %s4 = inlined_call_operand.hbm [shape: bf16[512,1024], index: 4, kind: input, shape index: {}]
  %s5 = inlined_call_operand.hbm [shape: bf16[625,1024], index: 5, kind: input, shape index: {}]
  %s6 = inlined_call_operand.hbm [shape: f32[1,1024], index: 6, kind: input, shape index: {}]
  %s7 = inlined_call_operand.hbm [shape: bf16[1024,1024], index: 7, kind: input, shape index: {}]
  %s8 = inlined_call_operand.hbm [shape: f32[1,1024], index: 8, kind: input, shape index: {}]
  %s9 = inlined_call_operand.hbm [shape: bf16[1024,512], index: 9, kind: input, shape index: {}]
  %s10 = inlined_call_operand.hbm [shape: f32[1,512], index: 10, kind: input, shape index: {}]
  %s11 = inlined_call_operand.vmem [shape: bf16[512,1], index: 11, kind: input, shape index: {}]
  %s12 = inlined_call_operand.<no memory space> [shape: f32[1,1], index: 12, kind: input, shape index: {}]
  %s13 = inlined_call_operand.vmem [shape: f32[2,1], index: 13, kind: output, shape index: {}]
  %s14 = sld [smem:[#allocation0]]
  $region102: #{forward.3} parent=0
    _
  %s16 = ssub.s32 1, %s14
  %s17 = scalar_select 0, %s16, %s14
  %v18 = vstv %s12
  %19 = vst [vmem:[#allocation2] sm:$0x1] %v18
  $region1: #{forward.3} parent=0
    #allocation3 [shape = 'u8[5120]{0}', space=vmem, size = 0x1400, scoped, tag = 'input window, operand 1, single buffered']
    #allocation4 [shape = 's32[1]{0}', space=sflag, size = 0x4, scoped, tag = 'scoped memory for forward.3']
    #allocation5 [shape = 'u8[131072]{0}', space=vmem, size = 0x20000, scoped, tag = 'input window, operand 2, single buffered']
    #allocation6 [shape = 's32[1]{0}', space=sflag, size = 0x4, scoped, tag = 'scoped memory for forward.3']
    #allocation7 [shape = 'u8[2048]{0}', space=vmem, size = 0x800, scoped, tag = 'input window, operand 3, single buffered']
    #allocation8 [shape = 'u8[1048576]{0}', space=vmem, size = 0x100000, scoped, tag = 'input window, operand 4, single buffered']
    #allocation9 [shape = 's32[1]{0}', space=sflag, size = 0x4, scoped, tag = 'scoped memory for forward.3']
    #allocation10 [shape = 'u8[1294336]{0}', space=vmem, size = 0x13c000, scoped, tag = 'input window, operand 5, single buffered']
    #allocation11 [shape = 'u8[4096]{0}', space=vmem, size = 0x1000, scoped, tag = 'input window, operand 6, single buffered']
    #allocation12 [shape = 's32[1]{0}', space=sflag, size = 0x4, scoped, tag = 'scoped memory for forward.3']
    #allocation13 [shape = 'u8[2097152]{0}', space=vmem, size = 0x200000, scoped, tag = 'input window, operand 7, single buffered']
    #allocation14 [shape = 'u8[4096]{0}', space=vmem, size = 0x1000, scoped, tag = 'input window, operand 8, single buffered']
    #allocation15 [shape = 's32[1]{0}', space=sflag, size = 0x4, scoped, tag = 'scoped memory for forward.3']
    #allocation16 [shape = 'u8[1048576]{0}', space=vmem, size = 0x100000, scoped, tag = 'input window, operand 9, single buffered']
    #allocation17 [shape = 'u8[2048]{0}', space=vmem, size = 0x800, scoped, tag = 'input window, operand 10, single buffered']
    #allocation18 [shape = 's32[1]{0}', space=sflag, size = 0x4, scoped, tag = 'scoped memory for forward.3']
    %20 = vsyncpa [#allocation4], 0
    %21 = vsyncpa [#allocation6], 0
    %22 = vsyncpa [#allocation9], 0
    %23 = vsyncpa [#allocation12], 0
    %24 = vsyncpa [#allocation15], 0
    %25 = vsyncpa [#allocation18], 0
    // Predicated region
    $region2: #{forward.3} parent=1 // pred_check
      _
    $region3: #{forward.3} parent=1 // pred_check_branch
      %27 = sbr.rel (0) target = $region5
    $region4: #{forward.3} parent=1 // pred_region
      _
    $region5: #{forward.3} parent=1 // pred_fallthru
      _
    // Predicated region
    $region6: #{forward.3} parent=1 // pred_check
      _
    $region7: #{forward.3} parent=1 // pred_check_branch
      %29 = sbr.rel (0) target = $region9
    $region8: #{forward.3} parent=1 // pred_region
      %31 = vsyncadd [#allocation4], 0
      %s33 = sshll.u32 %s1, 4
      %s34 = int_to_ptr.hbm [resolvable:$true] %s33
      %s35 = sshll.u32 [#allocation3], 4
      %s36 = int_to_ptr.vmem [resolvable:$true] %s35
      %38 = dma.hbm_to_vmem [thread:$0]  %s34, 160, %s36, [#allocation4]
    $region9: #{forward.3} parent=1 // pred_fallthru
      _
    // Predicated region
    $region10: #{forward.3} parent=1 // pred_check
      _
    $region11: #{forward.3} parent=1 // pred_check_branch
      %40 = sbr.rel (0) target = $region13
    $region12: #{forward.3} parent=1 // pred_region
      %42 = vsyncadd [#allocation6], 0
      %s43 = sshll.u32 %s2, 4
      %s44 = int_to_ptr.hbm [resolvable:$true] %s43
      %s45 = sshll.u32 [#allocation5], 4
      %s46 = int_to_ptr.vmem [resolvable:$true] %s45
      %51 = dma.hbm_to_vmem [thread:$0]  %s44, 4096, %s46, [#allocation6], 256, 256, 16
    $region13: #{forward.3} parent=1 // pred_fallthru
      _
    // Predicated region
    $region14: #{forward.3} parent=1 // pred_check
      _
    $region15: #{forward.3} parent=1 // pred_check_branch
      %53 = sbr.rel (0) target = $region17
    $region16: #{forward.3} parent=1 // pred_region
      %55 = vsyncadd [#allocation6], 0
      %s57 = sshll.u32 %s3, 4
      %s58 = int_to_ptr.hbm [resolvable:$true] %s57
      %s59 = sshll.u32 [#allocation7], 4
      %s60 = int_to_ptr.vmem [resolvable:$true] %s59
      %62 = dma.hbm_to_vmem [thread:$0]  %s58, 64, %s60, [#allocation6]
    $region17: #{forward.3} parent=1 // pred_fallthru
      _
    // Predicated region
    $region18: #{forward.3} parent=1 // pred_check
      _
    $region19: #{forward.3} parent=1 // pred_check_branch
      %64 = sbr.rel (0) target = $region21
    $region20: #{forward.3} parent=1 // pred_region
      %66 = vsyncadd [#allocation9], 0
      %s67 = sshll.u32 %s4, 4
      %s68 = int_to_ptr.hbm [resolvable:$true] %s67
      %s69 = sshll.u32 [#allocation8], 4
      %s70 = int_to_ptr.vmem [resolvable:$true] %s69
      %75 = dma.hbm_to_vmem [thread:$0]  %s68, 32768, %s70, [#allocation9], 512, 512, 32
    $region21: #{forward.3} parent=1 // pred_fallthru
      _
    // Predicated region
    $region22: #{forward.3} parent=1 // pred_check
      _
    $region23: #{forward.3} parent=1 // pred_check_branch
      %77 = sbr.rel (0) target = $region25
    $region24: #{forward.3} parent=1 // pred_region
      %79 = vsyncadd [#allocation9], 0
      %s80 = sshll.u32 %s5, 4
      %s81 = int_to_ptr.hbm [resolvable:$true] %s80
      %s82 = sshll.u32 [#allocation10], 4
      %s83 = int_to_ptr.vmem [resolvable:$true] %s82
      %88 = dma.hbm_to_vmem [thread:$0]  %s81, 40448, %s83, [#allocation9], 512, 512, 32
    $region25: #{forward.3} parent=1 // pred_fallthru
      _
    // Predicated region
    $region26: #{forward.3} parent=1 // pred_check
      _
    $region27: #{forward.3} parent=1 // pred_check_branch
      %90 = sbr.rel (0) target = $region29
    $region28: #{forward.3} parent=1 // pred_region
      %92 = vsyncadd [#allocation12], 0
      %s94 = sshll.u32 %s6, 4
      %s95 = int_to_ptr.hbm [resolvable:$true] %s94
      %s96 = sshll.u32 [#allocation11], 4
      %s97 = int_to_ptr.vmem [resolvable:$true] %s96
      %99 = dma.hbm_to_vmem [thread:$0]  %s95, 128, %s97, [#allocation12]
    $region29: #{forward.3} parent=1 // pred_fallthru
      _
    // Predicated region
    $region30: #{forward.3} parent=1 // pred_check
      _
    $region31: #{forward.3} parent=1 // pred_check_branch
      %101 = sbr.rel (0) target = $region33
    $region32: #{forward.3} parent=1 // pred_region
      %103 = vsyncadd [#allocation12], 0
      %s104 = sshll.u32 %s7, 4
      %s105 = int_to_ptr.hbm [resolvable:$true] %s104
      %s106 = sshll.u32 [#allocation13], 4
      %s107 = int_to_ptr.vmem [resolvable:$true] %s106
      %112 = dma.hbm_to_vmem [thread:$0]  %s105, 65536, %s107, [#allocation12], 512, 512, 32
    $region33: #{forward.3} parent=1 // pred_fallthru
      _
    // Predicated region
    $region34: #{forward.3} parent=1 // pred_check
      _
    $region35: #{forward.3} parent=1 // pred_check_branch
      %114 = sbr.rel (0) target = $region37
    $region36: #{forward.3} parent=1 // pred_region
      %116 = vsyncadd [#allocation15], 0
      %s118 = sshll.u32 %s8, 4
      %s119 = int_to_ptr.hbm [resolvable:$true] %s118
      %s120 = sshll.u32 [#allocation14], 4
      %s121 = int_to_ptr.vmem [resolvable:$true] %s120
      %123 = dma.hbm_to_vmem [thread:$0]  %s119, 128, %s121, [#allocation15]
    $region37: #{forward.3} parent=1 // pred_fallthru
      _
    // Predicated region
    $region38: #{forward.3} parent=1 // pred_check
      _
    $region39: #{forward.3} parent=1 // pred_check_branch
      %125 = sbr.rel (0) target = $region41
    $region40: #{forward.3} parent=1 // pred_region
      %127 = vsyncadd [#allocation15], 0
      %s128 = sshll.u32 %s9, 4
      %s129 = int_to_ptr.hbm [resolvable:$true] %s128
      %s130 = sshll.u32 [#allocation16], 4
      %s131 = int_to_ptr.vmem [resolvable:$true] %s130
      %136 = dma.hbm_to_vmem [thread:$0]  %s129, 32768, %s131, [#allocation15], 256, 256, 16
    $region41: #{forward.3} parent=1 // pred_fallthru
      _
    // Predicated region
    $region42: #{forward.3} parent=1 // pred_check
      _
    $region43: #{forward.3} parent=1 // pred_check_branch
      %138 = sbr.rel (0) target = $region45
    $region44: #{forward.3} parent=1 // pred_region
      %140 = vsyncadd [#allocation18], 0
      %s142 = sshll.u32 %s10, 4
      %s143 = int_to_ptr.hbm [resolvable:$true] %s142
      %s144 = sshll.u32 [#allocation17], 4
      %s145 = int_to_ptr.vmem [resolvable:$true] %s144
      %147 = dma.hbm_to_vmem [thread:$0]  %s143, 64, %s145, [#allocation18]
    $region45: #{forward.3} parent=1 // pred_fallthru
      _
    // Predicated region
    $region46: #{forward.3} parent=1 // pred_check
      _
    $region47: #{forward.3} parent=1 // pred_check_branch
      %149 = sbr.rel (0) target = $region49
    $region48: #{forward.3} parent=1 // pred_region
      _
    $region49: #{forward.3} parent=1 // pred_fallthru
      _
    // Predicated region
    $region50: #{forward.3} parent=1 // pred_check
      _
    $region51: #{forward.3} parent=1 // pred_check_branch
      %151 = sbr.rel (0) target = $region53
    $region52: #{forward.3} parent=1 // pred_region
      _
    $region53: #{forward.3} parent=1 // pred_fallthru
      _
    // Predicated region
    $region54: #{forward.3} parent=1 // pred_check
      _
    $region55: #{forward.3} parent=1 // pred_check_branch
      %153 = sbr.rel (0) target = $region57
    $region56: #{forward.3} parent=1 // pred_region
      %155 = dma.done [#allocation4], 160
    $region57: #{forward.3} parent=1 // pred_fallthru
      _
    // Predicated region
    $region58: #{forward.3} parent=1 // pred_check
      _
    $region59: #{forward.3} parent=1 // pred_check_branch
      %157 = sbr.rel (0) target = $region61
    $region60: #{forward.3} parent=1 // pred_region
      %159 = dma.done [#allocation6], 4096
    $region61: #{forward.3} parent=1 // pred_fallthru
      _
    // Predicated region
    $region62: #{forward.3} parent=1 // pred_check
      _
    $region63: #{forward.3} parent=1 // pred_check_branch
      %161 = sbr.rel (0) target = $region65
    $region64: #{forward.3} parent=1 // pred_region
      %163 = dma.done [#allocation6], 64
    $region65: #{forward.3} parent=1 // pred_fallthru
      _
    // Predicated region
    $region66: #{forward.3} parent=1 // pred_check
      _
    $region67: #{forward.3} parent=1 // pred_check_branch
      %165 = sbr.rel (0) target = $region69
    $region68: #{forward.3} parent=1 // pred_region
      %167 = dma.done [#allocation9], 32768
    $region69: #{forward.3} parent=1 // pred_fallthru
      _
    // Predicated region
    $region70: #{forward.3} parent=1 // pred_check
      _
    $region71: #{forward.3} parent=1 // pred_check_branch
      %169 = sbr.rel (0) target = $region73
    $region72: #{forward.3} parent=1 // pred_region
      %171 = dma.done [#allocation9], 40448
    $region73: #{forward.3} parent=1 // pred_fallthru
      _
    // Predicated region
    $region74: #{forward.3} parent=1 // pred_check
      _
    $region75: #{forward.3} parent=1 // pred_check_branch
      %173 = sbr.rel (0) target = $region77
    $region76: #{forward.3} parent=1 // pred_region
      %175 = dma.done [#allocation12], 128
    $region77: #{forward.3} parent=1 // pred_fallthru
      _
    // Predicated region
    $region78: #{forward.3} parent=1 // pred_check
      _
    $region79: #{forward.3} parent=1 // pred_check_branch
      %177 = sbr.rel (0) target = $region81
    $region80: #{forward.3} parent=1 // pred_region
      %179 = dma.done [#allocation12], 65536
    $region81: #{forward.3} parent=1 // pred_fallthru
      _
    // Predicated region
    $region82: #{forward.3} parent=1 // pred_check
      _
    $region83: #{forward.3} parent=1 // pred_check_branch
      %181 = sbr.rel (0) target = $region85
    $region84: #{forward.3} parent=1 // pred_region
      %183 = dma.done [#allocation15], 128
    $region85: #{forward.3} parent=1 // pred_fallthru
      _
    // Predicated region
    $region86: #{forward.3} parent=1 // pred_check
      _
    $region87: #{forward.3} parent=1 // pred_check_branch
      %185 = sbr.rel (0) target = $region89
    $region88: #{forward.3} parent=1 // pred_region
      %187 = dma.done [#allocation15], 32768
    $region89: #{forward.3} parent=1 // pred_fallthru
      _
    // Predicated region
    $region90: #{forward.3} parent=1 // pred_check
      _
    $region91: #{forward.3} parent=1 // pred_check_branch
      %189 = sbr.rel (0) target = $region93
    $region92: #{forward.3} parent=1 // pred_region
      %191 = dma.done [#allocation18], 64
    $region93: #{forward.3} parent=1 // pred_fallthru
      _
    %v192 = vld [vmem:[%s0] sm:$0x3]
    %v193 = vpack.c.bf16 %v192, %v192
    %v194 = vld [vmem:[#allocation5] sm:$0xff]
    %v195 = vld [vmem:[#allocation5 + $0x8] sm:$0xff]
    %v196 = vld [vmem:[#allocation5 + $0x10] sm:$0xff]
    %v197 = vld [vmem:[#allocation5 + $0x18] sm:$0xff]
    %v198 = vld [vmem:[#allocation5 + $0x20] sm:$0xff]
    %v199 = vld [vmem:[#allocation5 + $0x28] sm:$0xff]
    %v200 = vld [vmem:[#allocation5 + $0x30] sm:$0xff]
    %v201 = vld [vmem:[#allocation5 + $0x38] sm:$0xff]
    %v202 = vld [vmem:[#allocation5 + $0x40] sm:$0xff]
    %v203 = vld [vmem:[#allocation5 + $0x48] sm:$0xff]
    %v204 = vld [vmem:[#allocation5 + $0x50] sm:$0xff]
    %v205 = vld [vmem:[#allocation5 + $0x58] sm:$0xff]
    %v206 = vld [vmem:[#allocation5 + $0x60] sm:$0xff]
    %v207 = vld [vmem:[#allocation5 + $0x68] sm:$0xff]
    %v208 = vld [vmem:[#allocation5 + $0x70] sm:$0xff]
    %v209 = vld [vmem:[#allocation5 + $0x78] sm:$0xff]
    %v210 = vld [vmem:[#allocation5 + $0x80] sm:$0xff]
    %v211 = vld [vmem:[#allocation5 + $0x88] sm:$0xff]
    %v212 = vld [vmem:[#allocation5 + $0x90] sm:$0xff]
    %v213 = vld [vmem:[#allocation5 + $0x98] sm:$0xff]
    %v214 = vld [vmem:[#allocation5 + $0xa0] sm:$0xff]
    %v215 = vld [vmem:[#allocation5 + $0xa8] sm:$0xff]
    %v216 = vld [vmem:[#allocation5 + $0xb0] sm:$0xff]
    %v217 = vld [vmem:[#allocation5 + $0xb8] sm:$0xff]
    %v218 = vld [vmem:[#allocation5 + $0xc0] sm:$0xff]
    %v219 = vld [vmem:[#allocation5 + $0xc8] sm:$0xff]
    %v220 = vld [vmem:[#allocation5 + $0xd0] sm:$0xff]
    %v221 = vld [vmem:[#allocation5 + $0xd8] sm:$0xff]
    %v222 = vld [vmem:[#allocation5 + $0xe0] sm:$0xff]
    %v223 = vld [vmem:[#allocation5 + $0xe8] sm:$0xff]
    %v224 = vld [vmem:[#allocation5 + $0xf0] sm:$0xff]
    %v225 = vld [vmem:[#allocation5 + $0xf8] sm:$0xff]
    %v226 = vld [vmem:[#allocation7] sm:$0xf]
    %v228 = vperm.slane %v226, 0
    %v229 = vperm.slane %v226, 1
    %v230 = vperm.slane %v226, 2
    %v231 = vperm.slane %v226, 3
    %v268 = vunpack.c.l.b16 %v194
    %v269 = vunpack.c.h.b16 %v194
    %v270 = vunpack.c.l.b16 %v195
    %v271 = vunpack.c.h.b16 %v195
    %v272 = vunpack.c.l.b16 %v196
    %v273 = vunpack.c.h.b16 %v196
    %v274 = vunpack.c.l.b16 %v197
    %v275 = vunpack.c.h.b16 %v197
    %v276 = vunpack.c.l.b16 %v198
    %v277 = vunpack.c.h.b16 %v198
    %v278 = vunpack.c.l.b16 %v199
    %v279 = vunpack.c.h.b16 %v199
    %v280 = vunpack.c.l.b16 %v200
    %v281 = vunpack.c.h.b16 %v200
    %v282 = vunpack.c.l.b16 %v201
    %v283 = vunpack.c.h.b16 %v201
    %v284 = vunpack.c.l.b16 %v202
    %v285 = vunpack.c.h.b16 %v202
    %v286 = vunpack.c.l.b16 %v203
    %v287 = vunpack.c.h.b16 %v203
    %v288 = vunpack.c.l.b16 %v204
    %v289 = vunpack.c.h.b16 %v204
    %v290 = vunpack.c.l.b16 %v205
    %v291 = vunpack.c.h.b16 %v205
    %v292 = vunpack.c.l.b16 %v206
    %v293 = vunpack.c.h.b16 %v206
    %v294 = vunpack.c.l.b16 %v207
    %v295 = vunpack.c.h.b16 %v207
    %v296 = vunpack.c.l.b16 %v208
    %v297 = vunpack.c.h.b16 %v208
    %v298 = vunpack.c.l.b16 %v209
    %v299 = vunpack.c.h.b16 %v209
    %v300 = vunpack.c.l.b16 %v210
    %v301 = vunpack.c.h.b16 %v210
    %v302 = vunpack.c.l.b16 %v211
    %v303 = vunpack.c.h.b16 %v211
    %v304 = vunpack.c.l.b16 %v212
    %v305 = vunpack.c.h.b16 %v212
    %v306 = vunpack.c.l.b16 %v213
    %v307 = vunpack.c.h.b16 %v213
    %v308 = vunpack.c.l.b16 %v214
    %v309 = vunpack.c.h.b16 %v214
    %v310 = vunpack.c.l.b16 %v215
    %v311 = vunpack.c.h.b16 %v215
    %v312 = vunpack.c.l.b16 %v216
    %v313 = vunpack.c.h.b16 %v216
    %v314 = vunpack.c.l.b16 %v217
    %v315 = vunpack.c.h.b16 %v217
    %v316 = vunpack.c.l.b16 %v218
    %v317 = vunpack.c.h.b16 %v218
    %v318 = vunpack.c.l.b16 %v219
    %v319 = vunpack.c.h.b16 %v219
    %v320 = vunpack.c.l.b16 %v220
    %v321 = vunpack.c.h.b16 %v220
    %v322 = vunpack.c.l.b16 %v221
    %v323 = vunpack.c.h.b16 %v221
    %v324 = vunpack.c.l.b16 %v222
    %v325 = vunpack.c.h.b16 %v222
    %v326 = vunpack.c.l.b16 %v223
    %v327 = vunpack.c.h.b16 %v223
    %v328 = vunpack.c.l.b16 %v224
    %v329 = vunpack.c.h.b16 %v224
    %v330 = vunpack.c.l.b16 %v225
    %v331 = vunpack.c.h.b16 %v225
    %v332 = vpack.c.b16 %v272, %v268
    %v333 = vpack.c.b16 %v273, %v269
    %v334 = vpack.c.b16 %v274, %v270
    %v335 = vpack.c.b16 %v275, %v271
    %v336 = vpack.c.b16 %v280, %v276
    %v337 = vpack.c.b16 %v281, %v277
    %v338 = vpack.c.b16 %v282, %v278
    %v339 = vpack.c.b16 %v283, %v279
    %v340 = vpack.c.b16 %v288, %v284
    %v341 = vpack.c.b16 %v289, %v285
    %v342 = vpack.c.b16 %v290, %v286
    %v343 = vpack.c.b16 %v291, %v287
    %v344 = vpack.c.b16 %v296, %v292
    %v345 = vpack.c.b16 %v297, %v293
    %v346 = vpack.c.b16 %v298, %v294
    %v347 = vpack.c.b16 %v299, %v295
    %v348 = vpack.c.b16 %v304, %v300
    %v349 = vpack.c.b16 %v305, %v301
    %v350 = vpack.c.b16 %v306, %v302
    %v351 = vpack.c.b16 %v307, %v303
    %v352 = vpack.c.b16 %v312, %v308
    %v353 = vpack.c.b16 %v313, %v309
    %v354 = vpack.c.b16 %v314, %v310
    %v355 = vpack.c.b16 %v315, %v311
    %v356 = vpack.c.b16 %v320, %v316
    %v357 = vpack.c.b16 %v321, %v317
    %v358 = vpack.c.b16 %v322, %v318
    %v359 = vpack.c.b16 %v323, %v319
    %v360 = vpack.c.b16 %v328, %v324
    %v361 = vpack.c.b16 %v329, %v325
    %v362 = vpack.c.b16 %v330, %v326
    %v363 = vpack.c.b16 %v331, %v327
    %396 = vmatpush.bf16.msra.mxu0 %v360
    %397 = vmatpush.bf16.msra.mxu0 %v356
    %398 = vmatpush.bf16.msra.mxu0 %v352
    %399 = vmatpush.bf16.msra.mxu0 %v348
    %400 = vmatpush.bf16.msra.mxu0 %v344
    %401 = vmatpush.bf16.msra.mxu0 %v340
    %402 = vmatpush.bf16.msra.mxu0 %v336
    %403 = vmatpush.bf16.msra.mxu0 %v332
    %404 = vmatmul.bf16.gmra.mxu0 %v193
    %v405 = vpop.f32.mrf.mxu0
    %v406 = vadd.f32 %v228, %v405
    %v407 = vpop.f32.mrf.mxu0
    %408 = vdwg.mxu0
    %409 = vmatpush.bf16.msra.mxu0 %v361
    %410 = vmatpush.bf16.msra.mxu0 %v357
    %411 = vmatpush.bf16.msra.mxu0 %v353
    %412 = vmatpush.bf16.msra.mxu0 %v349
    %413 = vmatpush.bf16.msra.mxu0 %v345
    %414 = vmatpush.bf16.msra.mxu0 %v341
    %415 = vmatpush.bf16.msra.mxu0 %v337
    %416 = vmatpush.bf16.msra.mxu0 %v333
    %417 = vmatmul.bf16.gmra.mxu0 %v193
    %v418 = vpop.f32.mrf.mxu0
    %v419 = vadd.f32 %v229, %v418
    %v420 = vpop.f32.mrf.mxu0
    %421 = vdwg.mxu0
    %422 = vmatpush.bf16.msra.mxu0 %v362
    %423 = vmatpush.bf16.msra.mxu0 %v358
    %424 = vmatpush.bf16.msra.mxu0 %v354
    %425 = vmatpush.bf16.msra.mxu0 %v350
    %426 = vmatpush.bf16.msra.mxu0 %v346
    %427 = vmatpush.bf16.msra.mxu0 %v342
    %428 = vmatpush.bf16.msra.mxu0 %v338
    %429 = vmatpush.bf16.msra.mxu0 %v334
    %430 = vmatmul.bf16.gmra.mxu0 %v193
    %v431 = vpop.f32.mrf.mxu0
    %v432 = vadd.f32 %v230, %v431
    %v433 = vpop.f32.mrf.mxu0
    %434 = vdwg.mxu0
    %435 = vmatpush.bf16.msra.mxu0 %v363
    %436 = vmatpush.bf16.msra.mxu0 %v359
    %437 = vmatpush.bf16.msra.mxu0 %v355
    %438 = vmatpush.bf16.msra.mxu0 %v351
    %439 = vmatpush.bf16.msra.mxu0 %v347
    %440 = vmatpush.bf16.msra.mxu0 %v343
    %441 = vmatpush.bf16.msra.mxu0 %v339
    %442 = vmatpush.bf16.msra.mxu0 %v335
    %443 = vmatmul.bf16.gmra.mxu0 %v193
    %v444 = vpop.f32.mrf.mxu0
    %v445 = vadd.f32 %v231, %v444
    %v446 = vpop.f32.mrf.mxu0
    %447 = vdwg.mxu0
    %v448 = vmax.f32 %v406, 0.0
    %v449 = vmax.f32 %v419, 0.0
    %v450 = vmax.f32 %v432, 0.0
    %v451 = vmax.f32 %v445, 0.0
    %v452 = vpack.c.bf16 %v448, %v448
    %v453 = vpack.c.bf16 %v449, %v449
    %v454 = vpack.c.bf16 %v450, %v450
    %v455 = vpack.c.bf16 %v451, %v451
    %v456 = vld [vmem:[#allocation8] sm:$0xff]
    %v457 = vld [vmem:[#allocation8 + $0x8] sm:$0xff]
    %v458 = vld [vmem:[#allocation8 + $0x10] sm:$0xff]
    %v459 = vld [vmem:[#allocation8 + $0x18] sm:$0xff]
    %v460 = vld [vmem:[#allocation8 + $0x20] sm:$0xff]
    %v461 = vld [vmem:[#allocation8 + $0x28] sm:$0xff]
    %v462 = vld [vmem:[#allocation8 + $0x30] sm:$0xff]
    %v463 = vld [vmem:[#allocation8 + $0x38] sm:$0xff]
    %v464 = vld [vmem:[#allocation8 + $0x40] sm:$0xff]
    %v465 = vld [vmem:[#allocation8 + $0x48] sm:$0xff]
    %v466 = vld [vmem:[#allocation8 + $0x50] sm:$0xff]
    %v467 = vld [vmem:[#allocation8 + $0x58] sm:$0xff]
    %v468 = vld [vmem:[#allocation8 + $0x60] sm:$0xff]
    %v469 = vld [vmem:[#allocation8 + $0x68] sm:$0xff]
    %v470 = vld [vmem:[#allocation8 + $0x70] sm:$0xff]
    %v471 = vld [vmem:[#allocation8 + $0x78] sm:$0xff]
    %v472 = vld [vmem:[#allocation8 + $0x80] sm:$0xff]
    %v473 = vld [vmem:[#allocation8 + $0x88] sm:$0xff]
    %v474 = vld [vmem:[#allocation8 + $0x90] sm:$0xff]
    %v475 = vld [vmem:[#allocation8 + $0x98] sm:$0xff]
    %v476 = vld [vmem:[#allocation8 + $0xa0] sm:$0xff]
    %v477 = vld [vmem:[#allocation8 + $0xa8] sm:$0xff]
    %v478 = vld [vmem:[#allocation8 + $0xb0] sm:$0xff]
    %v479 = vld [vmem:[#allocation8 + $0xb8] sm:$0xff]
    %v480 = vld [vmem:[#allocation8 + $0xc0] sm:$0xff]
    %v481 = vld [vmem:[#allocation8 + $0xc8] sm:$0xff]
    %v482 = vld [vmem:[#allocation8 + $0xd0] sm:$0xff]
    %v483 = vld [vmem:[#allocation8 + $0xd8] sm:$0xff]
    %v484 = vld [vmem:[#allocation8 + $0xe0] sm:$0xff]
    %v485 = vld [vmem:[#allocation8 + $0xe8] sm:$0xff]
    %v486 = vld [vmem:[#allocation8 + $0xf0] sm:$0xff]
    %v487 = vld [vmem:[#allocation8 + $0xf8] sm:$0xff]
    %v488 = vld [vmem:[#allocation8 + $0x100] sm:$0xff]
    %v489 = vld [vmem:[#allocation8 + $0x108] sm:$0xff]
    %v490 = vld [vmem:[#allocation8 + $0x110] sm:$0xff]
    %v491 = vld [vmem:[#allocation8 + $0x118] sm:$0xff]
    %v492 = vld [vmem:[#allocation8 + $0x120] sm:$0xff]
    %v493 = vld [vmem:[#allocation8 + $0x128] sm:$0xff]
    %v494 = vld [vmem:[#allocation8 + $0x130] sm:$0xff]
    %v495 = vld [vmem:[#allocation8 + $0x138] sm:$0xff]
    %v496 = vld [vmem:[#allocation8 + $0x140] sm:$0xff]
    %v497 = vld [vmem:[#allocation8 + $0x148] sm:$0xff]
    %v498 = vld [vmem:[#allocation8 + $0x150] sm:$0xff]
    %v499 = vld [vmem:[#allocation8 + $0x158] sm:$0xff]
    %v500 = vld [vmem:[#allocation8 + $0x160] sm:$0xff]
    %v501 = vld [vmem:[#allocation8 + $0x168] sm:$0xff]
    %v502 = vld [vmem:[#allocation8 + $0x170] sm:$0xff]
    %v503 = vld [vmem:[#allocation8 + $0x178] sm:$0xff]
    %v504 = vld [vmem:[#allocation8 + $0x180] sm:$0xff]
    %v505 = vld [vmem:[#allocation8 + $0x188] sm:$0xff]
    %v506 = vld [vmem:[#allocation8 + $0x190] sm:$0xff]
    %v507 = vld [vmem:[#allocation8 + $0x198] sm:$0xff]
    %v508 = vld [vmem:[#allocation8 + $0x1a0] sm:$0xff]
    %v509 = vld [vmem:[#allocation8 + $0x1a8] sm:$0xff]
    %v510 = vld [vmem:[#allocation8 + $0x1b0] sm:$0xff]
    %v511 = vld [vmem:[#allocation8 + $0x1b8] sm:$0xff]
    %v512 = vld [vmem:[#allocation8 + $0x1c0] sm:$0xff]
    %v513 = vld [vmem:[#allocation8 + $0x1c8] sm:$0xff]
    %v514 = vld [vmem:[#allocation8 + $0x1d0] sm:$0xff]
    %v515 = vld [vmem:[#allocation8 + $0x1d8] sm:$0xff]
    %v516 = vld [vmem:[#allocation8 + $0x1e0] sm:$0xff]
    %v517 = vld [vmem:[#allocation8 + $0x1e8] sm:$0xff]
    %v518 = vld [vmem:[#allocation8 + $0x1f0] sm:$0xff]
    %v519 = vld [vmem:[#allocation8 + $0x1f8] sm:$0xff]
    %v520 = vld [vmem:[#allocation8 + $0x200] sm:$0xff]
    %v521 = vld [vmem:[#allocation8 + $0x208] sm:$0xff]
    %v522 = vld [vmem:[#allocation8 + $0x210] sm:$0xff]
    %v523 = vld [vmem:[#allocation8 + $0x218] sm:$0xff]
    %v524 = vld [vmem:[#allocation8 + $0x220] sm:$0xff]
    %v525 = vld [vmem:[#allocation8 + $0x228] sm:$0xff]
    %v526 = vld [vmem:[#allocation8 + $0x230] sm:$0xff]
    %v527 = vld [vmem:[#allocation8 + $0x238] sm:$0xff]
    %v528 = vld [vmem:[#allocation8 + $0x240] sm:$0xff]
    %v529 = vld [vmem:[#allocation8 + $0x248] sm:$0xff]
    %v530 = vld [vmem:[#allocation8 + $0x250] sm:$0xff]
    %v531 = vld [vmem:[#allocation8 + $0x258] sm:$0xff]
    %v532 = vld [vmem:[#allocation8 + $0x260] sm:$0xff]
    %v533 = vld [vmem:[#allocation8 + $0x268] sm:$0xff]
    %v534 = vld [vmem:[#allocation8 + $0x270] sm:$0xff]
    %v535 = vld [vmem:[#allocation8 + $0x278] sm:$0xff]
    %v536 = vld [vmem:[#allocation8 + $0x280] sm:$0xff]
    %v537 = vld [vmem:[#allocation8 + $0x288] sm:$0xff]
    %v538 = vld [vmem:[#allocation8 + $0x290] sm:$0xff]
    %v539 = vld [vmem:[#allocation8 + $0x298] sm:$0xff]
    %v540 = vld [vmem:[#allocation8 + $0x2a0] sm:$0xff]
    %v541 = vld [vmem:[#allocation8 + $0x2a8] sm:$0xff]
    %v542 = vld [vmem:[#allocation8 + $0x2b0] sm:$0xff]
    %v543 = vld [vmem:[#allocation8 + $0x2b8] sm:$0xff]
    %v544 = vld [vmem:[#allocation8 + $0x2c0] sm:$0xff]
    %v545 = vld [vmem:[#allocation8 + $0x2c8] sm:$0xff]
    %v546 = vld [vmem:[#allocation8 + $0x2d0] sm:$0xff]
    %v547 = vld [vmem:[#allocation8 + $0x2d8] sm:$0xff]
    %v548 = vld [vmem:[#allocation8 + $0x2e0] sm:$0xff]
    %v549 = vld [vmem:[#allocation8 + $0x2e8] sm:$0xff]
    %v550 = vld [vmem:[#allocation8 + $0x2f0] sm:$0xff]
    %v551 = vld [vmem:[#allocation8 + $0x2f8] sm:$0xff]
    %v552 = vld [vmem:[#allocation8 + $0x300] sm:$0xff]
    %v553 = vld [vmem:[#allocation8 + $0x308] sm:$0xff]
    %v554 = vld [vmem:[#allocation8 + $0x310] sm:$0xff]
    %v555 = vld [vmem:[#allocation8 + $0x318] sm:$0xff]
    %v556 = vld [vmem:[#allocation8 + $0x320] sm:$0xff]
    %v557 = vld [vmem:[#allocation8 + $0x328] sm:$0xff]
    %v558 = vld [vmem:[#allocation8 + $0x330] sm:$0xff]
    %v559 = vld [vmem:[#allocation8 + $0x338] sm:$0xff]
    %v560 = vld [vmem:[#allocation8 + $0x340] sm:$0xff]
    %v561 = vld [vmem:[#allocation8 + $0x348] sm:$0xff]
    %v562 = vld [vmem:[#allocation8 + $0x350] sm:$0xff]
    %v563 = vld [vmem:[#allocation8 + $0x358] sm:$0xff]
    %v564 = vld [vmem:[#allocation8 + $0x360] sm:$0xff]
    %v565 = vld [vmem:[#allocation8 + $0x368] sm:$0xff]
    %v566 = vld [vmem:[#allocation8 + $0x370] sm:$0xff]
    %v567 = vld [vmem:[#allocation8 + $0x378] sm:$0xff]
    %v568 = vld [vmem:[#allocation8 + $0x380] sm:$0xff]
    %v569 = vld [vmem:[#allocation8 + $0x388] sm:$0xff]
    %v570 = vld [vmem:[#allocation8 + $0x390] sm:$0xff]
    %v571 = vld [vmem:[#allocation8 + $0x398] sm:$0xff]
    %v572 = vld [vmem:[#allocation8 + $0x3a0] sm:$0xff]
    %v573 = vld [vmem:[#allocation8 + $0x3a8] sm:$0xff]
    %v574 = vld [vmem:[#allocation8 + $0x3b0] sm:$0xff]
    %v575 = vld [vmem:[#allocation8 + $0x3b8] sm:$0xff]
    %v576 = vld [vmem:[#allocation8 + $0x3c0] sm:$0xff]
    %v577 = vld [vmem:[#allocation8 + $0x3c8] sm:$0xff]
    %v578 = vld [vmem:[#allocation8 + $0x3d0] sm:$0xff]
    %v579 = vld [vmem:[#allocation8 + $0x3d8] sm:$0xff]
    %v580 = vld [vmem:[#allocation8 + $0x3e0] sm:$0xff]
    %v581 = vld [vmem:[#allocation8 + $0x3e8] sm:$0xff]
    %v582 = vld [vmem:[#allocation8 + $0x3f0] sm:$0xff]
    %v583 = vld [vmem:[#allocation8 + $0x3f8] sm:$0xff]
    %v584 = vld [vmem:[#allocation8 + $0x400] sm:$0xff]
    %v585 = vld [vmem:[#allocation8 + $0x408] sm:$0xff]
    %v586 = vld [vmem:[#allocation8 + $0x410] sm:$0xff]
    %v587 = vld [vmem:[#allocation8 + $0x418] sm:$0xff]
    %v588 = vld [vmem:[#allocation8 + $0x420] sm:$0xff]
    %v589 = vld [vmem:[#allocation8 + $0x428] sm:$0xff]
    %v590 = vld [vmem:[#allocation8 + $0x430] sm:$0xff]
    %v591 = vld [vmem:[#allocation8 + $0x438] sm:$0xff]
    %v592 = vld [vmem:[#allocation8 + $0x440] sm:$0xff]
    %v593 = vld [vmem:[#allocation8 + $0x448] sm:$0xff]
    %v594 = vld [vmem:[#allocation8 + $0x450] sm:$0xff]
    %v595 = vld [vmem:[#allocation8 + $0x458] sm:$0xff]
    %v596 = vld [vmem:[#allocation8 + $0x460] sm:$0xff]
    %v597 = vld [vmem:[#allocation8 + $0x468] sm:$0xff]
    %v598 = vld [vmem:[#allocation8 + $0x470] sm:$0xff]
    %v599 = vld [vmem:[#allocation8 + $0x478] sm:$0xff]
    %v600 = vld [vmem:[#allocation8 + $0x480] sm:$0xff]
    %v601 = vld [vmem:[#allocation8 + $0x488] sm:$0xff]
    %v602 = vld [vmem:[#allocation8 + $0x490] sm:$0xff]
    %v603 = vld [vmem:[#allocation8 + $0x498] sm:$0xff]
    %v604 = vld [vmem:[#allocation8 + $0x4a0] sm:$0xff]
    %v605 = vld [vmem:[#allocation8 + $0x4a8] sm:$0xff]
    %v606 = vld [vmem:[#allocation8 + $0x4b0] sm:$0xff]
    %v607 = vld [vmem:[#allocation8 + $0x4b8] sm:$0xff]
    %v608 = vld [vmem:[#allocation8 + $0x4c0] sm:$0xff]
    %v609 = vld [vmem:[#allocation8 + $0x4c8] sm:$0xff]
    %v610 = vld [vmem:[#allocation8 + $0x4d0] sm:$0xff]
    %v611 = vld [vmem:[#allocation8 + $0x4d8] sm:$0xff]
    %v612 = vld [vmem:[#allocation8 + $0x4e0] sm:$0xff]
    %v613 = vld [vmem:[#allocation8 + $0x4e8] sm:$0xff]
    %v614 = vld [vmem:[#allocation8 + $0x4f0] sm:$0xff]
    %v615 = vld [vmem:[#allocation8 + $0x4f8] sm:$0xff]
    %v616 = vld [vmem:[#allocation8 + $0x500] sm:$0xff]
    %v617 = vld [vmem:[#allocation8 + $0x508] sm:$0xff]
    %v618 = vld [vmem:[#allocation8 + $0x510] sm:$0xff]
    %v619 = vld [vmem:[#allocation8 + $0x518] sm:$0xff]
    %v620 = vld [vmem:[#allocation8 + $0x520] sm:$0xff]
    %v621 = vld [vmem:[#allocation8 + $0x528] sm:$0xff]
    %v622 = vld [vmem:[#allocation8 + $0x530] sm:$0xff]
    %v623 = vld [vmem:[#allocation8 + $0x538] sm:$0xff]
    %v624 = vld [vmem:[#allocation8 + $0x540] sm:$0xff]
    %v625 = vld [vmem:[#allocation8 + $0x548] sm:$0xff]
    %v626 = vld [vmem:[#allocation8 + $0x550] sm:$0xff]
    %v627 = vld [vmem:[#allocation8 + $0x558] sm:$0xff]
    %v628 = vld [vmem:[#allocation8 + $0x560] sm:$0xff]
    %v629 = vld [vmem:[#allocation8 + $0x568] sm:$0xff]
    %v630 = vld [vmem:[#allocation8 + $0x570] sm:$0xff]
    %v631 = vld [vmem:[#allocation8 + $0x578] sm:$0xff]
    %v632 = vld [vmem:[#allocation8 + $0x580] sm:$0xff]
    %v633 = vld [vmem:[#allocation8 + $0x588] sm:$0xff]
    %v634 = vld [vmem:[#allocation8 + $0x590] sm:$0xff]
    %v635 = vld [vmem:[#allocation8 + $0x598] sm:$0xff]
    %v636 = vld [vmem:[#allocation8 + $0x5a0] sm:$0xff]
    %v637 = vld [vmem:[#allocation8 + $0x5a8] sm:$0xff]
    %v638 = vld [vmem:[#allocation8 + $0x5b0] sm:$0xff]
    %v639 = vld [vmem:[#allocation8 + $0x5b8] sm:$0xff]
    %v640 = vld [vmem:[#allocation8 + $0x5c0] sm:$0xff]
    %v641 = vld [vmem:[#allocation8 + $0x5c8] sm:$0xff]
    %v642 = vld [vmem:[#allocation8 + $0x5d0] sm:$0xff]
    %v643 = vld [vmem:[#allocation8 + $0x5d8] sm:$0xff]
    %v644 = vld [vmem:[#allocation8 + $0x5e0] sm:$0xff]
    %v645 = vld [vmem:[#allocation8 + $0x5e8] sm:$0xff]
    %v646 = vld [vmem:[#allocation8 + $0x5f0] sm:$0xff]
    %v647 = vld [vmem:[#allocation8 + $0x5f8] sm:$0xff]
    %v648 = vld [vmem:[#allocation8 + $0x600] sm:$0xff]
    %v649 = vld [vmem:[#allocation8 + $0x608] sm:$0xff]
    %v650 = vld [vmem:[#allocation8 + $0x610] sm:$0xff]
    %v651 = vld [vmem:[#allocation8 + $0x618] sm:$0xff]
    %v652 = vld [vmem:[#allocation8 + $0x620] sm:$0xff]
    %v653 = vld [vmem:[#allocation8 + $0x628] sm:$0xff]
    %v654 = vld [vmem:[#allocation8 + $0x630] sm:$0xff]
    %v655 = vld [vmem:[#allocation8 + $0x638] sm:$0xff]
    %v656 = vld [vmem:[#allocation8 + $0x640] sm:$0xff]
    %v657 = vld [vmem:[#allocation8 + $0x648] sm:$0xff]
    %v658 = vld [vmem:[#allocation8 + $0x650] sm:$0xff]
    %v659 = vld [vmem:[#allocation8 + $0x658] sm:$0xff]
    %v660 = vld [vmem:[#allocation8 + $0x660] sm:$0xff]
    %v661 = vld [vmem:[#allocation8 + $0x668] sm:$0xff]
    %v662 = vld [vmem:[#allocation8 + $0x670] sm:$0xff]
    %v663 = vld [vmem:[#allocation8 + $0x678] sm:$0xff]
    %v664 = vld [vmem:[#allocation8 + $0x680] sm:$0xff]
    %v665 = vld [vmem:[#allocation8 + $0x688] sm:$0xff]
    %v666 = vld [vmem:[#allocation8 + $0x690] sm:$0xff]
    %v667 = vld [vmem:[#allocation8 + $0x698] sm:$0xff]
    %v668 = vld [vmem:[#allocation8 + $0x6a0] sm:$0xff]
    %v669 = vld [vmem:[#allocation8 + $0x6a8] sm:$0xff]
    %v670 = vld [vmem:[#allocation8 + $0x6b0] sm:$0xff]
    %v671 = vld [vmem:[#allocation8 + $0x6b8] sm:$0xff]
    %v672 = vld [vmem:[#allocation8 + $0x6c0] sm:$0xff]
    %v673 = vld [vmem:[#allocation8 + $0x6c8] sm:$0xff]
    %v674 = vld [vmem:[#allocation8 + $0x6d0] sm:$0xff]
    %v675 = vld [vmem:[#allocation8 + $0x6d8] sm:$0xff]
    %v676 = vld [vmem:[#allocation8 + $0x6e0] sm:$0xff]
    %v677 = vld [vmem:[#allocation8 + $0x6e8] sm:$0xff]
    %v678 = vld [vmem:[#allocation8 + $0x6f0] sm:$0xff]
    %v679 = vld [vmem:[#allocation8 + $0x6f8] sm:$0xff]
    %v680 = vld [vmem:[#allocation8 + $0x700] sm:$0xff]
    %v681 = vld [vmem:[#allocation8 + $0x708] sm:$0xff]
    %v682 = vld [vmem:[#allocation8 + $0x710] sm:$0xff]
    %v683 = vld [vmem:[#allocation8 + $0x718] sm:$0xff]
    %v684 = vld [vmem:[#allocation8 + $0x720] sm:$0xff]
    %v685 = vld [vmem:[#allocation8 + $0x728] sm:$0xff]
    %v686 = vld [vmem:[#allocation8 + $0x730] sm:$0xff]
    %v687 = vld [vmem:[#allocation8 + $0x738] sm:$0xff]
    %v688 = vld [vmem:[#allocation8 + $0x740] sm:$0xff]
    %v689 = vld [vmem:[#allocation8 + $0x748] sm:$0xff]
    %v690 = vld [vmem:[#allocation8 + $0x750] sm:$0xff]
    %v691 = vld [vmem:[#allocation8 + $0x758] sm:$0xff]
    %v692 = vld [vmem:[#allocation8 + $0x760] sm:$0xff]
    %v693 = vld [vmem:[#allocation8 + $0x768] sm:$0xff]
    %v694 = vld [vmem:[#allocation8 + $0x770] sm:$0xff]
    %v695 = vld [vmem:[#allocation8 + $0x778] sm:$0xff]
    %v696 = vld [vmem:[#allocation8 + $0x780] sm:$0xff]
    %v697 = vld [vmem:[#allocation8 + $0x788] sm:$0xff]
    %v698 = vld [vmem:[#allocation8 + $0x790] sm:$0xff]
    %v699 = vld [vmem:[#allocation8 + $0x798] sm:$0xff]
    %v700 = vld [vmem:[#allocation8 + $0x7a0] sm:$0xff]
    %v701 = vld [vmem:[#allocation8 + $0x7a8] sm:$0xff]
    %v702 = vld [vmem:[#allocation8 + $0x7b0] sm:$0xff]
    %v703 = vld [vmem:[#allocation8 + $0x7b8] sm:$0xff]
    %v704 = vld [vmem:[#allocation8 + $0x7c0] sm:$0xff]
    %v705 = vld [vmem:[#allocation8 + $0x7c8] sm:$0xff]
    %v706 = vld [vmem:[#allocation8 + $0x7d0] sm:$0xff]
    %v707 = vld [vmem:[#allocation8 + $0x7d8] sm:$0xff]
    %v708 = vld [vmem:[#allocation8 + $0x7e0] sm:$0xff]
    %v709 = vld [vmem:[#allocation8 + $0x7e8] sm:$0xff]
    %v710 = vld [vmem:[#allocation8 + $0x7f0] sm:$0xff]
    %v711 = vld [vmem:[#allocation8 + $0x7f8] sm:$0xff]
    %v712 = vld [vmem:[#allocation3] sm:$0xff]
    %v713 = vld [vmem:[#allocation3 + $0x8] sm:$0x3]
    %716 = vst [vmem:[#allocation1] ss:$4 sm:$0xff] %v712
    %s717 = scalar_lea.vmem [#allocation1], 32
    %718 = vst [vmem:[%s717] ss:$4 sm:$0xff] %v713
    %v719 = vld.sshfl [vmem:[#allocation1] sm:$0xff pattern:$0x73625140]
    %v720 = vld.sshfl [vmem:[#allocation1 + $0x8] sm:$0xff pattern:$0x73625140]
    %v721 = vld.sshfl [vmem:[#allocation1 + $0x10] sm:$0xff pattern:$0x73625140]
    %v722 = vld.sshfl [vmem:[#allocation1 + $0x18] sm:$0xff pattern:$0x73625140]
    %v723 = vld.sshfl [vmem:[#allocation1 + $0x20] sm:$0xff pattern:$0x73625140]
    %v729 = vpack.c.bf16 %v719, %v719
    %v730 = vpack.c.bf16 %v720, %v720
    %v731 = vpack.c.bf16 %v721, %v721
    %v732 = vpack.c.bf16 %v722, %v722
    %v733 = vpack.c.bf16 %v723, %v723
    %v734 = vld [vmem:[#allocation10] sm:$0xff]
    %v735 = vld [vmem:[#allocation10 + $0x8] sm:$0xff]
    %v736 = vld [vmem:[#allocation10 + $0x10] sm:$0xff]
    %v737 = vld [vmem:[#allocation10 + $0x18] sm:$0xff]
    %v738 = vld [vmem:[#allocation10 + $0x20] sm:$0xff]
    %v739 = vld [vmem:[#allocation10 + $0x28] sm:$0xff]
    %v740 = vld [vmem:[#allocation10 + $0x30] sm:$0xff]
    %v741 = vld [vmem:[#allocation10 + $0x38] sm:$0xff]
    %v742 = vld [vmem:[#allocation10 + $0x40] sm:$0xff]
    %v743 = vld [vmem:[#allocation10 + $0x48] sm:$0xff]
    %v744 = vld [vmem:[#allocation10 + $0x50] sm:$0xff]
    %v745 = vld [vmem:[#allocation10 + $0x58] sm:$0xff]
    %v746 = vld [vmem:[#allocation10 + $0x60] sm:$0xff]
    %v747 = vld [vmem:[#allocation10 + $0x68] sm:$0xff]
    %v748 = vld [vmem:[#allocation10 + $0x70] sm:$0xff]
    %v749 = vld [vmem:[#allocation10 + $0x78] sm:$0xff]
    %v750 = vld [vmem:[#allocation10 + $0x80] sm:$0xff]
    %v751 = vld [vmem:[#allocation10 + $0x88] sm:$0xff]
    %v752 = vld [vmem:[#allocation10 + $0x90] sm:$0xff]
    %v753 = vld [vmem:[#allocation10 + $0x98] sm:$0xff]
    %v754 = vld [vmem:[#allocation10 + $0xa0] sm:$0xff]
    %v755 = vld [vmem:[#allocation10 + $0xa8] sm:$0xff]
    %v756 = vld [vmem:[#allocation10 + $0xb0] sm:$0xff]
    %v757 = vld [vmem:[#allocation10 + $0xb8] sm:$0xff]
    %v758 = vld [vmem:[#allocation10 + $0xc0] sm:$0xff]
    %v759 = vld [vmem:[#allocation10 + $0xc8] sm:$0xff]
    %v760 = vld [vmem:[#allocation10 + $0xd0] sm:$0xff]
    %v761 = vld [vmem:[#allocation10 + $0xd8] sm:$0xff]
    %v762 = vld [vmem:[#allocation10 + $0xe0] sm:$0xff]
    %v763 = vld [vmem:[#allocation10 + $0xe8] sm:$0xff]
    %v764 = vld [vmem:[#allocation10 + $0xf0] sm:$0xff]
    %v765 = vld [vmem:[#allocation10 + $0xf8] sm:$0xff]
    %v766 = vld [vmem:[#allocation10 + $0x100] sm:$0xff]
    %v767 = vld [vmem:[#allocation10 + $0x108] sm:$0xff]
    %v768 = vld [vmem:[#allocation10 + $0x110] sm:$0xff]
    %v769 = vld [vmem:[#allocation10 + $0x118] sm:$0xff]
    %v770 = vld [vmem:[#allocation10 + $0x120] sm:$0xff]
    %v771 = vld [vmem:[#allocation10 + $0x128] sm:$0xff]
    %v772 = vld [vmem:[#allocation10 + $0x130] sm:$0xff]
    %v773 = vld [vmem:[#allocation10 + $0x138] sm:$0xff]
    %v774 = vld [vmem:[#allocation10 + $0x140] sm:$0xff]
    %v775 = vld [vmem:[#allocation10 + $0x148] sm:$0xff]
    %v776 = vld [vmem:[#allocation10 + $0x150] sm:$0xff]
    %v777 = vld [vmem:[#allocation10 + $0x158] sm:$0xff]
    %v778 = vld [vmem:[#allocation10 + $0x160] sm:$0xff]
    %v779 = vld [vmem:[#allocation10 + $0x168] sm:$0xff]
    %v780 = vld [vmem:[#allocation10 + $0x170] sm:$0xff]
    %v781 = vld [vmem:[#allocation10 + $0x178] sm:$0xff]
    %v782 = vld [vmem:[#allocation10 + $0x180] sm:$0xff]
    %v783 = vld [vmem:[#allocation10 + $0x188] sm:$0xff]
    %v784 = vld [vmem:[#allocation10 + $0x190] sm:$0xff]
    %v785 = vld [vmem:[#allocation10 + $0x198] sm:$0xff]
    %v786 = vld [vmem:[#allocation10 + $0x1a0] sm:$0xff]
    %v787 = vld [vmem:[#allocation10 + $0x1a8] sm:$0xff]
    %v788 = vld [vmem:[#allocation10 + $0x1b0] sm:$0xff]
    %v789 = vld [vmem:[#allocation10 + $0x1b8] sm:$0xff]
    %v790 = vld [vmem:[#allocation10 + $0x1c0] sm:$0xff]
    %v791 = vld [vmem:[#allocation10 + $0x1c8] sm:$0xff]
    %v792 = vld [vmem:[#allocation10 + $0x1d0] sm:$0xff]
    %v793 = vld [vmem:[#allocation10 + $0x1d8] sm:$0xff]
    %v794 = vld [vmem:[#allocation10 + $0x1e0] sm:$0xff]
    %v795 = vld [vmem:[#allocation10 + $0x1e8] sm:$0xff]
    %v796 = vld [vmem:[#allocation10 + $0x1f0] sm:$0xff]
    %v797 = vld [vmem:[#allocation10 + $0x1f8] sm:$0xff]
    %v798 = vld [vmem:[#allocation10 + $0x200] sm:$0xff]
    %v799 = vld [vmem:[#allocation10 + $0x208] sm:$0xff]
    %v800 = vld [vmem:[#allocation10 + $0x210] sm:$0xff]
    %v801 = vld [vmem:[#allocation10 + $0x218] sm:$0xff]
    %v802 = vld [vmem:[#allocation10 + $0x220] sm:$0xff]
    %v803 = vld [vmem:[#allocation10 + $0x228] sm:$0xff]
    %v804 = vld [vmem:[#allocation10 + $0x230] sm:$0xff]
    %v805 = vld [vmem:[#allocation10 + $0x238] sm:$0xff]
    %v806 = vld [vmem:[#allocation10 + $0x240] sm:$0xff]
    %v807 = vld [vmem:[#allocation10 + $0x248] sm:$0xff]
    %v808 = vld [vmem:[#allocation10 + $0x250] sm:$0xff]
    %v809 = vld [vmem:[#allocation10 + $0x258] sm:$0xff]
    %v810 = vld [vmem:[#allocation10 + $0x260] sm:$0xff]
    %v811 = vld [vmem:[#allocation10 + $0x268] sm:$0xff]
    %v812 = vld [vmem:[#allocation10 + $0x270] sm:$0xff]
    %v813 = vld [vmem:[#allocation10 + $0x278] sm:$0xff]
    %v814 = vld [vmem:[#allocation10 + $0x280] sm:$0xff]
    %v815 = vld [vmem:[#allocation10 + $0x288] sm:$0xff]
    %v816 = vld [vmem:[#allocation10 + $0x290] sm:$0xff]
    %v817 = vld [vmem:[#allocation10 + $0x298] sm:$0xff]
    %v818 = vld [vmem:[#allocation10 + $0x2a0] sm:$0xff]
    %v819 = vld [vmem:[#allocation10 + $0x2a8] sm:$0xff]
    %v820 = vld [vmem:[#allocation10 + $0x2b0] sm:$0xff]
    %v821 = vld [vmem:[#allocation10 + $0x2b8] sm:$0xff]
    %v822 = vld [vmem:[#allocation10 + $0x2c0] sm:$0xff]
    %v823 = vld [vmem:[#allocation10 + $0x2c8] sm:$0xff]
    %v824 = vld [vmem:[#allocation10 + $0x2d0] sm:$0xff]
    %v825 = vld [vmem:[#allocation10 + $0x2d8] sm:$0xff]
    %v826 = vld [vmem:[#allocation10 + $0x2e0] sm:$0xff]
    %v827 = vld [vmem:[#allocation10 + $0x2e8] sm:$0xff]
    %v828 = vld [vmem:[#allocation10 + $0x2f0] sm:$0xff]
    %v829 = vld [vmem:[#allocation10 + $0x2f8] sm:$0xff]
    %v830 = vld [vmem:[#allocation10 + $0x300] sm:$0xff]
    %v831 = vld [vmem:[#allocation10 + $0x308] sm:$0xff]
    %v832 = vld [vmem:[#allocation10 + $0x310] sm:$0xff]
    %v833 = vld [vmem:[#allocation10 + $0x318] sm:$0xff]
    %v834 = vld [vmem:[#allocation10 + $0x320] sm:$0xff]
    %v835 = vld [vmem:[#allocation10 + $0x328] sm:$0xff]
    %v836 = vld [vmem:[#allocation10 + $0x330] sm:$0xff]
    %v837 = vld [vmem:[#allocation10 + $0x338] sm:$0xff]
    %v838 = vld [vmem:[#allocation10 + $0x340] sm:$0xff]
    %v839 = vld [vmem:[#allocation10 + $0x348] sm:$0xff]
    %v840 = vld [vmem:[#allocation10 + $0x350] sm:$0xff]
    %v841 = vld [vmem:[#allocation10 + $0x358] sm:$0xff]
    %v842 = vld [vmem:[#allocation10 + $0x360] sm:$0xff]
    %v843 = vld [vmem:[#allocation10 + $0x368] sm:$0xff]
    %v844 = vld [vmem:[#allocation10 + $0x370] sm:$0xff]
    %v845 = vld [vmem:[#allocation10 + $0x378] sm:$0xff]
    %v846 = vld [vmem:[#allocation10 + $0x380] sm:$0xff]
    %v847 = vld [vmem:[#allocation10 + $0x388] sm:$0xff]
    %v848 = vld [vmem:[#allocation10 + $0x390] sm:$0xff]
    %v849 = vld [vmem:[#allocation10 + $0x398] sm:$0xff]
    %v850 = vld [vmem:[#allocation10 + $0x3a0] sm:$0xff]
    %v851 = vld [vmem:[#allocation10 + $0x3a8] sm:$0xff]
    %v852 = vld [vmem:[#allocation10 + $0x3b0] sm:$0xff]
    %v853 = vld [vmem:[#allocation10 + $0x3b8] sm:$0xff]
    %v854 = vld [vmem:[#allocation10 + $0x3c0] sm:$0xff]
    %v855 = vld [vmem:[#allocation10 + $0x3c8] sm:$0xff]
    %v856 = vld [vmem:[#allocation10 + $0x3d0] sm:$0xff]
    %v857 = vld [vmem:[#allocation10 + $0x3d8] sm:$0xff]
    %v858 = vld [vmem:[#allocation10 + $0x3e0] sm:$0xff]
    %v859 = vld [vmem:[#allocation10 + $0x3e8] sm:$0xff]
    %v860 = vld [vmem:[#allocation10 + $0x3f0] sm:$0xff]
    %v861 = vld [vmem:[#allocation10 + $0x3f8] sm:$0xff]
    %v862 = vld [vmem:[#allocation10 + $0x400] sm:$0xff]
    %v863 = vld [vmem:[#allocation10 + $0x408] sm:$0xff]
    %v864 = vld [vmem:[#allocation10 + $0x410] sm:$0xff]
    %v865 = vld [vmem:[#allocation10 + $0x418] sm:$0xff]
    %v866 = vld [vmem:[#allocation10 + $0x420] sm:$0xff]
    %v867 = vld [vmem:[#allocation10 + $0x428] sm:$0xff]
    %v868 = vld [vmem:[#allocation10 + $0x430] sm:$0xff]
    %v869 = vld [vmem:[#allocation10 + $0x438] sm:$0xff]
    %v870 = vld [vmem:[#allocation10 + $0x440] sm:$0xff]
    %v871 = vld [vmem:[#allocation10 + $0x448] sm:$0xff]
    %v872 = vld [vmem:[#allocation10 + $0x450] sm:$0xff]
    %v873 = vld [vmem:[#allocation10 + $0x458] sm:$0xff]
    %v874 = vld [vmem:[#allocation10 + $0x460] sm:$0xff]
    %v875 = vld [vmem:[#allocation10 + $0x468] sm:$0xff]
    %v876 = vld [vmem:[#allocation10 + $0x470] sm:$0xff]
    %v877 = vld [vmem:[#allocation10 + $0x478] sm:$0xff]
    %v878 = vld [vmem:[#allocation10 + $0x480] sm:$0xff]
    %v879 = vld [vmem:[#allocation10 + $0x488] sm:$0xff]
    %v880 = vld [vmem:[#allocation10 + $0x490] sm:$0xff]
    %v881 = vld [vmem:[#allocation10 + $0x498] sm:$0xff]
    %v882 = vld [vmem:[#allocation10 + $0x4a0] sm:$0xff]
    %v883 = vld [vmem:[#allocation10 + $0x4a8] sm:$0xff]
    %v884 = vld [vmem:[#allocation10 + $0x4b0] sm:$0xff]
    %v885 = vld [vmem:[#allocation10 + $0x4b8] sm:$0xff]
    %v886 = vld [vmem:[#allocation10 + $0x4c0] sm:$0xff]
    %v887 = vld [vmem:[#allocation10 + $0x4c8] sm:$0xff]
    %v888 = vld [vmem:[#allocation10 + $0x4d0] sm:$0xff]
    %v889 = vld [vmem:[#allocation10 + $0x4d8] sm:$0xff]
    %v890 = vld [vmem:[#allocation10 + $0x4e0] sm:$0xff]
    %v891 = vld [vmem:[#allocation10 + $0x4e8] sm:$0xff]
    %v892 = vld [vmem:[#allocation10 + $0x4f0] sm:$0xff]
    %v893 = vld [vmem:[#allocation10 + $0x4f8] sm:$0xff]
    %v894 = vld [vmem:[#allocation10 + $0x500] sm:$0xff]
    %v895 = vld [vmem:[#allocation10 + $0x508] sm:$0xff]
    %v896 = vld [vmem:[#allocation10 + $0x510] sm:$0xff]
    %v897 = vld [vmem:[#allocation10 + $0x518] sm:$0xff]
    %v898 = vld [vmem:[#allocation10 + $0x520] sm:$0xff]
    %v899 = vld [vmem:[#allocation10 + $0x528] sm:$0xff]
    %v900 = vld [vmem:[#allocation10 + $0x530] sm:$0xff]
    %v901 = vld [vmem:[#allocation10 + $0x538] sm:$0xff]
    %v902 = vld [vmem:[#allocation10 + $0x540] sm:$0xff]
    %v903 = vld [vmem:[#allocation10 + $0x548] sm:$0xff]
    %v904 = vld [vmem:[#allocation10 + $0x550] sm:$0xff]
    %v905 = vld [vmem:[#allocation10 + $0x558] sm:$0xff]
    %v906 = vld [vmem:[#allocation10 + $0x560] sm:$0xff]
    %v907 = vld [vmem:[#allocation10 + $0x568] sm:$0xff]
    %v908 = vld [vmem:[#allocation10 + $0x570] sm:$0xff]
    %v909 = vld [vmem:[#allocation10 + $0x578] sm:$0xff]
    %v910 = vld [vmem:[#allocation10 + $0x580] sm:$0xff]
    %v911 = vld [vmem:[#allocation10 + $0x588] sm:$0xff]
    %v912 = vld [vmem:[#allocation10 + $0x590] sm:$0xff]
    %v913 = vld [vmem:[#allocation10 + $0x598] sm:$0xff]
    %v914 = vld [vmem:[#allocation10 + $0x5a0] sm:$0xff]
    %v915 = vld [vmem:[#allocation10 + $0x5a8] sm:$0xff]
    %v916 = vld [vmem:[#allocation10 + $0x5b0] sm:$0xff]
    %v917 = vld [vmem:[#allocation10 + $0x5b8] sm:$0xff]
    %v918 = vld [vmem:[#allocation10 + $0x5c0] sm:$0xff]
    %v919 = vld [vmem:[#allocation10 + $0x5c8] sm:$0xff]
    %v920 = vld [vmem:[#allocation10 + $0x5d0] sm:$0xff]
    %v921 = vld [vmem:[#allocation10 + $0x5d8] sm:$0xff]
    %v922 = vld [vmem:[#allocation10 + $0x5e0] sm:$0xff]
    %v923 = vld [vmem:[#allocation10 + $0x5e8] sm:$0xff]
    %v924 = vld [vmem:[#allocation10 + $0x5f0] sm:$0xff]
    %v925 = vld [vmem:[#allocation10 + $0x5f8] sm:$0xff]
    %v926 = vld [vmem:[#allocation10 + $0x600] sm:$0xff]
    %v927 = vld [vmem:[#allocation10 + $0x608] sm:$0xff]
    %v928 = vld [vmem:[#allocation10 + $0x610] sm:$0xff]
    %v929 = vld [vmem:[#allocation10 + $0x618] sm:$0xff]
    %v930 = vld [vmem:[#allocation10 + $0x620] sm:$0xff]
    %v931 = vld [vmem:[#allocation10 + $0x628] sm:$0xff]
    %v932 = vld [vmem:[#allocation10 + $0x630] sm:$0xff]
    %v933 = vld [vmem:[#allocation10 + $0x638] sm:$0xff]
    %v934 = vld [vmem:[#allocation10 + $0x640] sm:$0xff]
    %v935 = vld [vmem:[#allocation10 + $0x648] sm:$0xff]
    %v936 = vld [vmem:[#allocation10 + $0x650] sm:$0xff]
    %v937 = vld [vmem:[#allocation10 + $0x658] sm:$0xff]
    %v938 = vld [vmem:[#allocation10 + $0x660] sm:$0xff]
    %v939 = vld [vmem:[#allocation10 + $0x668] sm:$0xff]
    %v940 = vld [vmem:[#allocation10 + $0x670] sm:$0xff]
    %v941 = vld [vmem:[#allocation10 + $0x678] sm:$0xff]
    %v942 = vld [vmem:[#allocation10 + $0x680] sm:$0xff]
    %v943 = vld [vmem:[#allocation10 + $0x688] sm:$0xff]
    %v944 = vld [vmem:[#allocation10 + $0x690] sm:$0xff]
    %v945 = vld [vmem:[#allocation10 + $0x698] sm:$0xff]
    %v946 = vld [vmem:[#allocation10 + $0x6a0] sm:$0xff]
    %v947 = vld [vmem:[#allocation10 + $0x6a8] sm:$0xff]
    %v948 = vld [vmem:[#allocation10 + $0x6b0] sm:$0xff]
    %v949 = vld [vmem:[#allocation10 + $0x6b8] sm:$0xff]
    %v950 = vld [vmem:[#allocation10 + $0x6c0] sm:$0xff]
    %v951 = vld [vmem:[#allocation10 + $0x6c8] sm:$0xff]
    %v952 = vld [vmem:[#allocation10 + $0x6d0] sm:$0xff]
    %v953 = vld [vmem:[#allocation10 + $0x6d8] sm:$0xff]
    %v954 = vld [vmem:[#allocation10 + $0x6e0] sm:$0xff]
    %v955 = vld [vmem:[#allocation10 + $0x6e8] sm:$0xff]
    %v956 = vld [vmem:[#allocation10 + $0x6f0] sm:$0xff]
    %v957 = vld [vmem:[#allocation10 + $0x6f8] sm:$0xff]
    %v958 = vld [vmem:[#allocation10 + $0x700] sm:$0xff]
    %v959 = vld [vmem:[#allocation10 + $0x708] sm:$0xff]
    %v960 = vld [vmem:[#allocation10 + $0x710] sm:$0xff]
    %v961 = vld [vmem:[#allocation10 + $0x718] sm:$0xff]
    %v962 = vld [vmem:[#allocation10 + $0x720] sm:$0xff]
    %v963 = vld [vmem:[#allocation10 + $0x728] sm:$0xff]
    %v964 = vld [vmem:[#allocation10 + $0x730] sm:$0xff]
    %v965 = vld [vmem:[#allocation10 + $0x738] sm:$0xff]
    %v966 = vld [vmem:[#allocation10 + $0x740] sm:$0xff]
    %v967 = vld [vmem:[#allocation10 + $0x748] sm:$0xff]
    %v968 = vld [vmem:[#allocation10 + $0x750] sm:$0xff]
    %v969 = vld [vmem:[#allocation10 + $0x758] sm:$0xff]
    %v970 = vld [vmem:[#allocation10 + $0x760] sm:$0xff]
    %v971 = vld [vmem:[#allocation10 + $0x768] sm:$0xff]
    %v972 = vld [vmem:[#allocation10 + $0x770] sm:$0xff]
    %v973 = vld [vmem:[#allocation10 + $0x778] sm:$0xff]
    %v974 = vld [vmem:[#allocation10 + $0x780] sm:$0xff]
    %v975 = vld [vmem:[#allocation10 + $0x788] sm:$0xff]
    %v976 = vld [vmem:[#allocation10 + $0x790] sm:$0xff]
    %v977 = vld [vmem:[#allocation10 + $0x798] sm:$0xff]
    %v978 = vld [vmem:[#allocation10 + $0x7a0] sm:$0xff]
    %v979 = vld [vmem:[#allocation10 + $0x7a8] sm:$0xff]
    %v980 = vld [vmem:[#allocation10 + $0x7b0] sm:$0xff]
    %v981 = vld [vmem:[#allocation10 + $0x7b8] sm:$0xff]
    %v982 = vld [vmem:[#allocation10 + $0x7c0] sm:$0xff]
    %v983 = vld [vmem:[#allocation10 + $0x7c8] sm:$0xff]
    %v984 = vld [vmem:[#allocation10 + $0x7d0] sm:$0xff]
    %v985 = vld [vmem:[#allocation10 + $0x7d8] sm:$0xff]
    %v986 = vld [vmem:[#allocation10 + $0x7e0] sm:$0xff]
    %v987 = vld [vmem:[#allocation10 + $0x7e8] sm:$0xff]
    %v988 = vld [vmem:[#allocation10 + $0x7f0] sm:$0xff]
    %v989 = vld [vmem:[#allocation10 + $0x7f8] sm:$0xff]
    %v990 = vld [vmem:[#allocation10 + $0x800] sm:$0xff]
    %v991 = vld [vmem:[#allocation10 + $0x808] sm:$0xff]
    %v992 = vld [vmem:[#allocation10 + $0x810] sm:$0xff]
    %v993 = vld [vmem:[#allocation10 + $0x818] sm:$0xff]
    %v994 = vld [vmem:[#allocation10 + $0x820] sm:$0xff]
    %v995 = vld [vmem:[#allocation10 + $0x828] sm:$0xff]
    %v996 = vld [vmem:[#allocation10 + $0x830] sm:$0xff]
    %v997 = vld [vmem:[#allocation10 + $0x838] sm:$0xff]
    %v998 = vld [vmem:[#allocation10 + $0x840] sm:$0xff]
    %v999 = vld [vmem:[#allocation10 + $0x848] sm:$0xff]
    %v1000 = vld [vmem:[#allocation10 + $0x850] sm:$0xff]
    %v1001 = vld [vmem:[#allocation10 + $0x858] sm:$0xff]
    %v1002 = vld [vmem:[#allocation10 + $0x860] sm:$0xff]
    %v1003 = vld [vmem:[#allocation10 + $0x868] sm:$0xff]
    %v1004 = vld [vmem:[#allocation10 + $0x870] sm:$0xff]
    %v1005 = vld [vmem:[#allocation10 + $0x878] sm:$0xff]
    %v1006 = vld [vmem:[#allocation10 + $0x880] sm:$0xff]
    %v1007 = vld [vmem:[#allocation10 + $0x888] sm:$0xff]
    %v1008 = vld [vmem:[#allocation10 + $0x890] sm:$0xff]
    %v1009 = vld [vmem:[#allocation10 + $0x898] sm:$0xff]
    %v1010 = vld [vmem:[#allocation10 + $0x8a0] sm:$0xff]
    %v1011 = vld [vmem:[#allocation10 + $0x8a8] sm:$0xff]
    %v1012 = vld [vmem:[#allocation10 + $0x8b0] sm:$0xff]
    %v1013 = vld [vmem:[#allocation10 + $0x8b8] sm:$0xff]
    %v1014 = vld [vmem:[#allocation10 + $0x8c0] sm:$0xff]
    %v1015 = vld [vmem:[#allocation10 + $0x8c8] sm:$0xff]
    %v1016 = vld [vmem:[#allocation10 + $0x8d0] sm:$0xff]
    %v1017 = vld [vmem:[#allocation10 + $0x8d8] sm:$0xff]
    %v1018 = vld [vmem:[#allocation10 + $0x8e0] sm:$0xff]
    %v1019 = vld [vmem:[#allocation10 + $0x8e8] sm:$0xff]
    %v1020 = vld [vmem:[#allocation10 + $0x8f0] sm:$0xff]
    %v1021 = vld [vmem:[#allocation10 + $0x8f8] sm:$0xff]
    %v1022 = vld [vmem:[#allocation10 + $0x900] sm:$0xff]
    %v1023 = vld [vmem:[#allocation10 + $0x908] sm:$0xff]
    %v1024 = vld [vmem:[#allocation10 + $0x910] sm:$0xff]
    %v1025 = vld [vmem:[#allocation10 + $0x918] sm:$0xff]
    %v1026 = vld [vmem:[#allocation10 + $0x920] sm:$0xff]
    %v1027 = vld [vmem:[#allocation10 + $0x928] sm:$0xff]
    %v1028 = vld [vmem:[#allocation10 + $0x930] sm:$0xff]
    %v1029 = vld [vmem:[#allocation10 + $0x938] sm:$0xff]
    %v1030 = vld [vmem:[#allocation10 + $0x940] sm:$0xff]
    %v1031 = vld [vmem:[#allocation10 + $0x948] sm:$0xff]
    %v1032 = vld [vmem:[#allocation10 + $0x950] sm:$0xff]
    %v1033 = vld [vmem:[#allocation10 + $0x958] sm:$0xff]
    %v1034 = vld [vmem:[#allocation10 + $0x960] sm:$0xff]
    %v1035 = vld [vmem:[#allocation10 + $0x968] sm:$0xff]
    %v1036 = vld [vmem:[#allocation10 + $0x970] sm:$0xff]
    %v1037 = vld [vmem:[#allocation10 + $0x978] sm:$0xff]
    %v1038 = vld [vmem:[#allocation10 + $0x980] sm:$0xff]
    %v1039 = vld [vmem:[#allocation10 + $0x988] sm:$0xff]
    %v1040 = vld [vmem:[#allocation10 + $0x990] sm:$0xff]
    %v1041 = vld [vmem:[#allocation10 + $0x998] sm:$0xff]
    %v1042 = vld [vmem:[#allocation10 + $0x9a0] sm:$0xff]
    %v1043 = vld [vmem:[#allocation10 + $0x9a8] sm:$0xff]
    %v1044 = vld [vmem:[#allocation10 + $0x9b0] sm:$0xff]
    %v1045 = vld [vmem:[#allocation10 + $0x9b8] sm:$0xff]
    %v1046 = vld [vmem:[#allocation10 + $0x9c0] sm:$0x11]
    %v1047 = vld [vmem:[#allocation10 + $0x9c8] sm:$0x11]
    %v1048 = vld [vmem:[#allocation10 + $0x9d0] sm:$0x11]
    %v1049 = vld [vmem:[#allocation10 + $0x9d8] sm:$0x11]
    %v1366 = vunpack.c.l.b16 %v734
    %v1367 = vunpack.c.h.b16 %v734
    %v1368 = vunpack.c.l.b16 %v735
    %v1369 = vunpack.c.h.b16 %v735
    %v1370 = vunpack.c.l.b16 %v736
    %v1371 = vunpack.c.h.b16 %v736
    %v1372 = vunpack.c.l.b16 %v737
    %v1373 = vunpack.c.h.b16 %v737
    %v1374 = vunpack.c.l.b16 %v738
    %v1375 = vunpack.c.h.b16 %v738
    %v1376 = vunpack.c.l.b16 %v739
    %v1377 = vunpack.c.h.b16 %v739
    %v1378 = vunpack.c.l.b16 %v740
    %v1379 = vunpack.c.h.b16 %v740
    %v1380 = vunpack.c.l.b16 %v741
    %v1381 = vunpack.c.h.b16 %v741
    %v1382 = vunpack.c.l.b16 %v742
    %v1383 = vunpack.c.h.b16 %v742
    %v1384 = vunpack.c.l.b16 %v743
    %v1385 = vunpack.c.h.b16 %v743
    %v1386 = vunpack.c.l.b16 %v744
    %v1387 = vunpack.c.h.b16 %v744
    %v1388 = vunpack.c.l.b16 %v745
    %v1389 = vunpack.c.h.b16 %v745
    %v1390 = vunpack.c.l.b16 %v746
    %v1391 = vunpack.c.h.b16 %v746
    %v1392 = vunpack.c.l.b16 %v747
    %v1393 = vunpack.c.h.b16 %v747
    %v1394 = vunpack.c.l.b16 %v748
    %v1395 = vunpack.c.h.b16 %v748
    %v1396 = vunpack.c.l.b16 %v749
    %v1397 = vunpack.c.h.b16 %v749
    %v1398 = vunpack.c.l.b16 %v750
    %v1399 = vunpack.c.h.b16 %v750
    %v1400 = vunpack.c.l.b16 %v751
    %v1401 = vunpack.c.h.b16 %v751
    %v1402 = vunpack.c.l.b16 %v752
    %v1403 = vunpack.c.h.b16 %v752
    %v1404 = vunpack.c.l.b16 %v753
    %v1405 = vunpack.c.h.b16 %v753
    %v1406 = vunpack.c.l.b16 %v754
    %v1407 = vunpack.c.h.b16 %v754
    %v1408 = vunpack.c.l.b16 %v755
    %v1409 = vunpack.c.h.b16 %v755
    %v1410 = vunpack.c.l.b16 %v756
    %v1411 = vunpack.c.h.b16 %v756
    %v1412 = vunpack.c.l.b16 %v757
    %v1413 = vunpack.c.h.b16 %v757
    %v1414 = vunpack.c.l.b16 %v758
    %v1415 = vunpack.c.h.b16 %v758
    %v1416 = vunpack.c.l.b16 %v759
    %v1417 = vunpack.c.h.b16 %v759
    %v1418 = vunpack.c.l.b16 %v760
    %v1419 = vunpack.c.h.b16 %v760
    %v1420 = vunpack.c.l.b16 %v761
    %v1421 = vunpack.c.h.b16 %v761
    %v1422 = vunpack.c.l.b16 %v762
    %v1423 = vunpack.c.h.b16 %v762
    %v1424 = vunpack.c.l.b16 %v763
    %v1425 = vunpack.c.h.b16 %v763
    %v1426 = vunpack.c.l.b16 %v764
    %v1427 = vunpack.c.h.b16 %v764
    %v1428 = vunpack.c.l.b16 %v765
    %v1429 = vunpack.c.h.b16 %v765
    %v1430 = vunpack.c.l.b16 %v766
    %v1431 = vunpack.c.h.b16 %v766
    %v1432 = vunpack.c.l.b16 %v767
    %v1433 = vunpack.c.h.b16 %v767
    %v1434 = vunpack.c.l.b16 %v768
    %v1435 = vunpack.c.h.b16 %v768
    %v1436 = vunpack.c.l.b16 %v769
    %v1437 = vunpack.c.h.b16 %v769
    %v1438 = vunpack.c.l.b16 %v770
    %v1439 = vunpack.c.h.b16 %v770
    %v1440 = vunpack.c.l.b16 %v771
    %v1441 = vunpack.c.h.b16 %v771
    %v1442 = vunpack.c.l.b16 %v772
    %v1443 = vunpack.c.h.b16 %v772
    %v1444 = vunpack.c.l.b16 %v773
    %v1445 = vunpack.c.h.b16 %v773
    %v1446 = vunpack.c.l.b16 %v774
    %v1447 = vunpack.c.h.b16 %v774
    %v1448 = vunpack.c.l.b16 %v775
    %v1449 = vunpack.c.h.b16 %v775
    %v1450 = vunpack.c.l.b16 %v776
    %v1451 = vunpack.c.h.b16 %v776
    %v1452 = vunpack.c.l.b16 %v777
    %v1453 = vunpack.c.h.b16 %v777
    %v1454 = vunpack.c.l.b16 %v778
    %v1455 = vunpack.c.h.b16 %v778
    %v1456 = vunpack.c.l.b16 %v779
    %v1457 = vunpack.c.h.b16 %v779
    %v1458 = vunpack.c.l.b16 %v780
    %v1459 = vunpack.c.h.b16 %v780
    %v1460 = vunpack.c.l.b16 %v781
    %v1461 = vunpack.c.h.b16 %v781
    %v1462 = vunpack.c.l.b16 %v782
    %v1463 = vunpack.c.h.b16 %v782
    %v1464 = vunpack.c.l.b16 %v783
    %v1465 = vunpack.c.h.b16 %v783
    %v1466 = vunpack.c.l.b16 %v784
    %v1467 = vunpack.c.h.b16 %v784
    %v1468 = vunpack.c.l.b16 %v785
    %v1469 = vunpack.c.h.b16 %v785
    %v1470 = vunpack.c.l.b16 %v786
    %v1471 = vunpack.c.h.b16 %v786
    %v1472 = vunpack.c.l.b16 %v787
    %v1473 = vunpack.c.h.b16 %v787
    %v1474 = vunpack.c.l.b16 %v788
    %v1475 = vunpack.c.h.b16 %v788
    %v1476 = vunpack.c.l.b16 %v789
    %v1477 = vunpack.c.h.b16 %v789
    %v1478 = vunpack.c.l.b16 %v790
    %v1479 = vunpack.c.h.b16 %v790
    %v1480 = vunpack.c.l.b16 %v791
    %v1481 = vunpack.c.h.b16 %v791
    %v1482 = vunpack.c.l.b16 %v792
    %v1483 = vunpack.c.h.b16 %v792
    %v1484 = vunpack.c.l.b16 %v793
    %v1485 = vunpack.c.h.b16 %v793
    %v1486 = vunpack.c.l.b16 %v794
    %v1487 = vunpack.c.h.b16 %v794
    %v1488 = vunpack.c.l.b16 %v795
    %v1489 = vunpack.c.h.b16 %v795
    %v1490 = vunpack.c.l.b16 %v796
    %v1491 = vunpack.c.h.b16 %v796
    %v1492 = vunpack.c.l.b16 %v797
    %v1493 = vunpack.c.h.b16 %v797
    %v1494 = vunpack.c.l.b16 %v798
    %v1495 = vunpack.c.h.b16 %v798
    %v1496 = vunpack.c.l.b16 %v799
    %v1497 = vunpack.c.h.b16 %v799
    %v1498 = vunpack.c.l.b16 %v800
    %v1499 = vunpack.c.h.b16 %v800
    %v1500 = vunpack.c.l.b16 %v801
    %v1501 = vunpack.c.h.b16 %v801
    %v1502 = vunpack.c.l.b16 %v802
    %v1503 = vunpack.c.h.b16 %v802
    %v1504 = vunpack.c.l.b16 %v803
    %v1505 = vunpack.c.h.b16 %v803
    %v1506 = vunpack.c.l.b16 %v804
    %v1507 = vunpack.c.h.b16 %v804
    %v1508 = vunpack.c.l.b16 %v805
    %v1509 = vunpack.c.h.b16 %v805
    %v1510 = vunpack.c.l.b16 %v806
    %v1511 = vunpack.c.h.b16 %v806
    %v1512 = vunpack.c.l.b16 %v807
    %v1513 = vunpack.c.h.b16 %v807
    %v1514 = vunpack.c.l.b16 %v808
    %v1515 = vunpack.c.h.b16 %v808
    %v1516 = vunpack.c.l.b16 %v809
    %v1517 = vunpack.c.h.b16 %v809
    %v1518 = vunpack.c.l.b16 %v810
    %v1519 = vunpack.c.h.b16 %v810
    %v1520 = vunpack.c.l.b16 %v811
    %v1521 = vunpack.c.h.b16 %v811
    %v1522 = vunpack.c.l.b16 %v812
    %v1523 = vunpack.c.h.b16 %v812
    %v1524 = vunpack.c.l.b16 %v813
    %v1525 = vunpack.c.h.b16 %v813
    %v1526 = vunpack.c.l.b16 %v814
    %v1527 = vunpack.c.h.b16 %v814
    %v1528 = vunpack.c.l.b16 %v815
    %v1529 = vunpack.c.h.b16 %v815
    %v1530 = vunpack.c.l.b16 %v816
    %v1531 = vunpack.c.h.b16 %v816
    %v1532 = vunpack.c.l.b16 %v817
    %v1533 = vunpack.c.h.b16 %v817
    %v1534 = vunpack.c.l.b16 %v818
    %v1535 = vunpack.c.h.b16 %v818
    %v1536 = vunpack.c.l.b16 %v819
    %v1537 = vunpack.c.h.b16 %v819
    %v1538 = vunpack.c.l.b16 %v820
    %v1539 = vunpack.c.h.b16 %v820
    %v1540 = vunpack.c.l.b16 %v821
    %v1541 = vunpack.c.h.b16 %v821
    %v1542 = vunpack.c.l.b16 %v822
    %v1543 = vunpack.c.h.b16 %v822
    %v1544 = vunpack.c.l.b16 %v823
    %v1545 = vunpack.c.h.b16 %v823
    %v1546 = vunpack.c.l.b16 %v824
    %v1547 = vunpack.c.h.b16 %v824
    %v1548 = vunpack.c.l.b16 %v825
    %v1549 = vunpack.c.h.b16 %v825
    %v1550 = vunpack.c.l.b16 %v826
    %v1551 = vunpack.c.h.b16 %v826
    %v1552 = vunpack.c.l.b16 %v827
    %v1553 = vunpack.c.h.b16 %v827
    %v1554 = vunpack.c.l.b16 %v828
    %v1555 = vunpack.c.h.b16 %v828
    %v1556 = vunpack.c.l.b16 %v829
    %v1557 = vunpack.c.h.b16 %v829
    %v1558 = vunpack.c.l.b16 %v830
    %v1559 = vunpack.c.h.b16 %v830
    %v1560 = vunpack.c.l.b16 %v831
    %v1561 = vunpack.c.h.b16 %v831
    %v1562 = vunpack.c.l.b16 %v832
    %v1563 = vunpack.c.h.b16 %v832
    %v1564 = vunpack.c.l.b16 %v833
    %v1565 = vunpack.c.h.b16 %v833
    %v1566 = vunpack.c.l.b16 %v834
    %v1567 = vunpack.c.h.b16 %v834
    %v1568 = vunpack.c.l.b16 %v835
    %v1569 = vunpack.c.h.b16 %v835
    %v1570 = vunpack.c.l.b16 %v836
    %v1571 = vunpack.c.h.b16 %v836
    %v1572 = vunpack.c.l.b16 %v837
    %v1573 = vunpack.c.h.b16 %v837
    %v1574 = vunpack.c.l.b16 %v838
    %v1575 = vunpack.c.h.b16 %v838
    %v1576 = vunpack.c.l.b16 %v839
    %v1577 = vunpack.c.h.b16 %v839
    %v1578 = vunpack.c.l.b16 %v840
    %v1579 = vunpack.c.h.b16 %v840
    %v1580 = vunpack.c.l.b16 %v841
    %v1581 = vunpack.c.h.b16 %v841
    %v1582 = vunpack.c.l.b16 %v842
    %v1583 = vunpack.c.h.b16 %v842
    %v1584 = vunpack.c.l.b16 %v843
    %v1585 = vunpack.c.h.b16 %v843
    %v1586 = vunpack.c.l.b16 %v844
    %v1587 = vunpack.c.h.b16 %v844
    %v1588 = vunpack.c.l.b16 %v845
    %v1589 = vunpack.c.h.b16 %v845
    %v1590 = vunpack.c.l.b16 %v846
    %v1591 = vunpack.c.h.b16 %v846
    %v1592 = vunpack.c.l.b16 %v847
    %v1593 = vunpack.c.h.b16 %v847
    %v1594 = vunpack.c.l.b16 %v848
    %v1595 = vunpack.c.h.b16 %v848
    %v1596 = vunpack.c.l.b16 %v849
    %v1597 = vunpack.c.h.b16 %v849
    %v1598 = vunpack.c.l.b16 %v850
    %v1599 = vunpack.c.h.b16 %v850
    %v1600 = vunpack.c.l.b16 %v851
    %v1601 = vunpack.c.h.b16 %v851
    %v1602 = vunpack.c.l.b16 %v852
    %v1603 = vunpack.c.h.b16 %v852
    %v1604 = vunpack.c.l.b16 %v853
    %v1605 = vunpack.c.h.b16 %v853
    %v1606 = vunpack.c.l.b16 %v854
    %v1607 = vunpack.c.h.b16 %v854
    %v1608 = vunpack.c.l.b16 %v855
    %v1609 = vunpack.c.h.b16 %v855
    %v1610 = vunpack.c.l.b16 %v856
    %v1611 = vunpack.c.h.b16 %v856
    %v1612 = vunpack.c.l.b16 %v857
    %v1613 = vunpack.c.h.b16 %v857
    %v1614 = vunpack.c.l.b16 %v858
    %v1615 = vunpack.c.h.b16 %v858
    %v1616 = vunpack.c.l.b16 %v859
    %v1617 = vunpack.c.h.b16 %v859
    %v1618 = vunpack.c.l.b16 %v860
    %v1619 = vunpack.c.h.b16 %v860
    %v1620 = vunpack.c.l.b16 %v861
    %v1621 = vunpack.c.h.b16 %v861
    %v1622 = vunpack.c.l.b16 %v862
    %v1623 = vunpack.c.h.b16 %v862
    %v1624 = vunpack.c.l.b16 %v863
    %v1625 = vunpack.c.h.b16 %v863
    %v1626 = vunpack.c.l.b16 %v864
    %v1627 = vunpack.c.h.b16 %v864
    %v1628 = vunpack.c.l.b16 %v865
    %v1629 = vunpack.c.h.b16 %v865
    %v1630 = vunpack.c.l.b16 %v866
    %v1631 = vunpack.c.h.b16 %v866
    %v1632 = vunpack.c.l.b16 %v867
    %v1633 = vunpack.c.h.b16 %v867
    %v1634 = vunpack.c.l.b16 %v868
    %v1635 = vunpack.c.h.b16 %v868
    %v1636 = vunpack.c.l.b16 %v869
    %v1637 = vunpack.c.h.b16 %v869
    %v1638 = vunpack.c.l.b16 %v870
    %v1639 = vunpack.c.h.b16 %v870
    %v1640 = vunpack.c.l.b16 %v871
    %v1641 = vunpack.c.h.b16 %v871
    %v1642 = vunpack.c.l.b16 %v872
    %v1643 = vunpack.c.h.b16 %v872
    %v1644 = vunpack.c.l.b16 %v873
    %v1645 = vunpack.c.h.b16 %v873
    %v1646 = vunpack.c.l.b16 %v874
    %v1647 = vunpack.c.h.b16 %v874
    %v1648 = vunpack.c.l.b16 %v875
    %v1649 = vunpack.c.h.b16 %v875
    %v1650 = vunpack.c.l.b16 %v876
    %v1651 = vunpack.c.h.b16 %v876
    %v1652 = vunpack.c.l.b16 %v877
    %v1653 = vunpack.c.h.b16 %v877
    %v1654 = vunpack.c.l.b16 %v878
    %v1655 = vunpack.c.h.b16 %v878
    %v1656 = vunpack.c.l.b16 %v879
    %v1657 = vunpack.c.h.b16 %v879
    %v1658 = vunpack.c.l.b16 %v880
    %v1659 = vunpack.c.h.b16 %v880
    %v1660 = vunpack.c.l.b16 %v881
    %v1661 = vunpack.c.h.b16 %v881
    %v1662 = vunpack.c.l.b16 %v882
    %v1663 = vunpack.c.h.b16 %v882
    %v1664 = vunpack.c.l.b16 %v883
    %v1665 = vunpack.c.h.b16 %v883
    %v1666 = vunpack.c.l.b16 %v884
    %v1667 = vunpack.c.h.b16 %v884
    %v1668 = vunpack.c.l.b16 %v885
    %v1669 = vunpack.c.h.b16 %v885
    %v1670 = vunpack.c.l.b16 %v886
    %v1671 = vunpack.c.h.b16 %v886
    %v1672 = vunpack.c.l.b16 %v887
    %v1673 = vunpack.c.h.b16 %v887
    %v1674 = vunpack.c.l.b16 %v888
    %v1675 = vunpack.c.h.b16 %v888
    %v1676 = vunpack.c.l.b16 %v889
    %v1677 = vunpack.c.h.b16 %v889
    %v1678 = vunpack.c.l.b16 %v890
    %v1679 = vunpack.c.h.b16 %v890
    %v1680 = vunpack.c.l.b16 %v891
    %v1681 = vunpack.c.h.b16 %v891
    %v1682 = vunpack.c.l.b16 %v892
    %v1683 = vunpack.c.h.b16 %v892
    %v1684 = vunpack.c.l.b16 %v893
    %v1685 = vunpack.c.h.b16 %v893
    %v1686 = vunpack.c.l.b16 %v894
    %v1687 = vunpack.c.h.b16 %v894
    %v1688 = vunpack.c.l.b16 %v895
    %v1689 = vunpack.c.h.b16 %v895
    %v1690 = vunpack.c.l.b16 %v896
    %v1691 = vunpack.c.h.b16 %v896
    %v1692 = vunpack.c.l.b16 %v897
    %v1693 = vunpack.c.h.b16 %v897
    %v1694 = vunpack.c.l.b16 %v898
    %v1695 = vunpack.c.h.b16 %v898
    %v1696 = vunpack.c.l.b16 %v899
    %v1697 = vunpack.c.h.b16 %v899
    %v1698 = vunpack.c.l.b16 %v900
    %v1699 = vunpack.c.h.b16 %v900
    %v1700 = vunpack.c.l.b16 %v901
    %v1701 = vunpack.c.h.b16 %v901
    %v1702 = vunpack.c.l.b16 %v902
    %v1703 = vunpack.c.h.b16 %v902
    %v1704 = vunpack.c.l.b16 %v903
    %v1705 = vunpack.c.h.b16 %v903
    %v1706 = vunpack.c.l.b16 %v904
    %v1707 = vunpack.c.h.b16 %v904
    %v1708 = vunpack.c.l.b16 %v905
    %v1709 = vunpack.c.h.b16 %v905
    %v1710 = vunpack.c.l.b16 %v906
    %v1711 = vunpack.c.h.b16 %v906
    %v1712 = vunpack.c.l.b16 %v907
    %v1713 = vunpack.c.h.b16 %v907
    %v1714 = vunpack.c.l.b16 %v908
    %v1715 = vunpack.c.h.b16 %v908
    %v1716 = vunpack.c.l.b16 %v909
    %v1717 = vunpack.c.h.b16 %v909
    %v1718 = vunpack.c.l.b16 %v910
    %v1719 = vunpack.c.h.b16 %v910
    %v1720 = vunpack.c.l.b16 %v911
    %v1721 = vunpack.c.h.b16 %v911
    %v1722 = vunpack.c.l.b16 %v912
    %v1723 = vunpack.c.h.b16 %v912
    %v1724 = vunpack.c.l.b16 %v913
    %v1725 = vunpack.c.h.b16 %v913
    %v1726 = vunpack.c.l.b16 %v914
    %v1727 = vunpack.c.h.b16 %v914
    %v1728 = vunpack.c.l.b16 %v915
    %v1729 = vunpack.c.h.b16 %v915
    %v1730 = vunpack.c.l.b16 %v916
    %v1731 = vunpack.c.h.b16 %v916
    %v1732 = vunpack.c.l.b16 %v917
    %v1733 = vunpack.c.h.b16 %v917
    %v1734 = vunpack.c.l.b16 %v918
    %v1735 = vunpack.c.h.b16 %v918
    %v1736 = vunpack.c.l.b16 %v919
    %v1737 = vunpack.c.h.b16 %v919
    %v1738 = vunpack.c.l.b16 %v920
    %v1739 = vunpack.c.h.b16 %v920
    %v1740 = vunpack.c.l.b16 %v921
    %v1741 = vunpack.c.h.b16 %v921
    %v1742 = vunpack.c.l.b16 %v922
    %v1743 = vunpack.c.h.b16 %v922
    %v1744 = vunpack.c.l.b16 %v923
    %v1745 = vunpack.c.h.b16 %v923
    %v1746 = vunpack.c.l.b16 %v924
    %v1747 = vunpack.c.h.b16 %v924
    %v1748 = vunpack.c.l.b16 %v925
    %v1749 = vunpack.c.h.b16 %v925
    %v1750 = vunpack.c.l.b16 %v926
    %v1751 = vunpack.c.h.b16 %v926
    %v1752 = vunpack.c.l.b16 %v927
    %v1753 = vunpack.c.h.b16 %v927
    %v1754 = vunpack.c.l.b16 %v928
    %v1755 = vunpack.c.h.b16 %v928
    %v1756 = vunpack.c.l.b16 %v929
    %v1757 = vunpack.c.h.b16 %v929
    %v1758 = vunpack.c.l.b16 %v930
    %v1759 = vunpack.c.h.b16 %v930
    %v1760 = vunpack.c.l.b16 %v931
    %v1761 = vunpack.c.h.b16 %v931
    %v1762 = vunpack.c.l.b16 %v932
    %v1763 = vunpack.c.h.b16 %v932
    %v1764 = vunpack.c.l.b16 %v933
    %v1765 = vunpack.c.h.b16 %v933
    %v1766 = vunpack.c.l.b16 %v934
    %v1767 = vunpack.c.h.b16 %v934
    %v1768 = vunpack.c.l.b16 %v935
    %v1769 = vunpack.c.h.b16 %v935
    %v1770 = vunpack.c.l.b16 %v936
    %v1771 = vunpack.c.h.b16 %v936
    %v1772 = vunpack.c.l.b16 %v937
    %v1773 = vunpack.c.h.b16 %v937
    %v1774 = vunpack.c.l.b16 %v938
    %v1775 = vunpack.c.h.b16 %v938
    %v1776 = vunpack.c.l.b16 %v939
    %v1777 = vunpack.c.h.b16 %v939
    %v1778 = vunpack.c.l.b16 %v940
    %v1779 = vunpack.c.h.b16 %v940
    %v1780 = vunpack.c.l.b16 %v941
    %v1781 = vunpack.c.h.b16 %v941
    %v1782 = vunpack.c.l.b16 %v942
    %v1783 = vunpack.c.h.b16 %v942
    %v1784 = vunpack.c.l.b16 %v943
    %v1785 = vunpack.c.h.b16 %v943
    %v1786 = vunpack.c.l.b16 %v944
    %v1787 = vunpack.c.h.b16 %v944
    %v1788 = vunpack.c.l.b16 %v945
    %v1789 = vunpack.c.h.b16 %v945
    %v1790 = vunpack.c.l.b16 %v946
    %v1791 = vunpack.c.h.b16 %v946
    %v1792 = vunpack.c.l.b16 %v947
    %v1793 = vunpack.c.h.b16 %v947
    %v1794 = vunpack.c.l.b16 %v948
    %v1795 = vunpack.c.h.b16 %v948
    %v1796 = vunpack.c.l.b16 %v949
    %v1797 = vunpack.c.h.b16 %v949
    %v1798 = vunpack.c.l.b16 %v950
    %v1799 = vunpack.c.h.b16 %v950
    %v1800 = vunpack.c.l.b16 %v951
    %v1801 = vunpack.c.h.b16 %v951
    %v1802 = vunpack.c.l.b16 %v952
    %v1803 = vunpack.c.h.b16 %v952
    %v1804 = vunpack.c.l.b16 %v953
    %v1805 = vunpack.c.h.b16 %v953
    %v1806 = vunpack.c.l.b16 %v954
    %v1807 = vunpack.c.h.b16 %v954
    %v1808 = vunpack.c.l.b16 %v955
    %v1809 = vunpack.c.h.b16 %v955
    %v1810 = vunpack.c.l.b16 %v956
    %v1811 = vunpack.c.h.b16 %v956
    %v1812 = vunpack.c.l.b16 %v957
    %v1813 = vunpack.c.h.b16 %v957
    %v1814 = vunpack.c.l.b16 %v958
    %v1815 = vunpack.c.h.b16 %v958
    %v1816 = vunpack.c.l.b16 %v959
    %v1817 = vunpack.c.h.b16 %v959
    %v1818 = vunpack.c.l.b16 %v960
    %v1819 = vunpack.c.h.b16 %v960
    %v1820 = vunpack.c.l.b16 %v961
    %v1821 = vunpack.c.h.b16 %v961
    %v1822 = vunpack.c.l.b16 %v962
    %v1823 = vunpack.c.h.b16 %v962
    %v1824 = vunpack.c.l.b16 %v963
    %v1825 = vunpack.c.h.b16 %v963
    %v1826 = vunpack.c.l.b16 %v964
    %v1827 = vunpack.c.h.b16 %v964
    %v1828 = vunpack.c.l.b16 %v965
    %v1829 = vunpack.c.h.b16 %v965
    %v1830 = vunpack.c.l.b16 %v966
    %v1831 = vunpack.c.h.b16 %v966
    %v1832 = vunpack.c.l.b16 %v967
    %v1833 = vunpack.c.h.b16 %v967
    %v1834 = vunpack.c.l.b16 %v968
    %v1835 = vunpack.c.h.b16 %v968
    %v1836 = vunpack.c.l.b16 %v969
    %v1837 = vunpack.c.h.b16 %v969
    %v1838 = vunpack.c.l.b16 %v970
    %v1839 = vunpack.c.h.b16 %v970
    %v1840 = vunpack.c.l.b16 %v971
    %v1841 = vunpack.c.h.b16 %v971
    %v1842 = vunpack.c.l.b16 %v972
    %v1843 = vunpack.c.h.b16 %v972
    %v1844 = vunpack.c.l.b16 %v973
    %v1845 = vunpack.c.h.b16 %v973
    %v1846 = vunpack.c.l.b16 %v974
    %v1847 = vunpack.c.h.b16 %v974
    %v1848 = vunpack.c.l.b16 %v975
    %v1849 = vunpack.c.h.b16 %v975
    %v1850 = vunpack.c.l.b16 %v976
    %v1851 = vunpack.c.h.b16 %v976
    %v1852 = vunpack.c.l.b16 %v977
    %v1853 = vunpack.c.h.b16 %v977
    %v1854 = vunpack.c.l.b16 %v978
    %v1855 = vunpack.c.h.b16 %v978
    %v1856 = vunpack.c.l.b16 %v979
    %v1857 = vunpack.c.h.b16 %v979
    %v1858 = vunpack.c.l.b16 %v980
    %v1859 = vunpack.c.h.b16 %v980
    %v1860 = vunpack.c.l.b16 %v981
    %v1861 = vunpack.c.h.b16 %v981
    %v1862 = vunpack.c.l.b16 %v982
    %v1863 = vunpack.c.h.b16 %v982
    %v1864 = vunpack.c.l.b16 %v983
    %v1865 = vunpack.c.h.b16 %v983
    %v1866 = vunpack.c.l.b16 %v984
    %v1867 = vunpack.c.h.b16 %v984
    %v1868 = vunpack.c.l.b16 %v985
    %v1869 = vunpack.c.h.b16 %v985
    %v1870 = vunpack.c.l.b16 %v986
    %v1871 = vunpack.c.h.b16 %v986
    %v1872 = vunpack.c.l.b16 %v987
    %v1873 = vunpack.c.h.b16 %v987
    %v1874 = vunpack.c.l.b16 %v988
    %v1875 = vunpack.c.h.b16 %v988
    %v1876 = vunpack.c.l.b16 %v989
    %v1877 = vunpack.c.h.b16 %v989
    %v1878 = vunpack.c.l.b16 %v990
    %v1879 = vunpack.c.h.b16 %v990
    %v1880 = vunpack.c.l.b16 %v991
    %v1881 = vunpack.c.h.b16 %v991
    %v1882 = vunpack.c.l.b16 %v992
    %v1883 = vunpack.c.h.b16 %v992
    %v1884 = vunpack.c.l.b16 %v993
    %v1885 = vunpack.c.h.b16 %v993
    %v1886 = vunpack.c.l.b16 %v994
    %v1887 = vunpack.c.h.b16 %v994
    %v1888 = vunpack.c.l.b16 %v995
    %v1889 = vunpack.c.h.b16 %v995
    %v1890 = vunpack.c.l.b16 %v996
    %v1891 = vunpack.c.h.b16 %v996
    %v1892 = vunpack.c.l.b16 %v997
    %v1893 = vunpack.c.h.b16 %v997
    %v1894 = vunpack.c.l.b16 %v998
    %v1895 = vunpack.c.h.b16 %v998
    %v1896 = vunpack.c.l.b16 %v999
    %v1897 = vunpack.c.h.b16 %v999
    %v1898 = vunpack.c.l.b16 %v1000
    %v1899 = vunpack.c.h.b16 %v1000
    %v1900 = vunpack.c.l.b16 %v1001
    %v1901 = vunpack.c.h.b16 %v1001
    %v1902 = vunpack.c.l.b16 %v1002
    %v1903 = vunpack.c.h.b16 %v1002
    %v1904 = vunpack.c.l.b16 %v1003
    %v1905 = vunpack.c.h.b16 %v1003
    %v1906 = vunpack.c.l.b16 %v1004
    %v1907 = vunpack.c.h.b16 %v1004
    %v1908 = vunpack.c.l.b16 %v1005
    %v1909 = vunpack.c.h.b16 %v1005
    %v1910 = vunpack.c.l.b16 %v1006
    %v1911 = vunpack.c.h.b16 %v1006
    %v1912 = vunpack.c.l.b16 %v1007
    %v1913 = vunpack.c.h.b16 %v1007
    %v1914 = vunpack.c.l.b16 %v1008
    %v1915 = vunpack.c.h.b16 %v1008
    %v1916 = vunpack.c.l.b16 %v1009
    %v1917 = vunpack.c.h.b16 %v1009
    %v1918 = vunpack.c.l.b16 %v1010
    %v1919 = vunpack.c.h.b16 %v1010
    %v1920 = vunpack.c.l.b16 %v1011
    %v1921 = vunpack.c.h.b16 %v1011
    %v1922 = vunpack.c.l.b16 %v1012
    %v1923 = vunpack.c.h.b16 %v1012
    %v1924 = vunpack.c.l.b16 %v1013
    %v1925 = vunpack.c.h.b16 %v1013
    %v1926 = vunpack.c.l.b16 %v1014
    %v1927 = vunpack.c.h.b16 %v1014
    %v1928 = vunpack.c.l.b16 %v1015
    %v1929 = vunpack.c.h.b16 %v1015
    %v1930 = vunpack.c.l.b16 %v1016
    %v1931 = vunpack.c.h.b16 %v1016
    %v1932 = vunpack.c.l.b16 %v1017
    %v1933 = vunpack.c.h.b16 %v1017
    %v1934 = vunpack.c.l.b16 %v1018
    %v1935 = vunpack.c.h.b16 %v1018
    %v1936 = vunpack.c.l.b16 %v1019
    %v1937 = vunpack.c.h.b16 %v1019
    %v1938 = vunpack.c.l.b16 %v1020
    %v1939 = vunpack.c.h.b16 %v1020
    %v1940 = vunpack.c.l.b16 %v1021
    %v1941 = vunpack.c.h.b16 %v1021
    %v1942 = vunpack.c.l.b16 %v1022
    %v1943 = vunpack.c.h.b16 %v1022
    %v1944 = vunpack.c.l.b16 %v1023
    %v1945 = vunpack.c.h.b16 %v1023
    %v1946 = vunpack.c.l.b16 %v1024
    %v1947 = vunpack.c.h.b16 %v1024
    %v1948 = vunpack.c.l.b16 %v1025
    %v1949 = vunpack.c.h.b16 %v1025
    %v1950 = vunpack.c.l.b16 %v1026
    %v1951 = vunpack.c.h.b16 %v1026
    %v1952 = vunpack.c.l.b16 %v1027
    %v1953 = vunpack.c.h.b16 %v1027
    %v1954 = vunpack.c.l.b16 %v1028
    %v1955 = vunpack.c.h.b16 %v1028
    %v1956 = vunpack.c.l.b16 %v1029
    %v1957 = vunpack.c.h.b16 %v1029
    %v1958 = vunpack.c.l.b16 %v1030
    %v1959 = vunpack.c.h.b16 %v1030
    %v1960 = vunpack.c.l.b16 %v1031
    %v1961 = vunpack.c.h.b16 %v1031
    %v1962 = vunpack.c.l.b16 %v1032
    %v1963 = vunpack.c.h.b16 %v1032
    %v1964 = vunpack.c.l.b16 %v1033
    %v1965 = vunpack.c.h.b16 %v1033
    %v1966 = vunpack.c.l.b16 %v1034
    %v1967 = vunpack.c.h.b16 %v1034
    %v1968 = vunpack.c.l.b16 %v1035
    %v1969 = vunpack.c.h.b16 %v1035
    %v1970 = vunpack.c.l.b16 %v1036
    %v1971 = vunpack.c.h.b16 %v1036
    %v1972 = vunpack.c.l.b16 %v1037
    %v1973 = vunpack.c.h.b16 %v1037
    %v1974 = vunpack.c.l.b16 %v1038
    %v1975 = vunpack.c.h.b16 %v1038
    %v1976 = vunpack.c.l.b16 %v1039
    %v1977 = vunpack.c.h.b16 %v1039
    %v1978 = vunpack.c.l.b16 %v1040
    %v1979 = vunpack.c.h.b16 %v1040
    %v1980 = vunpack.c.l.b16 %v1041
    %v1981 = vunpack.c.h.b16 %v1041
    %v1982 = vunpack.c.l.b16 %v1042
    %v1983 = vunpack.c.h.b16 %v1042
    %v1984 = vunpack.c.l.b16 %v1043
    %v1985 = vunpack.c.h.b16 %v1043
    %v1986 = vunpack.c.l.b16 %v1044
    %v1987 = vunpack.c.h.b16 %v1044
    %v1988 = vunpack.c.l.b16 %v1045
    %v1989 = vunpack.c.h.b16 %v1045
    %v1990 = vunpack.c.l.b16 %v1046
    %v1991 = vunpack.c.h.b16 %v1046
    %v1992 = vunpack.c.l.b16 %v1047
    %v1993 = vunpack.c.h.b16 %v1047
    %v1994 = vunpack.c.l.b16 %v1048
    %v1995 = vunpack.c.h.b16 %v1048
    %v1996 = vunpack.c.l.b16 %v1049
    %v1997 = vunpack.c.h.b16 %v1049
    %v1998 = vpack.c.b16 %v1374, %v1366
    %v1999 = vpack.c.b16 %v1375, %v1367
    %v2000 = vpack.c.b16 %v1376, %v1368
    %v2001 = vpack.c.b16 %v1377, %v1369
    %v2002 = vpack.c.b16 %v1378, %v1370
    %v2003 = vpack.c.b16 %v1379, %v1371
    %v2004 = vpack.c.b16 %v1380, %v1372
    %v2005 = vpack.c.b16 %v1381, %v1373
    %v2006 = vpack.c.b16 %v1390, %v1382
    %v2007 = vpack.c.b16 %v1391, %v1383
    %v2008 = vpack.c.b16 %v1392, %v1384
    %v2009 = vpack.c.b16 %v1393, %v1385
    %v2010 = vpack.c.b16 %v1394, %v1386
    %v2011 = vpack.c.b16 %v1395, %v1387
    %v2012 = vpack.c.b16 %v1396, %v1388
    %v2013 = vpack.c.b16 %v1397, %v1389
    %v2014 = vpack.c.b16 %v1406, %v1398
    %v2015 = vpack.c.b16 %v1407, %v1399
    %v2016 = vpack.c.b16 %v1408, %v1400
    %v2017 = vpack.c.b16 %v1409, %v1401
    %v2018 = vpack.c.b16 %v1410, %v1402
    %v2019 = vpack.c.b16 %v1411, %v1403
    %v2020 = vpack.c.b16 %v1412, %v1404
    %v2021 = vpack.c.b16 %v1413, %v1405
    %v2022 = vpack.c.b16 %v1422, %v1414
    %v2023 = vpack.c.b16 %v1423, %v1415
    %v2024 = vpack.c.b16 %v1424, %v1416
    %v2025 = vpack.c.b16 %v1425, %v1417
    %v2026 = vpack.c.b16 %v1426, %v1418
    %v2027 = vpack.c.b16 %v1427, %v1419
    %v2028 = vpack.c.b16 %v1428, %v1420
    %v2029 = vpack.c.b16 %v1429, %v1421
    %v2030 = vpack.c.b16 %v1438, %v1430
    %v2031 = vpack.c.b16 %v1439, %v1431
    %v2032 = vpack.c.b16 %v1440, %v1432
    %v2033 = vpack.c.b16 %v1441, %v1433
    %v2034 = vpack.c.b16 %v1442, %v1434
    %v2035 = vpack.c.b16 %v1443, %v1435
    %v2036 = vpack.c.b16 %v1444, %v1436
    %v2037 = vpack.c.b16 %v1445, %v1437
    %v2038 = vpack.c.b16 %v1454, %v1446
    %v2039 = vpack.c.b16 %v1455, %v1447
    %v2040 = vpack.c.b16 %v1456, %v1448
    %v2041 = vpack.c.b16 %v1457, %v1449
    %v2042 = vpack.c.b16 %v1458, %v1450
    %v2043 = vpack.c.b16 %v1459, %v1451
    %v2044 = vpack.c.b16 %v1460, %v1452
    %v2045 = vpack.c.b16 %v1461, %v1453
    %v2046 = vpack.c.b16 %v1470, %v1462
    %v2047 = vpack.c.b16 %v1471, %v1463
    %v2048 = vpack.c.b16 %v1472, %v1464
    %v2049 = vpack.c.b16 %v1473, %v1465
    %v2050 = vpack.c.b16 %v1474, %v1466
    %v2051 = vpack.c.b16 %v1475, %v1467
    %v2052 = vpack.c.b16 %v1476, %v1468
    %v2053 = vpack.c.b16 %v1477, %v1469
    %v2054 = vpack.c.b16 %v1486, %v1478
    %v2055 = vpack.c.b16 %v1487, %v1479
    %v2056 = vpack.c.b16 %v1488, %v1480
    %v2057 = vpack.c.b16 %v1489, %v1481
    %v2058 = vpack.c.b16 %v1490, %v1482
    %v2059 = vpack.c.b16 %v1491, %v1483
    %v2060 = vpack.c.b16 %v1492, %v1484
    %v2061 = vpack.c.b16 %v1493, %v1485
    %v2062 = vpack.c.b16 %v1502, %v1494
    %v2063 = vpack.c.b16 %v1503, %v1495
    %v2064 = vpack.c.b16 %v1504, %v1496
    %v2065 = vpack.c.b16 %v1505, %v1497
    %v2066 = vpack.c.b16 %v1506, %v1498
    %v2067 = vpack.c.b16 %v1507, %v1499
    %v2068 = vpack.c.b16 %v1508, %v1500
    %v2069 = vpack.c.b16 %v1509, %v1501
    %v2070 = vpack.c.b16 %v1518, %v1510
    %v2071 = vpack.c.b16 %v1519, %v1511
    %v2072 = vpack.c.b16 %v1520, %v1512
    %v2073 = vpack.c.b16 %v1521, %v1513
    %v2074 = vpack.c.b16 %v1522, %v1514
    %v2075 = vpack.c.b16 %v1523, %v1515
    %v2076 = vpack.c.b16 %v1524, %v1516
    %v2077 = vpack.c.b16 %v1525, %v1517
    %v2078 = vpack.c.b16 %v1534, %v1526
    %v2079 = vpack.c.b16 %v1535, %v1527
    %v2080 = vpack.c.b16 %v1536, %v1528
    %v2081 = vpack.c.b16 %v1537, %v1529
    %v2082 = vpack.c.b16 %v1538, %v1530
    %v2083 = vpack.c.b16 %v1539, %v1531
    %v2084 = vpack.c.b16 %v1540, %v1532
    %v2085 = vpack.c.b16 %v1541, %v1533
    %v2086 = vpack.c.b16 %v1550, %v1542
    %v2087 = vpack.c.b16 %v1551, %v1543
    %v2088 = vpack.c.b16 %v1552, %v1544
    %v2089 = vpack.c.b16 %v1553, %v1545
    %v2090 = vpack.c.b16 %v1554, %v1546
    %v2091 = vpack.c.b16 %v1555, %v1547
    %v2092 = vpack.c.b16 %v1556, %v1548
    %v2093 = vpack.c.b16 %v1557, %v1549
    %v2094 = vpack.c.b16 %v1566, %v1558
    %v2095 = vpack.c.b16 %v1567, %v1559
    %v2096 = vpack.c.b16 %v1568, %v1560
    %v2097 = vpack.c.b16 %v1569, %v1561
    %v2098 = vpack.c.b16 %v1570, %v1562
    %v2099 = vpack.c.b16 %v1571, %v1563
    %v2100 = vpack.c.b16 %v1572, %v1564
    %v2101 = vpack.c.b16 %v1573, %v1565
    %v2102 = vpack.c.b16 %v1582, %v1574
    %v2103 = vpack.c.b16 %v1583, %v1575
    %v2104 = vpack.c.b16 %v1584, %v1576
    %v2105 = vpack.c.b16 %v1585, %v1577
    %v2106 = vpack.c.b16 %v1586, %v1578
    %v2107 = vpack.c.b16 %v1587, %v1579
    %v2108 = vpack.c.b16 %v1588, %v1580
    %v2109 = vpack.c.b16 %v1589, %v1581
    %v2110 = vpack.c.b16 %v1598, %v1590
    %v2111 = vpack.c.b16 %v1599, %v1591
    %v2112 = vpack.c.b16 %v1600, %v1592
    %v2113 = vpack.c.b16 %v1601, %v1593
    %v2114 = vpack.c.b16 %v1602, %v1594
    %v2115 = vpack.c.b16 %v1603, %v1595
    %v2116 = vpack.c.b16 %v1604, %v1596
    %v2117 = vpack.c.b16 %v1605, %v1597
    %v2118 = vpack.c.b16 %v1614, %v1606
    %v2119 = vpack.c.b16 %v1615, %v1607
    %v2120 = vpack.c.b16 %v1616, %v1608
    %v2121 = vpack.c.b16 %v1617, %v1609
    %v2122 = vpack.c.b16 %v1618, %v1610
    %v2123 = vpack.c.b16 %v1619, %v1611
    %v2124 = vpack.c.b16 %v1620, %v1612
    %v2125 = vpack.c.b16 %v1621, %v1613
    %v2126 = vpack.c.b16 %v1630, %v1622
    %v2127 = vpack.c.b16 %v1631, %v1623
    %v2128 = vpack.c.b16 %v1632, %v1624
    %v2129 = vpack.c.b16 %v1633, %v1625
    %v2130 = vpack.c.b16 %v1634, %v1626
    %v2131 = vpack.c.b16 %v1635, %v1627
    %v2132 = vpack.c.b16 %v1636, %v1628
    %v2133 = vpack.c.b16 %v1637, %v1629
    %v2134 = vpack.c.b16 %v1646, %v1638
    %v2135 = vpack.c.b16 %v1647, %v1639
    %v2136 = vpack.c.b16 %v1648, %v1640
    %v2137 = vpack.c.b16 %v1649, %v1641
    %v2138 = vpack.c.b16 %v1650, %v1642
    %v2139 = vpack.c.b16 %v1651, %v1643
    %v2140 = vpack.c.b16 %v1652, %v1644
    %v2141 = vpack.c.b16 %v1653, %v1645
    %v2142 = vpack.c.b16 %v1662, %v1654
    %v2143 = vpack.c.b16 %v1663, %v1655
    %v2144 = vpack.c.b16 %v1664, %v1656
    %v2145 = vpack.c.b16 %v1665, %v1657
    %v2146 = vpack.c.b16 %v1666, %v1658
    %v2147 = vpack.c.b16 %v1667, %v1659
    %v2148 = vpack.c.b16 %v1668, %v1660
    %v2149 = vpack.c.b16 %v1669, %v1661
    %v2150 = vpack.c.b16 %v1678, %v1670
    %v2151 = vpack.c.b16 %v1679, %v1671
    %v2152 = vpack.c.b16 %v1680, %v1672
    %v2153 = vpack.c.b16 %v1681, %v1673
    %v2154 = vpack.c.b16 %v1682, %v1674
    %v2155 = vpack.c.b16 %v1683, %v1675
    %v2156 = vpack.c.b16 %v1684, %v1676
    %v2157 = vpack.c.b16 %v1685, %v1677
    %v2158 = vpack.c.b16 %v1694, %v1686
    %v2159 = vpack.c.b16 %v1695, %v1687
    %v2160 = vpack.c.b16 %v1696, %v1688
    %v2161 = vpack.c.b16 %v1697, %v1689
    %v2162 = vpack.c.b16 %v1698, %v1690
    %v2163 = vpack.c.b16 %v1699, %v1691
    %v2164 = vpack.c.b16 %v1700, %v1692
    %v2165 = vpack.c.b16 %v1701, %v1693
    %v2166 = vpack.c.b16 %v1710, %v1702
    %v2167 = vpack.c.b16 %v1711, %v1703
    %v2168 = vpack.c.b16 %v1712, %v1704
    %v2169 = vpack.c.b16 %v1713, %v1705
    %v2170 = vpack.c.b16 %v1714, %v1706
    %v2171 = vpack.c.b16 %v1715, %v1707
    %v2172 = vpack.c.b16 %v1716, %v1708
    %v2173 = vpack.c.b16 %v1717, %v1709
    %v2174 = vpack.c.b16 %v1726, %v1718
    %v2175 = vpack.c.b16 %v1727, %v1719
    %v2176 = vpack.c.b16 %v1728, %v1720
    %v2177 = vpack.c.b16 %v1729, %v1721
    %v2178 = vpack.c.b16 %v1730, %v1722
    %v2179 = vpack.c.b16 %v1731, %v1723
    %v2180 = vpack.c.b16 %v1732, %v1724
    %v2181 = vpack.c.b16 %v1733, %v1725
    %v2182 = vpack.c.b16 %v1742, %v1734
    %v2183 = vpack.c.b16 %v1743, %v1735
    %v2184 = vpack.c.b16 %v1744, %v1736
    %v2185 = vpack.c.b16 %v1745, %v1737
    %v2186 = vpack.c.b16 %v1746, %v1738
    %v2187 = vpack.c.b16 %v1747, %v1739
    %v2188 = vpack.c.b16 %v1748, %v1740
    %v2189 = vpack.c.b16 %v1749, %v1741
    %v2190 = vpack.c.b16 %v1758, %v1750
    %v2191 = vpack.c.b16 %v1759, %v1751
    %v2192 = vpack.c.b16 %v1760, %v1752
    %v2193 = vpack.c.b16 %v1761, %v1753
    %v2194 = vpack.c.b16 %v1762, %v1754
    %v2195 = vpack.c.b16 %v1763, %v1755
    %v2196 = vpack.c.b16 %v1764, %v1756
    %v2197 = vpack.c.b16 %v1765, %v1757
    %v2198 = vpack.c.b16 %v1774, %v1766
    %v2199 = vpack.c.b16 %v1775, %v1767
    %v2200 = vpack.c.b16 %v1776, %v1768
    %v2201 = vpack.c.b16 %v1777, %v1769
    %v2202 = vpack.c.b16 %v1778, %v1770
    %v2203 = vpack.c.b16 %v1779, %v1771
    %v2204 = vpack.c.b16 %v1780, %v1772
    %v2205 = vpack.c.b16 %v1781, %v1773
    %v2206 = vpack.c.b16 %v1790, %v1782
    %v2207 = vpack.c.b16 %v1791, %v1783
    %v2208 = vpack.c.b16 %v1792, %v1784
    %v2209 = vpack.c.b16 %v1793, %v1785
    %v2210 = vpack.c.b16 %v1794, %v1786
    %v2211 = vpack.c.b16 %v1795, %v1787
    %v2212 = vpack.c.b16 %v1796, %v1788
    %v2213 = vpack.c.b16 %v1797, %v1789
    %v2214 = vpack.c.b16 %v1806, %v1798
    %v2215 = vpack.c.b16 %v1807, %v1799
    %v2216 = vpack.c.b16 %v1808, %v1800
    %v2217 = vpack.c.b16 %v1809, %v1801
    %v2218 = vpack.c.b16 %v1810, %v1802
    %v2219 = vpack.c.b16 %v1811, %v1803
    %v2220 = vpack.c.b16 %v1812, %v1804
    %v2221 = vpack.c.b16 %v1813, %v1805
    %v2222 = vpack.c.b16 %v1822, %v1814
    %v2223 = vpack.c.b16 %v1823, %v1815
    %v2224 = vpack.c.b16 %v1824, %v1816
    %v2225 = vpack.c.b16 %v1825, %v1817
    %v2226 = vpack.c.b16 %v1826, %v1818
    %v2227 = vpack.c.b16 %v1827, %v1819
    %v2228 = vpack.c.b16 %v1828, %v1820
    %v2229 = vpack.c.b16 %v1829, %v1821
    %v2230 = vpack.c.b16 %v1838, %v1830
    %v2231 = vpack.c.b16 %v1839, %v1831
    %v2232 = vpack.c.b16 %v1840, %v1832
    %v2233 = vpack.c.b16 %v1841, %v1833
    %v2234 = vpack.c.b16 %v1842, %v1834
    %v2235 = vpack.c.b16 %v1843, %v1835
    %v2236 = vpack.c.b16 %v1844, %v1836
    %v2237 = vpack.c.b16 %v1845, %v1837
    %v2238 = vpack.c.b16 %v1854, %v1846
    %v2239 = vpack.c.b16 %v1855, %v1847
    %v2240 = vpack.c.b16 %v1856, %v1848
    %v2241 = vpack.c.b16 %v1857, %v1849
    %v2242 = vpack.c.b16 %v1858, %v1850
    %v2243 = vpack.c.b16 %v1859, %v1851
    %v2244 = vpack.c.b16 %v1860, %v1852
    %v2245 = vpack.c.b16 %v1861, %v1853
    %v2246 = vpack.c.b16 %v1870, %v1862
    %v2247 = vpack.c.b16 %v1871, %v1863
    %v2248 = vpack.c.b16 %v1872, %v1864
    %v2249 = vpack.c.b16 %v1873, %v1865
    %v2250 = vpack.c.b16 %v1874, %v1866
    %v2251 = vpack.c.b16 %v1875, %v1867
    %v2252 = vpack.c.b16 %v1876, %v1868
    %v2253 = vpack.c.b16 %v1877, %v1869
    %v2254 = vpack.c.b16 %v1886, %v1878
    %v2255 = vpack.c.b16 %v1887, %v1879
    %v2256 = vpack.c.b16 %v1888, %v1880
    %v2257 = vpack.c.b16 %v1889, %v1881
    %v2258 = vpack.c.b16 %v1890, %v1882
    %v2259 = vpack.c.b16 %v1891, %v1883
    %v2260 = vpack.c.b16 %v1892, %v1884
    %v2261 = vpack.c.b16 %v1893, %v1885
    %v2262 = vpack.c.b16 %v1902, %v1894
    %v2263 = vpack.c.b16 %v1903, %v1895
    %v2264 = vpack.c.b16 %v1904, %v1896
    %v2265 = vpack.c.b16 %v1905, %v1897
    %v2266 = vpack.c.b16 %v1906, %v1898
    %v2267 = vpack.c.b16 %v1907, %v1899
    %v2268 = vpack.c.b16 %v1908, %v1900
    %v2269 = vpack.c.b16 %v1909, %v1901
    %v2270 = vpack.c.b16 %v1918, %v1910
    %v2271 = vpack.c.b16 %v1919, %v1911
    %v2272 = vpack.c.b16 %v1920, %v1912
    %v2273 = vpack.c.b16 %v1921, %v1913
    %v2274 = vpack.c.b16 %v1922, %v1914
    %v2275 = vpack.c.b16 %v1923, %v1915
    %v2276 = vpack.c.b16 %v1924, %v1916
    %v2277 = vpack.c.b16 %v1925, %v1917
    %v2278 = vpack.c.b16 %v1934, %v1926
    %v2279 = vpack.c.b16 %v1935, %v1927
    %v2280 = vpack.c.b16 %v1936, %v1928
    %v2281 = vpack.c.b16 %v1937, %v1929
    %v2282 = vpack.c.b16 %v1938, %v1930
    %v2283 = vpack.c.b16 %v1939, %v1931
    %v2284 = vpack.c.b16 %v1940, %v1932
    %v2285 = vpack.c.b16 %v1941, %v1933
    %v2286 = vpack.c.b16 %v1950, %v1942
    %v2287 = vpack.c.b16 %v1951, %v1943
    %v2288 = vpack.c.b16 %v1952, %v1944
    %v2289 = vpack.c.b16 %v1953, %v1945
    %v2290 = vpack.c.b16 %v1954, %v1946
    %v2291 = vpack.c.b16 %v1955, %v1947
    %v2292 = vpack.c.b16 %v1956, %v1948
    %v2293 = vpack.c.b16 %v1957, %v1949
    %v2294 = vpack.c.b16 %v1966, %v1958
    %v2295 = vpack.c.b16 %v1967, %v1959
    %v2296 = vpack.c.b16 %v1968, %v1960
    %v2297 = vpack.c.b16 %v1969, %v1961
    %v2298 = vpack.c.b16 %v1970, %v1962
    %v2299 = vpack.c.b16 %v1971, %v1963
    %v2300 = vpack.c.b16 %v1972, %v1964
    %v2301 = vpack.c.b16 %v1973, %v1965
    %v2302 = vpack.c.b16 %v1982, %v1974
    %v2303 = vpack.c.b16 %v1983, %v1975
    %v2304 = vpack.c.b16 %v1984, %v1976
    %v2305 = vpack.c.b16 %v1985, %v1977
    %v2306 = vpack.c.b16 %v1986, %v1978
    %v2307 = vpack.c.b16 %v1987, %v1979
    %v2308 = vpack.c.b16 %v1988, %v1980
    %v2309 = vpack.c.b16 %v1989, %v1981
    %v2310 = vpack.c.b16 %v1990, %v1990
    %v2311 = vpack.c.b16 %v1991, %v1991
    %v2312 = vpack.c.b16 %v1992, %v1992
    %v2313 = vpack.c.b16 %v1993, %v1993
    %v2314 = vpack.c.b16 %v1994, %v1994
    %v2315 = vpack.c.b16 %v1995, %v1995
    %v2316 = vpack.c.b16 %v1996, %v1996
    %v2317 = vpack.c.b16 %v1997, %v1997
    %vm2630 = vcmask 924672
    %v2632 = vsel %vm2630, %v733, 0
    %vm2634 = vcmask 1040384
    %v2635 = vsel 0, 4294967295, 65535
    %v2636 = vsel %vm2634, %v2635, 0
    %v2638 = vand.u32 %v2310, %v2636
    %v2641 = vand.u32 %v2311, %v2636
    %v2644 = vand.u32 %v2312, %v2636
    %v2647 = vand.u32 %v2313, %v2636
    %v2650 = vand.u32 %v2314, %v2636
    %v2653 = vand.u32 %v2315, %v2636
    %v2656 = vand.u32 %v2316, %v2636
    %v2659 = vand.u32 %v2317, %v2636
    %2661 = vmatpush.bf16.msra.mxu0 %v2054
    %2662 = vmatpush.bf16.msra.mxu0 %v2046
    %2663 = vmatpush.bf16.msra.mxu0 %v2038
    %2664 = vmatpush.bf16.msra.mxu0 %v2030
    %2665 = vmatpush.bf16.msra.mxu0 %v2022
    %2666 = vmatpush.bf16.msra.mxu0 %v2014
    %2667 = vmatpush.bf16.msra.mxu0 %v2006
    %2668 = vmatpush.bf16.msra.mxu0 %v1998
    %2669 = vmatmul.bf16.gmra.mxu0 %v729
    %v2670 = vpop.f32.mrf.mxu0
    %v2671 = vadd.f32 0.0, %v2670
    %v2672 = vpop.f32.mrf.mxu0
    %2673 = vdwg.mxu0
    %2674 = vmatpush.bf16.msra.mxu0 %v2118
    %2675 = vmatpush.bf16.msra.mxu0 %v2110
    %2676 = vmatpush.bf16.msra.mxu0 %v2102
    %2677 = vmatpush.bf16.msra.mxu0 %v2094
    %2678 = vmatpush.bf16.msra.mxu0 %v2086
    %2679 = vmatpush.bf16.msra.mxu0 %v2078
    %2680 = vmatpush.bf16.msra.mxu0 %v2070
    %2681 = vmatpush.bf16.msra.mxu0 %v2062
    %2682 = vmatmul.bf16.gmra.mxu0 %v730
    %v2683 = vpop.f32.mrf.mxu0
    %v2684 = vadd.f32 %v2671, %v2683
    %v2685 = vpop.f32.mrf.mxu0
    %2686 = vdwg.mxu0
    %2687 = vmatpush.bf16.msra.mxu0 %v2182
    %2688 = vmatpush.bf16.msra.mxu0 %v2174
    %2689 = vmatpush.bf16.msra.mxu0 %v2166
    %2690 = vmatpush.bf16.msra.mxu0 %v2158
    %2691 = vmatpush.bf16.msra.mxu0 %v2150
    %2692 = vmatpush.bf16.msra.mxu0 %v2142
    %2693 = vmatpush.bf16.msra.mxu0 %v2134
    %2694 = vmatpush.bf16.msra.mxu0 %v2126
    %2695 = vmatmul.bf16.gmra.mxu0 %v731
    %v2696 = vpop.f32.mrf.mxu0
    %v2697 = vadd.f32 %v2684, %v2696
    %v2698 = vpop.f32.mrf.mxu0
    %2699 = vdwg.mxu0
    %2700 = vmatpush.bf16.msra.mxu0 %v2246
    %2701 = vmatpush.bf16.msra.mxu0 %v2238
    %2702 = vmatpush.bf16.msra.mxu0 %v2230
    %2703 = vmatpush.bf16.msra.mxu0 %v2222
    %2704 = vmatpush.bf16.msra.mxu0 %v2214
    %2705 = vmatpush.bf16.msra.mxu0 %v2206
    %2706 = vmatpush.bf16.msra.mxu0 %v2198
    %2707 = vmatpush.bf16.msra.mxu0 %v2190
    %2708 = vmatmul.bf16.gmra.mxu0 %v732
    %v2709 = vpop.f32.mrf.mxu0
    %v2710 = vadd.f32 %v2697, %v2709
    %v2711 = vpop.f32.mrf.mxu0
    %2712 = vdwg.mxu0
    %2713 = vmatpush.bf16.msra.mxu0 %v2638
    %2714 = vmatpush.bf16.msra.mxu0 %v2302
    %2715 = vmatpush.bf16.msra.mxu0 %v2294
    %2716 = vmatpush.bf16.msra.mxu0 %v2286
    %2717 = vmatpush.bf16.msra.mxu0 %v2278
    %2718 = vmatpush.bf16.msra.mxu0 %v2270
    %2719 = vmatpush.bf16.msra.mxu0 %v2262
    %2720 = vmatpush.bf16.msra.mxu0 %v2254
    %2721 = vmatmul.bf16.gmra.mxu0 %v2632
    %v2722 = vpop.f32.mrf.mxu0
    %v2723 = vadd.f32 %v2710, %v2722
    %v2724 = vpop.f32.mrf.mxu0
    %2725 = vdwg.mxu0
    %2726 = vmatpush.bf16.msra.mxu0 %v2055
    %2727 = vmatpush.bf16.msra.mxu0 %v2047
    %2728 = vmatpush.bf16.msra.mxu0 %v2039
    %2729 = vmatpush.bf16.msra.mxu0 %v2031
    %2730 = vmatpush.bf16.msra.mxu0 %v2023
    %2731 = vmatpush.bf16.msra.mxu0 %v2015
    %2732 = vmatpush.bf16.msra.mxu0 %v2007
    %2733 = vmatpush.bf16.msra.mxu0 %v1999
    %2734 = vmatmul.bf16.gmra.mxu0 %v729
    %v2735 = vpop.f32.mrf.mxu0
    %v2736 = vadd.f32 0.0, %v2735
    %v2737 = vpop.f32.mrf.mxu0
    %2738 = vdwg.mxu0
    %2739 = vmatpush.bf16.msra.mxu0 %v2119
    %2740 = vmatpush.bf16.msra.mxu0 %v2111
    %2741 = vmatpush.bf16.msra.mxu0 %v2103
    %2742 = vmatpush.bf16.msra.mxu0 %v2095
    %2743 = vmatpush.bf16.msra.mxu0 %v2087
    %2744 = vmatpush.bf16.msra.mxu0 %v2079
    %2745 = vmatpush.bf16.msra.mxu0 %v2071
    %2746 = vmatpush.bf16.msra.mxu0 %v2063
    %2747 = vmatmul.bf16.gmra.mxu0 %v730
    %v2748 = vpop.f32.mrf.mxu0
    %v2749 = vadd.f32 %v2736, %v2748
    %v2750 = vpop.f32.mrf.mxu0
    %2751 = vdwg.mxu0
    %2752 = vmatpush.bf16.msra.mxu0 %v2183
    %2753 = vmatpush.bf16.msra.mxu0 %v2175
    %2754 = vmatpush.bf16.msra.mxu0 %v2167
    %2755 = vmatpush.bf16.msra.mxu0 %v2159
    %2756 = vmatpush.bf16.msra.mxu0 %v2151
    %2757 = vmatpush.bf16.msra.mxu0 %v2143
    %2758 = vmatpush.bf16.msra.mxu0 %v2135
    %2759 = vmatpush.bf16.msra.mxu0 %v2127
    %2760 = vmatmul.bf16.gmra.mxu0 %v731
    %v2761 = vpop.f32.mrf.mxu0
    %v2762 = vadd.f32 %v2749, %v2761
    %v2763 = vpop.f32.mrf.mxu0
    %2764 = vdwg.mxu0
    %2765 = vmatpush.bf16.msra.mxu0 %v2247
    %2766 = vmatpush.bf16.msra.mxu0 %v2239
    %2767 = vmatpush.bf16.msra.mxu0 %v2231
    %2768 = vmatpush.bf16.msra.mxu0 %v2223
    %2769 = vmatpush.bf16.msra.mxu0 %v2215
    %2770 = vmatpush.bf16.msra.mxu0 %v2207
    %2771 = vmatpush.bf16.msra.mxu0 %v2199
    %2772 = vmatpush.bf16.msra.mxu0 %v2191
    %2773 = vmatmul.bf16.gmra.mxu0 %v732
    %v2774 = vpop.f32.mrf.mxu0
    %v2775 = vadd.f32 %v2762, %v2774
    %v2776 = vpop.f32.mrf.mxu0
    %2777 = vdwg.mxu0
    %2778 = vmatpush.bf16.msra.mxu0 %v2641
    %2779 = vmatpush.bf16.msra.mxu0 %v2303
    %2780 = vmatpush.bf16.msra.mxu0 %v2295
    %2781 = vmatpush.bf16.msra.mxu0 %v2287
    %2782 = vmatpush.bf16.msra.mxu0 %v2279
    %2783 = vmatpush.bf16.msra.mxu0 %v2271
    %2784 = vmatpush.bf16.msra.mxu0 %v2263
    %2785 = vmatpush.bf16.msra.mxu0 %v2255
    %2786 = vmatmul.bf16.gmra.mxu0 %v2632
    %v2787 = vpop.f32.mrf.mxu0
    %v2788 = vadd.f32 %v2775, %v2787
    %v2789 = vpop.f32.mrf.mxu0
    %2790 = vdwg.mxu0
    %2791 = vmatpush.bf16.msra.mxu0 %v2056
    %2792 = vmatpush.bf16.msra.mxu0 %v2048
    %2793 = vmatpush.bf16.msra.mxu0 %v2040
    %2794 = vmatpush.bf16.msra.mxu0 %v2032
    %2795 = vmatpush.bf16.msra.mxu0 %v2024
    %2796 = vmatpush.bf16.msra.mxu0 %v2016
    %2797 = vmatpush.bf16.msra.mxu0 %v2008
    %2798 = vmatpush.bf16.msra.mxu0 %v2000
    %2799 = vmatmul.bf16.gmra.mxu0 %v729
    %v2800 = vpop.f32.mrf.mxu0
    %v2801 = vadd.f32 0.0, %v2800
    %v2802 = vpop.f32.mrf.mxu0
    %2803 = vdwg.mxu0
    %2804 = vmatpush.bf16.msra.mxu0 %v2120
    %2805 = vmatpush.bf16.msra.mxu0 %v2112
    %2806 = vmatpush.bf16.msra.mxu0 %v2104
    %2807 = vmatpush.bf16.msra.mxu0 %v2096
    %2808 = vmatpush.bf16.msra.mxu0 %v2088
    %2809 = vmatpush.bf16.msra.mxu0 %v2080
    %2810 = vmatpush.bf16.msra.mxu0 %v2072
    %2811 = vmatpush.bf16.msra.mxu0 %v2064
    %2812 = vmatmul.bf16.gmra.mxu0 %v730
    %v2813 = vpop.f32.mrf.mxu0
    %v2814 = vadd.f32 %v2801, %v2813
    %v2815 = vpop.f32.mrf.mxu0
    %2816 = vdwg.mxu0
    %2817 = vmatpush.bf16.msra.mxu0 %v2184
    %2818 = vmatpush.bf16.msra.mxu0 %v2176
    %2819 = vmatpush.bf16.msra.mxu0 %v2168
    %2820 = vmatpush.bf16.msra.mxu0 %v2160
    %2821 = vmatpush.bf16.msra.mxu0 %v2152
    %2822 = vmatpush.bf16.msra.mxu0 %v2144
    %2823 = vmatpush.bf16.msra.mxu0 %v2136
    %2824 = vmatpush.bf16.msra.mxu0 %v2128
    %2825 = vmatmul.bf16.gmra.mxu0 %v731
    %v2826 = vpop.f32.mrf.mxu0
    %v2827 = vadd.f32 %v2814, %v2826
    %v2828 = vpop.f32.mrf.mxu0
    %2829 = vdwg.mxu0
    %2830 = vmatpush.bf16.msra.mxu0 %v2248
    %2831 = vmatpush.bf16.msra.mxu0 %v2240
    %2832 = vmatpush.bf16.msra.mxu0 %v2232
    %2833 = vmatpush.bf16.msra.mxu0 %v2224
    %2834 = vmatpush.bf16.msra.mxu0 %v2216
    %2835 = vmatpush.bf16.msra.mxu0 %v2208
    %2836 = vmatpush.bf16.msra.mxu0 %v2200
    %2837 = vmatpush.bf16.msra.mxu0 %v2192
    %2838 = vmatmul.bf16.gmra.mxu0 %v732
    %v2839 = vpop.f32.mrf.mxu0
    %v2840 = vadd.f32 %v2827, %v2839
    %v2841 = vpop.f32.mrf.mxu0
    %2842 = vdwg.mxu0
    %2843 = vmatpush.bf16.msra.mxu0 %v2644
    %2844 = vmatpush.bf16.msra.mxu0 %v2304
    %2845 = vmatpush.bf16.msra.mxu0 %v2296
    %2846 = vmatpush.bf16.msra.mxu0 %v2288
    %2847 = vmatpush.bf16.msra.mxu0 %v2280
    %2848 = vmatpush.bf16.msra.mxu0 %v2272
    %2849 = vmatpush.bf16.msra.mxu0 %v2264
    %2850 = vmatpush.bf16.msra.mxu0 %v2256
    %2851 = vmatmul.bf16.gmra.mxu0 %v2632
    %v2852 = vpop.f32.mrf.mxu0
    %v2853 = vadd.f32 %v2840, %v2852
    %v2854 = vpop.f32.mrf.mxu0
    %2855 = vdwg.mxu0
    %2856 = vmatpush.bf16.msra.mxu0 %v2057
    %2857 = vmatpush.bf16.msra.mxu0 %v2049
    %2858 = vmatpush.bf16.msra.mxu0 %v2041
    %2859 = vmatpush.bf16.msra.mxu0 %v2033
    %2860 = vmatpush.bf16.msra.mxu0 %v2025
    %2861 = vmatpush.bf16.msra.mxu0 %v2017
    %2862 = vmatpush.bf16.msra.mxu0 %v2009
    %2863 = vmatpush.bf16.msra.mxu0 %v2001
    %2864 = vmatmul.bf16.gmra.mxu0 %v729
    %v2865 = vpop.f32.mrf.mxu0
    %v2866 = vadd.f32 0.0, %v2865
    %v2867 = vpop.f32.mrf.mxu0
    %2868 = vdwg.mxu0
    %2869 = vmatpush.bf16.msra.mxu0 %v2121
    %2870 = vmatpush.bf16.msra.mxu0 %v2113
    %2871 = vmatpush.bf16.msra.mxu0 %v2105
    %2872 = vmatpush.bf16.msra.mxu0 %v2097
    %2873 = vmatpush.bf16.msra.mxu0 %v2089
    %2874 = vmatpush.bf16.msra.mxu0 %v2081
    %2875 = vmatpush.bf16.msra.mxu0 %v2073
    %2876 = vmatpush.bf16.msra.mxu0 %v2065
    %2877 = vmatmul.bf16.gmra.mxu0 %v730
    %v2878 = vpop.f32.mrf.mxu0
    %v2879 = vadd.f32 %v2866, %v2878
    %v2880 = vpop.f32.mrf.mxu0
    %2881 = vdwg.mxu0
    %2882 = vmatpush.bf16.msra.mxu0 %v2185
    %2883 = vmatpush.bf16.msra.mxu0 %v2177
    %2884 = vmatpush.bf16.msra.mxu0 %v2169
    %2885 = vmatpush.bf16.msra.mxu0 %v2161
    %2886 = vmatpush.bf16.msra.mxu0 %v2153
    %2887 = vmatpush.bf16.msra.mxu0 %v2145
    %2888 = vmatpush.bf16.msra.mxu0 %v2137
    %2889 = vmatpush.bf16.msra.mxu0 %v2129
    %2890 = vmatmul.bf16.gmra.mxu0 %v731
    %v2891 = vpop.f32.mrf.mxu0
    %v2892 = vadd.f32 %v2879, %v2891
    %v2893 = vpop.f32.mrf.mxu0
    %2894 = vdwg.mxu0
    %2895 = vmatpush.bf16.msra.mxu0 %v2249
    %2896 = vmatpush.bf16.msra.mxu0 %v2241
    %2897 = vmatpush.bf16.msra.mxu0 %v2233
    %2898 = vmatpush.bf16.msra.mxu0 %v2225
    %2899 = vmatpush.bf16.msra.mxu0 %v2217
    %2900 = vmatpush.bf16.msra.mxu0 %v2209
    %2901 = vmatpush.bf16.msra.mxu0 %v2201
    %2902 = vmatpush.bf16.msra.mxu0 %v2193
    %2903 = vmatmul.bf16.gmra.mxu0 %v732
    %v2904 = vpop.f32.mrf.mxu0
    %v2905 = vadd.f32 %v2892, %v2904
    %v2906 = vpop.f32.mrf.mxu0
    %2907 = vdwg.mxu0
    %2908 = vmatpush.bf16.msra.mxu0 %v2647
    %2909 = vmatpush.bf16.msra.mxu0 %v2305
    %2910 = vmatpush.bf16.msra.mxu0 %v2297
    %2911 = vmatpush.bf16.msra.mxu0 %v2289
    %2912 = vmatpush.bf16.msra.mxu0 %v2281
    %2913 = vmatpush.bf16.msra.mxu0 %v2273
    %2914 = vmatpush.bf16.msra.mxu0 %v2265
    %2915 = vmatpush.bf16.msra.mxu0 %v2257
    %2916 = vmatmul.bf16.gmra.mxu0 %v2632
    %v2917 = vpop.f32.mrf.mxu0
    %v2918 = vadd.f32 %v2905, %v2917
    %v2919 = vpop.f32.mrf.mxu0
    %2920 = vdwg.mxu0
    %2921 = vmatpush.bf16.msra.mxu0 %v2058
    %2922 = vmatpush.bf16.msra.mxu0 %v2050
    %2923 = vmatpush.bf16.msra.mxu0 %v2042
    %2924 = vmatpush.bf16.msra.mxu0 %v2034
    %2925 = vmatpush.bf16.msra.mxu0 %v2026
    %2926 = vmatpush.bf16.msra.mxu0 %v2018
    %2927 = vmatpush.bf16.msra.mxu0 %v2010
    %2928 = vmatpush.bf16.msra.mxu0 %v2002
    %2929 = vmatmul.bf16.gmra.mxu0 %v729
    %v2930 = vpop.f32.mrf.mxu0
    %v2931 = vadd.f32 0.0, %v2930
    %v2932 = vpop.f32.mrf.mxu0
    %2933 = vdwg.mxu0
    %2934 = vmatpush.bf16.msra.mxu0 %v2122
    %2935 = vmatpush.bf16.msra.mxu0 %v2114
    %2936 = vmatpush.bf16.msra.mxu0 %v2106
    %2937 = vmatpush.bf16.msra.mxu0 %v2098
    %2938 = vmatpush.bf16.msra.mxu0 %v2090
    %2939 = vmatpush.bf16.msra.mxu0 %v2082
    %2940 = vmatpush.bf16.msra.mxu0 %v2074
    %2941 = vmatpush.bf16.msra.mxu0 %v2066
    %2942 = vmatmul.bf16.gmra.mxu0 %v730
    %v2943 = vpop.f32.mrf.mxu0
    %v2944 = vadd.f32 %v2931, %v2943
    %v2945 = vpop.f32.mrf.mxu0
    %2946 = vdwg.mxu0
    %2947 = vmatpush.bf16.msra.mxu0 %v2186
    %2948 = vmatpush.bf16.msra.mxu0 %v2178
    %2949 = vmatpush.bf16.msra.mxu0 %v2170
    %2950 = vmatpush.bf16.msra.mxu0 %v2162
    %2951 = vmatpush.bf16.msra.mxu0 %v2154
    %2952 = vmatpush.bf16.msra.mxu0 %v2146
    %2953 = vmatpush.bf16.msra.mxu0 %v2138
    %2954 = vmatpush.bf16.msra.mxu0 %v2130
    %2955 = vmatmul.bf16.gmra.mxu0 %v731
    %v2956 = vpop.f32.mrf.mxu0
    %v2957 = vadd.f32 %v2944, %v2956
    %v2958 = vpop.f32.mrf.mxu0
    %2959 = vdwg.mxu0
    %2960 = vmatpush.bf16.msra.mxu0 %v2250
    %2961 = vmatpush.bf16.msra.mxu0 %v2242
    %2962 = vmatpush.bf16.msra.mxu0 %v2234
    %2963 = vmatpush.bf16.msra.mxu0 %v2226
    %2964 = vmatpush.bf16.msra.mxu0 %v2218
    %2965 = vmatpush.bf16.msra.mxu0 %v2210
    %2966 = vmatpush.bf16.msra.mxu0 %v2202
    %2967 = vmatpush.bf16.msra.mxu0 %v2194
    %2968 = vmatmul.bf16.gmra.mxu0 %v732
    %v2969 = vpop.f32.mrf.mxu0
    %v2970 = vadd.f32 %v2957, %v2969
    %v2971 = vpop.f32.mrf.mxu0
    %2972 = vdwg.mxu0
    %2973 = vmatpush.bf16.msra.mxu0 %v2650
    %2974 = vmatpush.bf16.msra.mxu0 %v2306
    %2975 = vmatpush.bf16.msra.mxu0 %v2298
    %2976 = vmatpush.bf16.msra.mxu0 %v2290
    %2977 = vmatpush.bf16.msra.mxu0 %v2282
    %2978 = vmatpush.bf16.msra.mxu0 %v2274
    %2979 = vmatpush.bf16.msra.mxu0 %v2266
    %2980 = vmatpush.bf16.msra.mxu0 %v2258
    %2981 = vmatmul.bf16.gmra.mxu0 %v2632
    %v2982 = vpop.f32.mrf.mxu0
    %v2983 = vadd.f32 %v2970, %v2982
    %v2984 = vpop.f32.mrf.mxu0
    %2985 = vdwg.mxu0
    %2986 = vmatpush.bf16.msra.mxu0 %v2059
    %2987 = vmatpush.bf16.msra.mxu0 %v2051
    %2988 = vmatpush.bf16.msra.mxu0 %v2043
    %2989 = vmatpush.bf16.msra.mxu0 %v2035
    %2990 = vmatpush.bf16.msra.mxu0 %v2027
    %2991 = vmatpush.bf16.msra.mxu0 %v2019
    %2992 = vmatpush.bf16.msra.mxu0 %v2011
    %2993 = vmatpush.bf16.msra.mxu0 %v2003
    %2994 = vmatmul.bf16.gmra.mxu0 %v729
    %v2995 = vpop.f32.mrf.mxu0
    %v2996 = vadd.f32 0.0, %v2995
    %v2997 = vpop.f32.mrf.mxu0
    %2998 = vdwg.mxu0
    %2999 = vmatpush.bf16.msra.mxu0 %v2123
    %3000 = vmatpush.bf16.msra.mxu0 %v2115
    %3001 = vmatpush.bf16.msra.mxu0 %v2107
    %3002 = vmatpush.bf16.msra.mxu0 %v2099
    %3003 = vmatpush.bf16.msra.mxu0 %v2091
    %3004 = vmatpush.bf16.msra.mxu0 %v2083
    %3005 = vmatpush.bf16.msra.mxu0 %v2075
    %3006 = vmatpush.bf16.msra.mxu0 %v2067
    %3007 = vmatmul.bf16.gmra.mxu0 %v730
    %v3008 = vpop.f32.mrf.mxu0
    %v3009 = vadd.f32 %v2996, %v3008
    %v3010 = vpop.f32.mrf.mxu0
    %3011 = vdwg.mxu0
    %3012 = vmatpush.bf16.msra.mxu0 %v2187
    %3013 = vmatpush.bf16.msra.mxu0 %v2179
    %3014 = vmatpush.bf16.msra.mxu0 %v2171
    %3015 = vmatpush.bf16.msra.mxu0 %v2163
    %3016 = vmatpush.bf16.msra.mxu0 %v2155
    %3017 = vmatpush.bf16.msra.mxu0 %v2147
    %3018 = vmatpush.bf16.msra.mxu0 %v2139
    %3019 = vmatpush.bf16.msra.mxu0 %v2131
    %3020 = vmatmul.bf16.gmra.mxu0 %v731
    %v3021 = vpop.f32.mrf.mxu0
    %v3022 = vadd.f32 %v3009, %v3021
    %v3023 = vpop.f32.mrf.mxu0
    %3024 = vdwg.mxu0
    %3025 = vmatpush.bf16.msra.mxu0 %v2251
    %3026 = vmatpush.bf16.msra.mxu0 %v2243
    %3027 = vmatpush.bf16.msra.mxu0 %v2235
    %3028 = vmatpush.bf16.msra.mxu0 %v2227
    %3029 = vmatpush.bf16.msra.mxu0 %v2219
    %3030 = vmatpush.bf16.msra.mxu0 %v2211
    %3031 = vmatpush.bf16.msra.mxu0 %v2203
    %3032 = vmatpush.bf16.msra.mxu0 %v2195
    %3033 = vmatmul.bf16.gmra.mxu0 %v732
    %v3034 = vpop.f32.mrf.mxu0
    %v3035 = vadd.f32 %v3022, %v3034
    %v3036 = vpop.f32.mrf.mxu0
    %3037 = vdwg.mxu0
    %3038 = vmatpush.bf16.msra.mxu0 %v2653
    %3039 = vmatpush.bf16.msra.mxu0 %v2307
    %3040 = vmatpush.bf16.msra.mxu0 %v2299
    %3041 = vmatpush.bf16.msra.mxu0 %v2291
    %3042 = vmatpush.bf16.msra.mxu0 %v2283
    %3043 = vmatpush.bf16.msra.mxu0 %v2275
    %3044 = vmatpush.bf16.msra.mxu0 %v2267
    %3045 = vmatpush.bf16.msra.mxu0 %v2259
    %3046 = vmatmul.bf16.gmra.mxu0 %v2632
    %v3047 = vpop.f32.mrf.mxu0
    %v3048 = vadd.f32 %v3035, %v3047
    %v3049 = vpop.f32.mrf.mxu0
    %3050 = vdwg.mxu0
    %3051 = vmatpush.bf16.msra.mxu0 %v2060
    %3052 = vmatpush.bf16.msra.mxu0 %v2052
    %3053 = vmatpush.bf16.msra.mxu0 %v2044
    %3054 = vmatpush.bf16.msra.mxu0 %v2036
    %3055 = vmatpush.bf16.msra.mxu0 %v2028
    %3056 = vmatpush.bf16.msra.mxu0 %v2020
    %3057 = vmatpush.bf16.msra.mxu0 %v2012
    %3058 = vmatpush.bf16.msra.mxu0 %v2004
    %3059 = vmatmul.bf16.gmra.mxu0 %v729
    %v3060 = vpop.f32.mrf.mxu0
    %v3061 = vadd.f32 0.0, %v3060
    %v3062 = vpop.f32.mrf.mxu0
    %3063 = vdwg.mxu0
    %3064 = vmatpush.bf16.msra.mxu0 %v2124
    %3065 = vmatpush.bf16.msra.mxu0 %v2116
    %3066 = vmatpush.bf16.msra.mxu0 %v2108
    %3067 = vmatpush.bf16.msra.mxu0 %v2100
    %3068 = vmatpush.bf16.msra.mxu0 %v2092
    %3069 = vmatpush.bf16.msra.mxu0 %v2084
    %3070 = vmatpush.bf16.msra.mxu0 %v2076
    %3071 = vmatpush.bf16.msra.mxu0 %v2068
    %3072 = vmatmul.bf16.gmra.mxu0 %v730
    %v3073 = vpop.f32.mrf.mxu0
    %v3074 = vadd.f32 %v3061, %v3073
    %v3075 = vpop.f32.mrf.mxu0
    %3076 = vdwg.mxu0
    %3077 = vmatpush.bf16.msra.mxu0 %v2188
    %3078 = vmatpush.bf16.msra.mxu0 %v2180
    %3079 = vmatpush.bf16.msra.mxu0 %v2172
    %3080 = vmatpush.bf16.msra.mxu0 %v2164
    %3081 = vmatpush.bf16.msra.mxu0 %v2156
    %3082 = vmatpush.bf16.msra.mxu0 %v2148
    %3083 = vmatpush.bf16.msra.mxu0 %v2140
    %3084 = vmatpush.bf16.msra.mxu0 %v2132
    %3085 = vmatmul.bf16.gmra.mxu0 %v731
    %v3086 = vpop.f32.mrf.mxu0
    %v3087 = vadd.f32 %v3074, %v3086
    %v3088 = vpop.f32.mrf.mxu0
    %3089 = vdwg.mxu0
    %3090 = vmatpush.bf16.msra.mxu0 %v2252
    %3091 = vmatpush.bf16.msra.mxu0 %v2244
    %3092 = vmatpush.bf16.msra.mxu0 %v2236
    %3093 = vmatpush.bf16.msra.mxu0 %v2228
    %3094 = vmatpush.bf16.msra.mxu0 %v2220
    %3095 = vmatpush.bf16.msra.mxu0 %v2212
    %3096 = vmatpush.bf16.msra.mxu0 %v2204
    %3097 = vmatpush.bf16.msra.mxu0 %v2196
    %3098 = vmatmul.bf16.gmra.mxu0 %v732
    %v3099 = vpop.f32.mrf.mxu0
    %v3100 = vadd.f32 %v3087, %v3099
    %v3101 = vpop.f32.mrf.mxu0
    %3102 = vdwg.mxu0
    %3103 = vmatpush.bf16.msra.mxu0 %v2656
    %3104 = vmatpush.bf16.msra.mxu0 %v2308
    %3105 = vmatpush.bf16.msra.mxu0 %v2300
    %3106 = vmatpush.bf16.msra.mxu0 %v2292
    %3107 = vmatpush.bf16.msra.mxu0 %v2284
    %3108 = vmatpush.bf16.msra.mxu0 %v2276
    %3109 = vmatpush.bf16.msra.mxu0 %v2268
    %3110 = vmatpush.bf16.msra.mxu0 %v2260
    %3111 = vmatmul.bf16.gmra.mxu0 %v2632
    %v3112 = vpop.f32.mrf.mxu0
    %v3113 = vadd.f32 %v3100, %v3112
    %v3114 = vpop.f32.mrf.mxu0
    %3115 = vdwg.mxu0
    %3116 = vmatpush.bf16.msra.mxu0 %v2061
    %3117 = vmatpush.bf16.msra.mxu0 %v2053
    %3118 = vmatpush.bf16.msra.mxu0 %v2045
    %3119 = vmatpush.bf16.msra.mxu0 %v2037
    %3120 = vmatpush.bf16.msra.mxu0 %v2029
    %3121 = vmatpush.bf16.msra.mxu0 %v2021
    %3122 = vmatpush.bf16.msra.mxu0 %v2013
    %3123 = vmatpush.bf16.msra.mxu0 %v2005
    %3124 = vmatmul.bf16.gmra.mxu0 %v729
    %v3125 = vpop.f32.mrf.mxu0
    %v3126 = vadd.f32 0.0, %v3125
    %v3127 = vpop.f32.mrf.mxu0
    %3128 = vdwg.mxu0
    %3129 = vmatpush.bf16.msra.mxu0 %v2125
    %3130 = vmatpush.bf16.msra.mxu0 %v2117
    %3131 = vmatpush.bf16.msra.mxu0 %v2109
    %3132 = vmatpush.bf16.msra.mxu0 %v2101
    %3133 = vmatpush.bf16.msra.mxu0 %v2093
    %3134 = vmatpush.bf16.msra.mxu0 %v2085
    %3135 = vmatpush.bf16.msra.mxu0 %v2077
    %3136 = vmatpush.bf16.msra.mxu0 %v2069
    %3137 = vmatmul.bf16.gmra.mxu0 %v730
    %v3138 = vpop.f32.mrf.mxu0
    %v3139 = vadd.f32 %v3126, %v3138
    %v3140 = vpop.f32.mrf.mxu0
    %3141 = vdwg.mxu0
    %3142 = vmatpush.bf16.msra.mxu0 %v2189
    %3143 = vmatpush.bf16.msra.mxu0 %v2181
    %3144 = vmatpush.bf16.msra.mxu0 %v2173
    %3145 = vmatpush.bf16.msra.mxu0 %v2165
    %3146 = vmatpush.bf16.msra.mxu0 %v2157
    %3147 = vmatpush.bf16.msra.mxu0 %v2149
    %3148 = vmatpush.bf16.msra.mxu0 %v2141
    %3149 = vmatpush.bf16.msra.mxu0 %v2133
    %3150 = vmatmul.bf16.gmra.mxu0 %v731
    %v3151 = vpop.f32.mrf.mxu0
    %v3152 = vadd.f32 %v3139, %v3151
    %v3153 = vpop.f32.mrf.mxu0
    %3154 = vdwg.mxu0
    %3155 = vmatpush.bf16.msra.mxu0 %v2253
    %3156 = vmatpush.bf16.msra.mxu0 %v2245
    %3157 = vmatpush.bf16.msra.mxu0 %v2237
    %3158 = vmatpush.bf16.msra.mxu0 %v2229
    %3159 = vmatpush.bf16.msra.mxu0 %v2221
    %3160 = vmatpush.bf16.msra.mxu0 %v2213
    %3161 = vmatpush.bf16.msra.mxu0 %v2205
    %3162 = vmatpush.bf16.msra.mxu0 %v2197
    %3163 = vmatmul.bf16.gmra.mxu0 %v732
    %v3164 = vpop.f32.mrf.mxu0
    %v3165 = vadd.f32 %v3152, %v3164
    %v3166 = vpop.f32.mrf.mxu0
    %3167 = vdwg.mxu0
    %3168 = vmatpush.bf16.msra.mxu0 %v2659
    %3169 = vmatpush.bf16.msra.mxu0 %v2309
    %3170 = vmatpush.bf16.msra.mxu0 %v2301
    %3171 = vmatpush.bf16.msra.mxu0 %v2293
    %3172 = vmatpush.bf16.msra.mxu0 %v2285
    %3173 = vmatpush.bf16.msra.mxu0 %v2277
    %3174 = vmatpush.bf16.msra.mxu0 %v2269
    %3175 = vmatpush.bf16.msra.mxu0 %v2261
    %3176 = vmatmul.bf16.gmra.mxu0 %v2632
    %v3177 = vpop.f32.mrf.mxu0
    %v3178 = vadd.f32 %v3165, %v3177
    %v3179 = vpop.f32.mrf.mxu0
    %3180 = vdwg.mxu0
    %v3437 = vunpack.c.l.b16 %v456
    %v3438 = vunpack.c.h.b16 %v456
    %v3439 = vunpack.c.l.b16 %v457
    %v3440 = vunpack.c.h.b16 %v457
    %v3441 = vunpack.c.l.b16 %v458
    %v3442 = vunpack.c.h.b16 %v458
    %v3443 = vunpack.c.l.b16 %v459
    %v3444 = vunpack.c.h.b16 %v459
    %v3445 = vunpack.c.l.b16 %v460
    %v3446 = vunpack.c.h.b16 %v460
    %v3447 = vunpack.c.l.b16 %v461
    %v3448 = vunpack.c.h.b16 %v461
    %v3449 = vunpack.c.l.b16 %v462
    %v3450 = vunpack.c.h.b16 %v462
    %v3451 = vunpack.c.l.b16 %v463
    %v3452 = vunpack.c.h.b16 %v463
    %v3453 = vunpack.c.l.b16 %v464
    %v3454 = vunpack.c.h.b16 %v464
    %v3455 = vunpack.c.l.b16 %v465
    %v3456 = vunpack.c.h.b16 %v465
    %v3457 = vunpack.c.l.b16 %v466
    %v3458 = vunpack.c.h.b16 %v466
    %v3459 = vunpack.c.l.b16 %v467
    %v3460 = vunpack.c.h.b16 %v467
    %v3461 = vunpack.c.l.b16 %v468
    %v3462 = vunpack.c.h.b16 %v468
    %v3463 = vunpack.c.l.b16 %v469
    %v3464 = vunpack.c.h.b16 %v469
    %v3465 = vunpack.c.l.b16 %v470
    %v3466 = vunpack.c.h.b16 %v470
    %v3467 = vunpack.c.l.b16 %v471
    %v3468 = vunpack.c.h.b16 %v471
    %v3469 = vunpack.c.l.b16 %v472
    %v3470 = vunpack.c.h.b16 %v472
    %v3471 = vunpack.c.l.b16 %v473
    %v3472 = vunpack.c.h.b16 %v473
    %v3473 = vunpack.c.l.b16 %v474
    %v3474 = vunpack.c.h.b16 %v474
    %v3475 = vunpack.c.l.b16 %v475
    %v3476 = vunpack.c.h.b16 %v475
    %v3477 = vunpack.c.l.b16 %v476
    %v3478 = vunpack.c.h.b16 %v476
    %v3479 = vunpack.c.l.b16 %v477
    %v3480 = vunpack.c.h.b16 %v477
    %v3481 = vunpack.c.l.b16 %v478
    %v3482 = vunpack.c.h.b16 %v478
    %v3483 = vunpack.c.l.b16 %v479
    %v3484 = vunpack.c.h.b16 %v479
    %v3485 = vunpack.c.l.b16 %v480
    %v3486 = vunpack.c.h.b16 %v480
    %v3487 = vunpack.c.l.b16 %v481
    %v3488 = vunpack.c.h.b16 %v481
    %v3489 = vunpack.c.l.b16 %v482
    %v3490 = vunpack.c.h.b16 %v482
    %v3491 = vunpack.c.l.b16 %v483
    %v3492 = vunpack.c.h.b16 %v483
    %v3493 = vunpack.c.l.b16 %v484
    %v3494 = vunpack.c.h.b16 %v484
    %v3495 = vunpack.c.l.b16 %v485
    %v3496 = vunpack.c.h.b16 %v485
    %v3497 = vunpack.c.l.b16 %v486
    %v3498 = vunpack.c.h.b16 %v486
    %v3499 = vunpack.c.l.b16 %v487
    %v3500 = vunpack.c.h.b16 %v487
    %v3501 = vunpack.c.l.b16 %v488
    %v3502 = vunpack.c.h.b16 %v488
    %v3503 = vunpack.c.l.b16 %v489
    %v3504 = vunpack.c.h.b16 %v489
    %v3505 = vunpack.c.l.b16 %v490
    %v3506 = vunpack.c.h.b16 %v490
    %v3507 = vunpack.c.l.b16 %v491
    %v3508 = vunpack.c.h.b16 %v491
    %v3509 = vunpack.c.l.b16 %v492
    %v3510 = vunpack.c.h.b16 %v492
    %v3511 = vunpack.c.l.b16 %v493
    %v3512 = vunpack.c.h.b16 %v493
    %v3513 = vunpack.c.l.b16 %v494
    %v3514 = vunpack.c.h.b16 %v494
    %v3515 = vunpack.c.l.b16 %v495
    %v3516 = vunpack.c.h.b16 %v495
    %v3517 = vunpack.c.l.b16 %v496
    %v3518 = vunpack.c.h.b16 %v496
    %v3519 = vunpack.c.l.b16 %v497
    %v3520 = vunpack.c.h.b16 %v497
    %v3521 = vunpack.c.l.b16 %v498
    %v3522 = vunpack.c.h.b16 %v498
    %v3523 = vunpack.c.l.b16 %v499
    %v3524 = vunpack.c.h.b16 %v499
    %v3525 = vunpack.c.l.b16 %v500
    %v3526 = vunpack.c.h.b16 %v500
    %v3527 = vunpack.c.l.b16 %v501
    %v3528 = vunpack.c.h.b16 %v501
    %v3529 = vunpack.c.l.b16 %v502
    %v3530 = vunpack.c.h.b16 %v502
    %v3531 = vunpack.c.l.b16 %v503
    %v3532 = vunpack.c.h.b16 %v503
    %v3533 = vunpack.c.l.b16 %v504
    %v3534 = vunpack.c.h.b16 %v504
    %v3535 = vunpack.c.l.b16 %v505
    %v3536 = vunpack.c.h.b16 %v505
    %v3537 = vunpack.c.l.b16 %v506
    %v3538 = vunpack.c.h.b16 %v506
    %v3539 = vunpack.c.l.b16 %v507
    %v3540 = vunpack.c.h.b16 %v507
    %v3541 = vunpack.c.l.b16 %v508
    %v3542 = vunpack.c.h.b16 %v508
    %v3543 = vunpack.c.l.b16 %v509
    %v3544 = vunpack.c.h.b16 %v509
    %v3545 = vunpack.c.l.b16 %v510
    %v3546 = vunpack.c.h.b16 %v510
    %v3547 = vunpack.c.l.b16 %v511
    %v3548 = vunpack.c.h.b16 %v511
    %v3549 = vunpack.c.l.b16 %v512
    %v3550 = vunpack.c.h.b16 %v512
    %v3551 = vunpack.c.l.b16 %v513
    %v3552 = vunpack.c.h.b16 %v513
    %v3553 = vunpack.c.l.b16 %v514
    %v3554 = vunpack.c.h.b16 %v514
    %v3555 = vunpack.c.l.b16 %v515
    %v3556 = vunpack.c.h.b16 %v515
    %v3557 = vunpack.c.l.b16 %v516
    %v3558 = vunpack.c.h.b16 %v516
    %v3559 = vunpack.c.l.b16 %v517
    %v3560 = vunpack.c.h.b16 %v517
    %v3561 = vunpack.c.l.b16 %v518
    %v3562 = vunpack.c.h.b16 %v518
    %v3563 = vunpack.c.l.b16 %v519
    %v3564 = vunpack.c.h.b16 %v519
    %v3565 = vunpack.c.l.b16 %v520
    %v3566 = vunpack.c.h.b16 %v520
    %v3567 = vunpack.c.l.b16 %v521
    %v3568 = vunpack.c.h.b16 %v521
    %v3569 = vunpack.c.l.b16 %v522
    %v3570 = vunpack.c.h.b16 %v522
    %v3571 = vunpack.c.l.b16 %v523
    %v3572 = vunpack.c.h.b16 %v523
    %v3573 = vunpack.c.l.b16 %v524
    %v3574 = vunpack.c.h.b16 %v524
    %v3575 = vunpack.c.l.b16 %v525
    %v3576 = vunpack.c.h.b16 %v525
    %v3577 = vunpack.c.l.b16 %v526
    %v3578 = vunpack.c.h.b16 %v526
    %v3579 = vunpack.c.l.b16 %v527
    %v3580 = vunpack.c.h.b16 %v527
    %v3581 = vunpack.c.l.b16 %v528
    %v3582 = vunpack.c.h.b16 %v528
    %v3583 = vunpack.c.l.b16 %v529
    %v3584 = vunpack.c.h.b16 %v529
    %v3585 = vunpack.c.l.b16 %v530
    %v3586 = vunpack.c.h.b16 %v530
    %v3587 = vunpack.c.l.b16 %v531
    %v3588 = vunpack.c.h.b16 %v531
    %v3589 = vunpack.c.l.b16 %v532
    %v3590 = vunpack.c.h.b16 %v532
    %v3591 = vunpack.c.l.b16 %v533
    %v3592 = vunpack.c.h.b16 %v533
    %v3593 = vunpack.c.l.b16 %v534
    %v3594 = vunpack.c.h.b16 %v534
    %v3595 = vunpack.c.l.b16 %v535
    %v3596 = vunpack.c.h.b16 %v535
    %v3597 = vunpack.c.l.b16 %v536
    %v3598 = vunpack.c.h.b16 %v536
    %v3599 = vunpack.c.l.b16 %v537
    %v3600 = vunpack.c.h.b16 %v537
    %v3601 = vunpack.c.l.b16 %v538
    %v3602 = vunpack.c.h.b16 %v538
    %v3603 = vunpack.c.l.b16 %v539
    %v3604 = vunpack.c.h.b16 %v539
    %v3605 = vunpack.c.l.b16 %v540
    %v3606 = vunpack.c.h.b16 %v540
    %v3607 = vunpack.c.l.b16 %v541
    %v3608 = vunpack.c.h.b16 %v541
    %v3609 = vunpack.c.l.b16 %v542
    %v3610 = vunpack.c.h.b16 %v542
    %v3611 = vunpack.c.l.b16 %v543
    %v3612 = vunpack.c.h.b16 %v543
    %v3613 = vunpack.c.l.b16 %v544
    %v3614 = vunpack.c.h.b16 %v544
    %v3615 = vunpack.c.l.b16 %v545
    %v3616 = vunpack.c.h.b16 %v545
    %v3617 = vunpack.c.l.b16 %v546
    %v3618 = vunpack.c.h.b16 %v546
    %v3619 = vunpack.c.l.b16 %v547
    %v3620 = vunpack.c.h.b16 %v547
    %v3621 = vunpack.c.l.b16 %v548
    %v3622 = vunpack.c.h.b16 %v548
    %v3623 = vunpack.c.l.b16 %v549
    %v3624 = vunpack.c.h.b16 %v549
    %v3625 = vunpack.c.l.b16 %v550
    %v3626 = vunpack.c.h.b16 %v550
    %v3627 = vunpack.c.l.b16 %v551
    %v3628 = vunpack.c.h.b16 %v551
    %v3629 = vunpack.c.l.b16 %v552
    %v3630 = vunpack.c.h.b16 %v552
    %v3631 = vunpack.c.l.b16 %v553
    %v3632 = vunpack.c.h.b16 %v553
    %v3633 = vunpack.c.l.b16 %v554
    %v3634 = vunpack.c.h.b16 %v554
    %v3635 = vunpack.c.l.b16 %v555
    %v3636 = vunpack.c.h.b16 %v555
    %v3637 = vunpack.c.l.b16 %v556
    %v3638 = vunpack.c.h.b16 %v556
    %v3639 = vunpack.c.l.b16 %v557
    %v3640 = vunpack.c.h.b16 %v557
    %v3641 = vunpack.c.l.b16 %v558
    %v3642 = vunpack.c.h.b16 %v558
    %v3643 = vunpack.c.l.b16 %v559
    %v3644 = vunpack.c.h.b16 %v559
    %v3645 = vunpack.c.l.b16 %v560
    %v3646 = vunpack.c.h.b16 %v560
    %v3647 = vunpack.c.l.b16 %v561
    %v3648 = vunpack.c.h.b16 %v561
    %v3649 = vunpack.c.l.b16 %v562
    %v3650 = vunpack.c.h.b16 %v562
    %v3651 = vunpack.c.l.b16 %v563
    %v3652 = vunpack.c.h.b16 %v563
    %v3653 = vunpack.c.l.b16 %v564
    %v3654 = vunpack.c.h.b16 %v564
    %v3655 = vunpack.c.l.b16 %v565
    %v3656 = vunpack.c.h.b16 %v565
    %v3657 = vunpack.c.l.b16 %v566
    %v3658 = vunpack.c.h.b16 %v566
    %v3659 = vunpack.c.l.b16 %v567
    %v3660 = vunpack.c.h.b16 %v567
    %v3661 = vunpack.c.l.b16 %v568
    %v3662 = vunpack.c.h.b16 %v568
    %v3663 = vunpack.c.l.b16 %v569
    %v3664 = vunpack.c.h.b16 %v569
    %v3665 = vunpack.c.l.b16 %v570
    %v3666 = vunpack.c.h.b16 %v570
    %v3667 = vunpack.c.l.b16 %v571
    %v3668 = vunpack.c.h.b16 %v571
    %v3669 = vunpack.c.l.b16 %v572
    %v3670 = vunpack.c.h.b16 %v572
    %v3671 = vunpack.c.l.b16 %v573
    %v3672 = vunpack.c.h.b16 %v573
    %v3673 = vunpack.c.l.b16 %v574
    %v3674 = vunpack.c.h.b16 %v574
    %v3675 = vunpack.c.l.b16 %v575
    %v3676 = vunpack.c.h.b16 %v575
    %v3677 = vunpack.c.l.b16 %v576
    %v3678 = vunpack.c.h.b16 %v576
    %v3679 = vunpack.c.l.b16 %v577
    %v3680 = vunpack.c.h.b16 %v577
    %v3681 = vunpack.c.l.b16 %v578
    %v3682 = vunpack.c.h.b16 %v578
    %v3683 = vunpack.c.l.b16 %v579
    %v3684 = vunpack.c.h.b16 %v579
    %v3685 = vunpack.c.l.b16 %v580
    %v3686 = vunpack.c.h.b16 %v580
    %v3687 = vunpack.c.l.b16 %v581
    %v3688 = vunpack.c.h.b16 %v581
    %v3689 = vunpack.c.l.b16 %v582
    %v3690 = vunpack.c.h.b16 %v582
    %v3691 = vunpack.c.l.b16 %v583
    %v3692 = vunpack.c.h.b16 %v583
    %v3693 = vunpack.c.l.b16 %v584
    %v3694 = vunpack.c.h.b16 %v584
    %v3695 = vunpack.c.l.b16 %v585
    %v3696 = vunpack.c.h.b16 %v585
    %v3697 = vunpack.c.l.b16 %v586
    %v3698 = vunpack.c.h.b16 %v586
    %v3699 = vunpack.c.l.b16 %v587
    %v3700 = vunpack.c.h.b16 %v587
    %v3701 = vunpack.c.l.b16 %v588
    %v3702 = vunpack.c.h.b16 %v588
    %v3703 = vunpack.c.l.b16 %v589
    %v3704 = vunpack.c.h.b16 %v589
    %v3705 = vunpack.c.l.b16 %v590
    %v3706 = vunpack.c.h.b16 %v590
    %v3707 = vunpack.c.l.b16 %v591
    %v3708 = vunpack.c.h.b16 %v591
    %v3709 = vunpack.c.l.b16 %v592
    %v3710 = vunpack.c.h.b16 %v592
    %v3711 = vunpack.c.l.b16 %v593
    %v3712 = vunpack.c.h.b16 %v593
    %v3713 = vunpack.c.l.b16 %v594
    %v3714 = vunpack.c.h.b16 %v594
    %v3715 = vunpack.c.l.b16 %v595
    %v3716 = vunpack.c.h.b16 %v595
    %v3717 = vunpack.c.l.b16 %v596
    %v3718 = vunpack.c.h.b16 %v596
    %v3719 = vunpack.c.l.b16 %v597
    %v3720 = vunpack.c.h.b16 %v597
    %v3721 = vunpack.c.l.b16 %v598
    %v3722 = vunpack.c.h.b16 %v598
    %v3723 = vunpack.c.l.b16 %v599
    %v3724 = vunpack.c.h.b16 %v599
    %v3725 = vunpack.c.l.b16 %v600
    %v3726 = vunpack.c.h.b16 %v600
    %v3727 = vunpack.c.l.b16 %v601
    %v3728 = vunpack.c.h.b16 %v601
    %v3729 = vunpack.c.l.b16 %v602
    %v3730 = vunpack.c.h.b16 %v602
    %v3731 = vunpack.c.l.b16 %v603
    %v3732 = vunpack.c.h.b16 %v603
    %v3733 = vunpack.c.l.b16 %v604
    %v3734 = vunpack.c.h.b16 %v604
    %v3735 = vunpack.c.l.b16 %v605
    %v3736 = vunpack.c.h.b16 %v605
    %v3737 = vunpack.c.l.b16 %v606
    %v3738 = vunpack.c.h.b16 %v606
    %v3739 = vunpack.c.l.b16 %v607
    %v3740 = vunpack.c.h.b16 %v607
    %v3741 = vunpack.c.l.b16 %v608
    %v3742 = vunpack.c.h.b16 %v608
    %v3743 = vunpack.c.l.b16 %v609
    %v3744 = vunpack.c.h.b16 %v609
    %v3745 = vunpack.c.l.b16 %v610
    %v3746 = vunpack.c.h.b16 %v610
    %v3747 = vunpack.c.l.b16 %v611
    %v3748 = vunpack.c.h.b16 %v611
    %v3749 = vunpack.c.l.b16 %v612
    %v3750 = vunpack.c.h.b16 %v612
    %v3751 = vunpack.c.l.b16 %v613
    %v3752 = vunpack.c.h.b16 %v613
    %v3753 = vunpack.c.l.b16 %v614
    %v3754 = vunpack.c.h.b16 %v614
    %v3755 = vunpack.c.l.b16 %v615
    %v3756 = vunpack.c.h.b16 %v615
    %v3757 = vunpack.c.l.b16 %v616
    %v3758 = vunpack.c.h.b16 %v616
    %v3759 = vunpack.c.l.b16 %v617
    %v3760 = vunpack.c.h.b16 %v617
    %v3761 = vunpack.c.l.b16 %v618
    %v3762 = vunpack.c.h.b16 %v618
    %v3763 = vunpack.c.l.b16 %v619
    %v3764 = vunpack.c.h.b16 %v619
    %v3765 = vunpack.c.l.b16 %v620
    %v3766 = vunpack.c.h.b16 %v620
    %v3767 = vunpack.c.l.b16 %v621
    %v3768 = vunpack.c.h.b16 %v621
    %v3769 = vunpack.c.l.b16 %v622
    %v3770 = vunpack.c.h.b16 %v622
    %v3771 = vunpack.c.l.b16 %v623
    %v3772 = vunpack.c.h.b16 %v623
    %v3773 = vunpack.c.l.b16 %v624
    %v3774 = vunpack.c.h.b16 %v624
    %v3775 = vunpack.c.l.b16 %v625
    %v3776 = vunpack.c.h.b16 %v625
    %v3777 = vunpack.c.l.b16 %v626
    %v3778 = vunpack.c.h.b16 %v626
    %v3779 = vunpack.c.l.b16 %v627
    %v3780 = vunpack.c.h.b16 %v627
    %v3781 = vunpack.c.l.b16 %v628
    %v3782 = vunpack.c.h.b16 %v628
    %v3783 = vunpack.c.l.b16 %v629
    %v3784 = vunpack.c.h.b16 %v629
    %v3785 = vunpack.c.l.b16 %v630
    %v3786 = vunpack.c.h.b16 %v630
    %v3787 = vunpack.c.l.b16 %v631
    %v3788 = vunpack.c.h.b16 %v631
    %v3789 = vunpack.c.l.b16 %v632
    %v3790 = vunpack.c.h.b16 %v632
    %v3791 = vunpack.c.l.b16 %v633
    %v3792 = vunpack.c.h.b16 %v633
    %v3793 = vunpack.c.l.b16 %v634
    %v3794 = vunpack.c.h.b16 %v634
    %v3795 = vunpack.c.l.b16 %v635
    %v3796 = vunpack.c.h.b16 %v635
    %v3797 = vunpack.c.l.b16 %v636
    %v3798 = vunpack.c.h.b16 %v636
    %v3799 = vunpack.c.l.b16 %v637
    %v3800 = vunpack.c.h.b16 %v637
    %v3801 = vunpack.c.l.b16 %v638
    %v3802 = vunpack.c.h.b16 %v638
    %v3803 = vunpack.c.l.b16 %v639
    %v3804 = vunpack.c.h.b16 %v639
    %v3805 = vunpack.c.l.b16 %v640
    %v3806 = vunpack.c.h.b16 %v640
    %v3807 = vunpack.c.l.b16 %v641
    %v3808 = vunpack.c.h.b16 %v641
    %v3809 = vunpack.c.l.b16 %v642
    %v3810 = vunpack.c.h.b16 %v642
    %v3811 = vunpack.c.l.b16 %v643
    %v3812 = vunpack.c.h.b16 %v643
    %v3813 = vunpack.c.l.b16 %v644
    %v3814 = vunpack.c.h.b16 %v644
    %v3815 = vunpack.c.l.b16 %v645
    %v3816 = vunpack.c.h.b16 %v645
    %v3817 = vunpack.c.l.b16 %v646
    %v3818 = vunpack.c.h.b16 %v646
    %v3819 = vunpack.c.l.b16 %v647
    %v3820 = vunpack.c.h.b16 %v647
    %v3821 = vunpack.c.l.b16 %v648
    %v3822 = vunpack.c.h.b16 %v648
    %v3823 = vunpack.c.l.b16 %v649
    %v3824 = vunpack.c.h.b16 %v649
    %v3825 = vunpack.c.l.b16 %v650
    %v3826 = vunpack.c.h.b16 %v650
    %v3827 = vunpack.c.l.b16 %v651
    %v3828 = vunpack.c.h.b16 %v651
    %v3829 = vunpack.c.l.b16 %v652
    %v3830 = vunpack.c.h.b16 %v652
    %v3831 = vunpack.c.l.b16 %v653
    %v3832 = vunpack.c.h.b16 %v653
    %v3833 = vunpack.c.l.b16 %v654
    %v3834 = vunpack.c.h.b16 %v654
    %v3835 = vunpack.c.l.b16 %v655
    %v3836 = vunpack.c.h.b16 %v655
    %v3837 = vunpack.c.l.b16 %v656
    %v3838 = vunpack.c.h.b16 %v656
    %v3839 = vunpack.c.l.b16 %v657
    %v3840 = vunpack.c.h.b16 %v657
    %v3841 = vunpack.c.l.b16 %v658
    %v3842 = vunpack.c.h.b16 %v658
    %v3843 = vunpack.c.l.b16 %v659
    %v3844 = vunpack.c.h.b16 %v659
    %v3845 = vunpack.c.l.b16 %v660
    %v3846 = vunpack.c.h.b16 %v660
    %v3847 = vunpack.c.l.b16 %v661
    %v3848 = vunpack.c.h.b16 %v661
    %v3849 = vunpack.c.l.b16 %v662
    %v3850 = vunpack.c.h.b16 %v662
    %v3851 = vunpack.c.l.b16 %v663
    %v3852 = vunpack.c.h.b16 %v663
    %v3853 = vunpack.c.l.b16 %v664
    %v3854 = vunpack.c.h.b16 %v664
    %v3855 = vunpack.c.l.b16 %v665
    %v3856 = vunpack.c.h.b16 %v665
    %v3857 = vunpack.c.l.b16 %v666
    %v3858 = vunpack.c.h.b16 %v666
    %v3859 = vunpack.c.l.b16 %v667
    %v3860 = vunpack.c.h.b16 %v667
    %v3861 = vunpack.c.l.b16 %v668
    %v3862 = vunpack.c.h.b16 %v668
    %v3863 = vunpack.c.l.b16 %v669
    %v3864 = vunpack.c.h.b16 %v669
    %v3865 = vunpack.c.l.b16 %v670
    %v3866 = vunpack.c.h.b16 %v670
    %v3867 = vunpack.c.l.b16 %v671
    %v3868 = vunpack.c.h.b16 %v671
    %v3869 = vunpack.c.l.b16 %v672
    %v3870 = vunpack.c.h.b16 %v672
    %v3871 = vunpack.c.l.b16 %v673
    %v3872 = vunpack.c.h.b16 %v673
    %v3873 = vunpack.c.l.b16 %v674
    %v3874 = vunpack.c.h.b16 %v674
    %v3875 = vunpack.c.l.b16 %v675
    %v3876 = vunpack.c.h.b16 %v675
    %v3877 = vunpack.c.l.b16 %v676
    %v3878 = vunpack.c.h.b16 %v676
    %v3879 = vunpack.c.l.b16 %v677
    %v3880 = vunpack.c.h.b16 %v677
    %v3881 = vunpack.c.l.b16 %v678
    %v3882 = vunpack.c.h.b16 %v678
    %v3883 = vunpack.c.l.b16 %v679
    %v3884 = vunpack.c.h.b16 %v679
    %v3885 = vunpack.c.l.b16 %v680
    %v3886 = vunpack.c.h.b16 %v680
    %v3887 = vunpack.c.l.b16 %v681
    %v3888 = vunpack.c.h.b16 %v681
    %v3889 = vunpack.c.l.b16 %v682
    %v3890 = vunpack.c.h.b16 %v682
    %v3891 = vunpack.c.l.b16 %v683
    %v3892 = vunpack.c.h.b16 %v683
    %v3893 = vunpack.c.l.b16 %v684
    %v3894 = vunpack.c.h.b16 %v684
    %v3895 = vunpack.c.l.b16 %v685
    %v3896 = vunpack.c.h.b16 %v685
    %v3897 = vunpack.c.l.b16 %v686
    %v3898 = vunpack.c.h.b16 %v686
    %v3899 = vunpack.c.l.b16 %v687
    %v3900 = vunpack.c.h.b16 %v687
    %v3901 = vunpack.c.l.b16 %v688
    %v3902 = vunpack.c.h.b16 %v688
    %v3903 = vunpack.c.l.b16 %v689
    %v3904 = vunpack.c.h.b16 %v689
    %v3905 = vunpack.c.l.b16 %v690
    %v3906 = vunpack.c.h.b16 %v690
    %v3907 = vunpack.c.l.b16 %v691
    %v3908 = vunpack.c.h.b16 %v691
    %v3909 = vunpack.c.l.b16 %v692
    %v3910 = vunpack.c.h.b16 %v692
    %v3911 = vunpack.c.l.b16 %v693
    %v3912 = vunpack.c.h.b16 %v693
    %v3913 = vunpack.c.l.b16 %v694
    %v3914 = vunpack.c.h.b16 %v694
    %v3915 = vunpack.c.l.b16 %v695
    %v3916 = vunpack.c.h.b16 %v695
    %v3917 = vunpack.c.l.b16 %v696
    %v3918 = vunpack.c.h.b16 %v696
    %v3919 = vunpack.c.l.b16 %v697
    %v3920 = vunpack.c.h.b16 %v697
    %v3921 = vunpack.c.l.b16 %v698
    %v3922 = vunpack.c.h.b16 %v698
    %v3923 = vunpack.c.l.b16 %v699
    %v3924 = vunpack.c.h.b16 %v699
    %v3925 = vunpack.c.l.b16 %v700
    %v3926 = vunpack.c.h.b16 %v700
    %v3927 = vunpack.c.l.b16 %v701
    %v3928 = vunpack.c.h.b16 %v701
    %v3929 = vunpack.c.l.b16 %v702
    %v3930 = vunpack.c.h.b16 %v702
    %v3931 = vunpack.c.l.b16 %v703
    %v3932 = vunpack.c.h.b16 %v703
    %v3933 = vunpack.c.l.b16 %v704
    %v3934 = vunpack.c.h.b16 %v704
    %v3935 = vunpack.c.l.b16 %v705
    %v3936 = vunpack.c.h.b16 %v705
    %v3937 = vunpack.c.l.b16 %v706
    %v3938 = vunpack.c.h.b16 %v706
    %v3939 = vunpack.c.l.b16 %v707
    %v3940 = vunpack.c.h.b16 %v707
    %v3941 = vunpack.c.l.b16 %v708
    %v3942 = vunpack.c.h.b16 %v708
    %v3943 = vunpack.c.l.b16 %v709
    %v3944 = vunpack.c.h.b16 %v709
    %v3945 = vunpack.c.l.b16 %v710
    %v3946 = vunpack.c.h.b16 %v710
    %v3947 = vunpack.c.l.b16 %v711
    %v3948 = vunpack.c.h.b16 %v711
    %v3949 = vpack.c.b16 %v3445, %v3437
    %v3950 = vpack.c.b16 %v3446, %v3438
    %v3951 = vpack.c.b16 %v3447, %v3439
    %v3952 = vpack.c.b16 %v3448, %v3440
    %v3953 = vpack.c.b16 %v3449, %v3441
    %v3954 = vpack.c.b16 %v3450, %v3442
    %v3955 = vpack.c.b16 %v3451, %v3443
    %v3956 = vpack.c.b16 %v3452, %v3444
    %v3957 = vpack.c.b16 %v3461, %v3453
    %v3958 = vpack.c.b16 %v3462, %v3454
    %v3959 = vpack.c.b16 %v3463, %v3455
    %v3960 = vpack.c.b16 %v3464, %v3456
    %v3961 = vpack.c.b16 %v3465, %v3457
    %v3962 = vpack.c.b16 %v3466, %v3458
    %v3963 = vpack.c.b16 %v3467, %v3459
    %v3964 = vpack.c.b16 %v3468, %v3460
    %v3965 = vpack.c.b16 %v3477, %v3469
    %v3966 = vpack.c.b16 %v3478, %v3470
    %v3967 = vpack.c.b16 %v3479, %v3471
    %v3968 = vpack.c.b16 %v3480, %v3472
    %v3969 = vpack.c.b16 %v3481, %v3473
    %v3970 = vpack.c.b16 %v3482, %v3474
    %v3971 = vpack.c.b16 %v3483, %v3475
    %v3972 = vpack.c.b16 %v3484, %v3476
    %v3973 = vpack.c.b16 %v3493, %v3485
    %v3974 = vpack.c.b16 %v3494, %v3486
    %v3975 = vpack.c.b16 %v3495, %v3487
    %v3976 = vpack.c.b16 %v3496, %v3488
    %v3977 = vpack.c.b16 %v3497, %v3489
    %v3978 = vpack.c.b16 %v3498, %v3490
    %v3979 = vpack.c.b16 %v3499, %v3491
    %v3980 = vpack.c.b16 %v3500, %v3492
    %v3981 = vpack.c.b16 %v3509, %v3501
    %v3982 = vpack.c.b16 %v3510, %v3502
    %v3983 = vpack.c.b16 %v3511, %v3503
    %v3984 = vpack.c.b16 %v3512, %v3504
    %v3985 = vpack.c.b16 %v3513, %v3505
    %v3986 = vpack.c.b16 %v3514, %v3506
    %v3987 = vpack.c.b16 %v3515, %v3507
    %v3988 = vpack.c.b16 %v3516, %v3508
    %v3989 = vpack.c.b16 %v3525, %v3517
    %v3990 = vpack.c.b16 %v3526, %v3518
    %v3991 = vpack.c.b16 %v3527, %v3519
    %v3992 = vpack.c.b16 %v3528, %v3520
    %v3993 = vpack.c.b16 %v3529, %v3521
    %v3994 = vpack.c.b16 %v3530, %v3522
    %v3995 = vpack.c.b16 %v3531, %v3523
    %v3996 = vpack.c.b16 %v3532, %v3524
    %v3997 = vpack.c.b16 %v3541, %v3533
    %v3998 = vpack.c.b16 %v3542, %v3534
    %v3999 = vpack.c.b16 %v3543, %v3535
    %v4000 = vpack.c.b16 %v3544, %v3536
    %v4001 = vpack.c.b16 %v3545, %v3537
    %v4002 = vpack.c.b16 %v3546, %v3538
    %v4003 = vpack.c.b16 %v3547, %v3539
    %v4004 = vpack.c.b16 %v3548, %v3540
    %v4005 = vpack.c.b16 %v3557, %v3549
    %v4006 = vpack.c.b16 %v3558, %v3550
    %v4007 = vpack.c.b16 %v3559, %v3551
    %v4008 = vpack.c.b16 %v3560, %v3552
    %v4009 = vpack.c.b16 %v3561, %v3553
    %v4010 = vpack.c.b16 %v3562, %v3554
    %v4011 = vpack.c.b16 %v3563, %v3555
    %v4012 = vpack.c.b16 %v3564, %v3556
    %v4013 = vpack.c.b16 %v3573, %v3565
    %v4014 = vpack.c.b16 %v3574, %v3566
    %v4015 = vpack.c.b16 %v3575, %v3567
    %v4016 = vpack.c.b16 %v3576, %v3568
    %v4017 = vpack.c.b16 %v3577, %v3569
    %v4018 = vpack.c.b16 %v3578, %v3570
    %v4019 = vpack.c.b16 %v3579, %v3571
    %v4020 = vpack.c.b16 %v3580, %v3572
    %v4021 = vpack.c.b16 %v3589, %v3581
    %v4022 = vpack.c.b16 %v3590, %v3582
    %v4023 = vpack.c.b16 %v3591, %v3583
    %v4024 = vpack.c.b16 %v3592, %v3584
    %v4025 = vpack.c.b16 %v3593, %v3585
    %v4026 = vpack.c.b16 %v3594, %v3586
    %v4027 = vpack.c.b16 %v3595, %v3587
    %v4028 = vpack.c.b16 %v3596, %v3588
    %v4029 = vpack.c.b16 %v3605, %v3597
    %v4030 = vpack.c.b16 %v3606, %v3598
    %v4031 = vpack.c.b16 %v3607, %v3599
    %v4032 = vpack.c.b16 %v3608, %v3600
    %v4033 = vpack.c.b16 %v3609, %v3601
    %v4034 = vpack.c.b16 %v3610, %v3602
    %v4035 = vpack.c.b16 %v3611, %v3603
    %v4036 = vpack.c.b16 %v3612, %v3604
    %v4037 = vpack.c.b16 %v3621, %v3613
    %v4038 = vpack.c.b16 %v3622, %v3614
    %v4039 = vpack.c.b16 %v3623, %v3615
    %v4040 = vpack.c.b16 %v3624, %v3616
    %v4041 = vpack.c.b16 %v3625, %v3617
    %v4042 = vpack.c.b16 %v3626, %v3618
    %v4043 = vpack.c.b16 %v3627, %v3619
    %v4044 = vpack.c.b16 %v3628, %v3620
    %v4045 = vpack.c.b16 %v3637, %v3629
    %v4046 = vpack.c.b16 %v3638, %v3630
    %v4047 = vpack.c.b16 %v3639, %v3631
    %v4048 = vpack.c.b16 %v3640, %v3632
    %v4049 = vpack.c.b16 %v3641, %v3633
    %v4050 = vpack.c.b16 %v3642, %v3634
    %v4051 = vpack.c.b16 %v3643, %v3635
    %v4052 = vpack.c.b16 %v3644, %v3636
    %v4053 = vpack.c.b16 %v3653, %v3645
    %v4054 = vpack.c.b16 %v3654, %v3646
    %v4055 = vpack.c.b16 %v3655, %v3647
    %v4056 = vpack.c.b16 %v3656, %v3648
    %v4057 = vpack.c.b16 %v3657, %v3649
    %v4058 = vpack.c.b16 %v3658, %v3650
    %v4059 = vpack.c.b16 %v3659, %v3651
    %v4060 = vpack.c.b16 %v3660, %v3652
    %v4061 = vpack.c.b16 %v3669, %v3661
    %v4062 = vpack.c.b16 %v3670, %v3662
    %v4063 = vpack.c.b16 %v3671, %v3663
    %v4064 = vpack.c.b16 %v3672, %v3664
    %v4065 = vpack.c.b16 %v3673, %v3665
    %v4066 = vpack.c.b16 %v3674, %v3666
    %v4067 = vpack.c.b16 %v3675, %v3667
    %v4068 = vpack.c.b16 %v3676, %v3668
    %v4069 = vpack.c.b16 %v3685, %v3677
    %v4070 = vpack.c.b16 %v3686, %v3678
    %v4071 = vpack.c.b16 %v3687, %v3679
    %v4072 = vpack.c.b16 %v3688, %v3680
    %v4073 = vpack.c.b16 %v3689, %v3681
    %v4074 = vpack.c.b16 %v3690, %v3682
    %v4075 = vpack.c.b16 %v3691, %v3683
    %v4076 = vpack.c.b16 %v3692, %v3684
    %v4077 = vpack.c.b16 %v3701, %v3693
    %v4078 = vpack.c.b16 %v3702, %v3694
    %v4079 = vpack.c.b16 %v3703, %v3695
    %v4080 = vpack.c.b16 %v3704, %v3696
    %v4081 = vpack.c.b16 %v3705, %v3697
    %v4082 = vpack.c.b16 %v3706, %v3698
    %v4083 = vpack.c.b16 %v3707, %v3699
    %v4084 = vpack.c.b16 %v3708, %v3700
    %v4085 = vpack.c.b16 %v3717, %v3709
    %v4086 = vpack.c.b16 %v3718, %v3710
    %v4087 = vpack.c.b16 %v3719, %v3711
    %v4088 = vpack.c.b16 %v3720, %v3712
    %v4089 = vpack.c.b16 %v3721, %v3713
    %v4090 = vpack.c.b16 %v3722, %v3714
    %v4091 = vpack.c.b16 %v3723, %v3715
    %v4092 = vpack.c.b16 %v3724, %v3716
    %v4093 = vpack.c.b16 %v3733, %v3725
    %v4094 = vpack.c.b16 %v3734, %v3726
    %v4095 = vpack.c.b16 %v3735, %v3727
    %v4096 = vpack.c.b16 %v3736, %v3728
    %v4097 = vpack.c.b16 %v3737, %v3729
    %v4098 = vpack.c.b16 %v3738, %v3730
    %v4099 = vpack.c.b16 %v3739, %v3731
    %v4100 = vpack.c.b16 %v3740, %v3732
    %v4101 = vpack.c.b16 %v3749, %v3741
    %v4102 = vpack.c.b16 %v3750, %v3742
    %v4103 = vpack.c.b16 %v3751, %v3743
    %v4104 = vpack.c.b16 %v3752, %v3744
    %v4105 = vpack.c.b16 %v3753, %v3745
    %v4106 = vpack.c.b16 %v3754, %v3746
    %v4107 = vpack.c.b16 %v3755, %v3747
    %v4108 = vpack.c.b16 %v3756, %v3748
    %v4109 = vpack.c.b16 %v3765, %v3757
    %v4110 = vpack.c.b16 %v3766, %v3758
    %v4111 = vpack.c.b16 %v3767, %v3759
    %v4112 = vpack.c.b16 %v3768, %v3760
    %v4113 = vpack.c.b16 %v3769, %v3761
    %v4114 = vpack.c.b16 %v3770, %v3762
    %v4115 = vpack.c.b16 %v3771, %v3763
    %v4116 = vpack.c.b16 %v3772, %v3764
    %v4117 = vpack.c.b16 %v3781, %v3773
    %v4118 = vpack.c.b16 %v3782, %v3774
    %v4119 = vpack.c.b16 %v3783, %v3775
    %v4120 = vpack.c.b16 %v3784, %v3776
    %v4121 = vpack.c.b16 %v3785, %v3777
    %v4122 = vpack.c.b16 %v3786, %v3778
    %v4123 = vpack.c.b16 %v3787, %v3779
    %v4124 = vpack.c.b16 %v3788, %v3780
    %v4125 = vpack.c.b16 %v3797, %v3789
    %v4126 = vpack.c.b16 %v3798, %v3790
    %v4127 = vpack.c.b16 %v3799, %v3791
    %v4128 = vpack.c.b16 %v3800, %v3792
    %v4129 = vpack.c.b16 %v3801, %v3793
    %v4130 = vpack.c.b16 %v3802, %v3794
    %v4131 = vpack.c.b16 %v3803, %v3795
    %v4132 = vpack.c.b16 %v3804, %v3796
    %v4133 = vpack.c.b16 %v3813, %v3805
    %v4134 = vpack.c.b16 %v3814, %v3806
    %v4135 = vpack.c.b16 %v3815, %v3807
    %v4136 = vpack.c.b16 %v3816, %v3808
    %v4137 = vpack.c.b16 %v3817, %v3809
    %v4138 = vpack.c.b16 %v3818, %v3810
    %v4139 = vpack.c.b16 %v3819, %v3811
    %v4140 = vpack.c.b16 %v3820, %v3812
    %v4141 = vpack.c.b16 %v3829, %v3821
    %v4142 = vpack.c.b16 %v3830, %v3822
    %v4143 = vpack.c.b16 %v3831, %v3823
    %v4144 = vpack.c.b16 %v3832, %v3824
    %v4145 = vpack.c.b16 %v3833, %v3825
    %v4146 = vpack.c.b16 %v3834, %v3826
    %v4147 = vpack.c.b16 %v3835, %v3827
    %v4148 = vpack.c.b16 %v3836, %v3828
    %v4149 = vpack.c.b16 %v3845, %v3837
    %v4150 = vpack.c.b16 %v3846, %v3838
    %v4151 = vpack.c.b16 %v3847, %v3839
    %v4152 = vpack.c.b16 %v3848, %v3840
    %v4153 = vpack.c.b16 %v3849, %v3841
    %v4154 = vpack.c.b16 %v3850, %v3842
    %v4155 = vpack.c.b16 %v3851, %v3843
    %v4156 = vpack.c.b16 %v3852, %v3844
    %v4157 = vpack.c.b16 %v3861, %v3853
    %v4158 = vpack.c.b16 %v3862, %v3854
    %v4159 = vpack.c.b16 %v3863, %v3855
    %v4160 = vpack.c.b16 %v3864, %v3856
    %v4161 = vpack.c.b16 %v3865, %v3857
    %v4162 = vpack.c.b16 %v3866, %v3858
    %v4163 = vpack.c.b16 %v3867, %v3859
    %v4164 = vpack.c.b16 %v3868, %v3860
    %v4165 = vpack.c.b16 %v3877, %v3869
    %v4166 = vpack.c.b16 %v3878, %v3870
    %v4167 = vpack.c.b16 %v3879, %v3871
    %v4168 = vpack.c.b16 %v3880, %v3872
    %v4169 = vpack.c.b16 %v3881, %v3873
    %v4170 = vpack.c.b16 %v3882, %v3874
    %v4171 = vpack.c.b16 %v3883, %v3875
    %v4172 = vpack.c.b16 %v3884, %v3876
    %v4173 = vpack.c.b16 %v3893, %v3885
    %v4174 = vpack.c.b16 %v3894, %v3886
    %v4175 = vpack.c.b16 %v3895, %v3887
    %v4176 = vpack.c.b16 %v3896, %v3888
    %v4177 = vpack.c.b16 %v3897, %v3889
    %v4178 = vpack.c.b16 %v3898, %v3890
    %v4179 = vpack.c.b16 %v3899, %v3891
    %v4180 = vpack.c.b16 %v3900, %v3892
    %v4181 = vpack.c.b16 %v3909, %v3901
    %v4182 = vpack.c.b16 %v3910, %v3902
    %v4183 = vpack.c.b16 %v3911, %v3903
    %v4184 = vpack.c.b16 %v3912, %v3904
    %v4185 = vpack.c.b16 %v3913, %v3905
    %v4186 = vpack.c.b16 %v3914, %v3906
    %v4187 = vpack.c.b16 %v3915, %v3907
    %v4188 = vpack.c.b16 %v3916, %v3908
    %v4189 = vpack.c.b16 %v3925, %v3917
    %v4190 = vpack.c.b16 %v3926, %v3918
    %v4191 = vpack.c.b16 %v3927, %v3919
    %v4192 = vpack.c.b16 %v3928, %v3920
    %v4193 = vpack.c.b16 %v3929, %v3921
    %v4194 = vpack.c.b16 %v3930, %v3922
    %v4195 = vpack.c.b16 %v3931, %v3923
    %v4196 = vpack.c.b16 %v3932, %v3924
    %v4197 = vpack.c.b16 %v3941, %v3933
    %v4198 = vpack.c.b16 %v3942, %v3934
    %v4199 = vpack.c.b16 %v3943, %v3935
    %v4200 = vpack.c.b16 %v3944, %v3936
    %v4201 = vpack.c.b16 %v3945, %v3937
    %v4202 = vpack.c.b16 %v3946, %v3938
    %v4203 = vpack.c.b16 %v3947, %v3939
    %v4204 = vpack.c.b16 %v3948, %v3940
    %4461 = vmatpush.bf16.msra.mxu0 %v4005
    %4462 = vmatpush.bf16.msra.mxu0 %v3997
    %4463 = vmatpush.bf16.msra.mxu0 %v3989
    %4464 = vmatpush.bf16.msra.mxu0 %v3981
    %4465 = vmatpush.bf16.msra.mxu0 %v3973
    %4466 = vmatpush.bf16.msra.mxu0 %v3965
    %4467 = vmatpush.bf16.msra.mxu0 %v3957
    %4468 = vmatpush.bf16.msra.mxu0 %v3949
    %4469 = vmatmul.bf16.gmra.mxu0 %v452
    %v4470 = vpop.f32.mrf.mxu0
    %v4471 = vadd.f32 %v2723, %v4470
    %v4472 = vpop.f32.mrf.mxu0
    %4473 = vdwg.mxu0
    %4474 = vmatpush.bf16.msra.mxu0 %v4069
    %4475 = vmatpush.bf16.msra.mxu0 %v4061
    %4476 = vmatpush.bf16.msra.mxu0 %v4053
    %4477 = vmatpush.bf16.msra.mxu0 %v4045
    %4478 = vmatpush.bf16.msra.mxu0 %v4037
    %4479 = vmatpush.bf16.msra.mxu0 %v4029
    %4480 = vmatpush.bf16.msra.mxu0 %v4021
    %4481 = vmatpush.bf16.msra.mxu0 %v4013
    %4482 = vmatmul.bf16.gmra.mxu0 %v453
    %v4483 = vpop.f32.mrf.mxu0
    %v4484 = vadd.f32 %v4471, %v4483
    %v4485 = vpop.f32.mrf.mxu0
    %4486 = vdwg.mxu0
    %4487 = vmatpush.bf16.msra.mxu0 %v4133
    %4488 = vmatpush.bf16.msra.mxu0 %v4125
    %4489 = vmatpush.bf16.msra.mxu0 %v4117
    %4490 = vmatpush.bf16.msra.mxu0 %v4109
    %4491 = vmatpush.bf16.msra.mxu0 %v4101
    %4492 = vmatpush.bf16.msra.mxu0 %v4093
    %4493 = vmatpush.bf16.msra.mxu0 %v4085
    %4494 = vmatpush.bf16.msra.mxu0 %v4077
    %4495 = vmatmul.bf16.gmra.mxu0 %v454
    %v4496 = vpop.f32.mrf.mxu0
    %v4497 = vadd.f32 %v4484, %v4496
    %v4498 = vpop.f32.mrf.mxu0
    %4499 = vdwg.mxu0
    %4500 = vmatpush.bf16.msra.mxu0 %v4197
    %4501 = vmatpush.bf16.msra.mxu0 %v4189
    %4502 = vmatpush.bf16.msra.mxu0 %v4181
    %4503 = vmatpush.bf16.msra.mxu0 %v4173
    %4504 = vmatpush.bf16.msra.mxu0 %v4165
    %4505 = vmatpush.bf16.msra.mxu0 %v4157
    %4506 = vmatpush.bf16.msra.mxu0 %v4149
    %4507 = vmatpush.bf16.msra.mxu0 %v4141
    %4508 = vmatmul.bf16.gmra.mxu0 %v455
    %v4509 = vpop.f32.mrf.mxu0
    %v4510 = vadd.f32 %v4497, %v4509
    %v4511 = vpop.f32.mrf.mxu0
    %4512 = vdwg.mxu0
    %4513 = vmatpush.bf16.msra.mxu0 %v4006
    %4514 = vmatpush.bf16.msra.mxu0 %v3998
    %4515 = vmatpush.bf16.msra.mxu0 %v3990
    %4516 = vmatpush.bf16.msra.mxu0 %v3982
    %4517 = vmatpush.bf16.msra.mxu0 %v3974
    %4518 = vmatpush.bf16.msra.mxu0 %v3966
    %4519 = vmatpush.bf16.msra.mxu0 %v3958
    %4520 = vmatpush.bf16.msra.mxu0 %v3950
    %4521 = vmatmul.bf16.gmra.mxu0 %v452
    %v4522 = vpop.f32.mrf.mxu0
    %v4523 = vadd.f32 %v2788, %v4522
    %v4524 = vpop.f32.mrf.mxu0
    %4525 = vdwg.mxu0
    %4526 = vmatpush.bf16.msra.mxu0 %v4070
    %4527 = vmatpush.bf16.msra.mxu0 %v4062
    %4528 = vmatpush.bf16.msra.mxu0 %v4054
    %4529 = vmatpush.bf16.msra.mxu0 %v4046
    %4530 = vmatpush.bf16.msra.mxu0 %v4038
    %4531 = vmatpush.bf16.msra.mxu0 %v4030
    %4532 = vmatpush.bf16.msra.mxu0 %v4022
    %4533 = vmatpush.bf16.msra.mxu0 %v4014
    %4534 = vmatmul.bf16.gmra.mxu0 %v453
    %v4535 = vpop.f32.mrf.mxu0
    %v4536 = vadd.f32 %v4523, %v4535
    %v4537 = vpop.f32.mrf.mxu0
    %4538 = vdwg.mxu0
    %4539 = vmatpush.bf16.msra.mxu0 %v4134
    %4540 = vmatpush.bf16.msra.mxu0 %v4126
    %4541 = vmatpush.bf16.msra.mxu0 %v4118
    %4542 = vmatpush.bf16.msra.mxu0 %v4110
    %4543 = vmatpush.bf16.msra.mxu0 %v4102
    %4544 = vmatpush.bf16.msra.mxu0 %v4094
    %4545 = vmatpush.bf16.msra.mxu0 %v4086
    %4546 = vmatpush.bf16.msra.mxu0 %v4078
    %4547 = vmatmul.bf16.gmra.mxu0 %v454
    %v4548 = vpop.f32.mrf.mxu0
    %v4549 = vadd.f32 %v4536, %v4548
    %v4550 = vpop.f32.mrf.mxu0
    %4551 = vdwg.mxu0
    %4552 = vmatpush.bf16.msra.mxu0 %v4198
    %4553 = vmatpush.bf16.msra.mxu0 %v4190
    %4554 = vmatpush.bf16.msra.mxu0 %v4182
    %4555 = vmatpush.bf16.msra.mxu0 %v4174
    %4556 = vmatpush.bf16.msra.mxu0 %v4166
    %4557 = vmatpush.bf16.msra.mxu0 %v4158
    %4558 = vmatpush.bf16.msra.mxu0 %v4150
    %4559 = vmatpush.bf16.msra.mxu0 %v4142
    %4560 = vmatmul.bf16.gmra.mxu0 %v455
    %v4561 = vpop.f32.mrf.mxu0
    %v4562 = vadd.f32 %v4549, %v4561
    %v4563 = vpop.f32.mrf.mxu0
    %4564 = vdwg.mxu0
    %4565 = vmatpush.bf16.msra.mxu0 %v4007
    %4566 = vmatpush.bf16.msra.mxu0 %v3999
    %4567 = vmatpush.bf16.msra.mxu0 %v3991
    %4568 = vmatpush.bf16.msra.mxu0 %v3983
    %4569 = vmatpush.bf16.msra.mxu0 %v3975
    %4570 = vmatpush.bf16.msra.mxu0 %v3967
    %4571 = vmatpush.bf16.msra.mxu0 %v3959
    %4572 = vmatpush.bf16.msra.mxu0 %v3951
    %4573 = vmatmul.bf16.gmra.mxu0 %v452
    %v4574 = vpop.f32.mrf.mxu0
    %v4575 = vadd.f32 %v2853, %v4574
    %v4576 = vpop.f32.mrf.mxu0
    %4577 = vdwg.mxu0
    %4578 = vmatpush.bf16.msra.mxu0 %v4071
    %4579 = vmatpush.bf16.msra.mxu0 %v4063
    %4580 = vmatpush.bf16.msra.mxu0 %v4055
    %4581 = vmatpush.bf16.msra.mxu0 %v4047
    %4582 = vmatpush.bf16.msra.mxu0 %v4039
    %4583 = vmatpush.bf16.msra.mxu0 %v4031
    %4584 = vmatpush.bf16.msra.mxu0 %v4023
    %4585 = vmatpush.bf16.msra.mxu0 %v4015
    %4586 = vmatmul.bf16.gmra.mxu0 %v453
    %v4587 = vpop.f32.mrf.mxu0
    %v4588 = vadd.f32 %v4575, %v4587
    %v4589 = vpop.f32.mrf.mxu0
    %4590 = vdwg.mxu0
    %4591 = vmatpush.bf16.msra.mxu0 %v4135
    %4592 = vmatpush.bf16.msra.mxu0 %v4127
    %4593 = vmatpush.bf16.msra.mxu0 %v4119
    %4594 = vmatpush.bf16.msra.mxu0 %v4111
    %4595 = vmatpush.bf16.msra.mxu0 %v4103
    %4596 = vmatpush.bf16.msra.mxu0 %v4095
    %4597 = vmatpush.bf16.msra.mxu0 %v4087
    %4598 = vmatpush.bf16.msra.mxu0 %v4079
    %4599 = vmatmul.bf16.gmra.mxu0 %v454
    %v4600 = vpop.f32.mrf.mxu0
    %v4601 = vadd.f32 %v4588, %v4600
    %v4602 = vpop.f32.mrf.mxu0
    %4603 = vdwg.mxu0
    %4604 = vmatpush.bf16.msra.mxu0 %v4199
    %4605 = vmatpush.bf16.msra.mxu0 %v4191
    %4606 = vmatpush.bf16.msra.mxu0 %v4183
    %4607 = vmatpush.bf16.msra.mxu0 %v4175
    %4608 = vmatpush.bf16.msra.mxu0 %v4167
    %4609 = vmatpush.bf16.msra.mxu0 %v4159
    %4610 = vmatpush.bf16.msra.mxu0 %v4151
    %4611 = vmatpush.bf16.msra.mxu0 %v4143
    %4612 = vmatmul.bf16.gmra.mxu0 %v455
    %v4613 = vpop.f32.mrf.mxu0
    %v4614 = vadd.f32 %v4601, %v4613
    %v4615 = vpop.f32.mrf.mxu0
    %4616 = vdwg.mxu0
    %4617 = vmatpush.bf16.msra.mxu0 %v4008
    %4618 = vmatpush.bf16.msra.mxu0 %v4000
    %4619 = vmatpush.bf16.msra.mxu0 %v3992
    %4620 = vmatpush.bf16.msra.mxu0 %v3984
    %4621 = vmatpush.bf16.msra.mxu0 %v3976
    %4622 = vmatpush.bf16.msra.mxu0 %v3968
    %4623 = vmatpush.bf16.msra.mxu0 %v3960
    %4624 = vmatpush.bf16.msra.mxu0 %v3952
    %4625 = vmatmul.bf16.gmra.mxu0 %v452
    %v4626 = vpop.f32.mrf.mxu0
    %v4627 = vadd.f32 %v2918, %v4626
    %v4628 = vpop.f32.mrf.mxu0
    %4629 = vdwg.mxu0
    %4630 = vmatpush.bf16.msra.mxu0 %v4072
    %4631 = vmatpush.bf16.msra.mxu0 %v4064
    %4632 = vmatpush.bf16.msra.mxu0 %v4056
    %4633 = vmatpush.bf16.msra.mxu0 %v4048
    %4634 = vmatpush.bf16.msra.mxu0 %v4040
    %4635 = vmatpush.bf16.msra.mxu0 %v4032
    %4636 = vmatpush.bf16.msra.mxu0 %v4024
    %4637 = vmatpush.bf16.msra.mxu0 %v4016
    %4638 = vmatmul.bf16.gmra.mxu0 %v453
    %v4639 = vpop.f32.mrf.mxu0
    %v4640 = vadd.f32 %v4627, %v4639
    %v4641 = vpop.f32.mrf.mxu0
    %4642 = vdwg.mxu0
    %4643 = vmatpush.bf16.msra.mxu0 %v4136
    %4644 = vmatpush.bf16.msra.mxu0 %v4128
    %4645 = vmatpush.bf16.msra.mxu0 %v4120
    %4646 = vmatpush.bf16.msra.mxu0 %v4112
    %4647 = vmatpush.bf16.msra.mxu0 %v4104
    %4648 = vmatpush.bf16.msra.mxu0 %v4096
    %4649 = vmatpush.bf16.msra.mxu0 %v4088
    %4650 = vmatpush.bf16.msra.mxu0 %v4080
    %4651 = vmatmul.bf16.gmra.mxu0 %v454
    %v4652 = vpop.f32.mrf.mxu0
    %v4653 = vadd.f32 %v4640, %v4652
    %v4654 = vpop.f32.mrf.mxu0
    %4655 = vdwg.mxu0
    %4656 = vmatpush.bf16.msra.mxu0 %v4200
    %4657 = vmatpush.bf16.msra.mxu0 %v4192
    %4658 = vmatpush.bf16.msra.mxu0 %v4184
    %4659 = vmatpush.bf16.msra.mxu0 %v4176
    %4660 = vmatpush.bf16.msra.mxu0 %v4168
    %4661 = vmatpush.bf16.msra.mxu0 %v4160
    %4662 = vmatpush.bf16.msra.mxu0 %v4152
    %4663 = vmatpush.bf16.msra.mxu0 %v4144
    %4664 = vmatmul.bf16.gmra.mxu0 %v455
    %v4665 = vpop.f32.mrf.mxu0
    %v4666 = vadd.f32 %v4653, %v4665
    %v4667 = vpop.f32.mrf.mxu0
    %4668 = vdwg.mxu0
    %4669 = vmatpush.bf16.msra.mxu0 %v4009
    %4670 = vmatpush.bf16.msra.mxu0 %v4001
    %4671 = vmatpush.bf16.msra.mxu0 %v3993
    %4672 = vmatpush.bf16.msra.mxu0 %v3985
    %4673 = vmatpush.bf16.msra.mxu0 %v3977
    %4674 = vmatpush.bf16.msra.mxu0 %v3969
    %4675 = vmatpush.bf16.msra.mxu0 %v3961
    %4676 = vmatpush.bf16.msra.mxu0 %v3953
    %4677 = vmatmul.bf16.gmra.mxu0 %v452
    %v4678 = vpop.f32.mrf.mxu0
    %v4679 = vadd.f32 %v2983, %v4678
    %v4680 = vpop.f32.mrf.mxu0
    %4681 = vdwg.mxu0
    %4682 = vmatpush.bf16.msra.mxu0 %v4073
    %4683 = vmatpush.bf16.msra.mxu0 %v4065
    %4684 = vmatpush.bf16.msra.mxu0 %v4057
    %4685 = vmatpush.bf16.msra.mxu0 %v4049
    %4686 = vmatpush.bf16.msra.mxu0 %v4041
    %4687 = vmatpush.bf16.msra.mxu0 %v4033
    %4688 = vmatpush.bf16.msra.mxu0 %v4025
    %4689 = vmatpush.bf16.msra.mxu0 %v4017
    %4690 = vmatmul.bf16.gmra.mxu0 %v453
    %v4691 = vpop.f32.mrf.mxu0
    %v4692 = vadd.f32 %v4679, %v4691
    %v4693 = vpop.f32.mrf.mxu0
    %4694 = vdwg.mxu0
    %4695 = vmatpush.bf16.msra.mxu0 %v4137
    %4696 = vmatpush.bf16.msra.mxu0 %v4129
    %4697 = vmatpush.bf16.msra.mxu0 %v4121
    %4698 = vmatpush.bf16.msra.mxu0 %v4113
    %4699 = vmatpush.bf16.msra.mxu0 %v4105
    %4700 = vmatpush.bf16.msra.mxu0 %v4097
    %4701 = vmatpush.bf16.msra.mxu0 %v4089
    %4702 = vmatpush.bf16.msra.mxu0 %v4081
    %4703 = vmatmul.bf16.gmra.mxu0 %v454
    %v4704 = vpop.f32.mrf.mxu0
    %v4705 = vadd.f32 %v4692, %v4704
    %v4706 = vpop.f32.mrf.mxu0
    %4707 = vdwg.mxu0
    %4708 = vmatpush.bf16.msra.mxu0 %v4201
    %4709 = vmatpush.bf16.msra.mxu0 %v4193
    %4710 = vmatpush.bf16.msra.mxu0 %v4185
    %4711 = vmatpush.bf16.msra.mxu0 %v4177
    %4712 = vmatpush.bf16.msra.mxu0 %v4169
    %4713 = vmatpush.bf16.msra.mxu0 %v4161
    %4714 = vmatpush.bf16.msra.mxu0 %v4153
    %4715 = vmatpush.bf16.msra.mxu0 %v4145
    %4716 = vmatmul.bf16.gmra.mxu0 %v455
    %v4717 = vpop.f32.mrf.mxu0
    %v4718 = vadd.f32 %v4705, %v4717
    %v4719 = vpop.f32.mrf.mxu0
    %4720 = vdwg.mxu0
    %4721 = vmatpush.bf16.msra.mxu0 %v4010
    %4722 = vmatpush.bf16.msra.mxu0 %v4002
    %4723 = vmatpush.bf16.msra.mxu0 %v3994
    %4724 = vmatpush.bf16.msra.mxu0 %v3986
    %4725 = vmatpush.bf16.msra.mxu0 %v3978
    %4726 = vmatpush.bf16.msra.mxu0 %v3970
    %4727 = vmatpush.bf16.msra.mxu0 %v3962
    %4728 = vmatpush.bf16.msra.mxu0 %v3954
    %4729 = vmatmul.bf16.gmra.mxu0 %v452
    %v4730 = vpop.f32.mrf.mxu0
    %v4731 = vadd.f32 %v3048, %v4730
    %v4732 = vpop.f32.mrf.mxu0
    %4733 = vdwg.mxu0
    %4734 = vmatpush.bf16.msra.mxu0 %v4074
    %4735 = vmatpush.bf16.msra.mxu0 %v4066
    %4736 = vmatpush.bf16.msra.mxu0 %v4058
    %4737 = vmatpush.bf16.msra.mxu0 %v4050
    %4738 = vmatpush.bf16.msra.mxu0 %v4042
    %4739 = vmatpush.bf16.msra.mxu0 %v4034
    %4740 = vmatpush.bf16.msra.mxu0 %v4026
    %4741 = vmatpush.bf16.msra.mxu0 %v4018
    %4742 = vmatmul.bf16.gmra.mxu0 %v453
    %v4743 = vpop.f32.mrf.mxu0
    %v4744 = vadd.f32 %v4731, %v4743
    %v4745 = vpop.f32.mrf.mxu0
    %4746 = vdwg.mxu0
    %4747 = vmatpush.bf16.msra.mxu0 %v4138
    %4748 = vmatpush.bf16.msra.mxu0 %v4130
    %4749 = vmatpush.bf16.msra.mxu0 %v4122
    %4750 = vmatpush.bf16.msra.mxu0 %v4114
    %4751 = vmatpush.bf16.msra.mxu0 %v4106
    %4752 = vmatpush.bf16.msra.mxu0 %v4098
    %4753 = vmatpush.bf16.msra.mxu0 %v4090
    %4754 = vmatpush.bf16.msra.mxu0 %v4082
    %4755 = vmatmul.bf16.gmra.mxu0 %v454
    %v4756 = vpop.f32.mrf.mxu0
    %v4757 = vadd.f32 %v4744, %v4756
    %v4758 = vpop.f32.mrf.mxu0
    %4759 = vdwg.mxu0
    %4760 = vmatpush.bf16.msra.mxu0 %v4202
    %4761 = vmatpush.bf16.msra.mxu0 %v4194
    %4762 = vmatpush.bf16.msra.mxu0 %v4186
    %4763 = vmatpush.bf16.msra.mxu0 %v4178
    %4764 = vmatpush.bf16.msra.mxu0 %v4170
    %4765 = vmatpush.bf16.msra.mxu0 %v4162
    %4766 = vmatpush.bf16.msra.mxu0 %v4154
    %4767 = vmatpush.bf16.msra.mxu0 %v4146
    %4768 = vmatmul.bf16.gmra.mxu0 %v455
    %v4769 = vpop.f32.mrf.mxu0
    %v4770 = vadd.f32 %v4757, %v4769
    %v4771 = vpop.f32.mrf.mxu0
    %4772 = vdwg.mxu0
    %4773 = vmatpush.bf16.msra.mxu0 %v4011
    %4774 = vmatpush.bf16.msra.mxu0 %v4003
    %4775 = vmatpush.bf16.msra.mxu0 %v3995
    %4776 = vmatpush.bf16.msra.mxu0 %v3987
    %4777 = vmatpush.bf16.msra.mxu0 %v3979
    %4778 = vmatpush.bf16.msra.mxu0 %v3971
    %4779 = vmatpush.bf16.msra.mxu0 %v3963
    %4780 = vmatpush.bf16.msra.mxu0 %v3955
    %4781 = vmatmul.bf16.gmra.mxu0 %v452
    %v4782 = vpop.f32.mrf.mxu0
    %v4783 = vadd.f32 %v3113, %v4782
    %v4784 = vpop.f32.mrf.mxu0
    %4785 = vdwg.mxu0
    %4786 = vmatpush.bf16.msra.mxu0 %v4075
    %4787 = vmatpush.bf16.msra.mxu0 %v4067
    %4788 = vmatpush.bf16.msra.mxu0 %v4059
    %4789 = vmatpush.bf16.msra.mxu0 %v4051
    %4790 = vmatpush.bf16.msra.mxu0 %v4043
    %4791 = vmatpush.bf16.msra.mxu0 %v4035
    %4792 = vmatpush.bf16.msra.mxu0 %v4027
    %4793 = vmatpush.bf16.msra.mxu0 %v4019
    %4794 = vmatmul.bf16.gmra.mxu0 %v453
    %v4795 = vpop.f32.mrf.mxu0
    %v4796 = vadd.f32 %v4783, %v4795
    %v4797 = vpop.f32.mrf.mxu0
    %4798 = vdwg.mxu0
    %4799 = vmatpush.bf16.msra.mxu0 %v4139
    %4800 = vmatpush.bf16.msra.mxu0 %v4131
    %4801 = vmatpush.bf16.msra.mxu0 %v4123
    %4802 = vmatpush.bf16.msra.mxu0 %v4115
    %4803 = vmatpush.bf16.msra.mxu0 %v4107
    %4804 = vmatpush.bf16.msra.mxu0 %v4099
    %4805 = vmatpush.bf16.msra.mxu0 %v4091
    %4806 = vmatpush.bf16.msra.mxu0 %v4083
    %4807 = vmatmul.bf16.gmra.mxu0 %v454
    %v4808 = vpop.f32.mrf.mxu0
    %v4809 = vadd.f32 %v4796, %v4808
    %v4810 = vpop.f32.mrf.mxu0
    %4811 = vdwg.mxu0
    %4812 = vmatpush.bf16.msra.mxu0 %v4203
    %4813 = vmatpush.bf16.msra.mxu0 %v4195
    %4814 = vmatpush.bf16.msra.mxu0 %v4187
    %4815 = vmatpush.bf16.msra.mxu0 %v4179
    %4816 = vmatpush.bf16.msra.mxu0 %v4171
    %4817 = vmatpush.bf16.msra.mxu0 %v4163
    %4818 = vmatpush.bf16.msra.mxu0 %v4155
    %4819 = vmatpush.bf16.msra.mxu0 %v4147
    %4820 = vmatmul.bf16.gmra.mxu0 %v455
    %v4821 = vpop.f32.mrf.mxu0
    %v4822 = vadd.f32 %v4809, %v4821
    %v4823 = vpop.f32.mrf.mxu0
    %4824 = vdwg.mxu0
    %4825 = vmatpush.bf16.msra.mxu0 %v4012
    %4826 = vmatpush.bf16.msra.mxu0 %v4004
    %4827 = vmatpush.bf16.msra.mxu0 %v3996
    %4828 = vmatpush.bf16.msra.mxu0 %v3988
    %4829 = vmatpush.bf16.msra.mxu0 %v3980
    %4830 = vmatpush.bf16.msra.mxu0 %v3972
    %4831 = vmatpush.bf16.msra.mxu0 %v3964
    %4832 = vmatpush.bf16.msra.mxu0 %v3956
    %4833 = vmatmul.bf16.gmra.mxu0 %v452
    %v4834 = vpop.f32.mrf.mxu0
    %v4835 = vadd.f32 %v3178, %v4834
    %v4836 = vpop.f32.mrf.mxu0
    %4837 = vdwg.mxu0
    %4838 = vmatpush.bf16.msra.mxu0 %v4076
    %4839 = vmatpush.bf16.msra.mxu0 %v4068
    %4840 = vmatpush.bf16.msra.mxu0 %v4060
    %4841 = vmatpush.bf16.msra.mxu0 %v4052
    %4842 = vmatpush.bf16.msra.mxu0 %v4044
    %4843 = vmatpush.bf16.msra.mxu0 %v4036
    %4844 = vmatpush.bf16.msra.mxu0 %v4028
    %4845 = vmatpush.bf16.msra.mxu0 %v4020
    %4846 = vmatmul.bf16.gmra.mxu0 %v453
    %v4847 = vpop.f32.mrf.mxu0
    %v4848 = vadd.f32 %v4835, %v4847
    %v4849 = vpop.f32.mrf.mxu0
    %4850 = vdwg.mxu0
    %4851 = vmatpush.bf16.msra.mxu0 %v4140
    %4852 = vmatpush.bf16.msra.mxu0 %v4132
    %4853 = vmatpush.bf16.msra.mxu0 %v4124
    %4854 = vmatpush.bf16.msra.mxu0 %v4116
    %4855 = vmatpush.bf16.msra.mxu0 %v4108
    %4856 = vmatpush.bf16.msra.mxu0 %v4100
    %4857 = vmatpush.bf16.msra.mxu0 %v4092
    %4858 = vmatpush.bf16.msra.mxu0 %v4084
    %4859 = vmatmul.bf16.gmra.mxu0 %v454
    %v4860 = vpop.f32.mrf.mxu0
    %v4861 = vadd.f32 %v4848, %v4860
    %v4862 = vpop.f32.mrf.mxu0
    %4863 = vdwg.mxu0
    %4864 = vmatpush.bf16.msra.mxu0 %v4204
    %4865 = vmatpush.bf16.msra.mxu0 %v4196
    %4866 = vmatpush.bf16.msra.mxu0 %v4188
    %4867 = vmatpush.bf16.msra.mxu0 %v4180
    %4868 = vmatpush.bf16.msra.mxu0 %v4172
    %4869 = vmatpush.bf16.msra.mxu0 %v4164
    %4870 = vmatpush.bf16.msra.mxu0 %v4156
    %4871 = vmatpush.bf16.msra.mxu0 %v4148
    %4872 = vmatmul.bf16.gmra.mxu0 %v455
    %v4873 = vpop.f32.mrf.mxu0
    %v4874 = vadd.f32 %v4861, %v4873
    %v4875 = vpop.f32.mrf.mxu0
    %4876 = vdwg.mxu0
    %v4877 = vld [vmem:[#allocation11] sm:$0xff]
    %v4879 = vperm.slane %v4877, 0
    %v4880 = vperm.slane %v4877, 1
    %v4881 = vperm.slane %v4877, 2
    %v4882 = vperm.slane %v4877, 3
    %v4883 = vperm.slane %v4877, 4
    %v4884 = vperm.slane %v4877, 5
    %v4885 = vperm.slane %v4877, 6
    %v4886 = vperm.slane %v4877, 7
    %v4895 = vadd.f32 %v4510, %v4879
    %v4896 = vadd.f32 %v4562, %v4880
    %v4897 = vadd.f32 %v4614, %v4881
    %v4898 = vadd.f32 %v4666, %v4882
    %v4899 = vadd.f32 %v4718, %v4883
    %v4900 = vadd.f32 %v4770, %v4884
    %v4901 = vadd.f32 %v4822, %v4885
    %v4902 = vadd.f32 %v4874, %v4886
    %v4903 = vmax.f32 %v4895, 0.0
    %v4904 = vmax.f32 %v4896, 0.0
    %v4905 = vmax.f32 %v4897, 0.0
    %v4906 = vmax.f32 %v4898, 0.0
    %v4907 = vmax.f32 %v4899, 0.0
    %v4908 = vmax.f32 %v4900, 0.0
    %v4909 = vmax.f32 %v4901, 0.0
    %v4910 = vmax.f32 %v4902, 0.0
    %v4911 = vpack.c.bf16 %v4903, %v4903
    %v4912 = vpack.c.bf16 %v4904, %v4904
    %v4913 = vpack.c.bf16 %v4905, %v4905
    %v4914 = vpack.c.bf16 %v4906, %v4906
    %v4915 = vpack.c.bf16 %v4907, %v4907
    %v4916 = vpack.c.bf16 %v4908, %v4908
    %v4917 = vpack.c.bf16 %v4909, %v4909
    %v4918 = vpack.c.bf16 %v4910, %v4910
    %v4919 = vld [vmem:[#allocation13] sm:$0xff]
    %v4920 = vld [vmem:[#allocation13 + $0x8] sm:$0xff]
    %v4921 = vld [vmem:[#allocation13 + $0x10] sm:$0xff]
    %v4922 = vld [vmem:[#allocation13 + $0x18] sm:$0xff]
    %v4923 = vld [vmem:[#allocation13 + $0x20] sm:$0xff]
    %v4924 = vld [vmem:[#allocation13 + $0x28] sm:$0xff]
    %v4925 = vld [vmem:[#allocation13 + $0x30] sm:$0xff]
    %v4926 = vld [vmem:[#allocation13 + $0x38] sm:$0xff]
    %v4927 = vld [vmem:[#allocation13 + $0x40] sm:$0xff]
    %v4928 = vld [vmem:[#allocation13 + $0x48] sm:$0xff]
    %v4929 = vld [vmem:[#allocation13 + $0x50] sm:$0xff]
    %v4930 = vld [vmem:[#allocation13 + $0x58] sm:$0xff]
    %v4931 = vld [vmem:[#allocation13 + $0x60] sm:$0xff]
    %v4932 = vld [vmem:[#allocation13 + $0x68] sm:$0xff]
    %v4933 = vld [vmem:[#allocation13 + $0x70] sm:$0xff]
    %v4934 = vld [vmem:[#allocation13 + $0x78] sm:$0xff]
    %v4935 = vld [vmem:[#allocation13 + $0x80] sm:$0xff]
    %v4936 = vld [vmem:[#allocation13 + $0x88] sm:$0xff]
    %v4937 = vld [vmem:[#allocation13 + $0x90] sm:$0xff]
    %v4938 = vld [vmem:[#allocation13 + $0x98] sm:$0xff]
    %v4939 = vld [vmem:[#allocation13 + $0xa0] sm:$0xff]
    %v4940 = vld [vmem:[#allocation13 + $0xa8] sm:$0xff]
    %v4941 = vld [vmem:[#allocation13 + $0xb0] sm:$0xff]
    %v4942 = vld [vmem:[#allocation13 + $0xb8] sm:$0xff]
    %v4943 = vld [vmem:[#allocation13 + $0xc0] sm:$0xff]
    %v4944 = vld [vmem:[#allocation13 + $0xc8] sm:$0xff]
    %v4945 = vld [vmem:[#allocation13 + $0xd0] sm:$0xff]
    %v4946 = vld [vmem:[#allocation13 + $0xd8] sm:$0xff]
    %v4947 = vld [vmem:[#allocation13 + $0xe0] sm:$0xff]
    %v4948 = vld [vmem:[#allocation13 + $0xe8] sm:$0xff]
    %v4949 = vld [vmem:[#allocation13 + $0xf0] sm:$0xff]
    %v4950 = vld [vmem:[#allocation13 + $0xf8] sm:$0xff]
    %v4951 = vld [vmem:[#allocation13 + $0x100] sm:$0xff]
    %v4952 = vld [vmem:[#allocation13 + $0x108] sm:$0xff]
    %v4953 = vld [vmem:[#allocation13 + $0x110] sm:$0xff]
    %v4954 = vld [vmem:[#allocation13 + $0x118] sm:$0xff]
    %v4955 = vld [vmem:[#allocation13 + $0x120] sm:$0xff]
    %v4956 = vld [vmem:[#allocation13 + $0x128] sm:$0xff]
    %v4957 = vld [vmem:[#allocation13 + $0x130] sm:$0xff]
    %v4958 = vld [vmem:[#allocation13 + $0x138] sm:$0xff]
    %v4959 = vld [vmem:[#allocation13 + $0x140] sm:$0xff]
    %v4960 = vld [vmem:[#allocation13 + $0x148] sm:$0xff]
    %v4961 = vld [vmem:[#allocation13 + $0x150] sm:$0xff]
    %v4962 = vld [vmem:[#allocation13 + $0x158] sm:$0xff]
    %v4963 = vld [vmem:[#allocation13 + $0x160] sm:$0xff]
    %v4964 = vld [vmem:[#allocation13 + $0x168] sm:$0xff]
    %v4965 = vld [vmem:[#allocation13 + $0x170] sm:$0xff]
    %v4966 = vld [vmem:[#allocation13 + $0x178] sm:$0xff]
    %v4967 = vld [vmem:[#allocation13 + $0x180] sm:$0xff]
    %v4968 = vld [vmem:[#allocation13 + $0x188] sm:$0xff]
    %v4969 = vld [vmem:[#allocation13 + $0x190] sm:$0xff]
    %v4970 = vld [vmem:[#allocation13 + $0x198] sm:$0xff]
    %v4971 = vld [vmem:[#allocation13 + $0x1a0] sm:$0xff]
    %v4972 = vld [vmem:[#allocation13 + $0x1a8] sm:$0xff]
    %v4973 = vld [vmem:[#allocation13 + $0x1b0] sm:$0xff]
    %v4974 = vld [vmem:[#allocation13 + $0x1b8] sm:$0xff]
    %v4975 = vld [vmem:[#allocation13 + $0x1c0] sm:$0xff]
    %v4976 = vld [vmem:[#allocation13 + $0x1c8] sm:$0xff]
    %v4977 = vld [vmem:[#allocation13 + $0x1d0] sm:$0xff]
    %v4978 = vld [vmem:[#allocation13 + $0x1d8] sm:$0xff]
    %v4979 = vld [vmem:[#allocation13 + $0x1e0] sm:$0xff]
    %v4980 = vld [vmem:[#allocation13 + $0x1e8] sm:$0xff]
    %v4981 = vld [vmem:[#allocation13 + $0x1f0] sm:$0xff]
    %v4982 = vld [vmem:[#allocation13 + $0x1f8] sm:$0xff]
    %v4983 = vld [vmem:[#allocation13 + $0x200] sm:$0xff]
    %v4984 = vld [vmem:[#allocation13 + $0x208] sm:$0xff]
    %v4985 = vld [vmem:[#allocation13 + $0x210] sm:$0xff]
    %v4986 = vld [vmem:[#allocation13 + $0x218] sm:$0xff]
    %v4987 = vld [vmem:[#allocation13 + $0x220] sm:$0xff]
    %v4988 = vld [vmem:[#allocation13 + $0x228] sm:$0xff]
    %v4989 = vld [vmem:[#allocation13 + $0x230] sm:$0xff]
    %v4990 = vld [vmem:[#allocation13 + $0x238] sm:$0xff]
    %v4991 = vld [vmem:[#allocation13 + $0x240] sm:$0xff]
    %v4992 = vld [vmem:[#allocation13 + $0x248] sm:$0xff]
    %v4993 = vld [vmem:[#allocation13 + $0x250] sm:$0xff]
    %v4994 = vld [vmem:[#allocation13 + $0x258] sm:$0xff]
    %v4995 = vld [vmem:[#allocation13 + $0x260] sm:$0xff]
    %v4996 = vld [vmem:[#allocation13 + $0x268] sm:$0xff]
    %v4997 = vld [vmem:[#allocation13 + $0x270] sm:$0xff]
    %v4998 = vld [vmem:[#allocation13 + $0x278] sm:$0xff]
    %v4999 = vld [vmem:[#allocation13 + $0x280] sm:$0xff]
    %v5000 = vld [vmem:[#allocation13 + $0x288] sm:$0xff]
    %v5001 = vld [vmem:[#allocation13 + $0x290] sm:$0xff]
    %v5002 = vld [vmem:[#allocation13 + $0x298] sm:$0xff]
    %v5003 = vld [vmem:[#allocation13 + $0x2a0] sm:$0xff]
    %v5004 = vld [vmem:[#allocation13 + $0x2a8] sm:$0xff]
    %v5005 = vld [vmem:[#allocation13 + $0x2b0] sm:$0xff]
    %v5006 = vld [vmem:[#allocation13 + $0x2b8] sm:$0xff]
    %v5007 = vld [vmem:[#allocation13 + $0x2c0] sm:$0xff]
    %v5008 = vld [vmem:[#allocation13 + $0x2c8] sm:$0xff]
    %v5009 = vld [vmem:[#allocation13 + $0x2d0] sm:$0xff]
    %v5010 = vld [vmem:[#allocation13 + $0x2d8] sm:$0xff]
    %v5011 = vld [vmem:[#allocation13 + $0x2e0] sm:$0xff]
    %v5012 = vld [vmem:[#allocation13 + $0x2e8] sm:$0xff]
    %v5013 = vld [vmem:[#allocation13 + $0x2f0] sm:$0xff]
    %v5014 = vld [vmem:[#allocation13 + $0x2f8] sm:$0xff]
    %v5015 = vld [vmem:[#allocation13 + $0x300] sm:$0xff]
    %v5016 = vld [vmem:[#allocation13 + $0x308] sm:$0xff]
    %v5017 = vld [vmem:[#allocation13 + $0x310] sm:$0xff]
    %v5018 = vld [vmem:[#allocation13 + $0x318] sm:$0xff]
    %v5019 = vld [vmem:[#allocation13 + $0x320] sm:$0xff]
    %v5020 = vld [vmem:[#allocation13 + $0x328] sm:$0xff]
    %v5021 = vld [vmem:[#allocation13 + $0x330] sm:$0xff]
    %v5022 = vld [vmem:[#allocation13 + $0x338] sm:$0xff]
    %v5023 = vld [vmem:[#allocation13 + $0x340] sm:$0xff]
    %v5024 = vld [vmem:[#allocation13 + $0x348] sm:$0xff]
    %v5025 = vld [vmem:[#allocation13 + $0x350] sm:$0xff]
    %v5026 = vld [vmem:[#allocation13 + $0x358] sm:$0xff]
    %v5027 = vld [vmem:[#allocation13 + $0x360] sm:$0xff]
    %v5028 = vld [vmem:[#allocation13 + $0x368] sm:$0xff]
    %v5029 = vld [vmem:[#allocation13 + $0x370] sm:$0xff]
    %v5030 = vld [vmem:[#allocation13 + $0x378] sm:$0xff]
    %v5031 = vld [vmem:[#allocation13 + $0x380] sm:$0xff]
    %v5032 = vld [vmem:[#allocation13 + $0x388] sm:$0xff]
    %v5033 = vld [vmem:[#allocation13 + $0x390] sm:$0xff]
    %v5034 = vld [vmem:[#allocation13 + $0x398] sm:$0xff]
    %v5035 = vld [vmem:[#allocation13 + $0x3a0] sm:$0xff]
    %v5036 = vld [vmem:[#allocation13 + $0x3a8] sm:$0xff]
    %v5037 = vld [vmem:[#allocation13 + $0x3b0] sm:$0xff]
    %v5038 = vld [vmem:[#allocation13 + $0x3b8] sm:$0xff]
    %v5039 = vld [vmem:[#allocation13 + $0x3c0] sm:$0xff]
    %v5040 = vld [vmem:[#allocation13 + $0x3c8] sm:$0xff]
    %v5041 = vld [vmem:[#allocation13 + $0x3d0] sm:$0xff]
    %v5042 = vld [vmem:[#allocation13 + $0x3d8] sm:$0xff]
    %v5043 = vld [vmem:[#allocation13 + $0x3e0] sm:$0xff]
    %v5044 = vld [vmem:[#allocation13 + $0x3e8] sm:$0xff]
    %v5045 = vld [vmem:[#allocation13 + $0x3f0] sm:$0xff]
    %v5046 = vld [vmem:[#allocation13 + $0x3f8] sm:$0xff]
    %v5047 = vld [vmem:[#allocation13 + $0x400] sm:$0xff]
    %v5048 = vld [vmem:[#allocation13 + $0x408] sm:$0xff]
    %v5049 = vld [vmem:[#allocation13 + $0x410] sm:$0xff]
    %v5050 = vld [vmem:[#allocation13 + $0x418] sm:$0xff]
    %v5051 = vld [vmem:[#allocation13 + $0x420] sm:$0xff]
    %v5052 = vld [vmem:[#allocation13 + $0x428] sm:$0xff]
    %v5053 = vld [vmem:[#allocation13 + $0x430] sm:$0xff]
    %v5054 = vld [vmem:[#allocation13 + $0x438] sm:$0xff]
    %v5055 = vld [vmem:[#allocation13 + $0x440] sm:$0xff]
    %v5056 = vld [vmem:[#allocation13 + $0x448] sm:$0xff]
    %v5057 = vld [vmem:[#allocation13 + $0x450] sm:$0xff]
    %v5058 = vld [vmem:[#allocation13 + $0x458] sm:$0xff]
    %v5059 = vld [vmem:[#allocation13 + $0x460] sm:$0xff]
    %v5060 = vld [vmem:[#allocation13 + $0x468] sm:$0xff]
    %v5061 = vld [vmem:[#allocation13 + $0x470] sm:$0xff]
    %v5062 = vld [vmem:[#allocation13 + $0x478] sm:$0xff]
    %v5063 = vld [vmem:[#allocation13 + $0x480] sm:$0xff]
    %v5064 = vld [vmem:[#allocation13 + $0x488] sm:$0xff]
    %v5065 = vld [vmem:[#allocation13 + $0x490] sm:$0xff]
    %v5066 = vld [vmem:[#allocation13 + $0x498] sm:$0xff]
    %v5067 = vld [vmem:[#allocation13 + $0x4a0] sm:$0xff]
    %v5068 = vld [vmem:[#allocation13 + $0x4a8] sm:$0xff]
    %v5069 = vld [vmem:[#allocation13 + $0x4b0] sm:$0xff]
    %v5070 = vld [vmem:[#allocation13 + $0x4b8] sm:$0xff]
    %v5071 = vld [vmem:[#allocation13 + $0x4c0] sm:$0xff]
    %v5072 = vld [vmem:[#allocation13 + $0x4c8] sm:$0xff]
    %v5073 = vld [vmem:[#allocation13 + $0x4d0] sm:$0xff]
    %v5074 = vld [vmem:[#allocation13 + $0x4d8] sm:$0xff]
    %v5075 = vld [vmem:[#allocation13 + $0x4e0] sm:$0xff]
    %v5076 = vld [vmem:[#allocation13 + $0x4e8] sm:$0xff]
    %v5077 = vld [vmem:[#allocation13 + $0x4f0] sm:$0xff]
    %v5078 = vld [vmem:[#allocation13 + $0x4f8] sm:$0xff]
    %v5079 = vld [vmem:[#allocation13 + $0x500] sm:$0xff]
    %v5080 = vld [vmem:[#allocation13 + $0x508] sm:$0xff]
    %v5081 = vld [vmem:[#allocation13 + $0x510] sm:$0xff]
    %v5082 = vld [vmem:[#allocation13 + $0x518] sm:$0xff]
    %v5083 = vld [vmem:[#allocation13 + $0x520] sm:$0xff]
    %v5084 = vld [vmem:[#allocation13 + $0x528] sm:$0xff]
    %v5085 = vld [vmem:[#allocation13 + $0x530] sm:$0xff]
    %v5086 = vld [vmem:[#allocation13 + $0x538] sm:$0xff]
    %v5087 = vld [vmem:[#allocation13 + $0x540] sm:$0xff]
    %v5088 = vld [vmem:[#allocation13 + $0x548] sm:$0xff]
    %v5089 = vld [vmem:[#allocation13 + $0x550] sm:$0xff]
    %v5090 = vld [vmem:[#allocation13 + $0x558] sm:$0xff]
    %v5091 = vld [vmem:[#allocation13 + $0x560] sm:$0xff]
    %v5092 = vld [vmem:[#allocation13 + $0x568] sm:$0xff]
    %v5093 = vld [vmem:[#allocation13 + $0x570] sm:$0xff]
    %v5094 = vld [vmem:[#allocation13 + $0x578] sm:$0xff]
    %v5095 = vld [vmem:[#allocation13 + $0x580] sm:$0xff]
    %v5096 = vld [vmem:[#allocation13 + $0x588] sm:$0xff]
    %v5097 = vld [vmem:[#allocation13 + $0x590] sm:$0xff]
    %v5098 = vld [vmem:[#allocation13 + $0x598] sm:$0xff]
    %v5099 = vld [vmem:[#allocation13 + $0x5a0] sm:$0xff]
    %v5100 = vld [vmem:[#allocation13 + $0x5a8] sm:$0xff]
    %v5101 = vld [vmem:[#allocation13 + $0x5b0] sm:$0xff]
    %v5102 = vld [vmem:[#allocation13 + $0x5b8] sm:$0xff]
    %v5103 = vld [vmem:[#allocation13 + $0x5c0] sm:$0xff]
    %v5104 = vld [vmem:[#allocation13 + $0x5c8] sm:$0xff]
    %v5105 = vld [vmem:[#allocation13 + $0x5d0] sm:$0xff]
    %v5106 = vld [vmem:[#allocation13 + $0x5d8] sm:$0xff]
    %v5107 = vld [vmem:[#allocation13 + $0x5e0] sm:$0xff]
    %v5108 = vld [vmem:[#allocation13 + $0x5e8] sm:$0xff]
    %v5109 = vld [vmem:[#allocation13 + $0x5f0] sm:$0xff]
    %v5110 = vld [vmem:[#allocation13 + $0x5f8] sm:$0xff]
    %v5111 = vld [vmem:[#allocation13 + $0x600] sm:$0xff]
    %v5112 = vld [vmem:[#allocation13 + $0x608] sm:$0xff]
    %v5113 = vld [vmem:[#allocation13 + $0x610] sm:$0xff]
    %v5114 = vld [vmem:[#allocation13 + $0x618] sm:$0xff]
    %v5115 = vld [vmem:[#allocation13 + $0x620] sm:$0xff]
    %v5116 = vld [vmem:[#allocation13 + $0x628] sm:$0xff]
    %v5117 = vld [vmem:[#allocation13 + $0x630] sm:$0xff]
    %v5118 = vld [vmem:[#allocation13 + $0x638] sm:$0xff]
    %v5119 = vld [vmem:[#allocation13 + $0x640] sm:$0xff]
    %v5120 = vld [vmem:[#allocation13 + $0x648] sm:$0xff]
    %v5121 = vld [vmem:[#allocation13 + $0x650] sm:$0xff]
    %v5122 = vld [vmem:[#allocation13 + $0x658] sm:$0xff]
    %v5123 = vld [vmem:[#allocation13 + $0x660] sm:$0xff]
    %v5124 = vld [vmem:[#allocation13 + $0x668] sm:$0xff]
    %v5125 = vld [vmem:[#allocation13 + $0x670] sm:$0xff]
    %v5126 = vld [vmem:[#allocation13 + $0x678] sm:$0xff]
    %v5127 = vld [vmem:[#allocation13 + $0x680] sm:$0xff]
    %v5128 = vld [vmem:[#allocation13 + $0x688] sm:$0xff]
    %v5129 = vld [vmem:[#allocation13 + $0x690] sm:$0xff]
    %v5130 = vld [vmem:[#allocation13 + $0x698] sm:$0xff]
    %v5131 = vld [vmem:[#allocation13 + $0x6a0] sm:$0xff]
    %v5132 = vld [vmem:[#allocation13 + $0x6a8] sm:$0xff]
    %v5133 = vld [vmem:[#allocation13 + $0x6b0] sm:$0xff]
    %v5134 = vld [vmem:[#allocation13 + $0x6b8] sm:$0xff]
    %v5135 = vld [vmem:[#allocation13 + $0x6c0] sm:$0xff]
    %v5136 = vld [vmem:[#allocation13 + $0x6c8] sm:$0xff]
    %v5137 = vld [vmem:[#allocation13 + $0x6d0] sm:$0xff]
    %v5138 = vld [vmem:[#allocation13 + $0x6d8] sm:$0xff]
    %v5139 = vld [vmem:[#allocation13 + $0x6e0] sm:$0xff]
    %v5140 = vld [vmem:[#allocation13 + $0x6e8] sm:$0xff]
    %v5141 = vld [vmem:[#allocation13 + $0x6f0] sm:$0xff]
    %v5142 = vld [vmem:[#allocation13 + $0x6f8] sm:$0xff]
    %v5143 = vld [vmem:[#allocation13 + $0x700] sm:$0xff]
    %v5144 = vld [vmem:[#allocation13 + $0x708] sm:$0xff]
    %v5145 = vld [vmem:[#allocation13 + $0x710] sm:$0xff]
    %v5146 = vld [vmem:[#allocation13 + $0x718] sm:$0xff]
    %v5147 = vld [vmem:[#allocation13 + $0x720] sm:$0xff]
    %v5148 = vld [vmem:[#allocation13 + $0x728] sm:$0xff]
    %v5149 = vld [vmem:[#allocation13 + $0x730] sm:$0xff]
    %v5150 = vld [vmem:[#allocation13 + $0x738] sm:$0xff]
    %v5151 = vld [vmem:[#allocation13 + $0x740] sm:$0xff]
    %v5152 = vld [vmem:[#allocation13 + $0x748] sm:$0xff]
    %v5153 = vld [vmem:[#allocation13 + $0x750] sm:$0xff]
    %v5154 = vld [vmem:[#allocation13 + $0x758] sm:$0xff]
    %v5155 = vld [vmem:[#allocation13 + $0x760] sm:$0xff]
    %v5156 = vld [vmem:[#allocation13 + $0x768] sm:$0xff]
    %v5157 = vld [vmem:[#allocation13 + $0x770] sm:$0xff]
    %v5158 = vld [vmem:[#allocation13 + $0x778] sm:$0xff]
    %v5159 = vld [vmem:[#allocation13 + $0x780] sm:$0xff]
    %v5160 = vld [vmem:[#allocation13 + $0x788] sm:$0xff]
    %v5161 = vld [vmem:[#allocation13 + $0x790] sm:$0xff]
    %v5162 = vld [vmem:[#allocation13 + $0x798] sm:$0xff]
    %v5163 = vld [vmem:[#allocation13 + $0x7a0] sm:$0xff]
    %v5164 = vld [vmem:[#allocation13 + $0x7a8] sm:$0xff]
    %v5165 = vld [vmem:[#allocation13 + $0x7b0] sm:$0xff]
    %v5166 = vld [vmem:[#allocation13 + $0x7b8] sm:$0xff]
    %v5167 = vld [vmem:[#allocation13 + $0x7c0] sm:$0xff]
    %v5168 = vld [vmem:[#allocation13 + $0x7c8] sm:$0xff]
    %v5169 = vld [vmem:[#allocation13 + $0x7d0] sm:$0xff]
    %v5170 = vld [vmem:[#allocation13 + $0x7d8] sm:$0xff]
    %v5171 = vld [vmem:[#allocation13 + $0x7e0] sm:$0xff]
    %v5172 = vld [vmem:[#allocation13 + $0x7e8] sm:$0xff]
    %v5173 = vld [vmem:[#allocation13 + $0x7f0] sm:$0xff]
    %v5174 = vld [vmem:[#allocation13 + $0x7f8] sm:$0xff]
    %v5175 = vld [vmem:[#allocation13 + $0x800] sm:$0xff]
    %v5176 = vld [vmem:[#allocation13 + $0x808] sm:$0xff]
    %v5177 = vld [vmem:[#allocation13 + $0x810] sm:$0xff]
    %v5178 = vld [vmem:[#allocation13 + $0x818] sm:$0xff]
    %v5179 = vld [vmem:[#allocation13 + $0x820] sm:$0xff]
    %v5180 = vld [vmem:[#allocation13 + $0x828] sm:$0xff]
    %v5181 = vld [vmem:[#allocation13 + $0x830] sm:$0xff]
    %v5182 = vld [vmem:[#allocation13 + $0x838] sm:$0xff]
    %v5183 = vld [vmem:[#allocation13 + $0x840] sm:$0xff]
    %v5184 = vld [vmem:[#allocation13 + $0x848] sm:$0xff]
    %v5185 = vld [vmem:[#allocation13 + $0x850] sm:$0xff]
    %v5186 = vld [vmem:[#allocation13 + $0x858] sm:$0xff]
    %v5187 = vld [vmem:[#allocation13 + $0x860] sm:$0xff]
    %v5188 = vld [vmem:[#allocation13 + $0x868] sm:$0xff]
    %v5189 = vld [vmem:[#allocation13 + $0x870] sm:$0xff]
    %v5190 = vld [vmem:[#allocation13 + $0x878] sm:$0xff]
    %v5191 = vld [vmem:[#allocation13 + $0x880] sm:$0xff]
    %v5192 = vld [vmem:[#allocation13 + $0x888] sm:$0xff]
    %v5193 = vld [vmem:[#allocation13 + $0x890] sm:$0xff]
    %v5194 = vld [vmem:[#allocation13 + $0x898] sm:$0xff]
    %v5195 = vld [vmem:[#allocation13 + $0x8a0] sm:$0xff]
    %v5196 = vld [vmem:[#allocation13 + $0x8a8] sm:$0xff]
    %v5197 = vld [vmem:[#allocation13 + $0x8b0] sm:$0xff]
    %v5198 = vld [vmem:[#allocation13 + $0x8b8] sm:$0xff]
    %v5199 = vld [vmem:[#allocation13 + $0x8c0] sm:$0xff]
    %v5200 = vld [vmem:[#allocation13 + $0x8c8] sm:$0xff]
    %v5201 = vld [vmem:[#allocation13 + $0x8d0] sm:$0xff]
    %v5202 = vld [vmem:[#allocation13 + $0x8d8] sm:$0xff]
    %v5203 = vld [vmem:[#allocation13 + $0x8e0] sm:$0xff]
    %v5204 = vld [vmem:[#allocation13 + $0x8e8] sm:$0xff]
    %v5205 = vld [vmem:[#allocation13 + $0x8f0] sm:$0xff]
    %v5206 = vld [vmem:[#allocation13 + $0x8f8] sm:$0xff]
    %v5207 = vld [vmem:[#allocation13 + $0x900] sm:$0xff]
    %v5208 = vld [vmem:[#allocation13 + $0x908] sm:$0xff]
    %v5209 = vld [vmem:[#allocation13 + $0x910] sm:$0xff]
    %v5210 = vld [vmem:[#allocation13 + $0x918] sm:$0xff]
    %v5211 = vld [vmem:[#allocation13 + $0x920] sm:$0xff]
    %v5212 = vld [vmem:[#allocation13 + $0x928] sm:$0xff]
    %v5213 = vld [vmem:[#allocation13 + $0x930] sm:$0xff]
    %v5214 = vld [vmem:[#allocation13 + $0x938] sm:$0xff]
    %v5215 = vld [vmem:[#allocation13 + $0x940] sm:$0xff]
    %v5216 = vld [vmem:[#allocation13 + $0x948] sm:$0xff]
    %v5217 = vld [vmem:[#allocation13 + $0x950] sm:$0xff]
    %v5218 = vld [vmem:[#allocation13 + $0x958] sm:$0xff]
    %v5219 = vld [vmem:[#allocation13 + $0x960] sm:$0xff]
    %v5220 = vld [vmem:[#allocation13 + $0x968] sm:$0xff]
    %v5221 = vld [vmem:[#allocation13 + $0x970] sm:$0xff]
    %v5222 = vld [vmem:[#allocation13 + $0x978] sm:$0xff]
    %v5223 = vld [vmem:[#allocation13 + $0x980] sm:$0xff]
    %v5224 = vld [vmem:[#allocation13 + $0x988] sm:$0xff]
    %v5225 = vld [vmem:[#allocation13 + $0x990] sm:$0xff]
    %v5226 = vld [vmem:[#allocation13 + $0x998] sm:$0xff]
    %v5227 = vld [vmem:[#allocation13 + $0x9a0] sm:$0xff]
    %v5228 = vld [vmem:[#allocation13 + $0x9a8] sm:$0xff]
    %v5229 = vld [vmem:[#allocation13 + $0x9b0] sm:$0xff]
    %v5230 = vld [vmem:[#allocation13 + $0x9b8] sm:$0xff]
    %v5231 = vld [vmem:[#allocation13 + $0x9c0] sm:$0xff]
    %v5232 = vld [vmem:[#allocation13 + $0x9c8] sm:$0xff]
    %v5233 = vld [vmem:[#allocation13 + $0x9d0] sm:$0xff]
    %v5234 = vld [vmem:[#allocation13 + $0x9d8] sm:$0xff]
    %v5235 = vld [vmem:[#allocation13 + $0x9e0] sm:$0xff]
    %v5236 = vld [vmem:[#allocation13 + $0x9e8] sm:$0xff]
    %v5237 = vld [vmem:[#allocation13 + $0x9f0] sm:$0xff]
    %v5238 = vld [vmem:[#allocation13 + $0x9f8] sm:$0xff]
    %v5239 = vld [vmem:[#allocation13 + $0xa00] sm:$0xff]
    %v5240 = vld [vmem:[#allocation13 + $0xa08] sm:$0xff]
    %v5241 = vld [vmem:[#allocation13 + $0xa10] sm:$0xff]
    %v5242 = vld [vmem:[#allocation13 + $0xa18] sm:$0xff]
    %v5243 = vld [vmem:[#allocation13 + $0xa20] sm:$0xff]
    %v5244 = vld [vmem:[#allocation13 + $0xa28] sm:$0xff]
    %v5245 = vld [vmem:[#allocation13 + $0xa30] sm:$0xff]
    %v5246 = vld [vmem:[#allocation13 + $0xa38] sm:$0xff]
    %v5247 = vld [vmem:[#allocation13 + $0xa40] sm:$0xff]
    %v5248 = vld [vmem:[#allocation13 + $0xa48] sm:$0xff]
    %v5249 = vld [vmem:[#allocation13 + $0xa50] sm:$0xff]
    %v5250 = vld [vmem:[#allocation13 + $0xa58] sm:$0xff]
    %v5251 = vld [vmem:[#allocation13 + $0xa60] sm:$0xff]
    %v5252 = vld [vmem:[#allocation13 + $0xa68] sm:$0xff]
    %v5253 = vld [vmem:[#allocation13 + $0xa70] sm:$0xff]
    %v5254 = vld [vmem:[#allocation13 + $0xa78] sm:$0xff]
    %v5255 = vld [vmem:[#allocation13 + $0xa80] sm:$0xff]
    %v5256 = vld [vmem:[#allocation13 + $0xa88] sm:$0xff]
    %v5257 = vld [vmem:[#allocation13 + $0xa90] sm:$0xff]
    %v5258 = vld [vmem:[#allocation13 + $0xa98] sm:$0xff]
    %v5259 = vld [vmem:[#allocation13 + $0xaa0] sm:$0xff]
    %v5260 = vld [vmem:[#allocation13 + $0xaa8] sm:$0xff]
    %v5261 = vld [vmem:[#allocation13 + $0xab0] sm:$0xff]
    %v5262 = vld [vmem:[#allocation13 + $0xab8] sm:$0xff]
    %v5263 = vld [vmem:[#allocation13 + $0xac0] sm:$0xff]
    %v5264 = vld [vmem:[#allocation13 + $0xac8] sm:$0xff]
    %v5265 = vld [vmem:[#allocation13 + $0xad0] sm:$0xff]
    %v5266 = vld [vmem:[#allocation13 + $0xad8] sm:$0xff]
    %v5267 = vld [vmem:[#allocation13 + $0xae0] sm:$0xff]
    %v5268 = vld [vmem:[#allocation13 + $0xae8] sm:$0xff]
    %v5269 = vld [vmem:[#allocation13 + $0xaf0] sm:$0xff]
    %v5270 = vld [vmem:[#allocation13 + $0xaf8] sm:$0xff]
    %v5271 = vld [vmem:[#allocation13 + $0xb00] sm:$0xff]
    %v5272 = vld [vmem:[#allocation13 + $0xb08] sm:$0xff]
    %v5273 = vld [vmem:[#allocation13 + $0xb10] sm:$0xff]
    %v5274 = vld [vmem:[#allocation13 + $0xb18] sm:$0xff]
    %v5275 = vld [vmem:[#allocation13 + $0xb20] sm:$0xff]
    %v5276 = vld [vmem:[#allocation13 + $0xb28] sm:$0xff]
    %v5277 = vld [vmem:[#allocation13 + $0xb30] sm:$0xff]
    %v5278 = vld [vmem:[#allocation13 + $0xb38] sm:$0xff]
    %v5279 = vld [vmem:[#allocation13 + $0xb40] sm:$0xff]
    %v5280 = vld [vmem:[#allocation13 + $0xb48] sm:$0xff]
    %v5281 = vld [vmem:[#allocation13 + $0xb50] sm:$0xff]
    %v5282 = vld [vmem:[#allocation13 + $0xb58] sm:$0xff]
    %v5283 = vld [vmem:[#allocation13 + $0xb60] sm:$0xff]
    %v5284 = vld [vmem:[#allocation13 + $0xb68] sm:$0xff]
    %v5285 = vld [vmem:[#allocation13 + $0xb70] sm:$0xff]
    %v5286 = vld [vmem:[#allocation13 + $0xb78] sm:$0xff]
    %v5287 = vld [vmem:[#allocation13 + $0xb80] sm:$0xff]
    %v5288 = vld [vmem:[#allocation13 + $0xb88] sm:$0xff]
    %v5289 = vld [vmem:[#allocation13 + $0xb90] sm:$0xff]
    %v5290 = vld [vmem:[#allocation13 + $0xb98] sm:$0xff]
    %v5291 = vld [vmem:[#allocation13 + $0xba0] sm:$0xff]
    %v5292 = vld [vmem:[#allocation13 + $0xba8] sm:$0xff]
    %v5293 = vld [vmem:[#allocation13 + $0xbb0] sm:$0xff]
    %v5294 = vld [vmem:[#allocation13 + $0xbb8] sm:$0xff]
    %v5295 = vld [vmem:[#allocation13 + $0xbc0] sm:$0xff]
    %v5296 = vld [vmem:[#allocation13 + $0xbc8] sm:$0xff]
    %v5297 = vld [vmem:[#allocation13 + $0xbd0] sm:$0xff]
    %v5298 = vld [vmem:[#allocation13 + $0xbd8] sm:$0xff]
    %v5299 = vld [vmem:[#allocation13 + $0xbe0] sm:$0xff]
    %v5300 = vld [vmem:[#allocation13 + $0xbe8] sm:$0xff]
    %v5301 = vld [vmem:[#allocation13 + $0xbf0] sm:$0xff]
    %v5302 = vld [vmem:[#allocation13 + $0xbf8] sm:$0xff]
    %v5303 = vld [vmem:[#allocation13 + $0xc00] sm:$0xff]
    %v5304 = vld [vmem:[#allocation13 + $0xc08] sm:$0xff]
    %v5305 = vld [vmem:[#allocation13 + $0xc10] sm:$0xff]
    %v5306 = vld [vmem:[#allocation13 + $0xc18] sm:$0xff]
    %v5307 = vld [vmem:[#allocation13 + $0xc20] sm:$0xff]
    %v5308 = vld [vmem:[#allocation13 + $0xc28] sm:$0xff]
    %v5309 = vld [vmem:[#allocation13 + $0xc30] sm:$0xff]
    %v5310 = vld [vmem:[#allocation13 + $0xc38] sm:$0xff]
    %v5311 = vld [vmem:[#allocation13 + $0xc40] sm:$0xff]
    %v5312 = vld [vmem:[#allocation13 + $0xc48] sm:$0xff]
    %v5313 = vld [vmem:[#allocation13 + $0xc50] sm:$0xff]
    %v5314 = vld [vmem:[#allocation13 + $0xc58] sm:$0xff]
    %v5315 = vld [vmem:[#allocation13 + $0xc60] sm:$0xff]
    %v5316 = vld [vmem:[#allocation13 + $0xc68] sm:$0xff]
    %v5317 = vld [vmem:[#allocation13 + $0xc70] sm:$0xff]
    %v5318 = vld [vmem:[#allocation13 + $0xc78] sm:$0xff]
    %v5319 = vld [vmem:[#allocation13 + $0xc80] sm:$0xff]
    %v5320 = vld [vmem:[#allocation13 + $0xc88] sm:$0xff]
    %v5321 = vld [vmem:[#allocation13 + $0xc90] sm:$0xff]
    %v5322 = vld [vmem:[#allocation13 + $0xc98] sm:$0xff]
    %v5323 = vld [vmem:[#allocation13 + $0xca0] sm:$0xff]
    %v5324 = vld [vmem:[#allocation13 + $0xca8] sm:$0xff]
    %v5325 = vld [vmem:[#allocation13 + $0xcb0] sm:$0xff]
    %v5326 = vld [vmem:[#allocation13 + $0xcb8] sm:$0xff]
    %v5327 = vld [vmem:[#allocation13 + $0xcc0] sm:$0xff]
    %v5328 = vld [vmem:[#allocation13 + $0xcc8] sm:$0xff]
    %v5329 = vld [vmem:[#allocation13 + $0xcd0] sm:$0xff]
    %v5330 = vld [vmem:[#allocation13 + $0xcd8] sm:$0xff]
    %v5331 = vld [vmem:[#allocation13 + $0xce0] sm:$0xff]
    %v5332 = vld [vmem:[#allocation13 + $0xce8] sm:$0xff]
    %v5333 = vld [vmem:[#allocation13 + $0xcf0] sm:$0xff]
    %v5334 = vld [vmem:[#allocation13 + $0xcf8] sm:$0xff]
    %v5335 = vld [vmem:[#allocation13 + $0xd00] sm:$0xff]
    %v5336 = vld [vmem:[#allocation13 + $0xd08] sm:$0xff]
    %v5337 = vld [vmem:[#allocation13 + $0xd10] sm:$0xff]
    %v5338 = vld [vmem:[#allocation13 + $0xd18] sm:$0xff]
    %v5339 = vld [vmem:[#allocation13 + $0xd20] sm:$0xff]
    %v5340 = vld [vmem:[#allocation13 + $0xd28] sm:$0xff]
    %v5341 = vld [vmem:[#allocation13 + $0xd30] sm:$0xff]
    %v5342 = vld [vmem:[#allocation13 + $0xd38] sm:$0xff]
    %v5343 = vld [vmem:[#allocation13 + $0xd40] sm:$0xff]
    %v5344 = vld [vmem:[#allocation13 + $0xd48] sm:$0xff]
    %v5345 = vld [vmem:[#allocation13 + $0xd50] sm:$0xff]
    %v5346 = vld [vmem:[#allocation13 + $0xd58] sm:$0xff]
    %v5347 = vld [vmem:[#allocation13 + $0xd60] sm:$0xff]
    %v5348 = vld [vmem:[#allocation13 + $0xd68] sm:$0xff]
    %v5349 = vld [vmem:[#allocation13 + $0xd70] sm:$0xff]
    %v5350 = vld [vmem:[#allocation13 + $0xd78] sm:$0xff]
    %v5351 = vld [vmem:[#allocation13 + $0xd80] sm:$0xff]
    %v5352 = vld [vmem:[#allocation13 + $0xd88] sm:$0xff]
    %v5353 = vld [vmem:[#allocation13 + $0xd90] sm:$0xff]
    %v5354 = vld [vmem:[#allocation13 + $0xd98] sm:$0xff]
    %v5355 = vld [vmem:[#allocation13 + $0xda0] sm:$0xff]
    %v5356 = vld [vmem:[#allocation13 + $0xda8] sm:$0xff]
    %v5357 = vld [vmem:[#allocation13 + $0xdb0] sm:$0xff]
    %v5358 = vld [vmem:[#allocation13 + $0xdb8] sm:$0xff]
    %v5359 = vld [vmem:[#allocation13 + $0xdc0] sm:$0xff]
    %v5360 = vld [vmem:[#allocation13 + $0xdc8] sm:$0xff]
    %v5361 = vld [vmem:[#allocation13 + $0xdd0] sm:$0xff]
    %v5362 = vld [vmem:[#allocation13 + $0xdd8] sm:$0xff]
    %v5363 = vld [vmem:[#allocation13 + $0xde0] sm:$0xff]
    %v5364 = vld [vmem:[#allocation13 + $0xde8] sm:$0xff]
    %v5365 = vld [vmem:[#allocation13 + $0xdf0] sm:$0xff]
    %v5366 = vld [vmem:[#allocation13 + $0xdf8] sm:$0xff]
    %v5367 = vld [vmem:[#allocation13 + $0xe00] sm:$0xff]
    %v5368 = vld [vmem:[#allocation13 + $0xe08] sm:$0xff]
    %v5369 = vld [vmem:[#allocation13 + $0xe10] sm:$0xff]
    %v5370 = vld [vmem:[#allocation13 + $0xe18] sm:$0xff]
    %v5371 = vld [vmem:[#allocation13 + $0xe20] sm:$0xff]
    %v5372 = vld [vmem:[#allocation13 + $0xe28] sm:$0xff]
    %v5373 = vld [vmem:[#allocation13 + $0xe30] sm:$0xff]
    %v5374 = vld [vmem:[#allocation13 + $0xe38] sm:$0xff]
    %v5375 = vld [vmem:[#allocation13 + $0xe40] sm:$0xff]
    %v5376 = vld [vmem:[#allocation13 + $0xe48] sm:$0xff]
    %v5377 = vld [vmem:[#allocation13 + $0xe50] sm:$0xff]
    %v5378 = vld [vmem:[#allocation13 + $0xe58] sm:$0xff]
    %v5379 = vld [vmem:[#allocation13 + $0xe60] sm:$0xff]
    %v5380 = vld [vmem:[#allocation13 + $0xe68] sm:$0xff]
    %v5381 = vld [vmem:[#allocation13 + $0xe70] sm:$0xff]
    %v5382 = vld [vmem:[#allocation13 + $0xe78] sm:$0xff]
    %v5383 = vld [vmem:[#allocation13 + $0xe80] sm:$0xff]
    %v5384 = vld [vmem:[#allocation13 + $0xe88] sm:$0xff]
    %v5385 = vld [vmem:[#allocation13 + $0xe90] sm:$0xff]
    %v5386 = vld [vmem:[#allocation13 + $0xe98] sm:$0xff]
    %v5387 = vld [vmem:[#allocation13 + $0xea0] sm:$0xff]
    %v5388 = vld [vmem:[#allocation13 + $0xea8] sm:$0xff]
    %v5389 = vld [vmem:[#allocation13 + $0xeb0] sm:$0xff]
    %v5390 = vld [vmem:[#allocation13 + $0xeb8] sm:$0xff]
    %v5391 = vld [vmem:[#allocation13 + $0xec0] sm:$0xff]
    %v5392 = vld [vmem:[#allocation13 + $0xec8] sm:$0xff]
    %v5393 = vld [vmem:[#allocation13 + $0xed0] sm:$0xff]
    %v5394 = vld [vmem:[#allocation13 + $0xed8] sm:$0xff]
    %v5395 = vld [vmem:[#allocation13 + $0xee0] sm:$0xff]
    %v5396 = vld [vmem:[#allocation13 + $0xee8] sm:$0xff]
    %v5397 = vld [vmem:[#allocation13 + $0xef0] sm:$0xff]
    %v5398 = vld [vmem:[#allocation13 + $0xef8] sm:$0xff]
    %v5399 = vld [vmem:[#allocation13 + $0xf00] sm:$0xff]
    %v5400 = vld [vmem:[#allocation13 + $0xf08] sm:$0xff]
    %v5401 = vld [vmem:[#allocation13 + $0xf10] sm:$0xff]
    %v5402 = vld [vmem:[#allocation13 + $0xf18] sm:$0xff]
    %v5403 = vld [vmem:[#allocation13 + $0xf20] sm:$0xff]
    %v5404 = vld [vmem:[#allocation13 + $0xf28] sm:$0xff]
    %v5405 = vld [vmem:[#allocation13 + $0xf30] sm:$0xff]
    %v5406 = vld [vmem:[#allocation13 + $0xf38] sm:$0xff]
    %v5407 = vld [vmem:[#allocation13 + $0xf40] sm:$0xff]
    %v5408 = vld [vmem:[#allocation13 + $0xf48] sm:$0xff]
    %v5409 = vld [vmem:[#allocation13 + $0xf50] sm:$0xff]
    %v5410 = vld [vmem:[#allocation13 + $0xf58] sm:$0xff]
    %v5411 = vld [vmem:[#allocation13 + $0xf60] sm:$0xff]
    %v5412 = vld [vmem:[#allocation13 + $0xf68] sm:$0xff]
    %v5413 = vld [vmem:[#allocation13 + $0xf70] sm:$0xff]
    %v5414 = vld [vmem:[#allocation13 + $0xf78] sm:$0xff]
    %v5415 = vld [vmem:[#allocation13 + $0xf80] sm:$0xff]
    %v5416 = vld [vmem:[#allocation13 + $0xf88] sm:$0xff]
    %v5417 = vld [vmem:[#allocation13 + $0xf90] sm:$0xff]
    %v5418 = vld [vmem:[#allocation13 + $0xf98] sm:$0xff]
    %v5419 = vld [vmem:[#allocation13 + $0xfa0] sm:$0xff]
    %v5420 = vld [vmem:[#allocation13 + $0xfa8] sm:$0xff]
    %v5421 = vld [vmem:[#allocation13 + $0xfb0] sm:$0xff]
    %v5422 = vld [vmem:[#allocation13 + $0xfb8] sm:$0xff]
    %v5423 = vld [vmem:[#allocation13 + $0xfc0] sm:$0xff]
    %v5424 = vld [vmem:[#allocation13 + $0xfc8] sm:$0xff]
    %v5425 = vld [vmem:[#allocation13 + $0xfd0] sm:$0xff]
    %v5426 = vld [vmem:[#allocation13 + $0xfd8] sm:$0xff]
    %v5427 = vld [vmem:[#allocation13 + $0xfe0] sm:$0xff]
    %v5428 = vld [vmem:[#allocation13 + $0xfe8] sm:$0xff]
    %v5429 = vld [vmem:[#allocation13 + $0xff0] sm:$0xff]
    %v5430 = vld [vmem:[#allocation13 + $0xff8] sm:$0xff]
    %v5431 = vld [vmem:[#allocation14] sm:$0xff]
    %v5433 = vperm.slane %v5431, 0
    %v5434 = vperm.slane %v5431, 1
    %v5435 = vperm.slane %v5431, 2
    %v5436 = vperm.slane %v5431, 3
    %v5437 = vperm.slane %v5431, 4
    %v5438 = vperm.slane %v5431, 5
    %v5439 = vperm.slane %v5431, 6
    %v5440 = vperm.slane %v5431, 7
    %v5961 = vunpack.c.l.b16 %v4919
    %v5962 = vunpack.c.h.b16 %v4919
    %v5963 = vunpack.c.l.b16 %v4920
    %v5964 = vunpack.c.h.b16 %v4920
    %v5965 = vunpack.c.l.b16 %v4921
    %v5966 = vunpack.c.h.b16 %v4921
    %v5967 = vunpack.c.l.b16 %v4922
    %v5968 = vunpack.c.h.b16 %v4922
    %v5969 = vunpack.c.l.b16 %v4923
    %v5970 = vunpack.c.h.b16 %v4923
    %v5971 = vunpack.c.l.b16 %v4924
    %v5972 = vunpack.c.h.b16 %v4924
    %v5973 = vunpack.c.l.b16 %v4925
    %v5974 = vunpack.c.h.b16 %v4925
    %v5975 = vunpack.c.l.b16 %v4926
    %v5976 = vunpack.c.h.b16 %v4926
    %v5977 = vunpack.c.l.b16 %v4927
    %v5978 = vunpack.c.h.b16 %v4927
    %v5979 = vunpack.c.l.b16 %v4928
    %v5980 = vunpack.c.h.b16 %v4928
    %v5981 = vunpack.c.l.b16 %v4929
    %v5982 = vunpack.c.h.b16 %v4929
    %v5983 = vunpack.c.l.b16 %v4930
    %v5984 = vunpack.c.h.b16 %v4930
    %v5985 = vunpack.c.l.b16 %v4931
    %v5986 = vunpack.c.h.b16 %v4931
    %v5987 = vunpack.c.l.b16 %v4932
    %v5988 = vunpack.c.h.b16 %v4932
    %v5989 = vunpack.c.l.b16 %v4933
    %v5990 = vunpack.c.h.b16 %v4933
    %v5991 = vunpack.c.l.b16 %v4934
    %v5992 = vunpack.c.h.b16 %v4934
    %v5993 = vunpack.c.l.b16 %v4935
    %v5994 = vunpack.c.h.b16 %v4935
    %v5995 = vunpack.c.l.b16 %v4936
    %v5996 = vunpack.c.h.b16 %v4936
    %v5997 = vunpack.c.l.b16 %v4937
    %v5998 = vunpack.c.h.b16 %v4937
    %v5999 = vunpack.c.l.b16 %v4938
    %v6000 = vunpack.c.h.b16 %v4938
    %v6001 = vunpack.c.l.b16 %v4939
    %v6002 = vunpack.c.h.b16 %v4939
    %v6003 = vunpack.c.l.b16 %v4940
    %v6004 = vunpack.c.h.b16 %v4940
    %v6005 = vunpack.c.l.b16 %v4941
    %v6006 = vunpack.c.h.b16 %v4941
    %v6007 = vunpack.c.l.b16 %v4942
    %v6008 = vunpack.c.h.b16 %v4942
    %v6009 = vunpack.c.l.b16 %v4943
    %v6010 = vunpack.c.h.b16 %v4943
    %v6011 = vunpack.c.l.b16 %v4944
    %v6012 = vunpack.c.h.b16 %v4944
    %v6013 = vunpack.c.l.b16 %v4945
    %v6014 = vunpack.c.h.b16 %v4945
    %v6015 = vunpack.c.l.b16 %v4946
    %v6016 = vunpack.c.h.b16 %v4946
    %v6017 = vunpack.c.l.b16 %v4947
    %v6018 = vunpack.c.h.b16 %v4947
    %v6019 = vunpack.c.l.b16 %v4948
    %v6020 = vunpack.c.h.b16 %v4948
    %v6021 = vunpack.c.l.b16 %v4949
    %v6022 = vunpack.c.h.b16 %v4949
    %v6023 = vunpack.c.l.b16 %v4950
    %v6024 = vunpack.c.h.b16 %v4950
    %v6025 = vunpack.c.l.b16 %v4951
    %v6026 = vunpack.c.h.b16 %v4951
    %v6027 = vunpack.c.l.b16 %v4952
    %v6028 = vunpack.c.h.b16 %v4952
    %v6029 = vunpack.c.l.b16 %v4953
    %v6030 = vunpack.c.h.b16 %v4953
    %v6031 = vunpack.c.l.b16 %v4954
    %v6032 = vunpack.c.h.b16 %v4954
    %v6033 = vunpack.c.l.b16 %v4955
    %v6034 = vunpack.c.h.b16 %v4955
    %v6035 = vunpack.c.l.b16 %v4956
    %v6036 = vunpack.c.h.b16 %v4956
    %v6037 = vunpack.c.l.b16 %v4957
    %v6038 = vunpack.c.h.b16 %v4957
    %v6039 = vunpack.c.l.b16 %v4958
    %v6040 = vunpack.c.h.b16 %v4958
    %v6041 = vunpack.c.l.b16 %v4959
    %v6042 = vunpack.c.h.b16 %v4959
    %v6043 = vunpack.c.l.b16 %v4960
    %v6044 = vunpack.c.h.b16 %v4960
    %v6045 = vunpack.c.l.b16 %v4961
    %v6046 = vunpack.c.h.b16 %v4961
    %v6047 = vunpack.c.l.b16 %v4962
    %v6048 = vunpack.c.h.b16 %v4962
    %v6049 = vunpack.c.l.b16 %v4963
    %v6050 = vunpack.c.h.b16 %v4963
    %v6051 = vunpack.c.l.b16 %v4964
    %v6052 = vunpack.c.h.b16 %v4964
    %v6053 = vunpack.c.l.b16 %v4965
    %v6054 = vunpack.c.h.b16 %v4965
    %v6055 = vunpack.c.l.b16 %v4966
    %v6056 = vunpack.c.h.b16 %v4966
    %v6057 = vunpack.c.l.b16 %v4967
    %v6058 = vunpack.c.h.b16 %v4967
    %v6059 = vunpack.c.l.b16 %v4968
    %v6060 = vunpack.c.h.b16 %v4968
    %v6061 = vunpack.c.l.b16 %v4969
    %v6062 = vunpack.c.h.b16 %v4969
    %v6063 = vunpack.c.l.b16 %v4970
    %v6064 = vunpack.c.h.b16 %v4970
    %v6065 = vunpack.c.l.b16 %v4971
    %v6066 = vunpack.c.h.b16 %v4971
    %v6067 = vunpack.c.l.b16 %v4972
    %v6068 = vunpack.c.h.b16 %v4972
    %v6069 = vunpack.c.l.b16 %v4973
    %v6070 = vunpack.c.h.b16 %v4973
    %v6071 = vunpack.c.l.b16 %v4974
    %v6072 = vunpack.c.h.b16 %v4974
    %v6073 = vunpack.c.l.b16 %v4975
    %v6074 = vunpack.c.h.b16 %v4975
    %v6075 = vunpack.c.l.b16 %v4976
    %v6076 = vunpack.c.h.b16 %v4976
    %v6077 = vunpack.c.l.b16 %v4977
    %v6078 = vunpack.c.h.b16 %v4977
    %v6079 = vunpack.c.l.b16 %v4978
    %v6080 = vunpack.c.h.b16 %v4978
    %v6081 = vunpack.c.l.b16 %v4979
    %v6082 = vunpack.c.h.b16 %v4979
    %v6083 = vunpack.c.l.b16 %v4980
    %v6084 = vunpack.c.h.b16 %v4980
    %v6085 = vunpack.c.l.b16 %v4981
    %v6086 = vunpack.c.h.b16 %v4981
    %v6087 = vunpack.c.l.b16 %v4982
    %v6088 = vunpack.c.h.b16 %v4982
    %v6089 = vunpack.c.l.b16 %v4983
    %v6090 = vunpack.c.h.b16 %v4983
    %v6091 = vunpack.c.l.b16 %v4984
    %v6092 = vunpack.c.h.b16 %v4984
    %v6093 = vunpack.c.l.b16 %v4985
    %v6094 = vunpack.c.h.b16 %v4985
    %v6095 = vunpack.c.l.b16 %v4986
    %v6096 = vunpack.c.h.b16 %v4986
    %v6097 = vunpack.c.l.b16 %v4987
    %v6098 = vunpack.c.h.b16 %v4987
    %v6099 = vunpack.c.l.b16 %v4988
    %v6100 = vunpack.c.h.b16 %v4988
    %v6101 = vunpack.c.l.b16 %v4989
    %v6102 = vunpack.c.h.b16 %v4989
    %v6103 = vunpack.c.l.b16 %v4990
    %v6104 = vunpack.c.h.b16 %v4990
    %v6105 = vunpack.c.l.b16 %v4991
    %v6106 = vunpack.c.h.b16 %v4991
    %v6107 = vunpack.c.l.b16 %v4992
    %v6108 = vunpack.c.h.b16 %v4992
    %v6109 = vunpack.c.l.b16 %v4993
    %v6110 = vunpack.c.h.b16 %v4993
    %v6111 = vunpack.c.l.b16 %v4994
    %v6112 = vunpack.c.h.b16 %v4994
    %v6113 = vunpack.c.l.b16 %v4995
    %v6114 = vunpack.c.h.b16 %v4995
    %v6115 = vunpack.c.l.b16 %v4996
    %v6116 = vunpack.c.h.b16 %v4996
    %v6117 = vunpack.c.l.b16 %v4997
    %v6118 = vunpack.c.h.b16 %v4997
    %v6119 = vunpack.c.l.b16 %v4998
    %v6120 = vunpack.c.h.b16 %v4998
    %v6121 = vunpack.c.l.b16 %v4999
    %v6122 = vunpack.c.h.b16 %v4999
    %v6123 = vunpack.c.l.b16 %v5000
    %v6124 = vunpack.c.h.b16 %v5000
    %v6125 = vunpack.c.l.b16 %v5001
    %v6126 = vunpack.c.h.b16 %v5001
    %v6127 = vunpack.c.l.b16 %v5002
    %v6128 = vunpack.c.h.b16 %v5002
    %v6129 = vunpack.c.l.b16 %v5003
    %v6130 = vunpack.c.h.b16 %v5003
    %v6131 = vunpack.c.l.b16 %v5004
    %v6132 = vunpack.c.h.b16 %v5004
    %v6133 = vunpack.c.l.b16 %v5005
    %v6134 = vunpack.c.h.b16 %v5005
    %v6135 = vunpack.c.l.b16 %v5006
    %v6136 = vunpack.c.h.b16 %v5006
    %v6137 = vunpack.c.l.b16 %v5007
    %v6138 = vunpack.c.h.b16 %v5007
    %v6139 = vunpack.c.l.b16 %v5008
    %v6140 = vunpack.c.h.b16 %v5008
    %v6141 = vunpack.c.l.b16 %v5009
    %v6142 = vunpack.c.h.b16 %v5009
    %v6143 = vunpack.c.l.b16 %v5010
    %v6144 = vunpack.c.h.b16 %v5010
    %v6145 = vunpack.c.l.b16 %v5011
    %v6146 = vunpack.c.h.b16 %v5011
    %v6147 = vunpack.c.l.b16 %v5012
    %v6148 = vunpack.c.h.b16 %v5012
    %v6149 = vunpack.c.l.b16 %v5013
    %v6150 = vunpack.c.h.b16 %v5013
    %v6151 = vunpack.c.l.b16 %v5014
    %v6152 = vunpack.c.h.b16 %v5014
    %v6153 = vunpack.c.l.b16 %v5015
    %v6154 = vunpack.c.h.b16 %v5015
    %v6155 = vunpack.c.l.b16 %v5016
    %v6156 = vunpack.c.h.b16 %v5016
    %v6157 = vunpack.c.l.b16 %v5017
    %v6158 = vunpack.c.h.b16 %v5017
    %v6159 = vunpack.c.l.b16 %v5018
    %v6160 = vunpack.c.h.b16 %v5018
    %v6161 = vunpack.c.l.b16 %v5019
    %v6162 = vunpack.c.h.b16 %v5019
    %v6163 = vunpack.c.l.b16 %v5020
    %v6164 = vunpack.c.h.b16 %v5020
    %v6165 = vunpack.c.l.b16 %v5021
    %v6166 = vunpack.c.h.b16 %v5021
    %v6167 = vunpack.c.l.b16 %v5022
    %v6168 = vunpack.c.h.b16 %v5022
    %v6169 = vunpack.c.l.b16 %v5023
    %v6170 = vunpack.c.h.b16 %v5023
    %v6171 = vunpack.c.l.b16 %v5024
    %v6172 = vunpack.c.h.b16 %v5024
    %v6173 = vunpack.c.l.b16 %v5025
    %v6174 = vunpack.c.h.b16 %v5025
    %v6175 = vunpack.c.l.b16 %v5026
    %v6176 = vunpack.c.h.b16 %v5026
    %v6177 = vunpack.c.l.b16 %v5027
    %v6178 = vunpack.c.h.b16 %v5027
    %v6179 = vunpack.c.l.b16 %v5028
    %v6180 = vunpack.c.h.b16 %v5028
    %v6181 = vunpack.c.l.b16 %v5029
    %v6182 = vunpack.c.h.b16 %v5029
    %v6183 = vunpack.c.l.b16 %v5030
    %v6184 = vunpack.c.h.b16 %v5030
    %v6185 = vunpack.c.l.b16 %v5031
    %v6186 = vunpack.c.h.b16 %v5031
    %v6187 = vunpack.c.l.b16 %v5032
    %v6188 = vunpack.c.h.b16 %v5032
    %v6189 = vunpack.c.l.b16 %v5033
    %v6190 = vunpack.c.h.b16 %v5033
    %v6191 = vunpack.c.l.b16 %v5034
    %v6192 = vunpack.c.h.b16 %v5034
    %v6193 = vunpack.c.l.b16 %v5035
    %v6194 = vunpack.c.h.b16 %v5035
    %v6195 = vunpack.c.l.b16 %v5036
    %v6196 = vunpack.c.h.b16 %v5036
    %v6197 = vunpack.c.l.b16 %v5037
    %v6198 = vunpack.c.h.b16 %v5037
    %v6199 = vunpack.c.l.b16 %v5038
    %v6200 = vunpack.c.h.b16 %v5038
    %v6201 = vunpack.c.l.b16 %v5039
    %v6202 = vunpack.c.h.b16 %v5039
    %v6203 = vunpack.c.l.b16 %v5040
    %v6204 = vunpack.c.h.b16 %v5040
    %v6205 = vunpack.c.l.b16 %v5041
    %v6206 = vunpack.c.h.b16 %v5041
    %v6207 = vunpack.c.l.b16 %v5042
    %v6208 = vunpack.c.h.b16 %v5042
    %v6209 = vunpack.c.l.b16 %v5043
    %v6210 = vunpack.c.h.b16 %v5043
    %v6211 = vunpack.c.l.b16 %v5044
    %v6212 = vunpack.c.h.b16 %v5044
    %v6213 = vunpack.c.l.b16 %v5045
    %v6214 = vunpack.c.h.b16 %v5045
    %v6215 = vunpack.c.l.b16 %v5046
    %v6216 = vunpack.c.h.b16 %v5046
    %v6217 = vunpack.c.l.b16 %v5047
    %v6218 = vunpack.c.h.b16 %v5047
    %v6219 = vunpack.c.l.b16 %v5048
    %v6220 = vunpack.c.h.b16 %v5048
    %v6221 = vunpack.c.l.b16 %v5049
    %v6222 = vunpack.c.h.b16 %v5049
    %v6223 = vunpack.c.l.b16 %v5050
    %v6224 = vunpack.c.h.b16 %v5050
    %v6225 = vunpack.c.l.b16 %v5051
    %v6226 = vunpack.c.h.b16 %v5051
    %v6227 = vunpack.c.l.b16 %v5052
    %v6228 = vunpack.c.h.b16 %v5052
    %v6229 = vunpack.c.l.b16 %v5053
    %v6230 = vunpack.c.h.b16 %v5053
    %v6231 = vunpack.c.l.b16 %v5054
    %v6232 = vunpack.c.h.b16 %v5054
    %v6233 = vunpack.c.l.b16 %v5055
    %v6234 = vunpack.c.h.b16 %v5055
    %v6235 = vunpack.c.l.b16 %v5056
    %v6236 = vunpack.c.h.b16 %v5056
    %v6237 = vunpack.c.l.b16 %v5057
    %v6238 = vunpack.c.h.b16 %v5057
    %v6239 = vunpack.c.l.b16 %v5058
    %v6240 = vunpack.c.h.b16 %v5058
    %v6241 = vunpack.c.l.b16 %v5059
    %v6242 = vunpack.c.h.b16 %v5059
    %v6243 = vunpack.c.l.b16 %v5060
    %v6244 = vunpack.c.h.b16 %v5060
    %v6245 = vunpack.c.l.b16 %v5061
    %v6246 = vunpack.c.h.b16 %v5061
    %v6247 = vunpack.c.l.b16 %v5062
    %v6248 = vunpack.c.h.b16 %v5062
    %v6249 = vunpack.c.l.b16 %v5063
    %v6250 = vunpack.c.h.b16 %v5063
    %v6251 = vunpack.c.l.b16 %v5064
    %v6252 = vunpack.c.h.b16 %v5064
    %v6253 = vunpack.c.l.b16 %v5065
    %v6254 = vunpack.c.h.b16 %v5065
    %v6255 = vunpack.c.l.b16 %v5066
    %v6256 = vunpack.c.h.b16 %v5066
    %v6257 = vunpack.c.l.b16 %v5067
    %v6258 = vunpack.c.h.b16 %v5067
    %v6259 = vunpack.c.l.b16 %v5068
    %v6260 = vunpack.c.h.b16 %v5068
    %v6261 = vunpack.c.l.b16 %v5069
    %v6262 = vunpack.c.h.b16 %v5069
    %v6263 = vunpack.c.l.b16 %v5070
    %v6264 = vunpack.c.h.b16 %v5070
    %v6265 = vunpack.c.l.b16 %v5071
    %v6266 = vunpack.c.h.b16 %v5071
    %v6267 = vunpack.c.l.b16 %v5072
    %v6268 = vunpack.c.h.b16 %v5072
    %v6269 = vunpack.c.l.b16 %v5073
    %v6270 = vunpack.c.h.b16 %v5073
    %v6271 = vunpack.c.l.b16 %v5074
    %v6272 = vunpack.c.h.b16 %v5074
    %v6273 = vunpack.c.l.b16 %v5075
    %v6274 = vunpack.c.h.b16 %v5075
    %v6275 = vunpack.c.l.b16 %v5076
    %v6276 = vunpack.c.h.b16 %v5076
    %v6277 = vunpack.c.l.b16 %v5077
    %v6278 = vunpack.c.h.b16 %v5077
    %v6279 = vunpack.c.l.b16 %v5078
    %v6280 = vunpack.c.h.b16 %v5078
    %v6281 = vunpack.c.l.b16 %v5079
    %v6282 = vunpack.c.h.b16 %v5079
    %v6283 = vunpack.c.l.b16 %v5080
    %v6284 = vunpack.c.h.b16 %v5080
    %v6285 = vunpack.c.l.b16 %v5081
    %v6286 = vunpack.c.h.b16 %v5081
    %v6287 = vunpack.c.l.b16 %v5082
    %v6288 = vunpack.c.h.b16 %v5082
    %v6289 = vunpack.c.l.b16 %v5083
    %v6290 = vunpack.c.h.b16 %v5083
    %v6291 = vunpack.c.l.b16 %v5084
    %v6292 = vunpack.c.h.b16 %v5084
    %v6293 = vunpack.c.l.b16 %v5085
    %v6294 = vunpack.c.h.b16 %v5085
    %v6295 = vunpack.c.l.b16 %v5086
    %v6296 = vunpack.c.h.b16 %v5086
    %v6297 = vunpack.c.l.b16 %v5087
    %v6298 = vunpack.c.h.b16 %v5087
    %v6299 = vunpack.c.l.b16 %v5088
    %v6300 = vunpack.c.h.b16 %v5088
    %v6301 = vunpack.c.l.b16 %v5089
    %v6302 = vunpack.c.h.b16 %v5089
    %v6303 = vunpack.c.l.b16 %v5090
    %v6304 = vunpack.c.h.b16 %v5090
    %v6305 = vunpack.c.l.b16 %v5091
    %v6306 = vunpack.c.h.b16 %v5091
    %v6307 = vunpack.c.l.b16 %v5092
    %v6308 = vunpack.c.h.b16 %v5092
    %v6309 = vunpack.c.l.b16 %v5093
    %v6310 = vunpack.c.h.b16 %v5093
    %v6311 = vunpack.c.l.b16 %v5094
    %v6312 = vunpack.c.h.b16 %v5094
    %v6313 = vunpack.c.l.b16 %v5095
    %v6314 = vunpack.c.h.b16 %v5095
    %v6315 = vunpack.c.l.b16 %v5096
    %v6316 = vunpack.c.h.b16 %v5096
    %v6317 = vunpack.c.l.b16 %v5097
    %v6318 = vunpack.c.h.b16 %v5097
    %v6319 = vunpack.c.l.b16 %v5098
    %v6320 = vunpack.c.h.b16 %v5098
    %v6321 = vunpack.c.l.b16 %v5099
    %v6322 = vunpack.c.h.b16 %v5099
    %v6323 = vunpack.c.l.b16 %v5100
    %v6324 = vunpack.c.h.b16 %v5100
    %v6325 = vunpack.c.l.b16 %v5101
    %v6326 = vunpack.c.h.b16 %v5101
    %v6327 = vunpack.c.l.b16 %v5102
    %v6328 = vunpack.c.h.b16 %v5102
    %v6329 = vunpack.c.l.b16 %v5103
    %v6330 = vunpack.c.h.b16 %v5103
    %v6331 = vunpack.c.l.b16 %v5104
    %v6332 = vunpack.c.h.b16 %v5104
    %v6333 = vunpack.c.l.b16 %v5105
    %v6334 = vunpack.c.h.b16 %v5105
    %v6335 = vunpack.c.l.b16 %v5106
    %v6336 = vunpack.c.h.b16 %v5106
    %v6337 = vunpack.c.l.b16 %v5107
    %v6338 = vunpack.c.h.b16 %v5107
    %v6339 = vunpack.c.l.b16 %v5108
    %v6340 = vunpack.c.h.b16 %v5108
    %v6341 = vunpack.c.l.b16 %v5109
    %v6342 = vunpack.c.h.b16 %v5109
    %v6343 = vunpack.c.l.b16 %v5110
    %v6344 = vunpack.c.h.b16 %v5110
    %v6345 = vunpack.c.l.b16 %v5111
    %v6346 = vunpack.c.h.b16 %v5111
    %v6347 = vunpack.c.l.b16 %v5112
    %v6348 = vunpack.c.h.b16 %v5112
    %v6349 = vunpack.c.l.b16 %v5113
    %v6350 = vunpack.c.h.b16 %v5113
    %v6351 = vunpack.c.l.b16 %v5114
    %v6352 = vunpack.c.h.b16 %v5114
    %v6353 = vunpack.c.l.b16 %v5115
    %v6354 = vunpack.c.h.b16 %v5115
    %v6355 = vunpack.c.l.b16 %v5116
    %v6356 = vunpack.c.h.b16 %v5116
    %v6357 = vunpack.c.l.b16 %v5117
    %v6358 = vunpack.c.h.b16 %v5117
    %v6359 = vunpack.c.l.b16 %v5118
    %v6360 = vunpack.c.h.b16 %v5118
    %v6361 = vunpack.c.l.b16 %v5119
    %v6362 = vunpack.c.h.b16 %v5119
    %v6363 = vunpack.c.l.b16 %v5120
    %v6364 = vunpack.c.h.b16 %v5120
    %v6365 = vunpack.c.l.b16 %v5121
    %v6366 = vunpack.c.h.b16 %v5121
    %v6367 = vunpack.c.l.b16 %v5122
    %v6368 = vunpack.c.h.b16 %v5122
    %v6369 = vunpack.c.l.b16 %v5123
    %v6370 = vunpack.c.h.b16 %v5123
    %v6371 = vunpack.c.l.b16 %v5124
    %v6372 = vunpack.c.h.b16 %v5124
    %v6373 = vunpack.c.l.b16 %v5125
    %v6374 = vunpack.c.h.b16 %v5125
    %v6375 = vunpack.c.l.b16 %v5126
    %v6376 = vunpack.c.h.b16 %v5126
    %v6377 = vunpack.c.l.b16 %v5127
    %v6378 = vunpack.c.h.b16 %v5127
    %v6379 = vunpack.c.l.b16 %v5128
    %v6380 = vunpack.c.h.b16 %v5128
    %v6381 = vunpack.c.l.b16 %v5129
    %v6382 = vunpack.c.h.b16 %v5129
    %v6383 = vunpack.c.l.b16 %v5130
    %v6384 = vunpack.c.h.b16 %v5130
    %v6385 = vunpack.c.l.b16 %v5131
    %v6386 = vunpack.c.h.b16 %v5131
    %v6387 = vunpack.c.l.b16 %v5132
    %v6388 = vunpack.c.h.b16 %v5132
    %v6389 = vunpack.c.l.b16 %v5133
    %v6390 = vunpack.c.h.b16 %v5133
    %v6391 = vunpack.c.l.b16 %v5134
    %v6392 = vunpack.c.h.b16 %v5134
    %v6393 = vunpack.c.l.b16 %v5135
    %v6394 = vunpack.c.h.b16 %v5135
    %v6395 = vunpack.c.l.b16 %v5136
    %v6396 = vunpack.c.h.b16 %v5136
    %v6397 = vunpack.c.l.b16 %v5137
    %v6398 = vunpack.c.h.b16 %v5137
    %v6399 = vunpack.c.l.b16 %v5138
    %v6400 = vunpack.c.h.b16 %v5138
    %v6401 = vunpack.c.l.b16 %v5139
    %v6402 = vunpack.c.h.b16 %v5139
    %v6403 = vunpack.c.l.b16 %v5140
    %v6404 = vunpack.c.h.b16 %v5140
    %v6405 = vunpack.c.l.b16 %v5141
    %v6406 = vunpack.c.h.b16 %v5141
    %v6407 = vunpack.c.l.b16 %v5142
    %v6408 = vunpack.c.h.b16 %v5142
    %v6409 = vunpack.c.l.b16 %v5143
    %v6410 = vunpack.c.h.b16 %v5143
    %v6411 = vunpack.c.l.b16 %v5144
    %v6412 = vunpack.c.h.b16 %v5144
    %v6413 = vunpack.c.l.b16 %v5145
    %v6414 = vunpack.c.h.b16 %v5145
    %v6415 = vunpack.c.l.b16 %v5146
    %v6416 = vunpack.c.h.b16 %v5146
    %v6417 = vunpack.c.l.b16 %v5147
    %v6418 = vunpack.c.h.b16 %v5147
    %v6419 = vunpack.c.l.b16 %v5148
    %v6420 = vunpack.c.h.b16 %v5148
    %v6421 = vunpack.c.l.b16 %v5149
    %v6422 = vunpack.c.h.b16 %v5149
    %v6423 = vunpack.c.l.b16 %v5150
    %v6424 = vunpack.c.h.b16 %v5150
    %v6425 = vunpack.c.l.b16 %v5151
    %v6426 = vunpack.c.h.b16 %v5151
    %v6427 = vunpack.c.l.b16 %v5152
    %v6428 = vunpack.c.h.b16 %v5152
    %v6429 = vunpack.c.l.b16 %v5153
    %v6430 = vunpack.c.h.b16 %v5153
    %v6431 = vunpack.c.l.b16 %v5154
    %v6432 = vunpack.c.h.b16 %v5154
    %v6433 = vunpack.c.l.b16 %v5155
    %v6434 = vunpack.c.h.b16 %v5155
    %v6435 = vunpack.c.l.b16 %v5156
    %v6436 = vunpack.c.h.b16 %v5156
    %v6437 = vunpack.c.l.b16 %v5157
    %v6438 = vunpack.c.h.b16 %v5157
    %v6439 = vunpack.c.l.b16 %v5158
    %v6440 = vunpack.c.h.b16 %v5158
    %v6441 = vunpack.c.l.b16 %v5159
    %v6442 = vunpack.c.h.b16 %v5159
    %v6443 = vunpack.c.l.b16 %v5160
    %v6444 = vunpack.c.h.b16 %v5160
    %v6445 = vunpack.c.l.b16 %v5161
    %v6446 = vunpack.c.h.b16 %v5161
    %v6447 = vunpack.c.l.b16 %v5162
    %v6448 = vunpack.c.h.b16 %v5162
    %v6449 = vunpack.c.l.b16 %v5163
    %v6450 = vunpack.c.h.b16 %v5163
    %v6451 = vunpack.c.l.b16 %v5164
    %v6452 = vunpack.c.h.b16 %v5164
    %v6453 = vunpack.c.l.b16 %v5165
    %v6454 = vunpack.c.h.b16 %v5165
    %v6455 = vunpack.c.l.b16 %v5166
    %v6456 = vunpack.c.h.b16 %v5166
    %v6457 = vunpack.c.l.b16 %v5167
    %v6458 = vunpack.c.h.b16 %v5167
    %v6459 = vunpack.c.l.b16 %v5168
    %v6460 = vunpack.c.h.b16 %v5168
    %v6461 = vunpack.c.l.b16 %v5169
    %v6462 = vunpack.c.h.b16 %v5169
    %v6463 = vunpack.c.l.b16 %v5170
    %v6464 = vunpack.c.h.b16 %v5170
    %v6465 = vunpack.c.l.b16 %v5171
    %v6466 = vunpack.c.h.b16 %v5171
    %v6467 = vunpack.c.l.b16 %v5172
    %v6468 = vunpack.c.h.b16 %v5172
    %v6469 = vunpack.c.l.b16 %v5173
    %v6470 = vunpack.c.h.b16 %v5173
    %v6471 = vunpack.c.l.b16 %v5174
    %v6472 = vunpack.c.h.b16 %v5174
    %v6473 = vunpack.c.l.b16 %v5175
    %v6474 = vunpack.c.h.b16 %v5175
    %v6475 = vunpack.c.l.b16 %v5176
    %v6476 = vunpack.c.h.b16 %v5176
    %v6477 = vunpack.c.l.b16 %v5177
    %v6478 = vunpack.c.h.b16 %v5177
    %v6479 = vunpack.c.l.b16 %v5178
    %v6480 = vunpack.c.h.b16 %v5178
    %v6481 = vunpack.c.l.b16 %v5179
    %v6482 = vunpack.c.h.b16 %v5179
    %v6483 = vunpack.c.l.b16 %v5180
    %v6484 = vunpack.c.h.b16 %v5180
    %v6485 = vunpack.c.l.b16 %v5181
    %v6486 = vunpack.c.h.b16 %v5181
    %v6487 = vunpack.c.l.b16 %v5182
    %v6488 = vunpack.c.h.b16 %v5182
    %v6489 = vunpack.c.l.b16 %v5183
    %v6490 = vunpack.c.h.b16 %v5183
    %v6491 = vunpack.c.l.b16 %v5184
    %v6492 = vunpack.c.h.b16 %v5184
    %v6493 = vunpack.c.l.b16 %v5185
    %v6494 = vunpack.c.h.b16 %v5185
    %v6495 = vunpack.c.l.b16 %v5186
    %v6496 = vunpack.c.h.b16 %v5186
    %v6497 = vunpack.c.l.b16 %v5187
    %v6498 = vunpack.c.h.b16 %v5187
    %v6499 = vunpack.c.l.b16 %v5188
    %v6500 = vunpack.c.h.b16 %v5188
    %v6501 = vunpack.c.l.b16 %v5189
    %v6502 = vunpack.c.h.b16 %v5189
    %v6503 = vunpack.c.l.b16 %v5190
    %v6504 = vunpack.c.h.b16 %v5190
    %v6505 = vunpack.c.l.b16 %v5191
    %v6506 = vunpack.c.h.b16 %v5191
    %v6507 = vunpack.c.l.b16 %v5192
    %v6508 = vunpack.c.h.b16 %v5192
    %v6509 = vunpack.c.l.b16 %v5193
    %v6510 = vunpack.c.h.b16 %v5193
    %v6511 = vunpack.c.l.b16 %v5194
    %v6512 = vunpack.c.h.b16 %v5194
    %v6513 = vunpack.c.l.b16 %v5195
    %v6514 = vunpack.c.h.b16 %v5195
    %v6515 = vunpack.c.l.b16 %v5196
    %v6516 = vunpack.c.h.b16 %v5196
    %v6517 = vunpack.c.l.b16 %v5197
    %v6518 = vunpack.c.h.b16 %v5197
    %v6519 = vunpack.c.l.b16 %v5198
    %v6520 = vunpack.c.h.b16 %v5198
    %v6521 = vunpack.c.l.b16 %v5199
    %v6522 = vunpack.c.h.b16 %v5199
    %v6523 = vunpack.c.l.b16 %v5200
    %v6524 = vunpack.c.h.b16 %v5200
    %v6525 = vunpack.c.l.b16 %v5201
    %v6526 = vunpack.c.h.b16 %v5201
    %v6527 = vunpack.c.l.b16 %v5202
    %v6528 = vunpack.c.h.b16 %v5202
    %v6529 = vunpack.c.l.b16 %v5203
    %v6530 = vunpack.c.h.b16 %v5203
    %v6531 = vunpack.c.l.b16 %v5204
    %v6532 = vunpack.c.h.b16 %v5204
    %v6533 = vunpack.c.l.b16 %v5205
    %v6534 = vunpack.c.h.b16 %v5205
    %v6535 = vunpack.c.l.b16 %v5206
    %v6536 = vunpack.c.h.b16 %v5206
    %v6537 = vunpack.c.l.b16 %v5207
    %v6538 = vunpack.c.h.b16 %v5207
    %v6539 = vunpack.c.l.b16 %v5208
    %v6540 = vunpack.c.h.b16 %v5208
    %v6541 = vunpack.c.l.b16 %v5209
    %v6542 = vunpack.c.h.b16 %v5209
    %v6543 = vunpack.c.l.b16 %v5210
    %v6544 = vunpack.c.h.b16 %v5210
    %v6545 = vunpack.c.l.b16 %v5211
    %v6546 = vunpack.c.h.b16 %v5211
    %v6547 = vunpack.c.l.b16 %v5212
    %v6548 = vunpack.c.h.b16 %v5212
    %v6549 = vunpack.c.l.b16 %v5213
    %v6550 = vunpack.c.h.b16 %v5213
    %v6551 = vunpack.c.l.b16 %v5214
    %v6552 = vunpack.c.h.b16 %v5214
    %v6553 = vunpack.c.l.b16 %v5215
    %v6554 = vunpack.c.h.b16 %v5215
    %v6555 = vunpack.c.l.b16 %v5216
    %v6556 = vunpack.c.h.b16 %v5216
    %v6557 = vunpack.c.l.b16 %v5217
    %v6558 = vunpack.c.h.b16 %v5217
    %v6559 = vunpack.c.l.b16 %v5218
    %v6560 = vunpack.c.h.b16 %v5218
    %v6561 = vunpack.c.l.b16 %v5219
    %v6562 = vunpack.c.h.b16 %v5219
    %v6563 = vunpack.c.l.b16 %v5220
    %v6564 = vunpack.c.h.b16 %v5220
    %v6565 = vunpack.c.l.b16 %v5221
    %v6566 = vunpack.c.h.b16 %v5221
    %v6567 = vunpack.c.l.b16 %v5222
    %v6568 = vunpack.c.h.b16 %v5222
    %v6569 = vunpack.c.l.b16 %v5223
    %v6570 = vunpack.c.h.b16 %v5223
    %v6571 = vunpack.c.l.b16 %v5224
    %v6572 = vunpack.c.h.b16 %v5224
    %v6573 = vunpack.c.l.b16 %v5225
    %v6574 = vunpack.c.h.b16 %v5225
    %v6575 = vunpack.c.l.b16 %v5226
    %v6576 = vunpack.c.h.b16 %v5226
    %v6577 = vunpack.c.l.b16 %v5227
    %v6578 = vunpack.c.h.b16 %v5227
    %v6579 = vunpack.c.l.b16 %v5228
    %v6580 = vunpack.c.h.b16 %v5228
    %v6581 = vunpack.c.l.b16 %v5229
    %v6582 = vunpack.c.h.b16 %v5229
    %v6583 = vunpack.c.l.b16 %v5230
    %v6584 = vunpack.c.h.b16 %v5230
    %v6585 = vunpack.c.l.b16 %v5231
    %v6586 = vunpack.c.h.b16 %v5231
    %v6587 = vunpack.c.l.b16 %v5232
    %v6588 = vunpack.c.h.b16 %v5232
    %v6589 = vunpack.c.l.b16 %v5233
    %v6590 = vunpack.c.h.b16 %v5233
    %v6591 = vunpack.c.l.b16 %v5234
    %v6592 = vunpack.c.h.b16 %v5234
    %v6593 = vunpack.c.l.b16 %v5235
    %v6594 = vunpack.c.h.b16 %v5235
    %v6595 = vunpack.c.l.b16 %v5236
    %v6596 = vunpack.c.h.b16 %v5236
    %v6597 = vunpack.c.l.b16 %v5237
    %v6598 = vunpack.c.h.b16 %v5237
    %v6599 = vunpack.c.l.b16 %v5238
    %v6600 = vunpack.c.h.b16 %v5238
    %v6601 = vunpack.c.l.b16 %v5239
    %v6602 = vunpack.c.h.b16 %v5239
    %v6603 = vunpack.c.l.b16 %v5240
    %v6604 = vunpack.c.h.b16 %v5240
    %v6605 = vunpack.c.l.b16 %v5241
    %v6606 = vunpack.c.h.b16 %v5241
    %v6607 = vunpack.c.l.b16 %v5242
    %v6608 = vunpack.c.h.b16 %v5242
    %v6609 = vunpack.c.l.b16 %v5243
    %v6610 = vunpack.c.h.b16 %v5243
    %v6611 = vunpack.c.l.b16 %v5244
    %v6612 = vunpack.c.h.b16 %v5244
    %v6613 = vunpack.c.l.b16 %v5245
    %v6614 = vunpack.c.h.b16 %v5245
    %v6615 = vunpack.c.l.b16 %v5246
    %v6616 = vunpack.c.h.b16 %v5246
    %v6617 = vunpack.c.l.b16 %v5247
    %v6618 = vunpack.c.h.b16 %v5247
    %v6619 = vunpack.c.l.b16 %v5248
    %v6620 = vunpack.c.h.b16 %v5248
    %v6621 = vunpack.c.l.b16 %v5249
    %v6622 = vunpack.c.h.b16 %v5249
    %v6623 = vunpack.c.l.b16 %v5250
    %v6624 = vunpack.c.h.b16 %v5250
    %v6625 = vunpack.c.l.b16 %v5251
    %v6626 = vunpack.c.h.b16 %v5251
    %v6627 = vunpack.c.l.b16 %v5252
    %v6628 = vunpack.c.h.b16 %v5252
    %v6629 = vunpack.c.l.b16 %v5253
    %v6630 = vunpack.c.h.b16 %v5253
    %v6631 = vunpack.c.l.b16 %v5254
    %v6632 = vunpack.c.h.b16 %v5254
    %v6633 = vunpack.c.l.b16 %v5255
    %v6634 = vunpack.c.h.b16 %v5255
    %v6635 = vunpack.c.l.b16 %v5256
    %v6636 = vunpack.c.h.b16 %v5256
    %v6637 = vunpack.c.l.b16 %v5257
    %v6638 = vunpack.c.h.b16 %v5257
    %v6639 = vunpack.c.l.b16 %v5258
    %v6640 = vunpack.c.h.b16 %v5258
    %v6641 = vunpack.c.l.b16 %v5259
    %v6642 = vunpack.c.h.b16 %v5259
    %v6643 = vunpack.c.l.b16 %v5260
    %v6644 = vunpack.c.h.b16 %v5260
    %v6645 = vunpack.c.l.b16 %v5261
    %v6646 = vunpack.c.h.b16 %v5261
    %v6647 = vunpack.c.l.b16 %v5262
    %v6648 = vunpack.c.h.b16 %v5262
    %v6649 = vunpack.c.l.b16 %v5263
    %v6650 = vunpack.c.h.b16 %v5263
    %v6651 = vunpack.c.l.b16 %v5264
    %v6652 = vunpack.c.h.b16 %v5264
    %v6653 = vunpack.c.l.b16 %v5265
    %v6654 = vunpack.c.h.b16 %v5265
    %v6655 = vunpack.c.l.b16 %v5266
    %v6656 = vunpack.c.h.b16 %v5266
    %v6657 = vunpack.c.l.b16 %v5267
    %v6658 = vunpack.c.h.b16 %v5267
    %v6659 = vunpack.c.l.b16 %v5268
    %v6660 = vunpack.c.h.b16 %v5268
    %v6661 = vunpack.c.l.b16 %v5269
    %v6662 = vunpack.c.h.b16 %v5269
    %v6663 = vunpack.c.l.b16 %v5270
    %v6664 = vunpack.c.h.b16 %v5270
    %v6665 = vunpack.c.l.b16 %v5271
    %v6666 = vunpack.c.h.b16 %v5271
    %v6667 = vunpack.c.l.b16 %v5272
    %v6668 = vunpack.c.h.b16 %v5272
    %v6669 = vunpack.c.l.b16 %v5273
    %v6670 = vunpack.c.h.b16 %v5273
    %v6671 = vunpack.c.l.b16 %v5274
    %v6672 = vunpack.c.h.b16 %v5274
    %v6673 = vunpack.c.l.b16 %v5275
    %v6674 = vunpack.c.h.b16 %v5275
    %v6675 = vunpack.c.l.b16 %v5276
    %v6676 = vunpack.c.h.b16 %v5276
    %v6677 = vunpack.c.l.b16 %v5277
    %v6678 = vunpack.c.h.b16 %v5277
    %v6679 = vunpack.c.l.b16 %v5278
    %v6680 = vunpack.c.h.b16 %v5278
    %v6681 = vunpack.c.l.b16 %v5279
    %v6682 = vunpack.c.h.b16 %v5279
    %v6683 = vunpack.c.l.b16 %v5280
    %v6684 = vunpack.c.h.b16 %v5280
    %v6685 = vunpack.c.l.b16 %v5281
    %v6686 = vunpack.c.h.b16 %v5281
    %v6687 = vunpack.c.l.b16 %v5282
    %v6688 = vunpack.c.h.b16 %v5282
    %v6689 = vunpack.c.l.b16 %v5283
    %v6690 = vunpack.c.h.b16 %v5283
    %v6691 = vunpack.c.l.b16 %v5284
    %v6692 = vunpack.c.h.b16 %v5284
    %v6693 = vunpack.c.l.b16 %v5285
    %v6694 = vunpack.c.h.b16 %v5285
    %v6695 = vunpack.c.l.b16 %v5286
    %v6696 = vunpack.c.h.b16 %v5286
    %v6697 = vunpack.c.l.b16 %v5287
    %v6698 = vunpack.c.h.b16 %v5287
    %v6699 = vunpack.c.l.b16 %v5288
    %v6700 = vunpack.c.h.b16 %v5288
    %v6701 = vunpack.c.l.b16 %v5289
    %v6702 = vunpack.c.h.b16 %v5289
    %v6703 = vunpack.c.l.b16 %v5290
    %v6704 = vunpack.c.h.b16 %v5290
    %v6705 = vunpack.c.l.b16 %v5291
    %v6706 = vunpack.c.h.b16 %v5291
    %v6707 = vunpack.c.l.b16 %v5292
    %v6708 = vunpack.c.h.b16 %v5292
    %v6709 = vunpack.c.l.b16 %v5293
    %v6710 = vunpack.c.h.b16 %v5293
    %v6711 = vunpack.c.l.b16 %v5294
    %v6712 = vunpack.c.h.b16 %v5294
    %v6713 = vunpack.c.l.b16 %v5295
    %v6714 = vunpack.c.h.b16 %v5295
    %v6715 = vunpack.c.l.b16 %v5296
    %v6716 = vunpack.c.h.b16 %v5296
    %v6717 = vunpack.c.l.b16 %v5297
    %v6718 = vunpack.c.h.b16 %v5297
    %v6719 = vunpack.c.l.b16 %v5298
    %v6720 = vunpack.c.h.b16 %v5298
    %v6721 = vunpack.c.l.b16 %v5299
    %v6722 = vunpack.c.h.b16 %v5299
    %v6723 = vunpack.c.l.b16 %v5300
    %v6724 = vunpack.c.h.b16 %v5300
    %v6725 = vunpack.c.l.b16 %v5301
    %v6726 = vunpack.c.h.b16 %v5301
    %v6727 = vunpack.c.l.b16 %v5302
    %v6728 = vunpack.c.h.b16 %v5302
    %v6729 = vunpack.c.l.b16 %v5303
    %v6730 = vunpack.c.h.b16 %v5303
    %v6731 = vunpack.c.l.b16 %v5304
    %v6732 = vunpack.c.h.b16 %v5304
    %v6733 = vunpack.c.l.b16 %v5305
    %v6734 = vunpack.c.h.b16 %v5305
    %v6735 = vunpack.c.l.b16 %v5306
    %v6736 = vunpack.c.h.b16 %v5306
    %v6737 = vunpack.c.l.b16 %v5307
    %v6738 = vunpack.c.h.b16 %v5307
    %v6739 = vunpack.c.l.b16 %v5308
    %v6740 = vunpack.c.h.b16 %v5308
    %v6741 = vunpack.c.l.b16 %v5309
    %v6742 = vunpack.c.h.b16 %v5309
    %v6743 = vunpack.c.l.b16 %v5310
    %v6744 = vunpack.c.h.b16 %v5310
    %v6745 = vunpack.c.l.b16 %v5311
    %v6746 = vunpack.c.h.b16 %v5311
    %v6747 = vunpack.c.l.b16 %v5312
    %v6748 = vunpack.c.h.b16 %v5312
    %v6749 = vunpack.c.l.b16 %v5313
    %v6750 = vunpack.c.h.b16 %v5313
    %v6751 = vunpack.c.l.b16 %v5314
    %v6752 = vunpack.c.h.b16 %v5314
    %v6753 = vunpack.c.l.b16 %v5315
    %v6754 = vunpack.c.h.b16 %v5315
    %v6755 = vunpack.c.l.b16 %v5316
    %v6756 = vunpack.c.h.b16 %v5316
    %v6757 = vunpack.c.l.b16 %v5317
    %v6758 = vunpack.c.h.b16 %v5317
    %v6759 = vunpack.c.l.b16 %v5318
    %v6760 = vunpack.c.h.b16 %v5318
    %v6761 = vunpack.c.l.b16 %v5319
    %v6762 = vunpack.c.h.b16 %v5319
    %v6763 = vunpack.c.l.b16 %v5320
    %v6764 = vunpack.c.h.b16 %v5320
    %v6765 = vunpack.c.l.b16 %v5321
    %v6766 = vunpack.c.h.b16 %v5321
    %v6767 = vunpack.c.l.b16 %v5322
    %v6768 = vunpack.c.h.b16 %v5322
    %v6769 = vunpack.c.l.b16 %v5323
    %v6770 = vunpack.c.h.b16 %v5323
    %v6771 = vunpack.c.l.b16 %v5324
    %v6772 = vunpack.c.h.b16 %v5324
    %v6773 = vunpack.c.l.b16 %v5325
    %v6774 = vunpack.c.h.b16 %v5325
    %v6775 = vunpack.c.l.b16 %v5326
    %v6776 = vunpack.c.h.b16 %v5326
    %v6777 = vunpack.c.l.b16 %v5327
    %v6778 = vunpack.c.h.b16 %v5327
    %v6779 = vunpack.c.l.b16 %v5328
    %v6780 = vunpack.c.h.b16 %v5328
    %v6781 = vunpack.c.l.b16 %v5329
    %v6782 = vunpack.c.h.b16 %v5329
    %v6783 = vunpack.c.l.b16 %v5330
    %v6784 = vunpack.c.h.b16 %v5330
    %v6785 = vunpack.c.l.b16 %v5331
    %v6786 = vunpack.c.h.b16 %v5331
    %v6787 = vunpack.c.l.b16 %v5332
    %v6788 = vunpack.c.h.b16 %v5332
    %v6789 = vunpack.c.l.b16 %v5333
    %v6790 = vunpack.c.h.b16 %v5333
    %v6791 = vunpack.c.l.b16 %v5334
    %v6792 = vunpack.c.h.b16 %v5334
    %v6793 = vunpack.c.l.b16 %v5335
    %v6794 = vunpack.c.h.b16 %v5335
    %v6795 = vunpack.c.l.b16 %v5336
    %v6796 = vunpack.c.h.b16 %v5336
    %v6797 = vunpack.c.l.b16 %v5337
    %v6798 = vunpack.c.h.b16 %v5337
    %v6799 = vunpack.c.l.b16 %v5338
    %v6800 = vunpack.c.h.b16 %v5338
    %v6801 = vunpack.c.l.b16 %v5339
    %v6802 = vunpack.c.h.b16 %v5339
    %v6803 = vunpack.c.l.b16 %v5340
    %v6804 = vunpack.c.h.b16 %v5340
    %v6805 = vunpack.c.l.b16 %v5341
    %v6806 = vunpack.c.h.b16 %v5341
    %v6807 = vunpack.c.l.b16 %v5342
    %v6808 = vunpack.c.h.b16 %v5342
    %v6809 = vunpack.c.l.b16 %v5343
    %v6810 = vunpack.c.h.b16 %v5343
    %v6811 = vunpack.c.l.b16 %v5344
    %v6812 = vunpack.c.h.b16 %v5344
    %v6813 = vunpack.c.l.b16 %v5345
    %v6814 = vunpack.c.h.b16 %v5345
    %v6815 = vunpack.c.l.b16 %v5346
    %v6816 = vunpack.c.h.b16 %v5346
    %v6817 = vunpack.c.l.b16 %v5347
    %v6818 = vunpack.c.h.b16 %v5347
    %v6819 = vunpack.c.l.b16 %v5348
    %v6820 = vunpack.c.h.b16 %v5348
    %v6821 = vunpack.c.l.b16 %v5349
    %v6822 = vunpack.c.h.b16 %v5349
    %v6823 = vunpack.c.l.b16 %v5350
    %v6824 = vunpack.c.h.b16 %v5350
    %v6825 = vunpack.c.l.b16 %v5351
    %v6826 = vunpack.c.h.b16 %v5351
    %v6827 = vunpack.c.l.b16 %v5352
    %v6828 = vunpack.c.h.b16 %v5352
    %v6829 = vunpack.c.l.b16 %v5353
    %v6830 = vunpack.c.h.b16 %v5353
    %v6831 = vunpack.c.l.b16 %v5354
    %v6832 = vunpack.c.h.b16 %v5354
    %v6833 = vunpack.c.l.b16 %v5355
    %v6834 = vunpack.c.h.b16 %v5355
    %v6835 = vunpack.c.l.b16 %v5356
    %v6836 = vunpack.c.h.b16 %v5356
    %v6837 = vunpack.c.l.b16 %v5357
    %v6838 = vunpack.c.h.b16 %v5357
    %v6839 = vunpack.c.l.b16 %v5358
    %v6840 = vunpack.c.h.b16 %v5358
    %v6841 = vunpack.c.l.b16 %v5359
    %v6842 = vunpack.c.h.b16 %v5359
    %v6843 = vunpack.c.l.b16 %v5360
    %v6844 = vunpack.c.h.b16 %v5360
    %v6845 = vunpack.c.l.b16 %v5361
    %v6846 = vunpack.c.h.b16 %v5361
    %v6847 = vunpack.c.l.b16 %v5362
    %v6848 = vunpack.c.h.b16 %v5362
    %v6849 = vunpack.c.l.b16 %v5363
    %v6850 = vunpack.c.h.b16 %v5363
    %v6851 = vunpack.c.l.b16 %v5364
    %v6852 = vunpack.c.h.b16 %v5364
    %v6853 = vunpack.c.l.b16 %v5365
    %v6854 = vunpack.c.h.b16 %v5365
    %v6855 = vunpack.c.l.b16 %v5366
    %v6856 = vunpack.c.h.b16 %v5366
    %v6857 = vunpack.c.l.b16 %v5367
    %v6858 = vunpack.c.h.b16 %v5367
    %v6859 = vunpack.c.l.b16 %v5368
    %v6860 = vunpack.c.h.b16 %v5368
    %v6861 = vunpack.c.l.b16 %v5369
    %v6862 = vunpack.c.h.b16 %v5369
    %v6863 = vunpack.c.l.b16 %v5370
    %v6864 = vunpack.c.h.b16 %v5370
    %v6865 = vunpack.c.l.b16 %v5371
    %v6866 = vunpack.c.h.b16 %v5371
    %v6867 = vunpack.c.l.b16 %v5372
    %v6868 = vunpack.c.h.b16 %v5372
    %v6869 = vunpack.c.l.b16 %v5373
    %v6870 = vunpack.c.h.b16 %v5373
    %v6871 = vunpack.c.l.b16 %v5374
    %v6872 = vunpack.c.h.b16 %v5374
    %v6873 = vunpack.c.l.b16 %v5375
    %v6874 = vunpack.c.h.b16 %v5375
    %v6875 = vunpack.c.l.b16 %v5376
    %v6876 = vunpack.c.h.b16 %v5376
    %v6877 = vunpack.c.l.b16 %v5377
    %v6878 = vunpack.c.h.b16 %v5377
    %v6879 = vunpack.c.l.b16 %v5378
    %v6880 = vunpack.c.h.b16 %v5378
    %v6881 = vunpack.c.l.b16 %v5379
    %v6882 = vunpack.c.h.b16 %v5379
    %v6883 = vunpack.c.l.b16 %v5380
    %v6884 = vunpack.c.h.b16 %v5380
    %v6885 = vunpack.c.l.b16 %v5381
    %v6886 = vunpack.c.h.b16 %v5381
    %v6887 = vunpack.c.l.b16 %v5382
    %v6888 = vunpack.c.h.b16 %v5382
    %v6889 = vunpack.c.l.b16 %v5383
    %v6890 = vunpack.c.h.b16 %v5383
    %v6891 = vunpack.c.l.b16 %v5384
    %v6892 = vunpack.c.h.b16 %v5384
    %v6893 = vunpack.c.l.b16 %v5385
    %v6894 = vunpack.c.h.b16 %v5385
    %v6895 = vunpack.c.l.b16 %v5386
    %v6896 = vunpack.c.h.b16 %v5386
    %v6897 = vunpack.c.l.b16 %v5387
    %v6898 = vunpack.c.h.b16 %v5387
    %v6899 = vunpack.c.l.b16 %v5388
    %v6900 = vunpack.c.h.b16 %v5388
    %v6901 = vunpack.c.l.b16 %v5389
    %v6902 = vunpack.c.h.b16 %v5389
    %v6903 = vunpack.c.l.b16 %v5390
    %v6904 = vunpack.c.h.b16 %v5390
    %v6905 = vunpack.c.l.b16 %v5391
    %v6906 = vunpack.c.h.b16 %v5391
    %v6907 = vunpack.c.l.b16 %v5392
    %v6908 = vunpack.c.h.b16 %v5392
    %v6909 = vunpack.c.l.b16 %v5393
    %v6910 = vunpack.c.h.b16 %v5393
    %v6911 = vunpack.c.l.b16 %v5394
    %v6912 = vunpack.c.h.b16 %v5394
    %v6913 = vunpack.c.l.b16 %v5395
    %v6914 = vunpack.c.h.b16 %v5395
    %v6915 = vunpack.c.l.b16 %v5396
    %v6916 = vunpack.c.h.b16 %v5396
    %v6917 = vunpack.c.l.b16 %v5397
    %v6918 = vunpack.c.h.b16 %v5397
    %v6919 = vunpack.c.l.b16 %v5398
    %v6920 = vunpack.c.h.b16 %v5398
    %v6921 = vunpack.c.l.b16 %v5399
    %v6922 = vunpack.c.h.b16 %v5399
    %v6923 = vunpack.c.l.b16 %v5400
    %v6924 = vunpack.c.h.b16 %v5400
    %v6925 = vunpack.c.l.b16 %v5401
    %v6926 = vunpack.c.h.b16 %v5401
    %v6927 = vunpack.c.l.b16 %v5402
    %v6928 = vunpack.c.h.b16 %v5402
    %v6929 = vunpack.c.l.b16 %v5403
    %v6930 = vunpack.c.h.b16 %v5403
    %v6931 = vunpack.c.l.b16 %v5404
    %v6932 = vunpack.c.h.b16 %v5404
    %v6933 = vunpack.c.l.b16 %v5405
    %v6934 = vunpack.c.h.b16 %v5405
    %v6935 = vunpack.c.l.b16 %v5406
    %v6936 = vunpack.c.h.b16 %v5406
    %v6937 = vunpack.c.l.b16 %v5407
    %v6938 = vunpack.c.h.b16 %v5407
    %v6939 = vunpack.c.l.b16 %v5408
    %v6940 = vunpack.c.h.b16 %v5408
    %v6941 = vunpack.c.l.b16 %v5409
    %v6942 = vunpack.c.h.b16 %v5409
    %v6943 = vunpack.c.l.b16 %v5410
    %v6944 = vunpack.c.h.b16 %v5410
    %v6945 = vunpack.c.l.b16 %v5411
    %v6946 = vunpack.c.h.b16 %v5411
    %v6947 = vunpack.c.l.b16 %v5412
    %v6948 = vunpack.c.h.b16 %v5412
    %v6949 = vunpack.c.l.b16 %v5413
    %v6950 = vunpack.c.h.b16 %v5413
    %v6951 = vunpack.c.l.b16 %v5414
    %v6952 = vunpack.c.h.b16 %v5414
    %v6953 = vunpack.c.l.b16 %v5415
    %v6954 = vunpack.c.h.b16 %v5415
    %v6955 = vunpack.c.l.b16 %v5416
    %v6956 = vunpack.c.h.b16 %v5416
    %v6957 = vunpack.c.l.b16 %v5417
    %v6958 = vunpack.c.h.b16 %v5417
    %v6959 = vunpack.c.l.b16 %v5418
    %v6960 = vunpack.c.h.b16 %v5418
    %v6961 = vunpack.c.l.b16 %v5419
    %v6962 = vunpack.c.h.b16 %v5419
    %v6963 = vunpack.c.l.b16 %v5420
    %v6964 = vunpack.c.h.b16 %v5420
    %v6965 = vunpack.c.l.b16 %v5421
    %v6966 = vunpack.c.h.b16 %v5421
    %v6967 = vunpack.c.l.b16 %v5422
    %v6968 = vunpack.c.h.b16 %v5422
    %v6969 = vunpack.c.l.b16 %v5423
    %v6970 = vunpack.c.h.b16 %v5423
    %v6971 = vunpack.c.l.b16 %v5424
    %v6972 = vunpack.c.h.b16 %v5424
    %v6973 = vunpack.c.l.b16 %v5425
    %v6974 = vunpack.c.h.b16 %v5425
    %v6975 = vunpack.c.l.b16 %v5426
    %v6976 = vunpack.c.h.b16 %v5426
    %v6977 = vunpack.c.l.b16 %v5427
    %v6978 = vunpack.c.h.b16 %v5427
    %v6979 = vunpack.c.l.b16 %v5428
    %v6980 = vunpack.c.h.b16 %v5428
    %v6981 = vunpack.c.l.b16 %v5429
    %v6982 = vunpack.c.h.b16 %v5429
    %v6983 = vunpack.c.l.b16 %v5430
    %v6984 = vunpack.c.h.b16 %v5430
    %v6985 = vpack.c.b16 %v5969, %v5961
    %v6986 = vpack.c.b16 %v5970, %v5962
    %v6987 = vpack.c.b16 %v5971, %v5963
    %v6988 = vpack.c.b16 %v5972, %v5964
    %v6989 = vpack.c.b16 %v5973, %v5965
    %v6990 = vpack.c.b16 %v5974, %v5966
    %v6991 = vpack.c.b16 %v5975, %v5967
    %v6992 = vpack.c.b16 %v5976, %v5968
    %v6993 = vpack.c.b16 %v5985, %v5977
    %v6994 = vpack.c.b16 %v5986, %v5978
    %v6995 = vpack.c.b16 %v5987, %v5979
    %v6996 = vpack.c.b16 %v5988, %v5980
    %v6997 = vpack.c.b16 %v5989, %v5981
    %v6998 = vpack.c.b16 %v5990, %v5982
    %v6999 = vpack.c.b16 %v5991, %v5983
    %v7000 = vpack.c.b16 %v5992, %v5984
    %v7001 = vpack.c.b16 %v6001, %v5993
    %v7002 = vpack.c.b16 %v6002, %v5994
    %v7003 = vpack.c.b16 %v6003, %v5995
    %v7004 = vpack.c.b16 %v6004, %v5996
    %v7005 = vpack.c.b16 %v6005, %v5997
    %v7006 = vpack.c.b16 %v6006, %v5998
    %v7007 = vpack.c.b16 %v6007, %v5999
    %v7008 = vpack.c.b16 %v6008, %v6000
    %v7009 = vpack.c.b16 %v6017, %v6009
    %v7010 = vpack.c.b16 %v6018, %v6010
    %v7011 = vpack.c.b16 %v6019, %v6011
    %v7012 = vpack.c.b16 %v6020, %v6012
    %v7013 = vpack.c.b16 %v6021, %v6013
    %v7014 = vpack.c.b16 %v6022, %v6014
    %v7015 = vpack.c.b16 %v6023, %v6015
    %v7016 = vpack.c.b16 %v6024, %v6016
    %v7017 = vpack.c.b16 %v6033, %v6025
    %v7018 = vpack.c.b16 %v6034, %v6026
    %v7019 = vpack.c.b16 %v6035, %v6027
    %v7020 = vpack.c.b16 %v6036, %v6028
    %v7021 = vpack.c.b16 %v6037, %v6029
    %v7022 = vpack.c.b16 %v6038, %v6030
    %v7023 = vpack.c.b16 %v6039, %v6031
    %v7024 = vpack.c.b16 %v6040, %v6032
    %v7025 = vpack.c.b16 %v6049, %v6041
    %v7026 = vpack.c.b16 %v6050, %v6042
    %v7027 = vpack.c.b16 %v6051, %v6043
    %v7028 = vpack.c.b16 %v6052, %v6044
    %v7029 = vpack.c.b16 %v6053, %v6045
    %v7030 = vpack.c.b16 %v6054, %v6046
    %v7031 = vpack.c.b16 %v6055, %v6047
    %v7032 = vpack.c.b16 %v6056, %v6048
    %v7033 = vpack.c.b16 %v6065, %v6057
    %v7034 = vpack.c.b16 %v6066, %v6058
    %v7035 = vpack.c.b16 %v6067, %v6059
    %v7036 = vpack.c.b16 %v6068, %v6060
    %v7037 = vpack.c.b16 %v6069, %v6061
    %v7038 = vpack.c.b16 %v6070, %v6062
    %v7039 = vpack.c.b16 %v6071, %v6063
    %v7040 = vpack.c.b16 %v6072, %v6064
    %v7041 = vpack.c.b16 %v6081, %v6073
    %v7042 = vpack.c.b16 %v6082, %v6074
    %v7043 = vpack.c.b16 %v6083, %v6075
    %v7044 = vpack.c.b16 %v6084, %v6076
    %v7045 = vpack.c.b16 %v6085, %v6077
    %v7046 = vpack.c.b16 %v6086, %v6078
    %v7047 = vpack.c.b16 %v6087, %v6079
    %v7048 = vpack.c.b16 %v6088, %v6080
    %v7049 = vpack.c.b16 %v6097, %v6089
    %v7050 = vpack.c.b16 %v6098, %v6090
    %v7051 = vpack.c.b16 %v6099, %v6091
    %v7052 = vpack.c.b16 %v6100, %v6092
    %v7053 = vpack.c.b16 %v6101, %v6093
    %v7054 = vpack.c.b16 %v6102, %v6094
    %v7055 = vpack.c.b16 %v6103, %v6095
    %v7056 = vpack.c.b16 %v6104, %v6096
    %v7057 = vpack.c.b16 %v6113, %v6105
    %v7058 = vpack.c.b16 %v6114, %v6106
    %v7059 = vpack.c.b16 %v6115, %v6107
    %v7060 = vpack.c.b16 %v6116, %v6108
    %v7061 = vpack.c.b16 %v6117, %v6109
    %v7062 = vpack.c.b16 %v6118, %v6110
    %v7063 = vpack.c.b16 %v6119, %v6111
    %v7064 = vpack.c.b16 %v6120, %v6112
    %v7065 = vpack.c.b16 %v6129, %v6121
    %v7066 = vpack.c.b16 %v6130, %v6122
    %v7067 = vpack.c.b16 %v6131, %v6123
    %v7068 = vpack.c.b16 %v6132, %v6124
    %v7069 = vpack.c.b16 %v6133, %v6125
    %v7070 = vpack.c.b16 %v6134, %v6126
    %v7071 = vpack.c.b16 %v6135, %v6127
    %v7072 = vpack.c.b16 %v6136, %v6128
    %v7073 = vpack.c.b16 %v6145, %v6137
    %v7074 = vpack.c.b16 %v6146, %v6138
    %v7075 = vpack.c.b16 %v6147, %v6139
    %v7076 = vpack.c.b16 %v6148, %v6140
    %v7077 = vpack.c.b16 %v6149, %v6141
    %v7078 = vpack.c.b16 %v6150, %v6142
    %v7079 = vpack.c.b16 %v6151, %v6143
    %v7080 = vpack.c.b16 %v6152, %v6144
    %v7081 = vpack.c.b16 %v6161, %v6153
    %v7082 = vpack.c.b16 %v6162, %v6154
    %v7083 = vpack.c.b16 %v6163, %v6155
    %v7084 = vpack.c.b16 %v6164, %v6156
    %v7085 = vpack.c.b16 %v6165, %v6157
    %v7086 = vpack.c.b16 %v6166, %v6158
    %v7087 = vpack.c.b16 %v6167, %v6159
    %v7088 = vpack.c.b16 %v6168, %v6160
    %v7089 = vpack.c.b16 %v6177, %v6169
    %v7090 = vpack.c.b16 %v6178, %v6170
    %v7091 = vpack.c.b16 %v6179, %v6171
    %v7092 = vpack.c.b16 %v6180, %v6172
    %v7093 = vpack.c.b16 %v6181, %v6173
    %v7094 = vpack.c.b16 %v6182, %v6174
    %v7095 = vpack.c.b16 %v6183, %v6175
    %v7096 = vpack.c.b16 %v6184, %v6176
    %v7097 = vpack.c.b16 %v6193, %v6185
    %v7098 = vpack.c.b16 %v6194, %v6186
    %v7099 = vpack.c.b16 %v6195, %v6187
    %v7100 = vpack.c.b16 %v6196, %v6188
    %v7101 = vpack.c.b16 %v6197, %v6189
    %v7102 = vpack.c.b16 %v6198, %v6190
    %v7103 = vpack.c.b16 %v6199, %v6191
    %v7104 = vpack.c.b16 %v6200, %v6192
    %v7105 = vpack.c.b16 %v6209, %v6201
    %v7106 = vpack.c.b16 %v6210, %v6202
    %v7107 = vpack.c.b16 %v6211, %v6203
    %v7108 = vpack.c.b16 %v6212, %v6204
    %v7109 = vpack.c.b16 %v6213, %v6205
    %v7110 = vpack.c.b16 %v6214, %v6206
    %v7111 = vpack.c.b16 %v6215, %v6207
    %v7112 = vpack.c.b16 %v6216, %v6208
    %v7113 = vpack.c.b16 %v6225, %v6217
    %v7114 = vpack.c.b16 %v6226, %v6218
    %v7115 = vpack.c.b16 %v6227, %v6219
    %v7116 = vpack.c.b16 %v6228, %v6220
    %v7117 = vpack.c.b16 %v6229, %v6221
    %v7118 = vpack.c.b16 %v6230, %v6222
    %v7119 = vpack.c.b16 %v6231, %v6223
    %v7120 = vpack.c.b16 %v6232, %v6224
    %v7121 = vpack.c.b16 %v6241, %v6233
    %v7122 = vpack.c.b16 %v6242, %v6234
    %v7123 = vpack.c.b16 %v6243, %v6235
    %v7124 = vpack.c.b16 %v6244, %v6236
    %v7125 = vpack.c.b16 %v6245, %v6237
    %v7126 = vpack.c.b16 %v6246, %v6238
    %v7127 = vpack.c.b16 %v6247, %v6239
    %v7128 = vpack.c.b16 %v6248, %v6240
    %v7129 = vpack.c.b16 %v6257, %v6249
    %v7130 = vpack.c.b16 %v6258, %v6250
    %v7131 = vpack.c.b16 %v6259, %v6251
    %v7132 = vpack.c.b16 %v6260, %v6252
    %v7133 = vpack.c.b16 %v6261, %v6253
    %v7134 = vpack.c.b16 %v6262, %v6254
    %v7135 = vpack.c.b16 %v6263, %v6255
    %v7136 = vpack.c.b16 %v6264, %v6256
    %v7137 = vpack.c.b16 %v6273, %v6265
    %v7138 = vpack.c.b16 %v6274, %v6266
    %v7139 = vpack.c.b16 %v6275, %v6267
    %v7140 = vpack.c.b16 %v6276, %v6268
    %v7141 = vpack.c.b16 %v6277, %v6269
    %v7142 = vpack.c.b16 %v6278, %v6270
    %v7143 = vpack.c.b16 %v6279, %v6271
    %v7144 = vpack.c.b16 %v6280, %v6272
    %v7145 = vpack.c.b16 %v6289, %v6281
    %v7146 = vpack.c.b16 %v6290, %v6282
    %v7147 = vpack.c.b16 %v6291, %v6283
    %v7148 = vpack.c.b16 %v6292, %v6284
    %v7149 = vpack.c.b16 %v6293, %v6285
    %v7150 = vpack.c.b16 %v6294, %v6286
    %v7151 = vpack.c.b16 %v6295, %v6287
    %v7152 = vpack.c.b16 %v6296, %v6288
    %v7153 = vpack.c.b16 %v6305, %v6297
    %v7154 = vpack.c.b16 %v6306, %v6298
    %v7155 = vpack.c.b16 %v6307, %v6299
    %v7156 = vpack.c.b16 %v6308, %v6300
    %v7157 = vpack.c.b16 %v6309, %v6301
    %v7158 = vpack.c.b16 %v6310, %v6302
    %v7159 = vpack.c.b16 %v6311, %v6303
    %v7160 = vpack.c.b16 %v6312, %v6304
    %v7161 = vpack.c.b16 %v6321, %v6313
    %v7162 = vpack.c.b16 %v6322, %v6314
    %v7163 = vpack.c.b16 %v6323, %v6315
    %v7164 = vpack.c.b16 %v6324, %v6316
    %v7165 = vpack.c.b16 %v6325, %v6317
    %v7166 = vpack.c.b16 %v6326, %v6318
    %v7167 = vpack.c.b16 %v6327, %v6319
    %v7168 = vpack.c.b16 %v6328, %v6320
    %v7169 = vpack.c.b16 %v6337, %v6329
    %v7170 = vpack.c.b16 %v6338, %v6330
    %v7171 = vpack.c.b16 %v6339, %v6331
    %v7172 = vpack.c.b16 %v6340, %v6332
    %v7173 = vpack.c.b16 %v6341, %v6333
    %v7174 = vpack.c.b16 %v6342, %v6334
    %v7175 = vpack.c.b16 %v6343, %v6335
    %v7176 = vpack.c.b16 %v6344, %v6336
    %v7177 = vpack.c.b16 %v6353, %v6345
    %v7178 = vpack.c.b16 %v6354, %v6346
    %v7179 = vpack.c.b16 %v6355, %v6347
    %v7180 = vpack.c.b16 %v6356, %v6348
    %v7181 = vpack.c.b16 %v6357, %v6349
    %v7182 = vpack.c.b16 %v6358, %v6350
    %v7183 = vpack.c.b16 %v6359, %v6351
    %v7184 = vpack.c.b16 %v6360, %v6352
    %v7185 = vpack.c.b16 %v6369, %v6361
    %v7186 = vpack.c.b16 %v6370, %v6362
    %v7187 = vpack.c.b16 %v6371, %v6363
    %v7188 = vpack.c.b16 %v6372, %v6364
    %v7189 = vpack.c.b16 %v6373, %v6365
    %v7190 = vpack.c.b16 %v6374, %v6366
    %v7191 = vpack.c.b16 %v6375, %v6367
    %v7192 = vpack.c.b16 %v6376, %v6368
    %v7193 = vpack.c.b16 %v6385, %v6377
    %v7194 = vpack.c.b16 %v6386, %v6378
    %v7195 = vpack.c.b16 %v6387, %v6379
    %v7196 = vpack.c.b16 %v6388, %v6380
    %v7197 = vpack.c.b16 %v6389, %v6381
    %v7198 = vpack.c.b16 %v6390, %v6382
    %v7199 = vpack.c.b16 %v6391, %v6383
    %v7200 = vpack.c.b16 %v6392, %v6384
    %v7201 = vpack.c.b16 %v6401, %v6393
    %v7202 = vpack.c.b16 %v6402, %v6394
    %v7203 = vpack.c.b16 %v6403, %v6395
    %v7204 = vpack.c.b16 %v6404, %v6396
    %v7205 = vpack.c.b16 %v6405, %v6397
    %v7206 = vpack.c.b16 %v6406, %v6398
    %v7207 = vpack.c.b16 %v6407, %v6399
    %v7208 = vpack.c.b16 %v6408, %v6400
    %v7209 = vpack.c.b16 %v6417, %v6409
    %v7210 = vpack.c.b16 %v6418, %v6410
    %v7211 = vpack.c.b16 %v6419, %v6411
    %v7212 = vpack.c.b16 %v6420, %v6412
    %v7213 = vpack.c.b16 %v6421, %v6413
    %v7214 = vpack.c.b16 %v6422, %v6414
    %v7215 = vpack.c.b16 %v6423, %v6415
    %v7216 = vpack.c.b16 %v6424, %v6416
    %v7217 = vpack.c.b16 %v6433, %v6425
    %v7218 = vpack.c.b16 %v6434, %v6426
    %v7219 = vpack.c.b16 %v6435, %v6427
    %v7220 = vpack.c.b16 %v6436, %v6428
    %v7221 = vpack.c.b16 %v6437, %v6429
    %v7222 = vpack.c.b16 %v6438, %v6430
    %v7223 = vpack.c.b16 %v6439, %v6431
    %v7224 = vpack.c.b16 %v6440, %v6432
    %v7225 = vpack.c.b16 %v6449, %v6441
    %v7226 = vpack.c.b16 %v6450, %v6442
    %v7227 = vpack.c.b16 %v6451, %v6443
    %v7228 = vpack.c.b16 %v6452, %v6444
    %v7229 = vpack.c.b16 %v6453, %v6445
    %v7230 = vpack.c.b16 %v6454, %v6446
    %v7231 = vpack.c.b16 %v6455, %v6447
    %v7232 = vpack.c.b16 %v6456, %v6448
    %v7233 = vpack.c.b16 %v6465, %v6457
    %v7234 = vpack.c.b16 %v6466, %v6458
    %v7235 = vpack.c.b16 %v6467, %v6459
    %v7236 = vpack.c.b16 %v6468, %v6460
    %v7237 = vpack.c.b16 %v6469, %v6461
    %v7238 = vpack.c.b16 %v6470, %v6462
    %v7239 = vpack.c.b16 %v6471, %v6463
    %v7240 = vpack.c.b16 %v6472, %v6464
    %v7241 = vpack.c.b16 %v6481, %v6473
    %v7242 = vpack.c.b16 %v6482, %v6474
    %v7243 = vpack.c.b16 %v6483, %v6475
    %v7244 = vpack.c.b16 %v6484, %v6476
    %v7245 = vpack.c.b16 %v6485, %v6477
    %v7246 = vpack.c.b16 %v6486, %v6478
    %v7247 = vpack.c.b16 %v6487, %v6479
    %v7248 = vpack.c.b16 %v6488, %v6480
    %v7249 = vpack.c.b16 %v6497, %v6489
    %v7250 = vpack.c.b16 %v6498, %v6490
    %v7251 = vpack.c.b16 %v6499, %v6491
    %v7252 = vpack.c.b16 %v6500, %v6492
    %v7253 = vpack.c.b16 %v6501, %v6493
    %v7254 = vpack.c.b16 %v6502, %v6494
    %v7255 = vpack.c.b16 %v6503, %v6495
    %v7256 = vpack.c.b16 %v6504, %v6496
    %v7257 = vpack.c.b16 %v6513, %v6505
    %v7258 = vpack.c.b16 %v6514, %v6506
    %v7259 = vpack.c.b16 %v6515, %v6507
    %v7260 = vpack.c.b16 %v6516, %v6508
    %v7261 = vpack.c.b16 %v6517, %v6509
    %v7262 = vpack.c.b16 %v6518, %v6510
    %v7263 = vpack.c.b16 %v6519, %v6511
    %v7264 = vpack.c.b16 %v6520, %v6512
    %v7265 = vpack.c.b16 %v6529, %v6521
    %v7266 = vpack.c.b16 %v6530, %v6522
    %v7267 = vpack.c.b16 %v6531, %v6523
    %v7268 = vpack.c.b16 %v6532, %v6524
    %v7269 = vpack.c.b16 %v6533, %v6525
    %v7270 = vpack.c.b16 %v6534, %v6526
    %v7271 = vpack.c.b16 %v6535, %v6527
    %v7272 = vpack.c.b16 %v6536, %v6528
    %v7273 = vpack.c.b16 %v6545, %v6537
    %v7274 = vpack.c.b16 %v6546, %v6538
    %v7275 = vpack.c.b16 %v6547, %v6539
    %v7276 = vpack.c.b16 %v6548, %v6540
    %v7277 = vpack.c.b16 %v6549, %v6541
    %v7278 = vpack.c.b16 %v6550, %v6542
    %v7279 = vpack.c.b16 %v6551, %v6543
    %v7280 = vpack.c.b16 %v6552, %v6544
    %v7281 = vpack.c.b16 %v6561, %v6553
    %v7282 = vpack.c.b16 %v6562, %v6554
    %v7283 = vpack.c.b16 %v6563, %v6555
    %v7284 = vpack.c.b16 %v6564, %v6556
    %v7285 = vpack.c.b16 %v6565, %v6557
    %v7286 = vpack.c.b16 %v6566, %v6558
    %v7287 = vpack.c.b16 %v6567, %v6559
    %v7288 = vpack.c.b16 %v6568, %v6560
    %v7289 = vpack.c.b16 %v6577, %v6569
    %v7290 = vpack.c.b16 %v6578, %v6570
    %v7291 = vpack.c.b16 %v6579, %v6571
    %v7292 = vpack.c.b16 %v6580, %v6572
    %v7293 = vpack.c.b16 %v6581, %v6573
    %v7294 = vpack.c.b16 %v6582, %v6574
    %v7295 = vpack.c.b16 %v6583, %v6575
    %v7296 = vpack.c.b16 %v6584, %v6576
    %v7297 = vpack.c.b16 %v6593, %v6585
    %v7298 = vpack.c.b16 %v6594, %v6586
    %v7299 = vpack.c.b16 %v6595, %v6587
    %v7300 = vpack.c.b16 %v6596, %v6588
    %v7301 = vpack.c.b16 %v6597, %v6589
    %v7302 = vpack.c.b16 %v6598, %v6590
    %v7303 = vpack.c.b16 %v6599, %v6591
    %v7304 = vpack.c.b16 %v6600, %v6592
    %v7305 = vpack.c.b16 %v6609, %v6601
    %v7306 = vpack.c.b16 %v6610, %v6602
    %v7307 = vpack.c.b16 %v6611, %v6603
    %v7308 = vpack.c.b16 %v6612, %v6604
    %v7309 = vpack.c.b16 %v6613, %v6605
    %v7310 = vpack.c.b16 %v6614, %v6606
    %v7311 = vpack.c.b16 %v6615, %v6607
    %v7312 = vpack.c.b16 %v6616, %v6608
    %v7313 = vpack.c.b16 %v6625, %v6617
    %v7314 = vpack.c.b16 %v6626, %v6618
    %v7315 = vpack.c.b16 %v6627, %v6619
    %v7316 = vpack.c.b16 %v6628, %v6620
    %v7317 = vpack.c.b16 %v6629, %v6621
    %v7318 = vpack.c.b16 %v6630, %v6622
    %v7319 = vpack.c.b16 %v6631, %v6623
    %v7320 = vpack.c.b16 %v6632, %v6624
    %v7321 = vpack.c.b16 %v6641, %v6633
    %v7322 = vpack.c.b16 %v6642, %v6634
    %v7323 = vpack.c.b16 %v6643, %v6635
    %v7324 = vpack.c.b16 %v6644, %v6636
    %v7325 = vpack.c.b16 %v6645, %v6637
    %v7326 = vpack.c.b16 %v6646, %v6638
    %v7327 = vpack.c.b16 %v6647, %v6639
    %v7328 = vpack.c.b16 %v6648, %v6640
    %v7329 = vpack.c.b16 %v6657, %v6649
    %v7330 = vpack.c.b16 %v6658, %v6650
    %v7331 = vpack.c.b16 %v6659, %v6651
    %v7332 = vpack.c.b16 %v6660, %v6652
    %v7333 = vpack.c.b16 %v6661, %v6653
    %v7334 = vpack.c.b16 %v6662, %v6654
    %v7335 = vpack.c.b16 %v6663, %v6655
    %v7336 = vpack.c.b16 %v6664, %v6656
    %v7337 = vpack.c.b16 %v6673, %v6665
    %v7338 = vpack.c.b16 %v6674, %v6666
    %v7339 = vpack.c.b16 %v6675, %v6667
    %v7340 = vpack.c.b16 %v6676, %v6668
    %v7341 = vpack.c.b16 %v6677, %v6669
    %v7342 = vpack.c.b16 %v6678, %v6670
    %v7343 = vpack.c.b16 %v6679, %v6671
    %v7344 = vpack.c.b16 %v6680, %v6672
    %v7345 = vpack.c.b16 %v6689, %v6681
    %v7346 = vpack.c.b16 %v6690, %v6682
    %v7347 = vpack.c.b16 %v6691, %v6683
    %v7348 = vpack.c.b16 %v6692, %v6684
    %v7349 = vpack.c.b16 %v6693, %v6685
    %v7350 = vpack.c.b16 %v6694, %v6686
    %v7351 = vpack.c.b16 %v6695, %v6687
    %v7352 = vpack.c.b16 %v6696, %v6688
    %v7353 = vpack.c.b16 %v6705, %v6697
    %v7354 = vpack.c.b16 %v6706, %v6698
    %v7355 = vpack.c.b16 %v6707, %v6699
    %v7356 = vpack.c.b16 %v6708, %v6700
    %v7357 = vpack.c.b16 %v6709, %v6701
    %v7358 = vpack.c.b16 %v6710, %v6702
    %v7359 = vpack.c.b16 %v6711, %v6703
    %v7360 = vpack.c.b16 %v6712, %v6704
    %v7361 = vpack.c.b16 %v6721, %v6713
    %v7362 = vpack.c.b16 %v6722, %v6714
    %v7363 = vpack.c.b16 %v6723, %v6715
    %v7364 = vpack.c.b16 %v6724, %v6716
    %v7365 = vpack.c.b16 %v6725, %v6717
    %v7366 = vpack.c.b16 %v6726, %v6718
    %v7367 = vpack.c.b16 %v6727, %v6719
    %v7368 = vpack.c.b16 %v6728, %v6720
    %v7369 = vpack.c.b16 %v6737, %v6729
    %v7370 = vpack.c.b16 %v6738, %v6730
    %v7371 = vpack.c.b16 %v6739, %v6731
    %v7372 = vpack.c.b16 %v6740, %v6732
    %v7373 = vpack.c.b16 %v6741, %v6733
    %v7374 = vpack.c.b16 %v6742, %v6734
    %v7375 = vpack.c.b16 %v6743, %v6735
    %v7376 = vpack.c.b16 %v6744, %v6736
    %v7377 = vpack.c.b16 %v6753, %v6745
    %v7378 = vpack.c.b16 %v6754, %v6746
    %v7379 = vpack.c.b16 %v6755, %v6747
    %v7380 = vpack.c.b16 %v6756, %v6748
    %v7381 = vpack.c.b16 %v6757, %v6749
    %v7382 = vpack.c.b16 %v6758, %v6750
    %v7383 = vpack.c.b16 %v6759, %v6751
    %v7384 = vpack.c.b16 %v6760, %v6752
    %v7385 = vpack.c.b16 %v6769, %v6761
    %v7386 = vpack.c.b16 %v6770, %v6762
    %v7387 = vpack.c.b16 %v6771, %v6763
    %v7388 = vpack.c.b16 %v6772, %v6764
    %v7389 = vpack.c.b16 %v6773, %v6765
    %v7390 = vpack.c.b16 %v6774, %v6766
    %v7391 = vpack.c.b16 %v6775, %v6767
    %v7392 = vpack.c.b16 %v6776, %v6768
    %v7393 = vpack.c.b16 %v6785, %v6777
    %v7394 = vpack.c.b16 %v6786, %v6778
    %v7395 = vpack.c.b16 %v6787, %v6779
    %v7396 = vpack.c.b16 %v6788, %v6780
    %v7397 = vpack.c.b16 %v6789, %v6781
    %v7398 = vpack.c.b16 %v6790, %v6782
    %v7399 = vpack.c.b16 %v6791, %v6783
    %v7400 = vpack.c.b16 %v6792, %v6784
    %v7401 = vpack.c.b16 %v6801, %v6793
    %v7402 = vpack.c.b16 %v6802, %v6794
    %v7403 = vpack.c.b16 %v6803, %v6795
    %v7404 = vpack.c.b16 %v6804, %v6796
    %v7405 = vpack.c.b16 %v6805, %v6797
    %v7406 = vpack.c.b16 %v6806, %v6798
    %v7407 = vpack.c.b16 %v6807, %v6799
    %v7408 = vpack.c.b16 %v6808, %v6800
    %v7409 = vpack.c.b16 %v6817, %v6809
    %v7410 = vpack.c.b16 %v6818, %v6810
    %v7411 = vpack.c.b16 %v6819, %v6811
    %v7412 = vpack.c.b16 %v6820, %v6812
    %v7413 = vpack.c.b16 %v6821, %v6813
    %v7414 = vpack.c.b16 %v6822, %v6814
    %v7415 = vpack.c.b16 %v6823, %v6815
    %v7416 = vpack.c.b16 %v6824, %v6816
    %v7417 = vpack.c.b16 %v6833, %v6825
    %v7418 = vpack.c.b16 %v6834, %v6826
    %v7419 = vpack.c.b16 %v6835, %v6827
    %v7420 = vpack.c.b16 %v6836, %v6828
    %v7421 = vpack.c.b16 %v6837, %v6829
    %v7422 = vpack.c.b16 %v6838, %v6830
    %v7423 = vpack.c.b16 %v6839, %v6831
    %v7424 = vpack.c.b16 %v6840, %v6832
    %v7425 = vpack.c.b16 %v6849, %v6841
    %v7426 = vpack.c.b16 %v6850, %v6842
    %v7427 = vpack.c.b16 %v6851, %v6843
    %v7428 = vpack.c.b16 %v6852, %v6844
    %v7429 = vpack.c.b16 %v6853, %v6845
    %v7430 = vpack.c.b16 %v6854, %v6846
    %v7431 = vpack.c.b16 %v6855, %v6847
    %v7432 = vpack.c.b16 %v6856, %v6848
    %v7433 = vpack.c.b16 %v6865, %v6857
    %v7434 = vpack.c.b16 %v6866, %v6858
    %v7435 = vpack.c.b16 %v6867, %v6859
    %v7436 = vpack.c.b16 %v6868, %v6860
    %v7437 = vpack.c.b16 %v6869, %v6861
    %v7438 = vpack.c.b16 %v6870, %v6862
    %v7439 = vpack.c.b16 %v6871, %v6863
    %v7440 = vpack.c.b16 %v6872, %v6864
    %v7441 = vpack.c.b16 %v6881, %v6873
    %v7442 = vpack.c.b16 %v6882, %v6874
    %v7443 = vpack.c.b16 %v6883, %v6875
    %v7444 = vpack.c.b16 %v6884, %v6876
    %v7445 = vpack.c.b16 %v6885, %v6877
    %v7446 = vpack.c.b16 %v6886, %v6878
    %v7447 = vpack.c.b16 %v6887, %v6879
    %v7448 = vpack.c.b16 %v6888, %v6880
    %v7449 = vpack.c.b16 %v6897, %v6889
    %v7450 = vpack.c.b16 %v6898, %v6890
    %v7451 = vpack.c.b16 %v6899, %v6891
    %v7452 = vpack.c.b16 %v6900, %v6892
    %v7453 = vpack.c.b16 %v6901, %v6893
    %v7454 = vpack.c.b16 %v6902, %v6894
    %v7455 = vpack.c.b16 %v6903, %v6895
    %v7456 = vpack.c.b16 %v6904, %v6896
    %v7457 = vpack.c.b16 %v6913, %v6905
    %v7458 = vpack.c.b16 %v6914, %v6906
    %v7459 = vpack.c.b16 %v6915, %v6907
    %v7460 = vpack.c.b16 %v6916, %v6908
    %v7461 = vpack.c.b16 %v6917, %v6909
    %v7462 = vpack.c.b16 %v6918, %v6910
    %v7463 = vpack.c.b16 %v6919, %v6911
    %v7464 = vpack.c.b16 %v6920, %v6912
    %v7465 = vpack.c.b16 %v6929, %v6921
    %v7466 = vpack.c.b16 %v6930, %v6922
    %v7467 = vpack.c.b16 %v6931, %v6923
    %v7468 = vpack.c.b16 %v6932, %v6924
    %v7469 = vpack.c.b16 %v6933, %v6925
    %v7470 = vpack.c.b16 %v6934, %v6926
    %v7471 = vpack.c.b16 %v6935, %v6927
    %v7472 = vpack.c.b16 %v6936, %v6928
    %v7473 = vpack.c.b16 %v6945, %v6937
    %v7474 = vpack.c.b16 %v6946, %v6938
    %v7475 = vpack.c.b16 %v6947, %v6939
    %v7476 = vpack.c.b16 %v6948, %v6940
    %v7477 = vpack.c.b16 %v6949, %v6941
    %v7478 = vpack.c.b16 %v6950, %v6942
    %v7479 = vpack.c.b16 %v6951, %v6943
    %v7480 = vpack.c.b16 %v6952, %v6944
    %v7481 = vpack.c.b16 %v6961, %v6953
    %v7482 = vpack.c.b16 %v6962, %v6954
    %v7483 = vpack.c.b16 %v6963, %v6955
    %v7484 = vpack.c.b16 %v6964, %v6956
    %v7485 = vpack.c.b16 %v6965, %v6957
    %v7486 = vpack.c.b16 %v6966, %v6958
    %v7487 = vpack.c.b16 %v6967, %v6959
    %v7488 = vpack.c.b16 %v6968, %v6960
    %v7489 = vpack.c.b16 %v6977, %v6969
    %v7490 = vpack.c.b16 %v6978, %v6970
    %v7491 = vpack.c.b16 %v6979, %v6971
    %v7492 = vpack.c.b16 %v6980, %v6972
    %v7493 = vpack.c.b16 %v6981, %v6973
    %v7494 = vpack.c.b16 %v6982, %v6974
    %v7495 = vpack.c.b16 %v6983, %v6975
    %v7496 = vpack.c.b16 %v6984, %v6976
    %8009 = vmatpush.bf16.msra.mxu0 %v7041
    %8010 = vmatpush.bf16.msra.mxu0 %v7033
    %8011 = vmatpush.bf16.msra.mxu0 %v7025
    %8012 = vmatpush.bf16.msra.mxu0 %v7017
    %8013 = vmatpush.bf16.msra.mxu0 %v7009
    %8014 = vmatpush.bf16.msra.mxu0 %v7001
    %8015 = vmatpush.bf16.msra.mxu0 %v6993
    %8016 = vmatpush.bf16.msra.mxu0 %v6985
    %8017 = vmatmul.bf16.gmra.mxu0 %v4911
    %v8018 = vpop.f32.mrf.mxu0
    %v8019 = vadd.f32 %v5433, %v8018
    %v8020 = vpop.f32.mrf.mxu0
    %8021 = vdwg.mxu0
    %8022 = vmatpush.bf16.msra.mxu0 %v7105
    %8023 = vmatpush.bf16.msra.mxu0 %v7097
    %8024 = vmatpush.bf16.msra.mxu0 %v7089
    %8025 = vmatpush.bf16.msra.mxu0 %v7081
    %8026 = vmatpush.bf16.msra.mxu0 %v7073
    %8027 = vmatpush.bf16.msra.mxu0 %v7065
    %8028 = vmatpush.bf16.msra.mxu0 %v7057
    %8029 = vmatpush.bf16.msra.mxu0 %v7049
    %8030 = vmatmul.bf16.gmra.mxu0 %v4912
    %v8031 = vpop.f32.mrf.mxu0
    %v8032 = vadd.f32 %v8019, %v8031
    %v8033 = vpop.f32.mrf.mxu0
    %8034 = vdwg.mxu0
    %8035 = vmatpush.bf16.msra.mxu0 %v7169
    %8036 = vmatpush.bf16.msra.mxu0 %v7161
    %8037 = vmatpush.bf16.msra.mxu0 %v7153
    %8038 = vmatpush.bf16.msra.mxu0 %v7145
    %8039 = vmatpush.bf16.msra.mxu0 %v7137
    %8040 = vmatpush.bf16.msra.mxu0 %v7129
    %8041 = vmatpush.bf16.msra.mxu0 %v7121
    %8042 = vmatpush.bf16.msra.mxu0 %v7113
    %8043 = vmatmul.bf16.gmra.mxu0 %v4913
    %v8044 = vpop.f32.mrf.mxu0
    %v8045 = vadd.f32 %v8032, %v8044
    %v8046 = vpop.f32.mrf.mxu0
    %8047 = vdwg.mxu0
    %8048 = vmatpush.bf16.msra.mxu0 %v7233
    %8049 = vmatpush.bf16.msra.mxu0 %v7225
    %8050 = vmatpush.bf16.msra.mxu0 %v7217
    %8051 = vmatpush.bf16.msra.mxu0 %v7209
    %8052 = vmatpush.bf16.msra.mxu0 %v7201
    %8053 = vmatpush.bf16.msra.mxu0 %v7193
    %8054 = vmatpush.bf16.msra.mxu0 %v7185
    %8055 = vmatpush.bf16.msra.mxu0 %v7177
    %8056 = vmatmul.bf16.gmra.mxu0 %v4914
    %v8057 = vpop.f32.mrf.mxu0
    %v8058 = vadd.f32 %v8045, %v8057
    %v8059 = vpop.f32.mrf.mxu0
    %8060 = vdwg.mxu0
    %8061 = vmatpush.bf16.msra.mxu0 %v7297
    %8062 = vmatpush.bf16.msra.mxu0 %v7289
    %8063 = vmatpush.bf16.msra.mxu0 %v7281
    %8064 = vmatpush.bf16.msra.mxu0 %v7273
    %8065 = vmatpush.bf16.msra.mxu0 %v7265
    %8066 = vmatpush.bf16.msra.mxu0 %v7257
    %8067 = vmatpush.bf16.msra.mxu0 %v7249
    %8068 = vmatpush.bf16.msra.mxu0 %v7241
    %8069 = vmatmul.bf16.gmra.mxu0 %v4915
    %v8070 = vpop.f32.mrf.mxu0
    %v8071 = vadd.f32 %v8058, %v8070
    %v8072 = vpop.f32.mrf.mxu0
    %8073 = vdwg.mxu0
    %8074 = vmatpush.bf16.msra.mxu0 %v7361
    %8075 = vmatpush.bf16.msra.mxu0 %v7353
    %8076 = vmatpush.bf16.msra.mxu0 %v7345
    %8077 = vmatpush.bf16.msra.mxu0 %v7337
    %8078 = vmatpush.bf16.msra.mxu0 %v7329
    %8079 = vmatpush.bf16.msra.mxu0 %v7321
    %8080 = vmatpush.bf16.msra.mxu0 %v7313
    %8081 = vmatpush.bf16.msra.mxu0 %v7305
    %8082 = vmatmul.bf16.gmra.mxu0 %v4916
    %v8083 = vpop.f32.mrf.mxu0
    %v8084 = vadd.f32 %v8071, %v8083
    %v8085 = vpop.f32.mrf.mxu0
    %8086 = vdwg.mxu0
    %8087 = vmatpush.bf16.msra.mxu0 %v7425
    %8088 = vmatpush.bf16.msra.mxu0 %v7417
    %8089 = vmatpush.bf16.msra.mxu0 %v7409
    %8090 = vmatpush.bf16.msra.mxu0 %v7401
    %8091 = vmatpush.bf16.msra.mxu0 %v7393
    %8092 = vmatpush.bf16.msra.mxu0 %v7385
    %8093 = vmatpush.bf16.msra.mxu0 %v7377
    %8094 = vmatpush.bf16.msra.mxu0 %v7369
    %8095 = vmatmul.bf16.gmra.mxu0 %v4917
    %v8096 = vpop.f32.mrf.mxu0
    %v8097 = vadd.f32 %v8084, %v8096
    %v8098 = vpop.f32.mrf.mxu0
    %8099 = vdwg.mxu0
    %8100 = vmatpush.bf16.msra.mxu0 %v7489
    %8101 = vmatpush.bf16.msra.mxu0 %v7481
    %8102 = vmatpush.bf16.msra.mxu0 %v7473
    %8103 = vmatpush.bf16.msra.mxu0 %v7465
    %8104 = vmatpush.bf16.msra.mxu0 %v7457
    %8105 = vmatpush.bf16.msra.mxu0 %v7449
    %8106 = vmatpush.bf16.msra.mxu0 %v7441
    %8107 = vmatpush.bf16.msra.mxu0 %v7433
    %8108 = vmatmul.bf16.gmra.mxu0 %v4918
    %v8109 = vpop.f32.mrf.mxu0
    %v8110 = vadd.f32 %v8097, %v8109
    %v8111 = vpop.f32.mrf.mxu0
    %8112 = vdwg.mxu0
    %8113 = vmatpush.bf16.msra.mxu0 %v7042
    %8114 = vmatpush.bf16.msra.mxu0 %v7034
    %8115 = vmatpush.bf16.msra.mxu0 %v7026
    %8116 = vmatpush.bf16.msra.mxu0 %v7018
    %8117 = vmatpush.bf16.msra.mxu0 %v7010
    %8118 = vmatpush.bf16.msra.mxu0 %v7002
    %8119 = vmatpush.bf16.msra.mxu0 %v6994
    %8120 = vmatpush.bf16.msra.mxu0 %v6986
    %8121 = vmatmul.bf16.gmra.mxu0 %v4911
    %v8122 = vpop.f32.mrf.mxu0
    %v8123 = vadd.f32 %v5434, %v8122
    %v8124 = vpop.f32.mrf.mxu0
    %8125 = vdwg.mxu0
    %8126 = vmatpush.bf16.msra.mxu0 %v7106
    %8127 = vmatpush.bf16.msra.mxu0 %v7098
    %8128 = vmatpush.bf16.msra.mxu0 %v7090
    %8129 = vmatpush.bf16.msra.mxu0 %v7082
    %8130 = vmatpush.bf16.msra.mxu0 %v7074
    %8131 = vmatpush.bf16.msra.mxu0 %v7066
    %8132 = vmatpush.bf16.msra.mxu0 %v7058
    %8133 = vmatpush.bf16.msra.mxu0 %v7050
    %8134 = vmatmul.bf16.gmra.mxu0 %v4912
    %v8135 = vpop.f32.mrf.mxu0
    %v8136 = vadd.f32 %v8123, %v8135
    %v8137 = vpop.f32.mrf.mxu0
    %8138 = vdwg.mxu0
    %8139 = vmatpush.bf16.msra.mxu0 %v7170
    %8140 = vmatpush.bf16.msra.mxu0 %v7162
    %8141 = vmatpush.bf16.msra.mxu0 %v7154
    %8142 = vmatpush.bf16.msra.mxu0 %v7146
    %8143 = vmatpush.bf16.msra.mxu0 %v7138
    %8144 = vmatpush.bf16.msra.mxu0 %v7130
    %8145 = vmatpush.bf16.msra.mxu0 %v7122
    %8146 = vmatpush.bf16.msra.mxu0 %v7114
    %8147 = vmatmul.bf16.gmra.mxu0 %v4913
    %v8148 = vpop.f32.mrf.mxu0
    %v8149 = vadd.f32 %v8136, %v8148
    %v8150 = vpop.f32.mrf.mxu0
    %8151 = vdwg.mxu0
    %8152 = vmatpush.bf16.msra.mxu0 %v7234
    %8153 = vmatpush.bf16.msra.mxu0 %v7226
    %8154 = vmatpush.bf16.msra.mxu0 %v7218
    %8155 = vmatpush.bf16.msra.mxu0 %v7210
    %8156 = vmatpush.bf16.msra.mxu0 %v7202
    %8157 = vmatpush.bf16.msra.mxu0 %v7194
    %8158 = vmatpush.bf16.msra.mxu0 %v7186
    %8159 = vmatpush.bf16.msra.mxu0 %v7178
    %8160 = vmatmul.bf16.gmra.mxu0 %v4914
    %v8161 = vpop.f32.mrf.mxu0
    %v8162 = vadd.f32 %v8149, %v8161
    %v8163 = vpop.f32.mrf.mxu0
    %8164 = vdwg.mxu0
    %8165 = vmatpush.bf16.msra.mxu0 %v7298
    %8166 = vmatpush.bf16.msra.mxu0 %v7290
    %8167 = vmatpush.bf16.msra.mxu0 %v7282
    %8168 = vmatpush.bf16.msra.mxu0 %v7274
    %8169 = vmatpush.bf16.msra.mxu0 %v7266
    %8170 = vmatpush.bf16.msra.mxu0 %v7258
    %8171 = vmatpush.bf16.msra.mxu0 %v7250
    %8172 = vmatpush.bf16.msra.mxu0 %v7242
    %8173 = vmatmul.bf16.gmra.mxu0 %v4915
    %v8174 = vpop.f32.mrf.mxu0
    %v8175 = vadd.f32 %v8162, %v8174
    %v8176 = vpop.f32.mrf.mxu0
    %8177 = vdwg.mxu0
    %8178 = vmatpush.bf16.msra.mxu0 %v7362
    %8179 = vmatpush.bf16.msra.mxu0 %v7354
    %8180 = vmatpush.bf16.msra.mxu0 %v7346
    %8181 = vmatpush.bf16.msra.mxu0 %v7338
    %8182 = vmatpush.bf16.msra.mxu0 %v7330
    %8183 = vmatpush.bf16.msra.mxu0 %v7322
    %8184 = vmatpush.bf16.msra.mxu0 %v7314
    %8185 = vmatpush.bf16.msra.mxu0 %v7306
    %8186 = vmatmul.bf16.gmra.mxu0 %v4916
    %v8187 = vpop.f32.mrf.mxu0
    %v8188 = vadd.f32 %v8175, %v8187
    %v8189 = vpop.f32.mrf.mxu0
    %8190 = vdwg.mxu0
    %8191 = vmatpush.bf16.msra.mxu0 %v7426
    %8192 = vmatpush.bf16.msra.mxu0 %v7418
    %8193 = vmatpush.bf16.msra.mxu0 %v7410
    %8194 = vmatpush.bf16.msra.mxu0 %v7402
    %8195 = vmatpush.bf16.msra.mxu0 %v7394
    %8196 = vmatpush.bf16.msra.mxu0 %v7386
    %8197 = vmatpush.bf16.msra.mxu0 %v7378
    %8198 = vmatpush.bf16.msra.mxu0 %v7370
    %8199 = vmatmul.bf16.gmra.mxu0 %v4917
    %v8200 = vpop.f32.mrf.mxu0
    %v8201 = vadd.f32 %v8188, %v8200
    %v8202 = vpop.f32.mrf.mxu0
    %8203 = vdwg.mxu0
    %8204 = vmatpush.bf16.msra.mxu0 %v7490
    %8205 = vmatpush.bf16.msra.mxu0 %v7482
    %8206 = vmatpush.bf16.msra.mxu0 %v7474
    %8207 = vmatpush.bf16.msra.mxu0 %v7466
    %8208 = vmatpush.bf16.msra.mxu0 %v7458
    %8209 = vmatpush.bf16.msra.mxu0 %v7450
    %8210 = vmatpush.bf16.msra.mxu0 %v7442
    %8211 = vmatpush.bf16.msra.mxu0 %v7434
    %8212 = vmatmul.bf16.gmra.mxu0 %v4918
    %v8213 = vpop.f32.mrf.mxu0
    %v8214 = vadd.f32 %v8201, %v8213
    %v8215 = vpop.f32.mrf.mxu0
    %8216 = vdwg.mxu0
    %8217 = vmatpush.bf16.msra.mxu0 %v7043
    %8218 = vmatpush.bf16.msra.mxu0 %v7035
    %8219 = vmatpush.bf16.msra.mxu0 %v7027
    %8220 = vmatpush.bf16.msra.mxu0 %v7019
    %8221 = vmatpush.bf16.msra.mxu0 %v7011
    %8222 = vmatpush.bf16.msra.mxu0 %v7003
    %8223 = vmatpush.bf16.msra.mxu0 %v6995
    %8224 = vmatpush.bf16.msra.mxu0 %v6987
    %8225 = vmatmul.bf16.gmra.mxu0 %v4911
    %v8226 = vpop.f32.mrf.mxu0
    %v8227 = vadd.f32 %v5435, %v8226
    %v8228 = vpop.f32.mrf.mxu0
    %8229 = vdwg.mxu0
    %8230 = vmatpush.bf16.msra.mxu0 %v7107
    %8231 = vmatpush.bf16.msra.mxu0 %v7099
    %8232 = vmatpush.bf16.msra.mxu0 %v7091
    %8233 = vmatpush.bf16.msra.mxu0 %v7083
    %8234 = vmatpush.bf16.msra.mxu0 %v7075
    %8235 = vmatpush.bf16.msra.mxu0 %v7067
    %8236 = vmatpush.bf16.msra.mxu0 %v7059
    %8237 = vmatpush.bf16.msra.mxu0 %v7051
    %8238 = vmatmul.bf16.gmra.mxu0 %v4912
    %v8239 = vpop.f32.mrf.mxu0
    %v8240 = vadd.f32 %v8227, %v8239
    %v8241 = vpop.f32.mrf.mxu0
    %8242 = vdwg.mxu0
    %8243 = vmatpush.bf16.msra.mxu0 %v7171
    %8244 = vmatpush.bf16.msra.mxu0 %v7163
    %8245 = vmatpush.bf16.msra.mxu0 %v7155
    %8246 = vmatpush.bf16.msra.mxu0 %v7147
    %8247 = vmatpush.bf16.msra.mxu0 %v7139
    %8248 = vmatpush.bf16.msra.mxu0 %v7131
    %8249 = vmatpush.bf16.msra.mxu0 %v7123
    %8250 = vmatpush.bf16.msra.mxu0 %v7115
    %8251 = vmatmul.bf16.gmra.mxu0 %v4913
    %v8252 = vpop.f32.mrf.mxu0
    %v8253 = vadd.f32 %v8240, %v8252
    %v8254 = vpop.f32.mrf.mxu0
    %8255 = vdwg.mxu0
    %8256 = vmatpush.bf16.msra.mxu0 %v7235
    %8257 = vmatpush.bf16.msra.mxu0 %v7227
    %8258 = vmatpush.bf16.msra.mxu0 %v7219
    %8259 = vmatpush.bf16.msra.mxu0 %v7211
    %8260 = vmatpush.bf16.msra.mxu0 %v7203
    %8261 = vmatpush.bf16.msra.mxu0 %v7195
    %8262 = vmatpush.bf16.msra.mxu0 %v7187
    %8263 = vmatpush.bf16.msra.mxu0 %v7179
    %8264 = vmatmul.bf16.gmra.mxu0 %v4914
    %v8265 = vpop.f32.mrf.mxu0
    %v8266 = vadd.f32 %v8253, %v8265
    %v8267 = vpop.f32.mrf.mxu0
    %8268 = vdwg.mxu0
    %8269 = vmatpush.bf16.msra.mxu0 %v7299
    %8270 = vmatpush.bf16.msra.mxu0 %v7291
    %8271 = vmatpush.bf16.msra.mxu0 %v7283
    %8272 = vmatpush.bf16.msra.mxu0 %v7275
    %8273 = vmatpush.bf16.msra.mxu0 %v7267
    %8274 = vmatpush.bf16.msra.mxu0 %v7259
    %8275 = vmatpush.bf16.msra.mxu0 %v7251
    %8276 = vmatpush.bf16.msra.mxu0 %v7243
    %8277 = vmatmul.bf16.gmra.mxu0 %v4915
    %v8278 = vpop.f32.mrf.mxu0
    %v8279 = vadd.f32 %v8266, %v8278
    %v8280 = vpop.f32.mrf.mxu0
    %8281 = vdwg.mxu0
    %8282 = vmatpush.bf16.msra.mxu0 %v7363
    %8283 = vmatpush.bf16.msra.mxu0 %v7355
    %8284 = vmatpush.bf16.msra.mxu0 %v7347
    %8285 = vmatpush.bf16.msra.mxu0 %v7339
    %8286 = vmatpush.bf16.msra.mxu0 %v7331
    %8287 = vmatpush.bf16.msra.mxu0 %v7323
    %8288 = vmatpush.bf16.msra.mxu0 %v7315
    %8289 = vmatpush.bf16.msra.mxu0 %v7307
    %8290 = vmatmul.bf16.gmra.mxu0 %v4916
    %v8291 = vpop.f32.mrf.mxu0
    %v8292 = vadd.f32 %v8279, %v8291
    %v8293 = vpop.f32.mrf.mxu0
    %8294 = vdwg.mxu0
    %8295 = vmatpush.bf16.msra.mxu0 %v7427
    %8296 = vmatpush.bf16.msra.mxu0 %v7419
    %8297 = vmatpush.bf16.msra.mxu0 %v7411
    %8298 = vmatpush.bf16.msra.mxu0 %v7403
    %8299 = vmatpush.bf16.msra.mxu0 %v7395
    %8300 = vmatpush.bf16.msra.mxu0 %v7387
    %8301 = vmatpush.bf16.msra.mxu0 %v7379
    %8302 = vmatpush.bf16.msra.mxu0 %v7371
    %8303 = vmatmul.bf16.gmra.mxu0 %v4917
    %v8304 = vpop.f32.mrf.mxu0
    %v8305 = vadd.f32 %v8292, %v8304
    %v8306 = vpop.f32.mrf.mxu0
    %8307 = vdwg.mxu0
    %8308 = vmatpush.bf16.msra.mxu0 %v7491
    %8309 = vmatpush.bf16.msra.mxu0 %v7483
    %8310 = vmatpush.bf16.msra.mxu0 %v7475
    %8311 = vmatpush.bf16.msra.mxu0 %v7467
    %8312 = vmatpush.bf16.msra.mxu0 %v7459
    %8313 = vmatpush.bf16.msra.mxu0 %v7451
    %8314 = vmatpush.bf16.msra.mxu0 %v7443
    %8315 = vmatpush.bf16.msra.mxu0 %v7435
    %8316 = vmatmul.bf16.gmra.mxu0 %v4918
    %v8317 = vpop.f32.mrf.mxu0
    %v8318 = vadd.f32 %v8305, %v8317
    %v8319 = vpop.f32.mrf.mxu0
    %8320 = vdwg.mxu0
    %8321 = vmatpush.bf16.msra.mxu0 %v7044
    %8322 = vmatpush.bf16.msra.mxu0 %v7036
    %8323 = vmatpush.bf16.msra.mxu0 %v7028
    %8324 = vmatpush.bf16.msra.mxu0 %v7020
    %8325 = vmatpush.bf16.msra.mxu0 %v7012
    %8326 = vmatpush.bf16.msra.mxu0 %v7004
    %8327 = vmatpush.bf16.msra.mxu0 %v6996
    %8328 = vmatpush.bf16.msra.mxu0 %v6988
    %8329 = vmatmul.bf16.gmra.mxu0 %v4911
    %v8330 = vpop.f32.mrf.mxu0
    %v8331 = vadd.f32 %v5436, %v8330
    %v8332 = vpop.f32.mrf.mxu0
    %8333 = vdwg.mxu0
    %8334 = vmatpush.bf16.msra.mxu0 %v7108
    %8335 = vmatpush.bf16.msra.mxu0 %v7100
    %8336 = vmatpush.bf16.msra.mxu0 %v7092
    %8337 = vmatpush.bf16.msra.mxu0 %v7084
    %8338 = vmatpush.bf16.msra.mxu0 %v7076
    %8339 = vmatpush.bf16.msra.mxu0 %v7068
    %8340 = vmatpush.bf16.msra.mxu0 %v7060
    %8341 = vmatpush.bf16.msra.mxu0 %v7052
    %8342 = vmatmul.bf16.gmra.mxu0 %v4912
    %v8343 = vpop.f32.mrf.mxu0
    %v8344 = vadd.f32 %v8331, %v8343
    %v8345 = vpop.f32.mrf.mxu0
    %8346 = vdwg.mxu0
    %8347 = vmatpush.bf16.msra.mxu0 %v7172
    %8348 = vmatpush.bf16.msra.mxu0 %v7164
    %8349 = vmatpush.bf16.msra.mxu0 %v7156
    %8350 = vmatpush.bf16.msra.mxu0 %v7148
    %8351 = vmatpush.bf16.msra.mxu0 %v7140
    %8352 = vmatpush.bf16.msra.mxu0 %v7132
    %8353 = vmatpush.bf16.msra.mxu0 %v7124
    %8354 = vmatpush.bf16.msra.mxu0 %v7116
    %8355 = vmatmul.bf16.gmra.mxu0 %v4913
    %v8356 = vpop.f32.mrf.mxu0
    %v8357 = vadd.f32 %v8344, %v8356
    %v8358 = vpop.f32.mrf.mxu0
    %8359 = vdwg.mxu0
    %8360 = vmatpush.bf16.msra.mxu0 %v7236
    %8361 = vmatpush.bf16.msra.mxu0 %v7228
    %8362 = vmatpush.bf16.msra.mxu0 %v7220
    %8363 = vmatpush.bf16.msra.mxu0 %v7212
    %8364 = vmatpush.bf16.msra.mxu0 %v7204
    %8365 = vmatpush.bf16.msra.mxu0 %v7196
    %8366 = vmatpush.bf16.msra.mxu0 %v7188
    %8367 = vmatpush.bf16.msra.mxu0 %v7180
    %8368 = vmatmul.bf16.gmra.mxu0 %v4914
    %v8369 = vpop.f32.mrf.mxu0
    %v8370 = vadd.f32 %v8357, %v8369
    %v8371 = vpop.f32.mrf.mxu0
    %8372 = vdwg.mxu0
    %8373 = vmatpush.bf16.msra.mxu0 %v7300
    %8374 = vmatpush.bf16.msra.mxu0 %v7292
    %8375 = vmatpush.bf16.msra.mxu0 %v7284
    %8376 = vmatpush.bf16.msra.mxu0 %v7276
    %8377 = vmatpush.bf16.msra.mxu0 %v7268
    %8378 = vmatpush.bf16.msra.mxu0 %v7260
    %8379 = vmatpush.bf16.msra.mxu0 %v7252
    %8380 = vmatpush.bf16.msra.mxu0 %v7244
    %8381 = vmatmul.bf16.gmra.mxu0 %v4915
    %v8382 = vpop.f32.mrf.mxu0
    %v8383 = vadd.f32 %v8370, %v8382
    %v8384 = vpop.f32.mrf.mxu0
    %8385 = vdwg.mxu0
    %8386 = vmatpush.bf16.msra.mxu0 %v7364
    %8387 = vmatpush.bf16.msra.mxu0 %v7356
    %8388 = vmatpush.bf16.msra.mxu0 %v7348
    %8389 = vmatpush.bf16.msra.mxu0 %v7340
    %8390 = vmatpush.bf16.msra.mxu0 %v7332
    %8391 = vmatpush.bf16.msra.mxu0 %v7324
    %8392 = vmatpush.bf16.msra.mxu0 %v7316
    %8393 = vmatpush.bf16.msra.mxu0 %v7308
    %8394 = vmatmul.bf16.gmra.mxu0 %v4916
    %v8395 = vpop.f32.mrf.mxu0
    %v8396 = vadd.f32 %v8383, %v8395
    %v8397 = vpop.f32.mrf.mxu0
    %8398 = vdwg.mxu0
    %8399 = vmatpush.bf16.msra.mxu0 %v7428
    %8400 = vmatpush.bf16.msra.mxu0 %v7420
    %8401 = vmatpush.bf16.msra.mxu0 %v7412
    %8402 = vmatpush.bf16.msra.mxu0 %v7404
    %8403 = vmatpush.bf16.msra.mxu0 %v7396
    %8404 = vmatpush.bf16.msra.mxu0 %v7388
    %8405 = vmatpush.bf16.msra.mxu0 %v7380
    %8406 = vmatpush.bf16.msra.mxu0 %v7372
    %8407 = vmatmul.bf16.gmra.mxu0 %v4917
    %v8408 = vpop.f32.mrf.mxu0
    %v8409 = vadd.f32 %v8396, %v8408
    %v8410 = vpop.f32.mrf.mxu0
    %8411 = vdwg.mxu0
    %8412 = vmatpush.bf16.msra.mxu0 %v7492
    %8413 = vmatpush.bf16.msra.mxu0 %v7484
    %8414 = vmatpush.bf16.msra.mxu0 %v7476
    %8415 = vmatpush.bf16.msra.mxu0 %v7468
    %8416 = vmatpush.bf16.msra.mxu0 %v7460
    %8417 = vmatpush.bf16.msra.mxu0 %v7452
    %8418 = vmatpush.bf16.msra.mxu0 %v7444
    %8419 = vmatpush.bf16.msra.mxu0 %v7436
    %8420 = vmatmul.bf16.gmra.mxu0 %v4918
    %v8421 = vpop.f32.mrf.mxu0
    %v8422 = vadd.f32 %v8409, %v8421
    %v8423 = vpop.f32.mrf.mxu0
    %8424 = vdwg.mxu0
    %8425 = vmatpush.bf16.msra.mxu0 %v7045
    %8426 = vmatpush.bf16.msra.mxu0 %v7037
    %8427 = vmatpush.bf16.msra.mxu0 %v7029
    %8428 = vmatpush.bf16.msra.mxu0 %v7021
    %8429 = vmatpush.bf16.msra.mxu0 %v7013
    %8430 = vmatpush.bf16.msra.mxu0 %v7005
    %8431 = vmatpush.bf16.msra.mxu0 %v6997
    %8432 = vmatpush.bf16.msra.mxu0 %v6989
    %8433 = vmatmul.bf16.gmra.mxu0 %v4911
    %v8434 = vpop.f32.mrf.mxu0
    %v8435 = vadd.f32 %v5437, %v8434
    %v8436 = vpop.f32.mrf.mxu0
    %8437 = vdwg.mxu0
    %8438 = vmatpush.bf16.msra.mxu0 %v7109
    %8439 = vmatpush.bf16.msra.mxu0 %v7101
    %8440 = vmatpush.bf16.msra.mxu0 %v7093
    %8441 = vmatpush.bf16.msra.mxu0 %v7085
    %8442 = vmatpush.bf16.msra.mxu0 %v7077
    %8443 = vmatpush.bf16.msra.mxu0 %v7069
    %8444 = vmatpush.bf16.msra.mxu0 %v7061
    %8445 = vmatpush.bf16.msra.mxu0 %v7053
    %8446 = vmatmul.bf16.gmra.mxu0 %v4912
    %v8447 = vpop.f32.mrf.mxu0
    %v8448 = vadd.f32 %v8435, %v8447
    %v8449 = vpop.f32.mrf.mxu0
    %8450 = vdwg.mxu0
    %8451 = vmatpush.bf16.msra.mxu0 %v7173
    %8452 = vmatpush.bf16.msra.mxu0 %v7165
    %8453 = vmatpush.bf16.msra.mxu0 %v7157
    %8454 = vmatpush.bf16.msra.mxu0 %v7149
    %8455 = vmatpush.bf16.msra.mxu0 %v7141
    %8456 = vmatpush.bf16.msra.mxu0 %v7133
    %8457 = vmatpush.bf16.msra.mxu0 %v7125
    %8458 = vmatpush.bf16.msra.mxu0 %v7117
    %8459 = vmatmul.bf16.gmra.mxu0 %v4913
    %v8460 = vpop.f32.mrf.mxu0
    %v8461 = vadd.f32 %v8448, %v8460
    %v8462 = vpop.f32.mrf.mxu0
    %8463 = vdwg.mxu0
    %8464 = vmatpush.bf16.msra.mxu0 %v7237
    %8465 = vmatpush.bf16.msra.mxu0 %v7229
    %8466 = vmatpush.bf16.msra.mxu0 %v7221
    %8467 = vmatpush.bf16.msra.mxu0 %v7213
    %8468 = vmatpush.bf16.msra.mxu0 %v7205
    %8469 = vmatpush.bf16.msra.mxu0 %v7197
    %8470 = vmatpush.bf16.msra.mxu0 %v7189
    %8471 = vmatpush.bf16.msra.mxu0 %v7181
    %8472 = vmatmul.bf16.gmra.mxu0 %v4914
    %v8473 = vpop.f32.mrf.mxu0
    %v8474 = vadd.f32 %v8461, %v8473
    %v8475 = vpop.f32.mrf.mxu0
    %8476 = vdwg.mxu0
    %8477 = vmatpush.bf16.msra.mxu0 %v7301
    %8478 = vmatpush.bf16.msra.mxu0 %v7293
    %8479 = vmatpush.bf16.msra.mxu0 %v7285
    %8480 = vmatpush.bf16.msra.mxu0 %v7277
    %8481 = vmatpush.bf16.msra.mxu0 %v7269
    %8482 = vmatpush.bf16.msra.mxu0 %v7261
    %8483 = vmatpush.bf16.msra.mxu0 %v7253
    %8484 = vmatpush.bf16.msra.mxu0 %v7245
    %8485 = vmatmul.bf16.gmra.mxu0 %v4915
    %v8486 = vpop.f32.mrf.mxu0
    %v8487 = vadd.f32 %v8474, %v8486
    %v8488 = vpop.f32.mrf.mxu0
    %8489 = vdwg.mxu0
    %8490 = vmatpush.bf16.msra.mxu0 %v7365
    %8491 = vmatpush.bf16.msra.mxu0 %v7357
    %8492 = vmatpush.bf16.msra.mxu0 %v7349
    %8493 = vmatpush.bf16.msra.mxu0 %v7341
    %8494 = vmatpush.bf16.msra.mxu0 %v7333
    %8495 = vmatpush.bf16.msra.mxu0 %v7325
    %8496 = vmatpush.bf16.msra.mxu0 %v7317
    %8497 = vmatpush.bf16.msra.mxu0 %v7309
    %8498 = vmatmul.bf16.gmra.mxu0 %v4916
    %v8499 = vpop.f32.mrf.mxu0
    %v8500 = vadd.f32 %v8487, %v8499
    %v8501 = vpop.f32.mrf.mxu0
    %8502 = vdwg.mxu0
    %8503 = vmatpush.bf16.msra.mxu0 %v7429
    %8504 = vmatpush.bf16.msra.mxu0 %v7421
    %8505 = vmatpush.bf16.msra.mxu0 %v7413
    %8506 = vmatpush.bf16.msra.mxu0 %v7405
    %8507 = vmatpush.bf16.msra.mxu0 %v7397
    %8508 = vmatpush.bf16.msra.mxu0 %v7389
    %8509 = vmatpush.bf16.msra.mxu0 %v7381
    %8510 = vmatpush.bf16.msra.mxu0 %v7373
    %8511 = vmatmul.bf16.gmra.mxu0 %v4917
    %v8512 = vpop.f32.mrf.mxu0
    %v8513 = vadd.f32 %v8500, %v8512
    %v8514 = vpop.f32.mrf.mxu0
    %8515 = vdwg.mxu0
    %8516 = vmatpush.bf16.msra.mxu0 %v7493
    %8517 = vmatpush.bf16.msra.mxu0 %v7485
    %8518 = vmatpush.bf16.msra.mxu0 %v7477
    %8519 = vmatpush.bf16.msra.mxu0 %v7469
    %8520 = vmatpush.bf16.msra.mxu0 %v7461
    %8521 = vmatpush.bf16.msra.mxu0 %v7453
    %8522 = vmatpush.bf16.msra.mxu0 %v7445
    %8523 = vmatpush.bf16.msra.mxu0 %v7437
    %8524 = vmatmul.bf16.gmra.mxu0 %v4918
    %v8525 = vpop.f32.mrf.mxu0
    %v8526 = vadd.f32 %v8513, %v8525
    %v8527 = vpop.f32.mrf.mxu0
    %8528 = vdwg.mxu0
    %8529 = vmatpush.bf16.msra.mxu0 %v7046
    %8530 = vmatpush.bf16.msra.mxu0 %v7038
    %8531 = vmatpush.bf16.msra.mxu0 %v7030
    %8532 = vmatpush.bf16.msra.mxu0 %v7022
    %8533 = vmatpush.bf16.msra.mxu0 %v7014
    %8534 = vmatpush.bf16.msra.mxu0 %v7006
    %8535 = vmatpush.bf16.msra.mxu0 %v6998
    %8536 = vmatpush.bf16.msra.mxu0 %v6990
    %8537 = vmatmul.bf16.gmra.mxu0 %v4911
    %v8538 = vpop.f32.mrf.mxu0
    %v8539 = vadd.f32 %v5438, %v8538
    %v8540 = vpop.f32.mrf.mxu0
    %8541 = vdwg.mxu0
    %8542 = vmatpush.bf16.msra.mxu0 %v7110
    %8543 = vmatpush.bf16.msra.mxu0 %v7102
    %8544 = vmatpush.bf16.msra.mxu0 %v7094
    %8545 = vmatpush.bf16.msra.mxu0 %v7086
    %8546 = vmatpush.bf16.msra.mxu0 %v7078
    %8547 = vmatpush.bf16.msra.mxu0 %v7070
    %8548 = vmatpush.bf16.msra.mxu0 %v7062
    %8549 = vmatpush.bf16.msra.mxu0 %v7054
    %8550 = vmatmul.bf16.gmra.mxu0 %v4912
    %v8551 = vpop.f32.mrf.mxu0
    %v8552 = vadd.f32 %v8539, %v8551
    %v8553 = vpop.f32.mrf.mxu0
    %8554 = vdwg.mxu0
    %8555 = vmatpush.bf16.msra.mxu0 %v7174
    %8556 = vmatpush.bf16.msra.mxu0 %v7166
    %8557 = vmatpush.bf16.msra.mxu0 %v7158
    %8558 = vmatpush.bf16.msra.mxu0 %v7150
    %8559 = vmatpush.bf16.msra.mxu0 %v7142
    %8560 = vmatpush.bf16.msra.mxu0 %v7134
    %8561 = vmatpush.bf16.msra.mxu0 %v7126
    %8562 = vmatpush.bf16.msra.mxu0 %v7118
    %8563 = vmatmul.bf16.gmra.mxu0 %v4913
    %v8564 = vpop.f32.mrf.mxu0
    %v8565 = vadd.f32 %v8552, %v8564
    %v8566 = vpop.f32.mrf.mxu0
    %8567 = vdwg.mxu0
    %8568 = vmatpush.bf16.msra.mxu0 %v7238
    %8569 = vmatpush.bf16.msra.mxu0 %v7230
    %8570 = vmatpush.bf16.msra.mxu0 %v7222
    %8571 = vmatpush.bf16.msra.mxu0 %v7214
    %8572 = vmatpush.bf16.msra.mxu0 %v7206
    %8573 = vmatpush.bf16.msra.mxu0 %v7198
    %8574 = vmatpush.bf16.msra.mxu0 %v7190
    %8575 = vmatpush.bf16.msra.mxu0 %v7182
    %8576 = vmatmul.bf16.gmra.mxu0 %v4914
    %v8577 = vpop.f32.mrf.mxu0
    %v8578 = vadd.f32 %v8565, %v8577
    %v8579 = vpop.f32.mrf.mxu0
    %8580 = vdwg.mxu0
    %8581 = vmatpush.bf16.msra.mxu0 %v7302
    %8582 = vmatpush.bf16.msra.mxu0 %v7294
    %8583 = vmatpush.bf16.msra.mxu0 %v7286
    %8584 = vmatpush.bf16.msra.mxu0 %v7278
    %8585 = vmatpush.bf16.msra.mxu0 %v7270
    %8586 = vmatpush.bf16.msra.mxu0 %v7262
    %8587 = vmatpush.bf16.msra.mxu0 %v7254
    %8588 = vmatpush.bf16.msra.mxu0 %v7246
    %8589 = vmatmul.bf16.gmra.mxu0 %v4915
    %v8590 = vpop.f32.mrf.mxu0
    %v8591 = vadd.f32 %v8578, %v8590
    %v8592 = vpop.f32.mrf.mxu0
    %8593 = vdwg.mxu0
    %8594 = vmatpush.bf16.msra.mxu0 %v7366
    %8595 = vmatpush.bf16.msra.mxu0 %v7358
    %8596 = vmatpush.bf16.msra.mxu0 %v7350
    %8597 = vmatpush.bf16.msra.mxu0 %v7342
    %8598 = vmatpush.bf16.msra.mxu0 %v7334
    %8599 = vmatpush.bf16.msra.mxu0 %v7326
    %8600 = vmatpush.bf16.msra.mxu0 %v7318
    %8601 = vmatpush.bf16.msra.mxu0 %v7310
    %8602 = vmatmul.bf16.gmra.mxu0 %v4916
    %v8603 = vpop.f32.mrf.mxu0
    %v8604 = vadd.f32 %v8591, %v8603
    %v8605 = vpop.f32.mrf.mxu0
    %8606 = vdwg.mxu0
    %8607 = vmatpush.bf16.msra.mxu0 %v7430
    %8608 = vmatpush.bf16.msra.mxu0 %v7422
    %8609 = vmatpush.bf16.msra.mxu0 %v7414
    %8610 = vmatpush.bf16.msra.mxu0 %v7406
    %8611 = vmatpush.bf16.msra.mxu0 %v7398
    %8612 = vmatpush.bf16.msra.mxu0 %v7390
    %8613 = vmatpush.bf16.msra.mxu0 %v7382
    %8614 = vmatpush.bf16.msra.mxu0 %v7374
    %8615 = vmatmul.bf16.gmra.mxu0 %v4917
    %v8616 = vpop.f32.mrf.mxu0
    %v8617 = vadd.f32 %v8604, %v8616
    %v8618 = vpop.f32.mrf.mxu0
    %8619 = vdwg.mxu0
    %8620 = vmatpush.bf16.msra.mxu0 %v7494
    %8621 = vmatpush.bf16.msra.mxu0 %v7486
    %8622 = vmatpush.bf16.msra.mxu0 %v7478
    %8623 = vmatpush.bf16.msra.mxu0 %v7470
    %8624 = vmatpush.bf16.msra.mxu0 %v7462
    %8625 = vmatpush.bf16.msra.mxu0 %v7454
    %8626 = vmatpush.bf16.msra.mxu0 %v7446
    %8627 = vmatpush.bf16.msra.mxu0 %v7438
    %8628 = vmatmul.bf16.gmra.mxu0 %v4918
    %v8629 = vpop.f32.mrf.mxu0
    %v8630 = vadd.f32 %v8617, %v8629
    %v8631 = vpop.f32.mrf.mxu0
    %8632 = vdwg.mxu0
    %8633 = vmatpush.bf16.msra.mxu0 %v7047
    %8634 = vmatpush.bf16.msra.mxu0 %v7039
    %8635 = vmatpush.bf16.msra.mxu0 %v7031
    %8636 = vmatpush.bf16.msra.mxu0 %v7023
    %8637 = vmatpush.bf16.msra.mxu0 %v7015
    %8638 = vmatpush.bf16.msra.mxu0 %v7007
    %8639 = vmatpush.bf16.msra.mxu0 %v6999
    %8640 = vmatpush.bf16.msra.mxu0 %v6991
    %8641 = vmatmul.bf16.gmra.mxu0 %v4911
    %v8642 = vpop.f32.mrf.mxu0
    %v8643 = vadd.f32 %v5439, %v8642
    %v8644 = vpop.f32.mrf.mxu0
    %8645 = vdwg.mxu0
    %8646 = vmatpush.bf16.msra.mxu0 %v7111
    %8647 = vmatpush.bf16.msra.mxu0 %v7103
    %8648 = vmatpush.bf16.msra.mxu0 %v7095
    %8649 = vmatpush.bf16.msra.mxu0 %v7087
    %8650 = vmatpush.bf16.msra.mxu0 %v7079
    %8651 = vmatpush.bf16.msra.mxu0 %v7071
    %8652 = vmatpush.bf16.msra.mxu0 %v7063
    %8653 = vmatpush.bf16.msra.mxu0 %v7055
    %8654 = vmatmul.bf16.gmra.mxu0 %v4912
    %v8655 = vpop.f32.mrf.mxu0
    %v8656 = vadd.f32 %v8643, %v8655
    %v8657 = vpop.f32.mrf.mxu0
    %8658 = vdwg.mxu0
    %8659 = vmatpush.bf16.msra.mxu0 %v7175
    %8660 = vmatpush.bf16.msra.mxu0 %v7167
    %8661 = vmatpush.bf16.msra.mxu0 %v7159
    %8662 = vmatpush.bf16.msra.mxu0 %v7151
    %8663 = vmatpush.bf16.msra.mxu0 %v7143
    %8664 = vmatpush.bf16.msra.mxu0 %v7135
    %8665 = vmatpush.bf16.msra.mxu0 %v7127
    %8666 = vmatpush.bf16.msra.mxu0 %v7119
    %8667 = vmatmul.bf16.gmra.mxu0 %v4913
    %v8668 = vpop.f32.mrf.mxu0
    %v8669 = vadd.f32 %v8656, %v8668
    %v8670 = vpop.f32.mrf.mxu0
    %8671 = vdwg.mxu0
    %8672 = vmatpush.bf16.msra.mxu0 %v7239
    %8673 = vmatpush.bf16.msra.mxu0 %v7231
    %8674 = vmatpush.bf16.msra.mxu0 %v7223
    %8675 = vmatpush.bf16.msra.mxu0 %v7215
    %8676 = vmatpush.bf16.msra.mxu0 %v7207
    %8677 = vmatpush.bf16.msra.mxu0 %v7199
    %8678 = vmatpush.bf16.msra.mxu0 %v7191
    %8679 = vmatpush.bf16.msra.mxu0 %v7183
    %8680 = vmatmul.bf16.gmra.mxu0 %v4914
    %v8681 = vpop.f32.mrf.mxu0
    %v8682 = vadd.f32 %v8669, %v8681
    %v8683 = vpop.f32.mrf.mxu0
    %8684 = vdwg.mxu0
    %8685 = vmatpush.bf16.msra.mxu0 %v7303
    %8686 = vmatpush.bf16.msra.mxu0 %v7295
    %8687 = vmatpush.bf16.msra.mxu0 %v7287
    %8688 = vmatpush.bf16.msra.mxu0 %v7279
    %8689 = vmatpush.bf16.msra.mxu0 %v7271
    %8690 = vmatpush.bf16.msra.mxu0 %v7263
    %8691 = vmatpush.bf16.msra.mxu0 %v7255
    %8692 = vmatpush.bf16.msra.mxu0 %v7247
    %8693 = vmatmul.bf16.gmra.mxu0 %v4915
    %v8694 = vpop.f32.mrf.mxu0
    %v8695 = vadd.f32 %v8682, %v8694
    %v8696 = vpop.f32.mrf.mxu0
    %8697 = vdwg.mxu0
    %8698 = vmatpush.bf16.msra.mxu0 %v7367
    %8699 = vmatpush.bf16.msra.mxu0 %v7359
    %8700 = vmatpush.bf16.msra.mxu0 %v7351
    %8701 = vmatpush.bf16.msra.mxu0 %v7343
    %8702 = vmatpush.bf16.msra.mxu0 %v7335
    %8703 = vmatpush.bf16.msra.mxu0 %v7327
    %8704 = vmatpush.bf16.msra.mxu0 %v7319
    %8705 = vmatpush.bf16.msra.mxu0 %v7311
    %8706 = vmatmul.bf16.gmra.mxu0 %v4916
    %v8707 = vpop.f32.mrf.mxu0
    %v8708 = vadd.f32 %v8695, %v8707
    %v8709 = vpop.f32.mrf.mxu0
    %8710 = vdwg.mxu0
    %8711 = vmatpush.bf16.msra.mxu0 %v7431
    %8712 = vmatpush.bf16.msra.mxu0 %v7423
    %8713 = vmatpush.bf16.msra.mxu0 %v7415
    %8714 = vmatpush.bf16.msra.mxu0 %v7407
    %8715 = vmatpush.bf16.msra.mxu0 %v7399
    %8716 = vmatpush.bf16.msra.mxu0 %v7391
    %8717 = vmatpush.bf16.msra.mxu0 %v7383
    %8718 = vmatpush.bf16.msra.mxu0 %v7375
    %8719 = vmatmul.bf16.gmra.mxu0 %v4917
    %v8720 = vpop.f32.mrf.mxu0
    %v8721 = vadd.f32 %v8708, %v8720
    %v8722 = vpop.f32.mrf.mxu0
    %8723 = vdwg.mxu0
    %8724 = vmatpush.bf16.msra.mxu0 %v7495
    %8725 = vmatpush.bf16.msra.mxu0 %v7487
    %8726 = vmatpush.bf16.msra.mxu0 %v7479
    %8727 = vmatpush.bf16.msra.mxu0 %v7471
    %8728 = vmatpush.bf16.msra.mxu0 %v7463
    %8729 = vmatpush.bf16.msra.mxu0 %v7455
    %8730 = vmatpush.bf16.msra.mxu0 %v7447
    %8731 = vmatpush.bf16.msra.mxu0 %v7439
    %8732 = vmatmul.bf16.gmra.mxu0 %v4918
    %v8733 = vpop.f32.mrf.mxu0
    %v8734 = vadd.f32 %v8721, %v8733
    %v8735 = vpop.f32.mrf.mxu0
    %8736 = vdwg.mxu0
    %8737 = vmatpush.bf16.msra.mxu0 %v7048
    %8738 = vmatpush.bf16.msra.mxu0 %v7040
    %8739 = vmatpush.bf16.msra.mxu0 %v7032
    %8740 = vmatpush.bf16.msra.mxu0 %v7024
    %8741 = vmatpush.bf16.msra.mxu0 %v7016
    %8742 = vmatpush.bf16.msra.mxu0 %v7008
    %8743 = vmatpush.bf16.msra.mxu0 %v7000
    %8744 = vmatpush.bf16.msra.mxu0 %v6992
    %8745 = vmatmul.bf16.gmra.mxu0 %v4911
    %v8746 = vpop.f32.mrf.mxu0
    %v8747 = vadd.f32 %v5440, %v8746
    %v8748 = vpop.f32.mrf.mxu0
    %8749 = vdwg.mxu0
    %8750 = vmatpush.bf16.msra.mxu0 %v7112
    %8751 = vmatpush.bf16.msra.mxu0 %v7104
    %8752 = vmatpush.bf16.msra.mxu0 %v7096
    %8753 = vmatpush.bf16.msra.mxu0 %v7088
    %8754 = vmatpush.bf16.msra.mxu0 %v7080
    %8755 = vmatpush.bf16.msra.mxu0 %v7072
    %8756 = vmatpush.bf16.msra.mxu0 %v7064
    %8757 = vmatpush.bf16.msra.mxu0 %v7056
    %8758 = vmatmul.bf16.gmra.mxu0 %v4912
    %v8759 = vpop.f32.mrf.mxu0
    %v8760 = vadd.f32 %v8747, %v8759
    %v8761 = vpop.f32.mrf.mxu0
    %8762 = vdwg.mxu0
    %8763 = vmatpush.bf16.msra.mxu0 %v7176
    %8764 = vmatpush.bf16.msra.mxu0 %v7168
    %8765 = vmatpush.bf16.msra.mxu0 %v7160
    %8766 = vmatpush.bf16.msra.mxu0 %v7152
    %8767 = vmatpush.bf16.msra.mxu0 %v7144
    %8768 = vmatpush.bf16.msra.mxu0 %v7136
    %8769 = vmatpush.bf16.msra.mxu0 %v7128
    %8770 = vmatpush.bf16.msra.mxu0 %v7120
    %8771 = vmatmul.bf16.gmra.mxu0 %v4913
    %v8772 = vpop.f32.mrf.mxu0
    %v8773 = vadd.f32 %v8760, %v8772
    %v8774 = vpop.f32.mrf.mxu0
    %8775 = vdwg.mxu0
    %8776 = vmatpush.bf16.msra.mxu0 %v7240
    %8777 = vmatpush.bf16.msra.mxu0 %v7232
    %8778 = vmatpush.bf16.msra.mxu0 %v7224
    %8779 = vmatpush.bf16.msra.mxu0 %v7216
    %8780 = vmatpush.bf16.msra.mxu0 %v7208
    %8781 = vmatpush.bf16.msra.mxu0 %v7200
    %8782 = vmatpush.bf16.msra.mxu0 %v7192
    %8783 = vmatpush.bf16.msra.mxu0 %v7184
    %8784 = vmatmul.bf16.gmra.mxu0 %v4914
    %v8785 = vpop.f32.mrf.mxu0
    %v8786 = vadd.f32 %v8773, %v8785
    %v8787 = vpop.f32.mrf.mxu0
    %8788 = vdwg.mxu0
    %8789 = vmatpush.bf16.msra.mxu0 %v7304
    %8790 = vmatpush.bf16.msra.mxu0 %v7296
    %8791 = vmatpush.bf16.msra.mxu0 %v7288
    %8792 = vmatpush.bf16.msra.mxu0 %v7280
    %8793 = vmatpush.bf16.msra.mxu0 %v7272
    %8794 = vmatpush.bf16.msra.mxu0 %v7264
    %8795 = vmatpush.bf16.msra.mxu0 %v7256
    %8796 = vmatpush.bf16.msra.mxu0 %v7248
    %8797 = vmatmul.bf16.gmra.mxu0 %v4915
    %v8798 = vpop.f32.mrf.mxu0
    %v8799 = vadd.f32 %v8786, %v8798
    %v8800 = vpop.f32.mrf.mxu0
    %8801 = vdwg.mxu0
    %8802 = vmatpush.bf16.msra.mxu0 %v7368
    %8803 = vmatpush.bf16.msra.mxu0 %v7360
    %8804 = vmatpush.bf16.msra.mxu0 %v7352
    %8805 = vmatpush.bf16.msra.mxu0 %v7344
    %8806 = vmatpush.bf16.msra.mxu0 %v7336
    %8807 = vmatpush.bf16.msra.mxu0 %v7328
    %8808 = vmatpush.bf16.msra.mxu0 %v7320
    %8809 = vmatpush.bf16.msra.mxu0 %v7312
    %8810 = vmatmul.bf16.gmra.mxu0 %v4916
    %v8811 = vpop.f32.mrf.mxu0
    %v8812 = vadd.f32 %v8799, %v8811
    %v8813 = vpop.f32.mrf.mxu0
    %8814 = vdwg.mxu0
    %8815 = vmatpush.bf16.msra.mxu0 %v7432
    %8816 = vmatpush.bf16.msra.mxu0 %v7424
    %8817 = vmatpush.bf16.msra.mxu0 %v7416
    %8818 = vmatpush.bf16.msra.mxu0 %v7408
    %8819 = vmatpush.bf16.msra.mxu0 %v7400
    %8820 = vmatpush.bf16.msra.mxu0 %v7392
    %8821 = vmatpush.bf16.msra.mxu0 %v7384
    %8822 = vmatpush.bf16.msra.mxu0 %v7376
    %8823 = vmatmul.bf16.gmra.mxu0 %v4917
    %v8824 = vpop.f32.mrf.mxu0
    %v8825 = vadd.f32 %v8812, %v8824
    %v8826 = vpop.f32.mrf.mxu0
    %8827 = vdwg.mxu0
    %8828 = vmatpush.bf16.msra.mxu0 %v7496
    %8829 = vmatpush.bf16.msra.mxu0 %v7488
    %8830 = vmatpush.bf16.msra.mxu0 %v7480
    %8831 = vmatpush.bf16.msra.mxu0 %v7472
    %8832 = vmatpush.bf16.msra.mxu0 %v7464
    %8833 = vmatpush.bf16.msra.mxu0 %v7456
    %8834 = vmatpush.bf16.msra.mxu0 %v7448
    %8835 = vmatpush.bf16.msra.mxu0 %v7440
    %8836 = vmatmul.bf16.gmra.mxu0 %v4918
    %v8837 = vpop.f32.mrf.mxu0
    %v8838 = vadd.f32 %v8825, %v8837
    %v8839 = vpop.f32.mrf.mxu0
    %8840 = vdwg.mxu0
    %v8841 = vmax.f32 %v8110, 0.0
    %v8842 = vmax.f32 %v8214, 0.0
    %v8843 = vmax.f32 %v8318, 0.0
    %v8844 = vmax.f32 %v8422, 0.0
    %v8845 = vmax.f32 %v8526, 0.0
    %v8846 = vmax.f32 %v8630, 0.0
    %v8847 = vmax.f32 %v8734, 0.0
    %v8848 = vmax.f32 %v8838, 0.0
    %v8849 = vpack.c.bf16 %v8841, %v8841
    %v8850 = vpack.c.bf16 %v8842, %v8842
    %v8851 = vpack.c.bf16 %v8843, %v8843
    %v8852 = vpack.c.bf16 %v8844, %v8844
    %v8853 = vpack.c.bf16 %v8845, %v8845
    %v8854 = vpack.c.bf16 %v8846, %v8846
    %v8855 = vpack.c.bf16 %v8847, %v8847
    %v8856 = vpack.c.bf16 %v8848, %v8848
    %v8857 = vld [vmem:[#allocation16] sm:$0xff]
    %v8858 = vld [vmem:[#allocation16 + $0x8] sm:$0xff]
    %v8859 = vld [vmem:[#allocation16 + $0x10] sm:$0xff]
    %v8860 = vld [vmem:[#allocation16 + $0x18] sm:$0xff]
    %v8861 = vld [vmem:[#allocation16 + $0x20] sm:$0xff]
    %v8862 = vld [vmem:[#allocation16 + $0x28] sm:$0xff]
    %v8863 = vld [vmem:[#allocation16 + $0x30] sm:$0xff]
    %v8864 = vld [vmem:[#allocation16 + $0x38] sm:$0xff]
    %v8865 = vld [vmem:[#allocation16 + $0x40] sm:$0xff]
    %v8866 = vld [vmem:[#allocation16 + $0x48] sm:$0xff]
    %v8867 = vld [vmem:[#allocation16 + $0x50] sm:$0xff]
    %v8868 = vld [vmem:[#allocation16 + $0x58] sm:$0xff]
    %v8869 = vld [vmem:[#allocation16 + $0x60] sm:$0xff]
    %v8870 = vld [vmem:[#allocation16 + $0x68] sm:$0xff]
    %v8871 = vld [vmem:[#allocation16 + $0x70] sm:$0xff]
    %v8872 = vld [vmem:[#allocation16 + $0x78] sm:$0xff]
    %v8873 = vld [vmem:[#allocation16 + $0x80] sm:$0xff]
    %v8874 = vld [vmem:[#allocation16 + $0x88] sm:$0xff]
    %v8875 = vld [vmem:[#allocation16 + $0x90] sm:$0xff]
    %v8876 = vld [vmem:[#allocation16 + $0x98] sm:$0xff]
    %v8877 = vld [vmem:[#allocation16 + $0xa0] sm:$0xff]
    %v8878 = vld [vmem:[#allocation16 + $0xa8] sm:$0xff]
    %v8879 = vld [vmem:[#allocation16 + $0xb0] sm:$0xff]
    %v8880 = vld [vmem:[#allocation16 + $0xb8] sm:$0xff]
    %v8881 = vld [vmem:[#allocation16 + $0xc0] sm:$0xff]
    %v8882 = vld [vmem:[#allocation16 + $0xc8] sm:$0xff]
    %v8883 = vld [vmem:[#allocation16 + $0xd0] sm:$0xff]
    %v8884 = vld [vmem:[#allocation16 + $0xd8] sm:$0xff]
    %v8885 = vld [vmem:[#allocation16 + $0xe0] sm:$0xff]
    %v8886 = vld [vmem:[#allocation16 + $0xe8] sm:$0xff]
    %v8887 = vld [vmem:[#allocation16 + $0xf0] sm:$0xff]
    %v8888 = vld [vmem:[#allocation16 + $0xf8] sm:$0xff]
    %v8889 = vld [vmem:[#allocation16 + $0x100] sm:$0xff]
    %v8890 = vld [vmem:[#allocation16 + $0x108] sm:$0xff]
    %v8891 = vld [vmem:[#allocation16 + $0x110] sm:$0xff]
    %v8892 = vld [vmem:[#allocation16 + $0x118] sm:$0xff]
    %v8893 = vld [vmem:[#allocation16 + $0x120] sm:$0xff]
    %v8894 = vld [vmem:[#allocation16 + $0x128] sm:$0xff]
    %v8895 = vld [vmem:[#allocation16 + $0x130] sm:$0xff]
    %v8896 = vld [vmem:[#allocation16 + $0x138] sm:$0xff]
    %v8897 = vld [vmem:[#allocation16 + $0x140] sm:$0xff]
    %v8898 = vld [vmem:[#allocation16 + $0x148] sm:$0xff]
    %v8899 = vld [vmem:[#allocation16 + $0x150] sm:$0xff]
    %v8900 = vld [vmem:[#allocation16 + $0x158] sm:$0xff]
    %v8901 = vld [vmem:[#allocation16 + $0x160] sm:$0xff]
    %v8902 = vld [vmem:[#allocation16 + $0x168] sm:$0xff]
    %v8903 = vld [vmem:[#allocation16 + $0x170] sm:$0xff]
    %v8904 = vld [vmem:[#allocation16 + $0x178] sm:$0xff]
    %v8905 = vld [vmem:[#allocation16 + $0x180] sm:$0xff]
    %v8906 = vld [vmem:[#allocation16 + $0x188] sm:$0xff]
    %v8907 = vld [vmem:[#allocation16 + $0x190] sm:$0xff]
    %v8908 = vld [vmem:[#allocation16 + $0x198] sm:$0xff]
    %v8909 = vld [vmem:[#allocation16 + $0x1a0] sm:$0xff]
    %v8910 = vld [vmem:[#allocation16 + $0x1a8] sm:$0xff]
    %v8911 = vld [vmem:[#allocation16 + $0x1b0] sm:$0xff]
    %v8912 = vld [vmem:[#allocation16 + $0x1b8] sm:$0xff]
    %v8913 = vld [vmem:[#allocation16 + $0x1c0] sm:$0xff]
    %v8914 = vld [vmem:[#allocation16 + $0x1c8] sm:$0xff]
    %v8915 = vld [vmem:[#allocation16 + $0x1d0] sm:$0xff]
    %v8916 = vld [vmem:[#allocation16 + $0x1d8] sm:$0xff]
    %v8917 = vld [vmem:[#allocation16 + $0x1e0] sm:$0xff]
    %v8918 = vld [vmem:[#allocation16 + $0x1e8] sm:$0xff]
    %v8919 = vld [vmem:[#allocation16 + $0x1f0] sm:$0xff]
    %v8920 = vld [vmem:[#allocation16 + $0x1f8] sm:$0xff]
    %v8921 = vld [vmem:[#allocation16 + $0x200] sm:$0xff]
    %v8922 = vld [vmem:[#allocation16 + $0x208] sm:$0xff]
    %v8923 = vld [vmem:[#allocation16 + $0x210] sm:$0xff]
    %v8924 = vld [vmem:[#allocation16 + $0x218] sm:$0xff]
    %v8925 = vld [vmem:[#allocation16 + $0x220] sm:$0xff]
    %v8926 = vld [vmem:[#allocation16 + $0x228] sm:$0xff]
    %v8927 = vld [vmem:[#allocation16 + $0x230] sm:$0xff]
    %v8928 = vld [vmem:[#allocation16 + $0x238] sm:$0xff]
    %v8929 = vld [vmem:[#allocation16 + $0x240] sm:$0xff]
    %v8930 = vld [vmem:[#allocation16 + $0x248] sm:$0xff]
    %v8931 = vld [vmem:[#allocation16 + $0x250] sm:$0xff]
    %v8932 = vld [vmem:[#allocation16 + $0x258] sm:$0xff]
    %v8933 = vld [vmem:[#allocation16 + $0x260] sm:$0xff]
    %v8934 = vld [vmem:[#allocation16 + $0x268] sm:$0xff]
    %v8935 = vld [vmem:[#allocation16 + $0x270] sm:$0xff]
    %v8936 = vld [vmem:[#allocation16 + $0x278] sm:$0xff]
    %v8937 = vld [vmem:[#allocation16 + $0x280] sm:$0xff]
    %v8938 = vld [vmem:[#allocation16 + $0x288] sm:$0xff]
    %v8939 = vld [vmem:[#allocation16 + $0x290] sm:$0xff]
    %v8940 = vld [vmem:[#allocation16 + $0x298] sm:$0xff]
    %v8941 = vld [vmem:[#allocation16 + $0x2a0] sm:$0xff]
    %v8942 = vld [vmem:[#allocation16 + $0x2a8] sm:$0xff]
    %v8943 = vld [vmem:[#allocation16 + $0x2b0] sm:$0xff]
    %v8944 = vld [vmem:[#allocation16 + $0x2b8] sm:$0xff]
    %v8945 = vld [vmem:[#allocation16 + $0x2c0] sm:$0xff]
    %v8946 = vld [vmem:[#allocation16 + $0x2c8] sm:$0xff]
    %v8947 = vld [vmem:[#allocation16 + $0x2d0] sm:$0xff]
    %v8948 = vld [vmem:[#allocation16 + $0x2d8] sm:$0xff]
    %v8949 = vld [vmem:[#allocation16 + $0x2e0] sm:$0xff]
    %v8950 = vld [vmem:[#allocation16 + $0x2e8] sm:$0xff]
    %v8951 = vld [vmem:[#allocation16 + $0x2f0] sm:$0xff]
    %v8952 = vld [vmem:[#allocation16 + $0x2f8] sm:$0xff]
    %v8953 = vld [vmem:[#allocation16 + $0x300] sm:$0xff]
    %v8954 = vld [vmem:[#allocation16 + $0x308] sm:$0xff]
    %v8955 = vld [vmem:[#allocation16 + $0x310] sm:$0xff]
    %v8956 = vld [vmem:[#allocation16 + $0x318] sm:$0xff]
    %v8957 = vld [vmem:[#allocation16 + $0x320] sm:$0xff]
    %v8958 = vld [vmem:[#allocation16 + $0x328] sm:$0xff]
    %v8959 = vld [vmem:[#allocation16 + $0x330] sm:$0xff]
    %v8960 = vld [vmem:[#allocation16 + $0x338] sm:$0xff]
    %v8961 = vld [vmem:[#allocation16 + $0x340] sm:$0xff]
    %v8962 = vld [vmem:[#allocation16 + $0x348] sm:$0xff]
    %v8963 = vld [vmem:[#allocation16 + $0x350] sm:$0xff]
    %v8964 = vld [vmem:[#allocation16 + $0x358] sm:$0xff]
    %v8965 = vld [vmem:[#allocation16 + $0x360] sm:$0xff]
    %v8966 = vld [vmem:[#allocation16 + $0x368] sm:$0xff]
    %v8967 = vld [vmem:[#allocation16 + $0x370] sm:$0xff]
    %v8968 = vld [vmem:[#allocation16 + $0x378] sm:$0xff]
    %v8969 = vld [vmem:[#allocation16 + $0x380] sm:$0xff]
    %v8970 = vld [vmem:[#allocation16 + $0x388] sm:$0xff]
    %v8971 = vld [vmem:[#allocation16 + $0x390] sm:$0xff]
    %v8972 = vld [vmem:[#allocation16 + $0x398] sm:$0xff]
    %v8973 = vld [vmem:[#allocation16 + $0x3a0] sm:$0xff]
    %v8974 = vld [vmem:[#allocation16 + $0x3a8] sm:$0xff]
    %v8975 = vld [vmem:[#allocation16 + $0x3b0] sm:$0xff]
    %v8976 = vld [vmem:[#allocation16 + $0x3b8] sm:$0xff]
    %v8977 = vld [vmem:[#allocation16 + $0x3c0] sm:$0xff]
    %v8978 = vld [vmem:[#allocation16 + $0x3c8] sm:$0xff]
    %v8979 = vld [vmem:[#allocation16 + $0x3d0] sm:$0xff]
    %v8980 = vld [vmem:[#allocation16 + $0x3d8] sm:$0xff]
    %v8981 = vld [vmem:[#allocation16 + $0x3e0] sm:$0xff]
    %v8982 = vld [vmem:[#allocation16 + $0x3e8] sm:$0xff]
    %v8983 = vld [vmem:[#allocation16 + $0x3f0] sm:$0xff]
    %v8984 = vld [vmem:[#allocation16 + $0x3f8] sm:$0xff]
    %v8985 = vld [vmem:[#allocation16 + $0x400] sm:$0xff]
    %v8986 = vld [vmem:[#allocation16 + $0x408] sm:$0xff]
    %v8987 = vld [vmem:[#allocation16 + $0x410] sm:$0xff]
    %v8988 = vld [vmem:[#allocation16 + $0x418] sm:$0xff]
    %v8989 = vld [vmem:[#allocation16 + $0x420] sm:$0xff]
    %v8990 = vld [vmem:[#allocation16 + $0x428] sm:$0xff]
    %v8991 = vld [vmem:[#allocation16 + $0x430] sm:$0xff]
    %v8992 = vld [vmem:[#allocation16 + $0x438] sm:$0xff]
    %v8993 = vld [vmem:[#allocation16 + $0x440] sm:$0xff]
    %v8994 = vld [vmem:[#allocation16 + $0x448] sm:$0xff]
    %v8995 = vld [vmem:[#allocation16 + $0x450] sm:$0xff]
    %v8996 = vld [vmem:[#allocation16 + $0x458] sm:$0xff]
    %v8997 = vld [vmem:[#allocation16 + $0x460] sm:$0xff]
    %v8998 = vld [vmem:[#allocation16 + $0x468] sm:$0xff]
    %v8999 = vld [vmem:[#allocation16 + $0x470] sm:$0xff]
    %v9000 = vld [vmem:[#allocation16 + $0x478] sm:$0xff]
    %v9001 = vld [vmem:[#allocation16 + $0x480] sm:$0xff]
    %v9002 = vld [vmem:[#allocation16 + $0x488] sm:$0xff]
    %v9003 = vld [vmem:[#allocation16 + $0x490] sm:$0xff]
    %v9004 = vld [vmem:[#allocation16 + $0x498] sm:$0xff]
    %v9005 = vld [vmem:[#allocation16 + $0x4a0] sm:$0xff]
    %v9006 = vld [vmem:[#allocation16 + $0x4a8] sm:$0xff]
    %v9007 = vld [vmem:[#allocation16 + $0x4b0] sm:$0xff]
    %v9008 = vld [vmem:[#allocation16 + $0x4b8] sm:$0xff]
    %v9009 = vld [vmem:[#allocation16 + $0x4c0] sm:$0xff]
    %v9010 = vld [vmem:[#allocation16 + $0x4c8] sm:$0xff]
    %v9011 = vld [vmem:[#allocation16 + $0x4d0] sm:$0xff]
    %v9012 = vld [vmem:[#allocation16 + $0x4d8] sm:$0xff]
    %v9013 = vld [vmem:[#allocation16 + $0x4e0] sm:$0xff]
    %v9014 = vld [vmem:[#allocation16 + $0x4e8] sm:$0xff]
    %v9015 = vld [vmem:[#allocation16 + $0x4f0] sm:$0xff]
    %v9016 = vld [vmem:[#allocation16 + $0x4f8] sm:$0xff]
    %v9017 = vld [vmem:[#allocation16 + $0x500] sm:$0xff]
    %v9018 = vld [vmem:[#allocation16 + $0x508] sm:$0xff]
    %v9019 = vld [vmem:[#allocation16 + $0x510] sm:$0xff]
    %v9020 = vld [vmem:[#allocation16 + $0x518] sm:$0xff]
    %v9021 = vld [vmem:[#allocation16 + $0x520] sm:$0xff]
    %v9022 = vld [vmem:[#allocation16 + $0x528] sm:$0xff]
    %v9023 = vld [vmem:[#allocation16 + $0x530] sm:$0xff]
    %v9024 = vld [vmem:[#allocation16 + $0x538] sm:$0xff]
    %v9025 = vld [vmem:[#allocation16 + $0x540] sm:$0xff]
    %v9026 = vld [vmem:[#allocation16 + $0x548] sm:$0xff]
    %v9027 = vld [vmem:[#allocation16 + $0x550] sm:$0xff]
    %v9028 = vld [vmem:[#allocation16 + $0x558] sm:$0xff]
    %v9029 = vld [vmem:[#allocation16 + $0x560] sm:$0xff]
    %v9030 = vld [vmem:[#allocation16 + $0x568] sm:$0xff]
    %v9031 = vld [vmem:[#allocation16 + $0x570] sm:$0xff]
    %v9032 = vld [vmem:[#allocation16 + $0x578] sm:$0xff]
    %v9033 = vld [vmem:[#allocation16 + $0x580] sm:$0xff]
    %v9034 = vld [vmem:[#allocation16 + $0x588] sm:$0xff]
    %v9035 = vld [vmem:[#allocation16 + $0x590] sm:$0xff]
    %v9036 = vld [vmem:[#allocation16 + $0x598] sm:$0xff]
    %v9037 = vld [vmem:[#allocation16 + $0x5a0] sm:$0xff]
    %v9038 = vld [vmem:[#allocation16 + $0x5a8] sm:$0xff]
    %v9039 = vld [vmem:[#allocation16 + $0x5b0] sm:$0xff]
    %v9040 = vld [vmem:[#allocation16 + $0x5b8] sm:$0xff]
    %v9041 = vld [vmem:[#allocation16 + $0x5c0] sm:$0xff]
    %v9042 = vld [vmem:[#allocation16 + $0x5c8] sm:$0xff]
    %v9043 = vld [vmem:[#allocation16 + $0x5d0] sm:$0xff]
    %v9044 = vld [vmem:[#allocation16 + $0x5d8] sm:$0xff]
    %v9045 = vld [vmem:[#allocation16 + $0x5e0] sm:$0xff]
    %v9046 = vld [vmem:[#allocation16 + $0x5e8] sm:$0xff]
    %v9047 = vld [vmem:[#allocation16 + $0x5f0] sm:$0xff]
    %v9048 = vld [vmem:[#allocation16 + $0x5f8] sm:$0xff]
    %v9049 = vld [vmem:[#allocation16 + $0x600] sm:$0xff]
    %v9050 = vld [vmem:[#allocation16 + $0x608] sm:$0xff]
    %v9051 = vld [vmem:[#allocation16 + $0x610] sm:$0xff]
    %v9052 = vld [vmem:[#allocation16 + $0x618] sm:$0xff]
    %v9053 = vld [vmem:[#allocation16 + $0x620] sm:$0xff]
    %v9054 = vld [vmem:[#allocation16 + $0x628] sm:$0xff]
    %v9055 = vld [vmem:[#allocation16 + $0x630] sm:$0xff]
    %v9056 = vld [vmem:[#allocation16 + $0x638] sm:$0xff]
    %v9057 = vld [vmem:[#allocation16 + $0x640] sm:$0xff]
    %v9058 = vld [vmem:[#allocation16 + $0x648] sm:$0xff]
    %v9059 = vld [vmem:[#allocation16 + $0x650] sm:$0xff]
    %v9060 = vld [vmem:[#allocation16 + $0x658] sm:$0xff]
    %v9061 = vld [vmem:[#allocation16 + $0x660] sm:$0xff]
    %v9062 = vld [vmem:[#allocation16 + $0x668] sm:$0xff]
    %v9063 = vld [vmem:[#allocation16 + $0x670] sm:$0xff]
    %v9064 = vld [vmem:[#allocation16 + $0x678] sm:$0xff]
    %v9065 = vld [vmem:[#allocation16 + $0x680] sm:$0xff]
    %v9066 = vld [vmem:[#allocation16 + $0x688] sm:$0xff]
    %v9067 = vld [vmem:[#allocation16 + $0x690] sm:$0xff]
    %v9068 = vld [vmem:[#allocation16 + $0x698] sm:$0xff]
    %v9069 = vld [vmem:[#allocation16 + $0x6a0] sm:$0xff]
    %v9070 = vld [vmem:[#allocation16 + $0x6a8] sm:$0xff]
    %v9071 = vld [vmem:[#allocation16 + $0x6b0] sm:$0xff]
    %v9072 = vld [vmem:[#allocation16 + $0x6b8] sm:$0xff]
    %v9073 = vld [vmem:[#allocation16 + $0x6c0] sm:$0xff]
    %v9074 = vld [vmem:[#allocation16 + $0x6c8] sm:$0xff]
    %v9075 = vld [vmem:[#allocation16 + $0x6d0] sm:$0xff]
    %v9076 = vld [vmem:[#allocation16 + $0x6d8] sm:$0xff]
    %v9077 = vld [vmem:[#allocation16 + $0x6e0] sm:$0xff]
    %v9078 = vld [vmem:[#allocation16 + $0x6e8] sm:$0xff]
    %v9079 = vld [vmem:[#allocation16 + $0x6f0] sm:$0xff]
    %v9080 = vld [vmem:[#allocation16 + $0x6f8] sm:$0xff]
    %v9081 = vld [vmem:[#allocation16 + $0x700] sm:$0xff]
    %v9082 = vld [vmem:[#allocation16 + $0x708] sm:$0xff]
    %v9083 = vld [vmem:[#allocation16 + $0x710] sm:$0xff]
    %v9084 = vld [vmem:[#allocation16 + $0x718] sm:$0xff]
    %v9085 = vld [vmem:[#allocation16 + $0x720] sm:$0xff]
    %v9086 = vld [vmem:[#allocation16 + $0x728] sm:$0xff]
    %v9087 = vld [vmem:[#allocation16 + $0x730] sm:$0xff]
    %v9088 = vld [vmem:[#allocation16 + $0x738] sm:$0xff]
    %v9089 = vld [vmem:[#allocation16 + $0x740] sm:$0xff]
    %v9090 = vld [vmem:[#allocation16 + $0x748] sm:$0xff]
    %v9091 = vld [vmem:[#allocation16 + $0x750] sm:$0xff]
    %v9092 = vld [vmem:[#allocation16 + $0x758] sm:$0xff]
    %v9093 = vld [vmem:[#allocation16 + $0x760] sm:$0xff]
    %v9094 = vld [vmem:[#allocation16 + $0x768] sm:$0xff]
    %v9095 = vld [vmem:[#allocation16 + $0x770] sm:$0xff]
    %v9096 = vld [vmem:[#allocation16 + $0x778] sm:$0xff]
    %v9097 = vld [vmem:[#allocation16 + $0x780] sm:$0xff]
    %v9098 = vld [vmem:[#allocation16 + $0x788] sm:$0xff]
    %v9099 = vld [vmem:[#allocation16 + $0x790] sm:$0xff]
    %v9100 = vld [vmem:[#allocation16 + $0x798] sm:$0xff]
    %v9101 = vld [vmem:[#allocation16 + $0x7a0] sm:$0xff]
    %v9102 = vld [vmem:[#allocation16 + $0x7a8] sm:$0xff]
    %v9103 = vld [vmem:[#allocation16 + $0x7b0] sm:$0xff]
    %v9104 = vld [vmem:[#allocation16 + $0x7b8] sm:$0xff]
    %v9105 = vld [vmem:[#allocation16 + $0x7c0] sm:$0xff]
    %v9106 = vld [vmem:[#allocation16 + $0x7c8] sm:$0xff]
    %v9107 = vld [vmem:[#allocation16 + $0x7d0] sm:$0xff]
    %v9108 = vld [vmem:[#allocation16 + $0x7d8] sm:$0xff]
    %v9109 = vld [vmem:[#allocation16 + $0x7e0] sm:$0xff]
    %v9110 = vld [vmem:[#allocation16 + $0x7e8] sm:$0xff]
    %v9111 = vld [vmem:[#allocation16 + $0x7f0] sm:$0xff]
    %v9112 = vld [vmem:[#allocation16 + $0x7f8] sm:$0xff]
    %v9113 = vld [vmem:[#allocation17] sm:$0xf]
    %v9115 = vperm.slane %v9113, 0
    %v9116 = vperm.slane %v9113, 1
    %v9117 = vperm.slane %v9113, 2
    %v9118 = vperm.slane %v9113, 3
    %v9379 = vunpack.c.l.b16 %v8857
    %v9380 = vunpack.c.h.b16 %v8857
    %v9381 = vunpack.c.l.b16 %v8858
    %v9382 = vunpack.c.h.b16 %v8858
    %v9383 = vunpack.c.l.b16 %v8859
    %v9384 = vunpack.c.h.b16 %v8859
    %v9385 = vunpack.c.l.b16 %v8860
    %v9386 = vunpack.c.h.b16 %v8860
    %v9387 = vunpack.c.l.b16 %v8861
    %v9388 = vunpack.c.h.b16 %v8861
    %v9389 = vunpack.c.l.b16 %v8862
    %v9390 = vunpack.c.h.b16 %v8862
    %v9391 = vunpack.c.l.b16 %v8863
    %v9392 = vunpack.c.h.b16 %v8863
    %v9393 = vunpack.c.l.b16 %v8864
    %v9394 = vunpack.c.h.b16 %v8864
    %v9395 = vunpack.c.l.b16 %v8865
    %v9396 = vunpack.c.h.b16 %v8865
    %v9397 = vunpack.c.l.b16 %v8866
    %v9398 = vunpack.c.h.b16 %v8866
    %v9399 = vunpack.c.l.b16 %v8867
    %v9400 = vunpack.c.h.b16 %v8867
    %v9401 = vunpack.c.l.b16 %v8868
    %v9402 = vunpack.c.h.b16 %v8868
    %v9403 = vunpack.c.l.b16 %v8869
    %v9404 = vunpack.c.h.b16 %v8869
    %v9405 = vunpack.c.l.b16 %v8870
    %v9406 = vunpack.c.h.b16 %v8870
    %v9407 = vunpack.c.l.b16 %v8871
    %v9408 = vunpack.c.h.b16 %v8871
    %v9409 = vunpack.c.l.b16 %v8872
    %v9410 = vunpack.c.h.b16 %v8872
    %v9411 = vunpack.c.l.b16 %v8873
    %v9412 = vunpack.c.h.b16 %v8873
    %v9413 = vunpack.c.l.b16 %v8874
    %v9414 = vunpack.c.h.b16 %v8874
    %v9415 = vunpack.c.l.b16 %v8875
    %v9416 = vunpack.c.h.b16 %v8875
    %v9417 = vunpack.c.l.b16 %v8876
    %v9418 = vunpack.c.h.b16 %v8876
    %v9419 = vunpack.c.l.b16 %v8877
    %v9420 = vunpack.c.h.b16 %v8877
    %v9421 = vunpack.c.l.b16 %v8878
    %v9422 = vunpack.c.h.b16 %v8878
    %v9423 = vunpack.c.l.b16 %v8879
    %v9424 = vunpack.c.h.b16 %v8879
    %v9425 = vunpack.c.l.b16 %v8880
    %v9426 = vunpack.c.h.b16 %v8880
    %v9427 = vunpack.c.l.b16 %v8881
    %v9428 = vunpack.c.h.b16 %v8881
    %v9429 = vunpack.c.l.b16 %v8882
    %v9430 = vunpack.c.h.b16 %v8882
    %v9431 = vunpack.c.l.b16 %v8883
    %v9432 = vunpack.c.h.b16 %v8883
    %v9433 = vunpack.c.l.b16 %v8884
    %v9434 = vunpack.c.h.b16 %v8884
    %v9435 = vunpack.c.l.b16 %v8885
    %v9436 = vunpack.c.h.b16 %v8885
    %v9437 = vunpack.c.l.b16 %v8886
    %v9438 = vunpack.c.h.b16 %v8886
    %v9439 = vunpack.c.l.b16 %v8887
    %v9440 = vunpack.c.h.b16 %v8887
    %v9441 = vunpack.c.l.b16 %v8888
    %v9442 = vunpack.c.h.b16 %v8888
    %v9443 = vunpack.c.l.b16 %v8889
    %v9444 = vunpack.c.h.b16 %v8889
    %v9445 = vunpack.c.l.b16 %v8890
    %v9446 = vunpack.c.h.b16 %v8890
    %v9447 = vunpack.c.l.b16 %v8891
    %v9448 = vunpack.c.h.b16 %v8891
    %v9449 = vunpack.c.l.b16 %v8892
    %v9450 = vunpack.c.h.b16 %v8892
    %v9451 = vunpack.c.l.b16 %v8893
    %v9452 = vunpack.c.h.b16 %v8893
    %v9453 = vunpack.c.l.b16 %v8894
    %v9454 = vunpack.c.h.b16 %v8894
    %v9455 = vunpack.c.l.b16 %v8895
    %v9456 = vunpack.c.h.b16 %v8895
    %v9457 = vunpack.c.l.b16 %v8896
    %v9458 = vunpack.c.h.b16 %v8896
    %v9459 = vunpack.c.l.b16 %v8897
    %v9460 = vunpack.c.h.b16 %v8897
    %v9461 = vunpack.c.l.b16 %v8898
    %v9462 = vunpack.c.h.b16 %v8898
    %v9463 = vunpack.c.l.b16 %v8899
    %v9464 = vunpack.c.h.b16 %v8899
    %v9465 = vunpack.c.l.b16 %v8900
    %v9466 = vunpack.c.h.b16 %v8900
    %v9467 = vunpack.c.l.b16 %v8901
    %v9468 = vunpack.c.h.b16 %v8901
    %v9469 = vunpack.c.l.b16 %v8902
    %v9470 = vunpack.c.h.b16 %v8902
    %v9471 = vunpack.c.l.b16 %v8903
    %v9472 = vunpack.c.h.b16 %v8903
    %v9473 = vunpack.c.l.b16 %v8904
    %v9474 = vunpack.c.h.b16 %v8904
    %v9475 = vunpack.c.l.b16 %v8905
    %v9476 = vunpack.c.h.b16 %v8905
    %v9477 = vunpack.c.l.b16 %v8906
    %v9478 = vunpack.c.h.b16 %v8906
    %v9479 = vunpack.c.l.b16 %v8907
    %v9480 = vunpack.c.h.b16 %v8907
    %v9481 = vunpack.c.l.b16 %v8908
    %v9482 = vunpack.c.h.b16 %v8908
    %v9483 = vunpack.c.l.b16 %v8909
    %v9484 = vunpack.c.h.b16 %v8909
    %v9485 = vunpack.c.l.b16 %v8910
    %v9486 = vunpack.c.h.b16 %v8910
    %v9487 = vunpack.c.l.b16 %v8911
    %v9488 = vunpack.c.h.b16 %v8911
    %v9489 = vunpack.c.l.b16 %v8912
    %v9490 = vunpack.c.h.b16 %v8912
    %v9491 = vunpack.c.l.b16 %v8913
    %v9492 = vunpack.c.h.b16 %v8913
    %v9493 = vunpack.c.l.b16 %v8914
    %v9494 = vunpack.c.h.b16 %v8914
    %v9495 = vunpack.c.l.b16 %v8915
    %v9496 = vunpack.c.h.b16 %v8915
    %v9497 = vunpack.c.l.b16 %v8916
    %v9498 = vunpack.c.h.b16 %v8916
    %v9499 = vunpack.c.l.b16 %v8917
    %v9500 = vunpack.c.h.b16 %v8917
    %v9501 = vunpack.c.l.b16 %v8918
    %v9502 = vunpack.c.h.b16 %v8918
    %v9503 = vunpack.c.l.b16 %v8919
    %v9504 = vunpack.c.h.b16 %v8919
    %v9505 = vunpack.c.l.b16 %v8920
    %v9506 = vunpack.c.h.b16 %v8920
    %v9507 = vunpack.c.l.b16 %v8921
    %v9508 = vunpack.c.h.b16 %v8921
    %v9509 = vunpack.c.l.b16 %v8922
    %v9510 = vunpack.c.h.b16 %v8922
    %v9511 = vunpack.c.l.b16 %v8923
    %v9512 = vunpack.c.h.b16 %v8923
    %v9513 = vunpack.c.l.b16 %v8924
    %v9514 = vunpack.c.h.b16 %v8924
    %v9515 = vunpack.c.l.b16 %v8925
    %v9516 = vunpack.c.h.b16 %v8925
    %v9517 = vunpack.c.l.b16 %v8926
    %v9518 = vunpack.c.h.b16 %v8926
    %v9519 = vunpack.c.l.b16 %v8927
    %v9520 = vunpack.c.h.b16 %v8927
    %v9521 = vunpack.c.l.b16 %v8928
    %v9522 = vunpack.c.h.b16 %v8928
    %v9523 = vunpack.c.l.b16 %v8929
    %v9524 = vunpack.c.h.b16 %v8929
    %v9525 = vunpack.c.l.b16 %v8930
    %v9526 = vunpack.c.h.b16 %v8930
    %v9527 = vunpack.c.l.b16 %v8931
    %v9528 = vunpack.c.h.b16 %v8931
    %v9529 = vunpack.c.l.b16 %v8932
    %v9530 = vunpack.c.h.b16 %v8932
    %v9531 = vunpack.c.l.b16 %v8933
    %v9532 = vunpack.c.h.b16 %v8933
    %v9533 = vunpack.c.l.b16 %v8934
    %v9534 = vunpack.c.h.b16 %v8934
    %v9535 = vunpack.c.l.b16 %v8935
    %v9536 = vunpack.c.h.b16 %v8935
    %v9537 = vunpack.c.l.b16 %v8936
    %v9538 = vunpack.c.h.b16 %v8936
    %v9539 = vunpack.c.l.b16 %v8937
    %v9540 = vunpack.c.h.b16 %v8937
    %v9541 = vunpack.c.l.b16 %v8938
    %v9542 = vunpack.c.h.b16 %v8938
    %v9543 = vunpack.c.l.b16 %v8939
    %v9544 = vunpack.c.h.b16 %v8939
    %v9545 = vunpack.c.l.b16 %v8940
    %v9546 = vunpack.c.h.b16 %v8940
    %v9547 = vunpack.c.l.b16 %v8941
    %v9548 = vunpack.c.h.b16 %v8941
    %v9549 = vunpack.c.l.b16 %v8942
    %v9550 = vunpack.c.h.b16 %v8942
    %v9551 = vunpack.c.l.b16 %v8943
    %v9552 = vunpack.c.h.b16 %v8943
    %v9553 = vunpack.c.l.b16 %v8944
    %v9554 = vunpack.c.h.b16 %v8944
    %v9555 = vunpack.c.l.b16 %v8945
    %v9556 = vunpack.c.h.b16 %v8945
    %v9557 = vunpack.c.l.b16 %v8946
    %v9558 = vunpack.c.h.b16 %v8946
    %v9559 = vunpack.c.l.b16 %v8947
    %v9560 = vunpack.c.h.b16 %v8947
    %v9561 = vunpack.c.l.b16 %v8948
    %v9562 = vunpack.c.h.b16 %v8948
    %v9563 = vunpack.c.l.b16 %v8949
    %v9564 = vunpack.c.h.b16 %v8949
    %v9565 = vunpack.c.l.b16 %v8950
    %v9566 = vunpack.c.h.b16 %v8950
    %v9567 = vunpack.c.l.b16 %v8951
    %v9568 = vunpack.c.h.b16 %v8951
    %v9569 = vunpack.c.l.b16 %v8952
    %v9570 = vunpack.c.h.b16 %v8952
    %v9571 = vunpack.c.l.b16 %v8953
    %v9572 = vunpack.c.h.b16 %v8953
    %v9573 = vunpack.c.l.b16 %v8954
    %v9574 = vunpack.c.h.b16 %v8954
    %v9575 = vunpack.c.l.b16 %v8955
    %v9576 = vunpack.c.h.b16 %v8955
    %v9577 = vunpack.c.l.b16 %v8956
    %v9578 = vunpack.c.h.b16 %v8956
    %v9579 = vunpack.c.l.b16 %v8957
    %v9580 = vunpack.c.h.b16 %v8957
    %v9581 = vunpack.c.l.b16 %v8958
    %v9582 = vunpack.c.h.b16 %v8958
    %v9583 = vunpack.c.l.b16 %v8959
    %v9584 = vunpack.c.h.b16 %v8959
    %v9585 = vunpack.c.l.b16 %v8960
    %v9586 = vunpack.c.h.b16 %v8960
    %v9587 = vunpack.c.l.b16 %v8961
    %v9588 = vunpack.c.h.b16 %v8961
    %v9589 = vunpack.c.l.b16 %v8962
    %v9590 = vunpack.c.h.b16 %v8962
    %v9591 = vunpack.c.l.b16 %v8963
    %v9592 = vunpack.c.h.b16 %v8963
    %v9593 = vunpack.c.l.b16 %v8964
    %v9594 = vunpack.c.h.b16 %v8964
    %v9595 = vunpack.c.l.b16 %v8965
    %v9596 = vunpack.c.h.b16 %v8965
    %v9597 = vunpack.c.l.b16 %v8966
    %v9598 = vunpack.c.h.b16 %v8966
    %v9599 = vunpack.c.l.b16 %v8967
    %v9600 = vunpack.c.h.b16 %v8967
    %v9601 = vunpack.c.l.b16 %v8968
    %v9602 = vunpack.c.h.b16 %v8968
    %v9603 = vunpack.c.l.b16 %v8969
    %v9604 = vunpack.c.h.b16 %v8969
    %v9605 = vunpack.c.l.b16 %v8970
    %v9606 = vunpack.c.h.b16 %v8970
    %v9607 = vunpack.c.l.b16 %v8971
    %v9608 = vunpack.c.h.b16 %v8971
    %v9609 = vunpack.c.l.b16 %v8972
    %v9610 = vunpack.c.h.b16 %v8972
    %v9611 = vunpack.c.l.b16 %v8973
    %v9612 = vunpack.c.h.b16 %v8973
    %v9613 = vunpack.c.l.b16 %v8974
    %v9614 = vunpack.c.h.b16 %v8974
    %v9615 = vunpack.c.l.b16 %v8975
    %v9616 = vunpack.c.h.b16 %v8975
    %v9617 = vunpack.c.l.b16 %v8976
    %v9618 = vunpack.c.h.b16 %v8976
    %v9619 = vunpack.c.l.b16 %v8977
    %v9620 = vunpack.c.h.b16 %v8977
    %v9621 = vunpack.c.l.b16 %v8978
    %v9622 = vunpack.c.h.b16 %v8978
    %v9623 = vunpack.c.l.b16 %v8979
    %v9624 = vunpack.c.h.b16 %v8979
    %v9625 = vunpack.c.l.b16 %v8980
    %v9626 = vunpack.c.h.b16 %v8980
    %v9627 = vunpack.c.l.b16 %v8981
    %v9628 = vunpack.c.h.b16 %v8981
    %v9629 = vunpack.c.l.b16 %v8982
    %v9630 = vunpack.c.h.b16 %v8982
    %v9631 = vunpack.c.l.b16 %v8983
    %v9632 = vunpack.c.h.b16 %v8983
    %v9633 = vunpack.c.l.b16 %v8984
    %v9634 = vunpack.c.h.b16 %v8984
    %v9635 = vunpack.c.l.b16 %v8985
    %v9636 = vunpack.c.h.b16 %v8985
    %v9637 = vunpack.c.l.b16 %v8986
    %v9638 = vunpack.c.h.b16 %v8986
    %v9639 = vunpack.c.l.b16 %v8987
    %v9640 = vunpack.c.h.b16 %v8987
    %v9641 = vunpack.c.l.b16 %v8988
    %v9642 = vunpack.c.h.b16 %v8988
    %v9643 = vunpack.c.l.b16 %v8989
    %v9644 = vunpack.c.h.b16 %v8989
    %v9645 = vunpack.c.l.b16 %v8990
    %v9646 = vunpack.c.h.b16 %v8990
    %v9647 = vunpack.c.l.b16 %v8991
    %v9648 = vunpack.c.h.b16 %v8991
    %v9649 = vunpack.c.l.b16 %v8992
    %v9650 = vunpack.c.h.b16 %v8992
    %v9651 = vunpack.c.l.b16 %v8993
    %v9652 = vunpack.c.h.b16 %v8993
    %v9653 = vunpack.c.l.b16 %v8994
    %v9654 = vunpack.c.h.b16 %v8994
    %v9655 = vunpack.c.l.b16 %v8995
    %v9656 = vunpack.c.h.b16 %v8995
    %v9657 = vunpack.c.l.b16 %v8996
    %v9658 = vunpack.c.h.b16 %v8996
    %v9659 = vunpack.c.l.b16 %v8997
    %v9660 = vunpack.c.h.b16 %v8997
    %v9661 = vunpack.c.l.b16 %v8998
    %v9662 = vunpack.c.h.b16 %v8998
    %v9663 = vunpack.c.l.b16 %v8999
    %v9664 = vunpack.c.h.b16 %v8999
    %v9665 = vunpack.c.l.b16 %v9000
    %v9666 = vunpack.c.h.b16 %v9000
    %v9667 = vunpack.c.l.b16 %v9001
    %v9668 = vunpack.c.h.b16 %v9001
    %v9669 = vunpack.c.l.b16 %v9002
    %v9670 = vunpack.c.h.b16 %v9002
    %v9671 = vunpack.c.l.b16 %v9003
    %v9672 = vunpack.c.h.b16 %v9003
    %v9673 = vunpack.c.l.b16 %v9004
    %v9674 = vunpack.c.h.b16 %v9004
    %v9675 = vunpack.c.l.b16 %v9005
    %v9676 = vunpack.c.h.b16 %v9005
    %v9677 = vunpack.c.l.b16 %v9006
    %v9678 = vunpack.c.h.b16 %v9006
    %v9679 = vunpack.c.l.b16 %v9007
    %v9680 = vunpack.c.h.b16 %v9007
    %v9681 = vunpack.c.l.b16 %v9008
    %v9682 = vunpack.c.h.b16 %v9008
    %v9683 = vunpack.c.l.b16 %v9009
    %v9684 = vunpack.c.h.b16 %v9009
    %v9685 = vunpack.c.l.b16 %v9010
    %v9686 = vunpack.c.h.b16 %v9010
    %v9687 = vunpack.c.l.b16 %v9011
    %v9688 = vunpack.c.h.b16 %v9011
    %v9689 = vunpack.c.l.b16 %v9012
    %v9690 = vunpack.c.h.b16 %v9012
    %v9691 = vunpack.c.l.b16 %v9013
    %v9692 = vunpack.c.h.b16 %v9013
    %v9693 = vunpack.c.l.b16 %v9014
    %v9694 = vunpack.c.h.b16 %v9014
    %v9695 = vunpack.c.l.b16 %v9015
    %v9696 = vunpack.c.h.b16 %v9015
    %v9697 = vunpack.c.l.b16 %v9016
    %v9698 = vunpack.c.h.b16 %v9016
    %v9699 = vunpack.c.l.b16 %v9017
    %v9700 = vunpack.c.h.b16 %v9017
    %v9701 = vunpack.c.l.b16 %v9018
    %v9702 = vunpack.c.h.b16 %v9018
    %v9703 = vunpack.c.l.b16 %v9019
    %v9704 = vunpack.c.h.b16 %v9019
    %v9705 = vunpack.c.l.b16 %v9020
    %v9706 = vunpack.c.h.b16 %v9020
    %v9707 = vunpack.c.l.b16 %v9021
    %v9708 = vunpack.c.h.b16 %v9021
    %v9709 = vunpack.c.l.b16 %v9022
    %v9710 = vunpack.c.h.b16 %v9022
    %v9711 = vunpack.c.l.b16 %v9023
    %v9712 = vunpack.c.h.b16 %v9023
    %v9713 = vunpack.c.l.b16 %v9024
    %v9714 = vunpack.c.h.b16 %v9024
    %v9715 = vunpack.c.l.b16 %v9025
    %v9716 = vunpack.c.h.b16 %v9025
    %v9717 = vunpack.c.l.b16 %v9026
    %v9718 = vunpack.c.h.b16 %v9026
    %v9719 = vunpack.c.l.b16 %v9027
    %v9720 = vunpack.c.h.b16 %v9027
    %v9721 = vunpack.c.l.b16 %v9028
    %v9722 = vunpack.c.h.b16 %v9028
    %v9723 = vunpack.c.l.b16 %v9029
    %v9724 = vunpack.c.h.b16 %v9029
    %v9725 = vunpack.c.l.b16 %v9030
    %v9726 = vunpack.c.h.b16 %v9030
    %v9727 = vunpack.c.l.b16 %v9031
    %v9728 = vunpack.c.h.b16 %v9031
    %v9729 = vunpack.c.l.b16 %v9032
    %v9730 = vunpack.c.h.b16 %v9032
    %v9731 = vunpack.c.l.b16 %v9033
    %v9732 = vunpack.c.h.b16 %v9033
    %v9733 = vunpack.c.l.b16 %v9034
    %v9734 = vunpack.c.h.b16 %v9034
    %v9735 = vunpack.c.l.b16 %v9035
    %v9736 = vunpack.c.h.b16 %v9035
    %v9737 = vunpack.c.l.b16 %v9036
    %v9738 = vunpack.c.h.b16 %v9036
    %v9739 = vunpack.c.l.b16 %v9037
    %v9740 = vunpack.c.h.b16 %v9037
    %v9741 = vunpack.c.l.b16 %v9038
    %v9742 = vunpack.c.h.b16 %v9038
    %v9743 = vunpack.c.l.b16 %v9039
    %v9744 = vunpack.c.h.b16 %v9039
    %v9745 = vunpack.c.l.b16 %v9040
    %v9746 = vunpack.c.h.b16 %v9040
    %v9747 = vunpack.c.l.b16 %v9041
    %v9748 = vunpack.c.h.b16 %v9041
    %v9749 = vunpack.c.l.b16 %v9042
    %v9750 = vunpack.c.h.b16 %v9042
    %v9751 = vunpack.c.l.b16 %v9043
    %v9752 = vunpack.c.h.b16 %v9043
    %v9753 = vunpack.c.l.b16 %v9044
    %v9754 = vunpack.c.h.b16 %v9044
    %v9755 = vunpack.c.l.b16 %v9045
    %v9756 = vunpack.c.h.b16 %v9045
    %v9757 = vunpack.c.l.b16 %v9046
    %v9758 = vunpack.c.h.b16 %v9046
    %v9759 = vunpack.c.l.b16 %v9047
    %v9760 = vunpack.c.h.b16 %v9047
    %v9761 = vunpack.c.l.b16 %v9048
    %v9762 = vunpack.c.h.b16 %v9048
    %v9763 = vunpack.c.l.b16 %v9049
    %v9764 = vunpack.c.h.b16 %v9049
    %v9765 = vunpack.c.l.b16 %v9050
    %v9766 = vunpack.c.h.b16 %v9050
    %v9767 = vunpack.c.l.b16 %v9051
    %v9768 = vunpack.c.h.b16 %v9051
    %v9769 = vunpack.c.l.b16 %v9052
    %v9770 = vunpack.c.h.b16 %v9052
    %v9771 = vunpack.c.l.b16 %v9053
    %v9772 = vunpack.c.h.b16 %v9053
    %v9773 = vunpack.c.l.b16 %v9054
    %v9774 = vunpack.c.h.b16 %v9054
    %v9775 = vunpack.c.l.b16 %v9055
    %v9776 = vunpack.c.h.b16 %v9055
    %v9777 = vunpack.c.l.b16 %v9056
    %v9778 = vunpack.c.h.b16 %v9056
    %v9779 = vunpack.c.l.b16 %v9057
    %v9780 = vunpack.c.h.b16 %v9057
    %v9781 = vunpack.c.l.b16 %v9058
    %v9782 = vunpack.c.h.b16 %v9058
    %v9783 = vunpack.c.l.b16 %v9059
    %v9784 = vunpack.c.h.b16 %v9059
    %v9785 = vunpack.c.l.b16 %v9060
    %v9786 = vunpack.c.h.b16 %v9060
    %v9787 = vunpack.c.l.b16 %v9061
    %v9788 = vunpack.c.h.b16 %v9061
    %v9789 = vunpack.c.l.b16 %v9062
    %v9790 = vunpack.c.h.b16 %v9062
    %v9791 = vunpack.c.l.b16 %v9063
    %v9792 = vunpack.c.h.b16 %v9063
    %v9793 = vunpack.c.l.b16 %v9064
    %v9794 = vunpack.c.h.b16 %v9064
    %v9795 = vunpack.c.l.b16 %v9065
    %v9796 = vunpack.c.h.b16 %v9065
    %v9797 = vunpack.c.l.b16 %v9066
    %v9798 = vunpack.c.h.b16 %v9066
    %v9799 = vunpack.c.l.b16 %v9067
    %v9800 = vunpack.c.h.b16 %v9067
    %v9801 = vunpack.c.l.b16 %v9068
    %v9802 = vunpack.c.h.b16 %v9068
    %v9803 = vunpack.c.l.b16 %v9069
    %v9804 = vunpack.c.h.b16 %v9069
    %v9805 = vunpack.c.l.b16 %v9070
    %v9806 = vunpack.c.h.b16 %v9070
    %v9807 = vunpack.c.l.b16 %v9071
    %v9808 = vunpack.c.h.b16 %v9071
    %v9809 = vunpack.c.l.b16 %v9072
    %v9810 = vunpack.c.h.b16 %v9072
    %v9811 = vunpack.c.l.b16 %v9073
    %v9812 = vunpack.c.h.b16 %v9073
    %v9813 = vunpack.c.l.b16 %v9074
    %v9814 = vunpack.c.h.b16 %v9074
    %v9815 = vunpack.c.l.b16 %v9075
    %v9816 = vunpack.c.h.b16 %v9075
    %v9817 = vunpack.c.l.b16 %v9076
    %v9818 = vunpack.c.h.b16 %v9076
    %v9819 = vunpack.c.l.b16 %v9077
    %v9820 = vunpack.c.h.b16 %v9077
    %v9821 = vunpack.c.l.b16 %v9078
    %v9822 = vunpack.c.h.b16 %v9078
    %v9823 = vunpack.c.l.b16 %v9079
    %v9824 = vunpack.c.h.b16 %v9079
    %v9825 = vunpack.c.l.b16 %v9080
    %v9826 = vunpack.c.h.b16 %v9080
    %v9827 = vunpack.c.l.b16 %v9081
    %v9828 = vunpack.c.h.b16 %v9081
    %v9829 = vunpack.c.l.b16 %v9082
    %v9830 = vunpack.c.h.b16 %v9082
    %v9831 = vunpack.c.l.b16 %v9083
    %v9832 = vunpack.c.h.b16 %v9083
    %v9833 = vunpack.c.l.b16 %v9084
    %v9834 = vunpack.c.h.b16 %v9084
    %v9835 = vunpack.c.l.b16 %v9085
    %v9836 = vunpack.c.h.b16 %v9085
    %v9837 = vunpack.c.l.b16 %v9086
    %v9838 = vunpack.c.h.b16 %v9086
    %v9839 = vunpack.c.l.b16 %v9087
    %v9840 = vunpack.c.h.b16 %v9087
    %v9841 = vunpack.c.l.b16 %v9088
    %v9842 = vunpack.c.h.b16 %v9088
    %v9843 = vunpack.c.l.b16 %v9089
    %v9844 = vunpack.c.h.b16 %v9089
    %v9845 = vunpack.c.l.b16 %v9090
    %v9846 = vunpack.c.h.b16 %v9090
    %v9847 = vunpack.c.l.b16 %v9091
    %v9848 = vunpack.c.h.b16 %v9091
    %v9849 = vunpack.c.l.b16 %v9092
    %v9850 = vunpack.c.h.b16 %v9092
    %v9851 = vunpack.c.l.b16 %v9093
    %v9852 = vunpack.c.h.b16 %v9093
    %v9853 = vunpack.c.l.b16 %v9094
    %v9854 = vunpack.c.h.b16 %v9094
    %v9855 = vunpack.c.l.b16 %v9095
    %v9856 = vunpack.c.h.b16 %v9095
    %v9857 = vunpack.c.l.b16 %v9096
    %v9858 = vunpack.c.h.b16 %v9096
    %v9859 = vunpack.c.l.b16 %v9097
    %v9860 = vunpack.c.h.b16 %v9097
    %v9861 = vunpack.c.l.b16 %v9098
    %v9862 = vunpack.c.h.b16 %v9098
    %v9863 = vunpack.c.l.b16 %v9099
    %v9864 = vunpack.c.h.b16 %v9099
    %v9865 = vunpack.c.l.b16 %v9100
    %v9866 = vunpack.c.h.b16 %v9100
    %v9867 = vunpack.c.l.b16 %v9101
    %v9868 = vunpack.c.h.b16 %v9101
    %v9869 = vunpack.c.l.b16 %v9102
    %v9870 = vunpack.c.h.b16 %v9102
    %v9871 = vunpack.c.l.b16 %v9103
    %v9872 = vunpack.c.h.b16 %v9103
    %v9873 = vunpack.c.l.b16 %v9104
    %v9874 = vunpack.c.h.b16 %v9104
    %v9875 = vunpack.c.l.b16 %v9105
    %v9876 = vunpack.c.h.b16 %v9105
    %v9877 = vunpack.c.l.b16 %v9106
    %v9878 = vunpack.c.h.b16 %v9106
    %v9879 = vunpack.c.l.b16 %v9107
    %v9880 = vunpack.c.h.b16 %v9107
    %v9881 = vunpack.c.l.b16 %v9108
    %v9882 = vunpack.c.h.b16 %v9108
    %v9883 = vunpack.c.l.b16 %v9109
    %v9884 = vunpack.c.h.b16 %v9109
    %v9885 = vunpack.c.l.b16 %v9110
    %v9886 = vunpack.c.h.b16 %v9110
    %v9887 = vunpack.c.l.b16 %v9111
    %v9888 = vunpack.c.h.b16 %v9111
    %v9889 = vunpack.c.l.b16 %v9112
    %v9890 = vunpack.c.h.b16 %v9112
    %v9891 = vpack.c.b16 %v9383, %v9379
    %v9892 = vpack.c.b16 %v9384, %v9380
    %v9893 = vpack.c.b16 %v9385, %v9381
    %v9894 = vpack.c.b16 %v9386, %v9382
    %v9895 = vpack.c.b16 %v9391, %v9387
    %v9896 = vpack.c.b16 %v9392, %v9388
    %v9897 = vpack.c.b16 %v9393, %v9389
    %v9898 = vpack.c.b16 %v9394, %v9390
    %v9899 = vpack.c.b16 %v9399, %v9395
    %v9900 = vpack.c.b16 %v9400, %v9396
    %v9901 = vpack.c.b16 %v9401, %v9397
    %v9902 = vpack.c.b16 %v9402, %v9398
    %v9903 = vpack.c.b16 %v9407, %v9403
    %v9904 = vpack.c.b16 %v9408, %v9404
    %v9905 = vpack.c.b16 %v9409, %v9405
    %v9906 = vpack.c.b16 %v9410, %v9406
    %v9907 = vpack.c.b16 %v9415, %v9411
    %v9908 = vpack.c.b16 %v9416, %v9412
    %v9909 = vpack.c.b16 %v9417, %v9413
    %v9910 = vpack.c.b16 %v9418, %v9414
    %v9911 = vpack.c.b16 %v9423, %v9419
    %v9912 = vpack.c.b16 %v9424, %v9420
    %v9913 = vpack.c.b16 %v9425, %v9421
    %v9914 = vpack.c.b16 %v9426, %v9422
    %v9915 = vpack.c.b16 %v9431, %v9427
    %v9916 = vpack.c.b16 %v9432, %v9428
    %v9917 = vpack.c.b16 %v9433, %v9429
    %v9918 = vpack.c.b16 %v9434, %v9430
    %v9919 = vpack.c.b16 %v9439, %v9435
    %v9920 = vpack.c.b16 %v9440, %v9436
    %v9921 = vpack.c.b16 %v9441, %v9437
    %v9922 = vpack.c.b16 %v9442, %v9438
    %v9923 = vpack.c.b16 %v9447, %v9443
    %v9924 = vpack.c.b16 %v9448, %v9444
    %v9925 = vpack.c.b16 %v9449, %v9445
    %v9926 = vpack.c.b16 %v9450, %v9446
    %v9927 = vpack.c.b16 %v9455, %v9451
    %v9928 = vpack.c.b16 %v9456, %v9452
    %v9929 = vpack.c.b16 %v9457, %v9453
    %v9930 = vpack.c.b16 %v9458, %v9454
    %v9931 = vpack.c.b16 %v9463, %v9459
    %v9932 = vpack.c.b16 %v9464, %v9460
    %v9933 = vpack.c.b16 %v9465, %v9461
    %v9934 = vpack.c.b16 %v9466, %v9462
    %v9935 = vpack.c.b16 %v9471, %v9467
    %v9936 = vpack.c.b16 %v9472, %v9468
    %v9937 = vpack.c.b16 %v9473, %v9469
    %v9938 = vpack.c.b16 %v9474, %v9470
    %v9939 = vpack.c.b16 %v9479, %v9475
    %v9940 = vpack.c.b16 %v9480, %v9476
    %v9941 = vpack.c.b16 %v9481, %v9477
    %v9942 = vpack.c.b16 %v9482, %v9478
    %v9943 = vpack.c.b16 %v9487, %v9483
    %v9944 = vpack.c.b16 %v9488, %v9484
    %v9945 = vpack.c.b16 %v9489, %v9485
    %v9946 = vpack.c.b16 %v9490, %v9486
    %v9947 = vpack.c.b16 %v9495, %v9491
    %v9948 = vpack.c.b16 %v9496, %v9492
    %v9949 = vpack.c.b16 %v9497, %v9493
    %v9950 = vpack.c.b16 %v9498, %v9494
    %v9951 = vpack.c.b16 %v9503, %v9499
    %v9952 = vpack.c.b16 %v9504, %v9500
    %v9953 = vpack.c.b16 %v9505, %v9501
    %v9954 = vpack.c.b16 %v9506, %v9502
    %v9955 = vpack.c.b16 %v9511, %v9507
    %v9956 = vpack.c.b16 %v9512, %v9508
    %v9957 = vpack.c.b16 %v9513, %v9509
    %v9958 = vpack.c.b16 %v9514, %v9510
    %v9959 = vpack.c.b16 %v9519, %v9515
    %v9960 = vpack.c.b16 %v9520, %v9516
    %v9961 = vpack.c.b16 %v9521, %v9517
    %v9962 = vpack.c.b16 %v9522, %v9518
    %v9963 = vpack.c.b16 %v9527, %v9523
    %v9964 = vpack.c.b16 %v9528, %v9524
    %v9965 = vpack.c.b16 %v9529, %v9525
    %v9966 = vpack.c.b16 %v9530, %v9526
    %v9967 = vpack.c.b16 %v9535, %v9531
    %v9968 = vpack.c.b16 %v9536, %v9532
    %v9969 = vpack.c.b16 %v9537, %v9533
    %v9970 = vpack.c.b16 %v9538, %v9534
    %v9971 = vpack.c.b16 %v9543, %v9539
    %v9972 = vpack.c.b16 %v9544, %v9540
    %v9973 = vpack.c.b16 %v9545, %v9541
    %v9974 = vpack.c.b16 %v9546, %v9542
    %v9975 = vpack.c.b16 %v9551, %v9547
    %v9976 = vpack.c.b16 %v9552, %v9548
    %v9977 = vpack.c.b16 %v9553, %v9549
    %v9978 = vpack.c.b16 %v9554, %v9550
    %v9979 = vpack.c.b16 %v9559, %v9555
    %v9980 = vpack.c.b16 %v9560, %v9556
    %v9981 = vpack.c.b16 %v9561, %v9557
    %v9982 = vpack.c.b16 %v9562, %v9558
    %v9983 = vpack.c.b16 %v9567, %v9563
    %v9984 = vpack.c.b16 %v9568, %v9564
    %v9985 = vpack.c.b16 %v9569, %v9565
    %v9986 = vpack.c.b16 %v9570, %v9566
    %v9987 = vpack.c.b16 %v9575, %v9571
    %v9988 = vpack.c.b16 %v9576, %v9572
    %v9989 = vpack.c.b16 %v9577, %v9573
    %v9990 = vpack.c.b16 %v9578, %v9574
    %v9991 = vpack.c.b16 %v9583, %v9579
    %v9992 = vpack.c.b16 %v9584, %v9580
    %v9993 = vpack.c.b16 %v9585, %v9581
    %v9994 = vpack.c.b16 %v9586, %v9582
    %v9995 = vpack.c.b16 %v9591, %v9587
    %v9996 = vpack.c.b16 %v9592, %v9588
    %v9997 = vpack.c.b16 %v9593, %v9589
    %v9998 = vpack.c.b16 %v9594, %v9590
    %v9999 = vpack.c.b16 %v9599, %v9595
    %v10000 = vpack.c.b16 %v9600, %v9596
    %v10001 = vpack.c.b16 %v9601, %v9597
    %v10002 = vpack.c.b16 %v9602, %v9598
    %v10003 = vpack.c.b16 %v9607, %v9603
    %v10004 = vpack.c.b16 %v9608, %v9604
    %v10005 = vpack.c.b16 %v9609, %v9605
    %v10006 = vpack.c.b16 %v9610, %v9606
    %v10007 = vpack.c.b16 %v9615, %v9611
    %v10008 = vpack.c.b16 %v9616, %v9612
    %v10009 = vpack.c.b16 %v9617, %v9613
    %v10010 = vpack.c.b16 %v9618, %v9614
    %v10011 = vpack.c.b16 %v9623, %v9619
    %v10012 = vpack.c.b16 %v9624, %v9620
    %v10013 = vpack.c.b16 %v9625, %v9621
    %v10014 = vpack.c.b16 %v9626, %v9622
    %v10015 = vpack.c.b16 %v9631, %v9627
    %v10016 = vpack.c.b16 %v9632, %v9628
    %v10017 = vpack.c.b16 %v9633, %v9629
    %v10018 = vpack.c.b16 %v9634, %v9630
    %v10019 = vpack.c.b16 %v9639, %v9635
    %v10020 = vpack.c.b16 %v9640, %v9636
    %v10021 = vpack.c.b16 %v9641, %v9637
    %v10022 = vpack.c.b16 %v9642, %v9638
    %v10023 = vpack.c.b16 %v9647, %v9643
    %v10024 = vpack.c.b16 %v9648, %v9644
    %v10025 = vpack.c.b16 %v9649, %v9645
    %v10026 = vpack.c.b16 %v9650, %v9646
    %v10027 = vpack.c.b16 %v9655, %v9651
    %v10028 = vpack.c.b16 %v9656, %v9652
    %v10029 = vpack.c.b16 %v9657, %v9653
    %v10030 = vpack.c.b16 %v9658, %v9654
    %v10031 = vpack.c.b16 %v9663, %v9659
    %v10032 = vpack.c.b16 %v9664, %v9660
    %v10033 = vpack.c.b16 %v9665, %v9661
    %v10034 = vpack.c.b16 %v9666, %v9662
    %v10035 = vpack.c.b16 %v9671, %v9667
    %v10036 = vpack.c.b16 %v9672, %v9668
    %v10037 = vpack.c.b16 %v9673, %v9669
    %v10038 = vpack.c.b16 %v9674, %v9670
    %v10039 = vpack.c.b16 %v9679, %v9675
    %v10040 = vpack.c.b16 %v9680, %v9676
    %v10041 = vpack.c.b16 %v9681, %v9677
    %v10042 = vpack.c.b16 %v9682, %v9678
    %v10043 = vpack.c.b16 %v9687, %v9683
    %v10044 = vpack.c.b16 %v9688, %v9684
    %v10045 = vpack.c.b16 %v9689, %v9685
    %v10046 = vpack.c.b16 %v9690, %v9686
    %v10047 = vpack.c.b16 %v9695, %v9691
    %v10048 = vpack.c.b16 %v9696, %v9692
    %v10049 = vpack.c.b16 %v9697, %v9693
    %v10050 = vpack.c.b16 %v9698, %v9694
    %v10051 = vpack.c.b16 %v9703, %v9699
    %v10052 = vpack.c.b16 %v9704, %v9700
    %v10053 = vpack.c.b16 %v9705, %v9701
    %v10054 = vpack.c.b16 %v9706, %v9702
    %v10055 = vpack.c.b16 %v9711, %v9707
    %v10056 = vpack.c.b16 %v9712, %v9708
    %v10057 = vpack.c.b16 %v9713, %v9709
    %v10058 = vpack.c.b16 %v9714, %v9710
    %v10059 = vpack.c.b16 %v9719, %v9715
    %v10060 = vpack.c.b16 %v9720, %v9716
    %v10061 = vpack.c.b16 %v9721, %v9717
    %v10062 = vpack.c.b16 %v9722, %v9718
    %v10063 = vpack.c.b16 %v9727, %v9723
    %v10064 = vpack.c.b16 %v9728, %v9724
    %v10065 = vpack.c.b16 %v9729, %v9725
    %v10066 = vpack.c.b16 %v9730, %v9726
    %v10067 = vpack.c.b16 %v9735, %v9731
    %v10068 = vpack.c.b16 %v9736, %v9732
    %v10069 = vpack.c.b16 %v9737, %v9733
    %v10070 = vpack.c.b16 %v9738, %v9734
    %v10071 = vpack.c.b16 %v9743, %v9739
    %v10072 = vpack.c.b16 %v9744, %v9740
    %v10073 = vpack.c.b16 %v9745, %v9741
    %v10074 = vpack.c.b16 %v9746, %v9742
    %v10075 = vpack.c.b16 %v9751, %v9747
    %v10076 = vpack.c.b16 %v9752, %v9748
    %v10077 = vpack.c.b16 %v9753, %v9749
    %v10078 = vpack.c.b16 %v9754, %v9750
    %v10079 = vpack.c.b16 %v9759, %v9755
    %v10080 = vpack.c.b16 %v9760, %v9756
    %v10081 = vpack.c.b16 %v9761, %v9757
    %v10082 = vpack.c.b16 %v9762, %v9758
    %v10083 = vpack.c.b16 %v9767, %v9763
    %v10084 = vpack.c.b16 %v9768, %v9764
    %v10085 = vpack.c.b16 %v9769, %v9765
    %v10086 = vpack.c.b16 %v9770, %v9766
    %v10087 = vpack.c.b16 %v9775, %v9771
    %v10088 = vpack.c.b16 %v9776, %v9772
    %v10089 = vpack.c.b16 %v9777, %v9773
    %v10090 = vpack.c.b16 %v9778, %v9774
    %v10091 = vpack.c.b16 %v9783, %v9779
    %v10092 = vpack.c.b16 %v9784, %v9780
    %v10093 = vpack.c.b16 %v9785, %v9781
    %v10094 = vpack.c.b16 %v9786, %v9782
    %v10095 = vpack.c.b16 %v9791, %v9787
    %v10096 = vpack.c.b16 %v9792, %v9788
    %v10097 = vpack.c.b16 %v9793, %v9789
    %v10098 = vpack.c.b16 %v9794, %v9790
    %v10099 = vpack.c.b16 %v9799, %v9795
    %v10100 = vpack.c.b16 %v9800, %v9796
    %v10101 = vpack.c.b16 %v9801, %v9797
    %v10102 = vpack.c.b16 %v9802, %v9798
    %v10103 = vpack.c.b16 %v9807, %v9803
    %v10104 = vpack.c.b16 %v9808, %v9804
    %v10105 = vpack.c.b16 %v9809, %v9805
    %v10106 = vpack.c.b16 %v9810, %v9806
    %v10107 = vpack.c.b16 %v9815, %v9811
    %v10108 = vpack.c.b16 %v9816, %v9812
    %v10109 = vpack.c.b16 %v9817, %v9813
    %v10110 = vpack.c.b16 %v9818, %v9814
    %v10111 = vpack.c.b16 %v9823, %v9819
    %v10112 = vpack.c.b16 %v9824, %v9820
    %v10113 = vpack.c.b16 %v9825, %v9821
    %v10114 = vpack.c.b16 %v9826, %v9822
    %v10115 = vpack.c.b16 %v9831, %v9827
    %v10116 = vpack.c.b16 %v9832, %v9828
    %v10117 = vpack.c.b16 %v9833, %v9829
    %v10118 = vpack.c.b16 %v9834, %v9830
    %v10119 = vpack.c.b16 %v9839, %v9835
    %v10120 = vpack.c.b16 %v9840, %v9836
    %v10121 = vpack.c.b16 %v9841, %v9837
    %v10122 = vpack.c.b16 %v9842, %v9838
    %v10123 = vpack.c.b16 %v9847, %v9843
    %v10124 = vpack.c.b16 %v9848, %v9844
    %v10125 = vpack.c.b16 %v9849, %v9845
    %v10126 = vpack.c.b16 %v9850, %v9846
    %v10127 = vpack.c.b16 %v9855, %v9851
    %v10128 = vpack.c.b16 %v9856, %v9852
    %v10129 = vpack.c.b16 %v9857, %v9853
    %v10130 = vpack.c.b16 %v9858, %v9854
    %v10131 = vpack.c.b16 %v9863, %v9859
    %v10132 = vpack.c.b16 %v9864, %v9860
    %v10133 = vpack.c.b16 %v9865, %v9861
    %v10134 = vpack.c.b16 %v9866, %v9862
    %v10135 = vpack.c.b16 %v9871, %v9867
    %v10136 = vpack.c.b16 %v9872, %v9868
    %v10137 = vpack.c.b16 %v9873, %v9869
    %v10138 = vpack.c.b16 %v9874, %v9870
    %v10139 = vpack.c.b16 %v9879, %v9875
    %v10140 = vpack.c.b16 %v9880, %v9876
    %v10141 = vpack.c.b16 %v9881, %v9877
    %v10142 = vpack.c.b16 %v9882, %v9878
    %v10143 = vpack.c.b16 %v9887, %v9883
    %v10144 = vpack.c.b16 %v9888, %v9884
    %v10145 = vpack.c.b16 %v9889, %v9885
    %v10146 = vpack.c.b16 %v9890, %v9886
    %10403 = vmatpush.bf16.msra.mxu0 %v9919
    %10404 = vmatpush.bf16.msra.mxu0 %v9915
    %10405 = vmatpush.bf16.msra.mxu0 %v9911
    %10406 = vmatpush.bf16.msra.mxu0 %v9907
    %10407 = vmatpush.bf16.msra.mxu0 %v9903
    %10408 = vmatpush.bf16.msra.mxu0 %v9899
    %10409 = vmatpush.bf16.msra.mxu0 %v9895
    %10410 = vmatpush.bf16.msra.mxu0 %v9891
    %10411 = vmatmul.bf16.gmra.mxu0 %v8849
    %v10412 = vpop.f32.mrf.mxu0
    %v10413 = vadd.f32 %v9115, %v10412
    %v10414 = vpop.f32.mrf.mxu0
    %10415 = vdwg.mxu0
    %10416 = vmatpush.bf16.msra.mxu0 %v9951
    %10417 = vmatpush.bf16.msra.mxu0 %v9947
    %10418 = vmatpush.bf16.msra.mxu0 %v9943
    %10419 = vmatpush.bf16.msra.mxu0 %v9939
    %10420 = vmatpush.bf16.msra.mxu0 %v9935
    %10421 = vmatpush.bf16.msra.mxu0 %v9931
    %10422 = vmatpush.bf16.msra.mxu0 %v9927
    %10423 = vmatpush.bf16.msra.mxu0 %v9923
    %10424 = vmatmul.bf16.gmra.mxu0 %v8850
    %v10425 = vpop.f32.mrf.mxu0
    %v10426 = vadd.f32 %v10413, %v10425
    %v10427 = vpop.f32.mrf.mxu0
    %10428 = vdwg.mxu0
    %10429 = vmatpush.bf16.msra.mxu0 %v9983
    %10430 = vmatpush.bf16.msra.mxu0 %v9979
    %10431 = vmatpush.bf16.msra.mxu0 %v9975
    %10432 = vmatpush.bf16.msra.mxu0 %v9971
    %10433 = vmatpush.bf16.msra.mxu0 %v9967
    %10434 = vmatpush.bf16.msra.mxu0 %v9963
    %10435 = vmatpush.bf16.msra.mxu0 %v9959
    %10436 = vmatpush.bf16.msra.mxu0 %v9955
    %10437 = vmatmul.bf16.gmra.mxu0 %v8851
    %v10438 = vpop.f32.mrf.mxu0
    %v10439 = vadd.f32 %v10426, %v10438
    %v10440 = vpop.f32.mrf.mxu0
    %10441 = vdwg.mxu0
    %10442 = vmatpush.bf16.msra.mxu0 %v10015
    %10443 = vmatpush.bf16.msra.mxu0 %v10011
    %10444 = vmatpush.bf16.msra.mxu0 %v10007
    %10445 = vmatpush.bf16.msra.mxu0 %v10003
    %10446 = vmatpush.bf16.msra.mxu0 %v9999
    %10447 = vmatpush.bf16.msra.mxu0 %v9995
    %10448 = vmatpush.bf16.msra.mxu0 %v9991
    %10449 = vmatpush.bf16.msra.mxu0 %v9987
    %10450 = vmatmul.bf16.gmra.mxu0 %v8852
    %v10451 = vpop.f32.mrf.mxu0
    %v10452 = vadd.f32 %v10439, %v10451
    %v10453 = vpop.f32.mrf.mxu0
    %10454 = vdwg.mxu0
    %10455 = vmatpush.bf16.msra.mxu0 %v10047
    %10456 = vmatpush.bf16.msra.mxu0 %v10043
    %10457 = vmatpush.bf16.msra.mxu0 %v10039
    %10458 = vmatpush.bf16.msra.mxu0 %v10035
    %10459 = vmatpush.bf16.msra.mxu0 %v10031
    %10460 = vmatpush.bf16.msra.mxu0 %v10027
    %10461 = vmatpush.bf16.msra.mxu0 %v10023
    %10462 = vmatpush.bf16.msra.mxu0 %v10019
    %10463 = vmatmul.bf16.gmra.mxu0 %v8853
    %v10464 = vpop.f32.mrf.mxu0
    %v10465 = vadd.f32 %v10452, %v10464
    %v10466 = vpop.f32.mrf.mxu0
    %10467 = vdwg.mxu0
    %10468 = vmatpush.bf16.msra.mxu0 %v10079
    %10469 = vmatpush.bf16.msra.mxu0 %v10075
    %10470 = vmatpush.bf16.msra.mxu0 %v10071
    %10471 = vmatpush.bf16.msra.mxu0 %v10067
    %10472 = vmatpush.bf16.msra.mxu0 %v10063
    %10473 = vmatpush.bf16.msra.mxu0 %v10059
    %10474 = vmatpush.bf16.msra.mxu0 %v10055
    %10475 = vmatpush.bf16.msra.mxu0 %v10051
    %10476 = vmatmul.bf16.gmra.mxu0 %v8854
    %v10477 = vpop.f32.mrf.mxu0
    %v10478 = vadd.f32 %v10465, %v10477
    %v10479 = vpop.f32.mrf.mxu0
    %10480 = vdwg.mxu0
    %10481 = vmatpush.bf16.msra.mxu0 %v10111
    %10482 = vmatpush.bf16.msra.mxu0 %v10107
    %10483 = vmatpush.bf16.msra.mxu0 %v10103
    %10484 = vmatpush.bf16.msra.mxu0 %v10099
    %10485 = vmatpush.bf16.msra.mxu0 %v10095
    %10486 = vmatpush.bf16.msra.mxu0 %v10091
    %10487 = vmatpush.bf16.msra.mxu0 %v10087
    %10488 = vmatpush.bf16.msra.mxu0 %v10083
    %10489 = vmatmul.bf16.gmra.mxu0 %v8855
    %v10490 = vpop.f32.mrf.mxu0
    %v10491 = vadd.f32 %v10478, %v10490
    %v10492 = vpop.f32.mrf.mxu0
    %10493 = vdwg.mxu0
    %10494 = vmatpush.bf16.msra.mxu0 %v10143
    %10495 = vmatpush.bf16.msra.mxu0 %v10139
    %10496 = vmatpush.bf16.msra.mxu0 %v10135
    %10497 = vmatpush.bf16.msra.mxu0 %v10131
    %10498 = vmatpush.bf16.msra.mxu0 %v10127
    %10499 = vmatpush.bf16.msra.mxu0 %v10123
    %10500 = vmatpush.bf16.msra.mxu0 %v10119
    %10501 = vmatpush.bf16.msra.mxu0 %v10115
    %10502 = vmatmul.bf16.gmra.mxu0 %v8856
    %v10503 = vpop.f32.mrf.mxu0
    %v10504 = vadd.f32 %v10491, %v10503
    %v10505 = vpop.f32.mrf.mxu0
    %10506 = vdwg.mxu0
    %10507 = vmatpush.bf16.msra.mxu0 %v9920
    %10508 = vmatpush.bf16.msra.mxu0 %v9916
    %10509 = vmatpush.bf16.msra.mxu0 %v9912
    %10510 = vmatpush.bf16.msra.mxu0 %v9908
    %10511 = vmatpush.bf16.msra.mxu0 %v9904
    %10512 = vmatpush.bf16.msra.mxu0 %v9900
    %10513 = vmatpush.bf16.msra.mxu0 %v9896
    %10514 = vmatpush.bf16.msra.mxu0 %v9892
    %10515 = vmatmul.bf16.gmra.mxu0 %v8849
    %v10516 = vpop.f32.mrf.mxu0
    %v10517 = vadd.f32 %v9116, %v10516
    %v10518 = vpop.f32.mrf.mxu0
    %10519 = vdwg.mxu0
    %10520 = vmatpush.bf16.msra.mxu0 %v9952
    %10521 = vmatpush.bf16.msra.mxu0 %v9948
    %10522 = vmatpush.bf16.msra.mxu0 %v9944
    %10523 = vmatpush.bf16.msra.mxu0 %v9940
    %10524 = vmatpush.bf16.msra.mxu0 %v9936
    %10525 = vmatpush.bf16.msra.mxu0 %v9932
    %10526 = vmatpush.bf16.msra.mxu0 %v9928
    %10527 = vmatpush.bf16.msra.mxu0 %v9924
    %10528 = vmatmul.bf16.gmra.mxu0 %v8850
    %v10529 = vpop.f32.mrf.mxu0
    %v10530 = vadd.f32 %v10517, %v10529
    %v10531 = vpop.f32.mrf.mxu0
    %10532 = vdwg.mxu0
    %10533 = vmatpush.bf16.msra.mxu0 %v9984
    %10534 = vmatpush.bf16.msra.mxu0 %v9980
    %10535 = vmatpush.bf16.msra.mxu0 %v9976
    %10536 = vmatpush.bf16.msra.mxu0 %v9972
    %10537 = vmatpush.bf16.msra.mxu0 %v9968
    %10538 = vmatpush.bf16.msra.mxu0 %v9964
    %10539 = vmatpush.bf16.msra.mxu0 %v9960
    %10540 = vmatpush.bf16.msra.mxu0 %v9956
    %10541 = vmatmul.bf16.gmra.mxu0 %v8851
    %v10542 = vpop.f32.mrf.mxu0
    %v10543 = vadd.f32 %v10530, %v10542
    %v10544 = vpop.f32.mrf.mxu0
    %10545 = vdwg.mxu0
    %10546 = vmatpush.bf16.msra.mxu0 %v10016
    %10547 = vmatpush.bf16.msra.mxu0 %v10012
    %10548 = vmatpush.bf16.msra.mxu0 %v10008
    %10549 = vmatpush.bf16.msra.mxu0 %v10004
    %10550 = vmatpush.bf16.msra.mxu0 %v10000
    %10551 = vmatpush.bf16.msra.mxu0 %v9996
    %10552 = vmatpush.bf16.msra.mxu0 %v9992
    %10553 = vmatpush.bf16.msra.mxu0 %v9988
    %10554 = vmatmul.bf16.gmra.mxu0 %v8852
    %v10555 = vpop.f32.mrf.mxu0
    %v10556 = vadd.f32 %v10543, %v10555
    %v10557 = vpop.f32.mrf.mxu0
    %10558 = vdwg.mxu0
    %10559 = vmatpush.bf16.msra.mxu0 %v10048
    %10560 = vmatpush.bf16.msra.mxu0 %v10044
    %10561 = vmatpush.bf16.msra.mxu0 %v10040
    %10562 = vmatpush.bf16.msra.mxu0 %v10036
    %10563 = vmatpush.bf16.msra.mxu0 %v10032
    %10564 = vmatpush.bf16.msra.mxu0 %v10028
    %10565 = vmatpush.bf16.msra.mxu0 %v10024
    %10566 = vmatpush.bf16.msra.mxu0 %v10020
    %10567 = vmatmul.bf16.gmra.mxu0 %v8853
    %v10568 = vpop.f32.mrf.mxu0
    %v10569 = vadd.f32 %v10556, %v10568
    %v10570 = vpop.f32.mrf.mxu0
    %10571 = vdwg.mxu0
    %10572 = vmatpush.bf16.msra.mxu0 %v10080
    %10573 = vmatpush.bf16.msra.mxu0 %v10076
    %10574 = vmatpush.bf16.msra.mxu0 %v10072
    %10575 = vmatpush.bf16.msra.mxu0 %v10068
    %10576 = vmatpush.bf16.msra.mxu0 %v10064
    %10577 = vmatpush.bf16.msra.mxu0 %v10060
    %10578 = vmatpush.bf16.msra.mxu0 %v10056
    %10579 = vmatpush.bf16.msra.mxu0 %v10052
    %10580 = vmatmul.bf16.gmra.mxu0 %v8854
    %v10581 = vpop.f32.mrf.mxu0
    %v10582 = vadd.f32 %v10569, %v10581
    %v10583 = vpop.f32.mrf.mxu0
    %10584 = vdwg.mxu0
    %10585 = vmatpush.bf16.msra.mxu0 %v10112
    %10586 = vmatpush.bf16.msra.mxu0 %v10108
    %10587 = vmatpush.bf16.msra.mxu0 %v10104
    %10588 = vmatpush.bf16.msra.mxu0 %v10100
    %10589 = vmatpush.bf16.msra.mxu0 %v10096
    %10590 = vmatpush.bf16.msra.mxu0 %v10092
    %10591 = vmatpush.bf16.msra.mxu0 %v10088
    %10592 = vmatpush.bf16.msra.mxu0 %v10084
    %10593 = vmatmul.bf16.gmra.mxu0 %v8855
    %v10594 = vpop.f32.mrf.mxu0
    %v10595 = vadd.f32 %v10582, %v10594
    %v10596 = vpop.f32.mrf.mxu0
    %10597 = vdwg.mxu0
    %10598 = vmatpush.bf16.msra.mxu0 %v10144
    %10599 = vmatpush.bf16.msra.mxu0 %v10140
    %10600 = vmatpush.bf16.msra.mxu0 %v10136
    %10601 = vmatpush.bf16.msra.mxu0 %v10132
    %10602 = vmatpush.bf16.msra.mxu0 %v10128
    %10603 = vmatpush.bf16.msra.mxu0 %v10124
    %10604 = vmatpush.bf16.msra.mxu0 %v10120
    %10605 = vmatpush.bf16.msra.mxu0 %v10116
    %10606 = vmatmul.bf16.gmra.mxu0 %v8856
    %v10607 = vpop.f32.mrf.mxu0
    %v10608 = vadd.f32 %v10595, %v10607
    %v10609 = vpop.f32.mrf.mxu0
    %10610 = vdwg.mxu0
    %10611 = vmatpush.bf16.msra.mxu0 %v9921
    %10612 = vmatpush.bf16.msra.mxu0 %v9917
    %10613 = vmatpush.bf16.msra.mxu0 %v9913
    %10614 = vmatpush.bf16.msra.mxu0 %v9909
    %10615 = vmatpush.bf16.msra.mxu0 %v9905
    %10616 = vmatpush.bf16.msra.mxu0 %v9901
    %10617 = vmatpush.bf16.msra.mxu0 %v9897
    %10618 = vmatpush.bf16.msra.mxu0 %v9893
    %10619 = vmatmul.bf16.gmra.mxu0 %v8849
    %v10620 = vpop.f32.mrf.mxu0
    %v10621 = vadd.f32 %v9117, %v10620
    %v10622 = vpop.f32.mrf.mxu0
    %10623 = vdwg.mxu0
    %10624 = vmatpush.bf16.msra.mxu0 %v9953
    %10625 = vmatpush.bf16.msra.mxu0 %v9949
    %10626 = vmatpush.bf16.msra.mxu0 %v9945
    %10627 = vmatpush.bf16.msra.mxu0 %v9941
    %10628 = vmatpush.bf16.msra.mxu0 %v9937
    %10629 = vmatpush.bf16.msra.mxu0 %v9933
    %10630 = vmatpush.bf16.msra.mxu0 %v9929
    %10631 = vmatpush.bf16.msra.mxu0 %v9925
    %10632 = vmatmul.bf16.gmra.mxu0 %v8850
    %v10633 = vpop.f32.mrf.mxu0
    %v10634 = vadd.f32 %v10621, %v10633
    %v10635 = vpop.f32.mrf.mxu0
    %10636 = vdwg.mxu0
    %10637 = vmatpush.bf16.msra.mxu0 %v9985
    %10638 = vmatpush.bf16.msra.mxu0 %v9981
    %10639 = vmatpush.bf16.msra.mxu0 %v9977
    %10640 = vmatpush.bf16.msra.mxu0 %v9973
    %10641 = vmatpush.bf16.msra.mxu0 %v9969
    %10642 = vmatpush.bf16.msra.mxu0 %v9965
    %10643 = vmatpush.bf16.msra.mxu0 %v9961
    %10644 = vmatpush.bf16.msra.mxu0 %v9957
    %10645 = vmatmul.bf16.gmra.mxu0 %v8851
    %v10646 = vpop.f32.mrf.mxu0
    %v10647 = vadd.f32 %v10634, %v10646
    %v10648 = vpop.f32.mrf.mxu0
    %10649 = vdwg.mxu0
    %10650 = vmatpush.bf16.msra.mxu0 %v10017
    %10651 = vmatpush.bf16.msra.mxu0 %v10013
    %10652 = vmatpush.bf16.msra.mxu0 %v10009
    %10653 = vmatpush.bf16.msra.mxu0 %v10005
    %10654 = vmatpush.bf16.msra.mxu0 %v10001
    %10655 = vmatpush.bf16.msra.mxu0 %v9997
    %10656 = vmatpush.bf16.msra.mxu0 %v9993
    %10657 = vmatpush.bf16.msra.mxu0 %v9989
    %10658 = vmatmul.bf16.gmra.mxu0 %v8852
    %v10659 = vpop.f32.mrf.mxu0
    %v10660 = vadd.f32 %v10647, %v10659
    %v10661 = vpop.f32.mrf.mxu0
    %10662 = vdwg.mxu0
    %10663 = vmatpush.bf16.msra.mxu0 %v10049
    %10664 = vmatpush.bf16.msra.mxu0 %v10045
    %10665 = vmatpush.bf16.msra.mxu0 %v10041
    %10666 = vmatpush.bf16.msra.mxu0 %v10037
    %10667 = vmatpush.bf16.msra.mxu0 %v10033
    %10668 = vmatpush.bf16.msra.mxu0 %v10029
    %10669 = vmatpush.bf16.msra.mxu0 %v10025
    %10670 = vmatpush.bf16.msra.mxu0 %v10021
    %10671 = vmatmul.bf16.gmra.mxu0 %v8853
    %v10672 = vpop.f32.mrf.mxu0
    %v10673 = vadd.f32 %v10660, %v10672
    %v10674 = vpop.f32.mrf.mxu0
    %10675 = vdwg.mxu0
    %10676 = vmatpush.bf16.msra.mxu0 %v10081
    %10677 = vmatpush.bf16.msra.mxu0 %v10077
    %10678 = vmatpush.bf16.msra.mxu0 %v10073
    %10679 = vmatpush.bf16.msra.mxu0 %v10069
    %10680 = vmatpush.bf16.msra.mxu0 %v10065
    %10681 = vmatpush.bf16.msra.mxu0 %v10061
    %10682 = vmatpush.bf16.msra.mxu0 %v10057
    %10683 = vmatpush.bf16.msra.mxu0 %v10053
    %10684 = vmatmul.bf16.gmra.mxu0 %v8854
    %v10685 = vpop.f32.mrf.mxu0
    %v10686 = vadd.f32 %v10673, %v10685
    %v10687 = vpop.f32.mrf.mxu0
    %10688 = vdwg.mxu0
    %10689 = vmatpush.bf16.msra.mxu0 %v10113
    %10690 = vmatpush.bf16.msra.mxu0 %v10109
    %10691 = vmatpush.bf16.msra.mxu0 %v10105
    %10692 = vmatpush.bf16.msra.mxu0 %v10101
    %10693 = vmatpush.bf16.msra.mxu0 %v10097
    %10694 = vmatpush.bf16.msra.mxu0 %v10093
    %10695 = vmatpush.bf16.msra.mxu0 %v10089
    %10696 = vmatpush.bf16.msra.mxu0 %v10085
    %10697 = vmatmul.bf16.gmra.mxu0 %v8855
    %v10698 = vpop.f32.mrf.mxu0
    %v10699 = vadd.f32 %v10686, %v10698
    %v10700 = vpop.f32.mrf.mxu0
    %10701 = vdwg.mxu0
    %10702 = vmatpush.bf16.msra.mxu0 %v10145
    %10703 = vmatpush.bf16.msra.mxu0 %v10141
    %10704 = vmatpush.bf16.msra.mxu0 %v10137
    %10705 = vmatpush.bf16.msra.mxu0 %v10133
    %10706 = vmatpush.bf16.msra.mxu0 %v10129
    %10707 = vmatpush.bf16.msra.mxu0 %v10125
    %10708 = vmatpush.bf16.msra.mxu0 %v10121
    %10709 = vmatpush.bf16.msra.mxu0 %v10117
    %10710 = vmatmul.bf16.gmra.mxu0 %v8856
    %v10711 = vpop.f32.mrf.mxu0
    %v10712 = vadd.f32 %v10699, %v10711
    %v10713 = vpop.f32.mrf.mxu0
    %10714 = vdwg.mxu0
    %10715 = vmatpush.bf16.msra.mxu0 %v9922
    %10716 = vmatpush.bf16.msra.mxu0 %v9918
    %10717 = vmatpush.bf16.msra.mxu0 %v9914
    %10718 = vmatpush.bf16.msra.mxu0 %v9910
    %10719 = vmatpush.bf16.msra.mxu0 %v9906
    %10720 = vmatpush.bf16.msra.mxu0 %v9902
    %10721 = vmatpush.bf16.msra.mxu0 %v9898
    %10722 = vmatpush.bf16.msra.mxu0 %v9894
    %10723 = vmatmul.bf16.gmra.mxu0 %v8849
    %v10724 = vpop.f32.mrf.mxu0
    %v10725 = vadd.f32 %v9118, %v10724
    %v10726 = vpop.f32.mrf.mxu0
    %10727 = vdwg.mxu0
    %10728 = vmatpush.bf16.msra.mxu0 %v9954
    %10729 = vmatpush.bf16.msra.mxu0 %v9950
    %10730 = vmatpush.bf16.msra.mxu0 %v9946
    %10731 = vmatpush.bf16.msra.mxu0 %v9942
    %10732 = vmatpush.bf16.msra.mxu0 %v9938
    %10733 = vmatpush.bf16.msra.mxu0 %v9934
    %10734 = vmatpush.bf16.msra.mxu0 %v9930
    %10735 = vmatpush.bf16.msra.mxu0 %v9926
    %10736 = vmatmul.bf16.gmra.mxu0 %v8850
    %v10737 = vpop.f32.mrf.mxu0
    %v10738 = vadd.f32 %v10725, %v10737
    %v10739 = vpop.f32.mrf.mxu0
    %10740 = vdwg.mxu0
    %10741 = vmatpush.bf16.msra.mxu0 %v9986
    %10742 = vmatpush.bf16.msra.mxu0 %v9982
    %10743 = vmatpush.bf16.msra.mxu0 %v9978
    %10744 = vmatpush.bf16.msra.mxu0 %v9974
    %10745 = vmatpush.bf16.msra.mxu0 %v9970
    %10746 = vmatpush.bf16.msra.mxu0 %v9966
    %10747 = vmatpush.bf16.msra.mxu0 %v9962
    %10748 = vmatpush.bf16.msra.mxu0 %v9958
    %10749 = vmatmul.bf16.gmra.mxu0 %v8851
    %v10750 = vpop.f32.mrf.mxu0
    %v10751 = vadd.f32 %v10738, %v10750
    %v10752 = vpop.f32.mrf.mxu0
    %10753 = vdwg.mxu0
    %10754 = vmatpush.bf16.msra.mxu0 %v10018
    %10755 = vmatpush.bf16.msra.mxu0 %v10014
    %10756 = vmatpush.bf16.msra.mxu0 %v10010
    %10757 = vmatpush.bf16.msra.mxu0 %v10006
    %10758 = vmatpush.bf16.msra.mxu0 %v10002
    %10759 = vmatpush.bf16.msra.mxu0 %v9998
    %10760 = vmatpush.bf16.msra.mxu0 %v9994
    %10761 = vmatpush.bf16.msra.mxu0 %v9990
    %10762 = vmatmul.bf16.gmra.mxu0 %v8852
    %v10763 = vpop.f32.mrf.mxu0
    %v10764 = vadd.f32 %v10751, %v10763
    %v10765 = vpop.f32.mrf.mxu0
    %10766 = vdwg.mxu0
    %10767 = vmatpush.bf16.msra.mxu0 %v10050
    %10768 = vmatpush.bf16.msra.mxu0 %v10046
    %10769 = vmatpush.bf16.msra.mxu0 %v10042
    %10770 = vmatpush.bf16.msra.mxu0 %v10038
    %10771 = vmatpush.bf16.msra.mxu0 %v10034
    %10772 = vmatpush.bf16.msra.mxu0 %v10030
    %10773 = vmatpush.bf16.msra.mxu0 %v10026
    %10774 = vmatpush.bf16.msra.mxu0 %v10022
    %10775 = vmatmul.bf16.gmra.mxu0 %v8853
    %v10776 = vpop.f32.mrf.mxu0
    %v10777 = vadd.f32 %v10764, %v10776
    %v10778 = vpop.f32.mrf.mxu0
    %10779 = vdwg.mxu0
    %10780 = vmatpush.bf16.msra.mxu0 %v10082
    %10781 = vmatpush.bf16.msra.mxu0 %v10078
    %10782 = vmatpush.bf16.msra.mxu0 %v10074
    %10783 = vmatpush.bf16.msra.mxu0 %v10070
    %10784 = vmatpush.bf16.msra.mxu0 %v10066
    %10785 = vmatpush.bf16.msra.mxu0 %v10062
    %10786 = vmatpush.bf16.msra.mxu0 %v10058
    %10787 = vmatpush.bf16.msra.mxu0 %v10054
    %10788 = vmatmul.bf16.gmra.mxu0 %v8854
    %v10789 = vpop.f32.mrf.mxu0
    %v10790 = vadd.f32 %v10777, %v10789
    %v10791 = vpop.f32.mrf.mxu0
    %10792 = vdwg.mxu0
    %10793 = vmatpush.bf16.msra.mxu0 %v10114
    %10794 = vmatpush.bf16.msra.mxu0 %v10110
    %10795 = vmatpush.bf16.msra.mxu0 %v10106
    %10796 = vmatpush.bf16.msra.mxu0 %v10102
    %10797 = vmatpush.bf16.msra.mxu0 %v10098
    %10798 = vmatpush.bf16.msra.mxu0 %v10094
    %10799 = vmatpush.bf16.msra.mxu0 %v10090
    %10800 = vmatpush.bf16.msra.mxu0 %v10086
    %10801 = vmatmul.bf16.gmra.mxu0 %v8855
    %v10802 = vpop.f32.mrf.mxu0
    %v10803 = vadd.f32 %v10790, %v10802
    %v10804 = vpop.f32.mrf.mxu0
    %10805 = vdwg.mxu0
    %10806 = vmatpush.bf16.msra.mxu0 %v10146
    %10807 = vmatpush.bf16.msra.mxu0 %v10142
    %10808 = vmatpush.bf16.msra.mxu0 %v10138
    %10809 = vmatpush.bf16.msra.mxu0 %v10134
    %10810 = vmatpush.bf16.msra.mxu0 %v10130
    %10811 = vmatpush.bf16.msra.mxu0 %v10126
    %10812 = vmatpush.bf16.msra.mxu0 %v10122
    %10813 = vmatpush.bf16.msra.mxu0 %v10118
    %10814 = vmatmul.bf16.gmra.mxu0 %v8856
    %v10815 = vpop.f32.mrf.mxu0
    %v10816 = vadd.f32 %v10803, %v10815
    %v10817 = vpop.f32.mrf.mxu0
    %10818 = vdwg.mxu0
    %v10819 = vmax.f32 %v10504, 0.0
    %v10820 = vmax.f32 %v10608, 0.0
    %v10821 = vmax.f32 %v10712, 0.0
    %v10822 = vmax.f32 %v10816, 0.0
    %v10823 = vpack.c.bf16 %v10819, %v10819
    %v10824 = vpack.c.bf16 %v10820, %v10820
    %v10825 = vpack.c.bf16 %v10821, %v10821
    %v10826 = vpack.c.bf16 %v10822, %v10822
    %v10827 = vld [vmem:[%s11] sm:$0xf]
    %v10828 = vld [vmem:[%s11 + $0x4] sm:$0xf]
    %v10829 = vld [vmem:[%s11 + $0x8] sm:$0xf]
    %v10830 = vld [vmem:[%s11 + $0xc] sm:$0xf]
    %v10831 = vld [vmem:[%s11 + $0x10] sm:$0xf]
    %v10832 = vld [vmem:[%s11 + $0x14] sm:$0xf]
    %v10833 = vld [vmem:[%s11 + $0x18] sm:$0xf]
    %v10834 = vld [vmem:[%s11 + $0x1c] sm:$0xf]
    %v10835 = vld [vmem:[%s11 + $0x20] sm:$0xf]
    %v10836 = vld [vmem:[%s11 + $0x24] sm:$0xf]
    %v10837 = vld [vmem:[%s11 + $0x28] sm:$0xf]
    %v10838 = vld [vmem:[%s11 + $0x2c] sm:$0xf]
    %v10839 = vld [vmem:[%s11 + $0x30] sm:$0xf]
    %v10840 = vld [vmem:[%s11 + $0x34] sm:$0xf]
    %v10841 = vld [vmem:[%s11 + $0x38] sm:$0xf]
    %v10842 = vld [vmem:[%s11 + $0x3c] sm:$0xf]
    %v10843 = vld [vmem:[%s11 + $0x40] sm:$0xf]
    %v10844 = vld [vmem:[%s11 + $0x44] sm:$0xf]
    %v10845 = vld [vmem:[%s11 + $0x48] sm:$0xf]
    %v10846 = vld [vmem:[%s11 + $0x4c] sm:$0xf]
    %v10847 = vld [vmem:[%s11 + $0x50] sm:$0xf]
    %v10848 = vld [vmem:[%s11 + $0x54] sm:$0xf]
    %v10849 = vld [vmem:[%s11 + $0x58] sm:$0xf]
    %v10850 = vld [vmem:[%s11 + $0x5c] sm:$0xf]
    %v10851 = vld [vmem:[%s11 + $0x60] sm:$0xf]
    %v10852 = vld [vmem:[%s11 + $0x64] sm:$0xf]
    %v10853 = vld [vmem:[%s11 + $0x68] sm:$0xf]
    %v10854 = vld [vmem:[%s11 + $0x6c] sm:$0xf]
    %v10855 = vld [vmem:[%s11 + $0x70] sm:$0xf]
    %v10856 = vld [vmem:[%s11 + $0x74] sm:$0xf]
    %v10857 = vld [vmem:[%s11 + $0x78] sm:$0xf]
    %v10858 = vld [vmem:[%s11 + $0x7c] sm:$0xf]
    %v10859 = vld [vmem:[%s11 + $0x80] sm:$0xf]
    %v10860 = vld [vmem:[%s11 + $0x84] sm:$0xf]
    %v10861 = vld [vmem:[%s11 + $0x88] sm:$0xf]
    %v10862 = vld [vmem:[%s11 + $0x8c] sm:$0xf]
    %v10863 = vld [vmem:[%s11 + $0x90] sm:$0xf]
    %v10864 = vld [vmem:[%s11 + $0x94] sm:$0xf]
    %v10865 = vld [vmem:[%s11 + $0x98] sm:$0xf]
    %v10866 = vld [vmem:[%s11 + $0x9c] sm:$0xf]
    %v10867 = vld [vmem:[%s11 + $0xa0] sm:$0xf]
    %v10868 = vld [vmem:[%s11 + $0xa4] sm:$0xf]
    %v10869 = vld [vmem:[%s11 + $0xa8] sm:$0xf]
    %v10870 = vld [vmem:[%s11 + $0xac] sm:$0xf]
    %v10871 = vld [vmem:[%s11 + $0xb0] sm:$0xf]
    %v10872 = vld [vmem:[%s11 + $0xb4] sm:$0xf]
    %v10873 = vld [vmem:[%s11 + $0xb8] sm:$0xf]
    %v10874 = vld [vmem:[%s11 + $0xbc] sm:$0xf]
    %v10875 = vld [vmem:[%s11 + $0xc0] sm:$0xf]
    %v10876 = vld [vmem:[%s11 + $0xc4] sm:$0xf]
    %v10877 = vld [vmem:[%s11 + $0xc8] sm:$0xf]
    %v10878 = vld [vmem:[%s11 + $0xcc] sm:$0xf]
    %v10879 = vld [vmem:[%s11 + $0xd0] sm:$0xf]
    %v10880 = vld [vmem:[%s11 + $0xd4] sm:$0xf]
    %v10881 = vld [vmem:[%s11 + $0xd8] sm:$0xf]
    %v10882 = vld [vmem:[%s11 + $0xdc] sm:$0xf]
    %v10883 = vld [vmem:[%s11 + $0xe0] sm:$0xf]
    %v10884 = vld [vmem:[%s11 + $0xe4] sm:$0xf]
    %v10885 = vld [vmem:[%s11 + $0xe8] sm:$0xf]
    %v10886 = vld [vmem:[%s11 + $0xec] sm:$0xf]
    %v10887 = vld [vmem:[%s11 + $0xf0] sm:$0xf]
    %v10888 = vld [vmem:[%s11 + $0xf4] sm:$0xf]
    %v10889 = vld [vmem:[%s11 + $0xf8] sm:$0xf]
    %v10890 = vld [vmem:[%s11 + $0xfc] sm:$0xf]
    %v10891 = vld [vmem:[#allocation2] sm:$0x1]
    %v10893 = vperm.slane %v10891, 0
    %v10959 = vunpack.c.l.b16 %v10827
    %v10960 = vunpack.c.l.b16 %v10828
    %v10961 = vunpack.c.l.b16 %v10829
    %v10962 = vunpack.c.l.b16 %v10830
    %v10963 = vunpack.c.l.b16 %v10831
    %v10964 = vunpack.c.l.b16 %v10832
    %v10965 = vunpack.c.l.b16 %v10833
    %v10966 = vunpack.c.l.b16 %v10834
    %v10967 = vunpack.c.l.b16 %v10835
    %v10968 = vunpack.c.l.b16 %v10836
    %v10969 = vunpack.c.l.b16 %v10837
    %v10970 = vunpack.c.l.b16 %v10838
    %v10971 = vunpack.c.l.b16 %v10839
    %v10972 = vunpack.c.l.b16 %v10840
    %v10973 = vunpack.c.l.b16 %v10841
    %v10974 = vunpack.c.l.b16 %v10842
    %v10975 = vunpack.c.l.b16 %v10843
    %v10976 = vunpack.c.l.b16 %v10844
    %v10977 = vunpack.c.l.b16 %v10845
    %v10978 = vunpack.c.l.b16 %v10846
    %v10979 = vunpack.c.l.b16 %v10847
    %v10980 = vunpack.c.l.b16 %v10848
    %v10981 = vunpack.c.l.b16 %v10849
    %v10982 = vunpack.c.l.b16 %v10850
    %v10983 = vunpack.c.l.b16 %v10851
    %v10984 = vunpack.c.l.b16 %v10852
    %v10985 = vunpack.c.l.b16 %v10853
    %v10986 = vunpack.c.l.b16 %v10854
    %v10987 = vunpack.c.l.b16 %v10855
    %v10988 = vunpack.c.l.b16 %v10856
    %v10989 = vunpack.c.l.b16 %v10857
    %v10990 = vunpack.c.l.b16 %v10858
    %v10991 = vunpack.c.l.b16 %v10859
    %v10992 = vunpack.c.l.b16 %v10860
    %v10993 = vunpack.c.l.b16 %v10861
    %v10994 = vunpack.c.l.b16 %v10862
    %v10995 = vunpack.c.l.b16 %v10863
    %v10996 = vunpack.c.l.b16 %v10864
    %v10997 = vunpack.c.l.b16 %v10865
    %v10998 = vunpack.c.l.b16 %v10866
    %v10999 = vunpack.c.l.b16 %v10867
    %v11000 = vunpack.c.l.b16 %v10868
    %v11001 = vunpack.c.l.b16 %v10869
    %v11002 = vunpack.c.l.b16 %v10870
    %v11003 = vunpack.c.l.b16 %v10871
    %v11004 = vunpack.c.l.b16 %v10872
    %v11005 = vunpack.c.l.b16 %v10873
    %v11006 = vunpack.c.l.b16 %v10874
    %v11007 = vunpack.c.l.b16 %v10875
    %v11008 = vunpack.c.l.b16 %v10876
    %v11009 = vunpack.c.l.b16 %v10877
    %v11010 = vunpack.c.l.b16 %v10878
    %v11011 = vunpack.c.l.b16 %v10879
    %v11012 = vunpack.c.l.b16 %v10880
    %v11013 = vunpack.c.l.b16 %v10881
    %v11014 = vunpack.c.l.b16 %v10882
    %v11015 = vunpack.c.l.b16 %v10883
    %v11016 = vunpack.c.l.b16 %v10884
    %v11017 = vunpack.c.l.b16 %v10885
    %v11018 = vunpack.c.l.b16 %v10886
    %v11019 = vunpack.c.l.b16 %v10887
    %v11020 = vunpack.c.l.b16 %v10888
    %v11021 = vunpack.c.l.b16 %v10889
    %v11022 = vunpack.c.l.b16 %v10890
    %v11023 = vpack.c.b16 %v10960, %v10959
    %v11024 = vpack.c.b16 %v10962, %v10961
    %v11025 = vpack.c.b16 %v10964, %v10963
    %v11026 = vpack.c.b16 %v10966, %v10965
    %v11027 = vpack.c.b16 %v10968, %v10967
    %v11028 = vpack.c.b16 %v10970, %v10969
    %v11029 = vpack.c.b16 %v10972, %v10971
    %v11030 = vpack.c.b16 %v10974, %v10973
    %v11031 = vpack.c.b16 %v10976, %v10975
    %v11032 = vpack.c.b16 %v10978, %v10977
    %v11033 = vpack.c.b16 %v10980, %v10979
    %v11034 = vpack.c.b16 %v10982, %v10981
    %v11035 = vpack.c.b16 %v10984, %v10983
    %v11036 = vpack.c.b16 %v10986, %v10985
    %v11037 = vpack.c.b16 %v10988, %v10987
    %v11038 = vpack.c.b16 %v10990, %v10989
    %v11039 = vpack.c.b16 %v10992, %v10991
    %v11040 = vpack.c.b16 %v10994, %v10993
    %v11041 = vpack.c.b16 %v10996, %v10995
    %v11042 = vpack.c.b16 %v10998, %v10997
    %v11043 = vpack.c.b16 %v11000, %v10999
    %v11044 = vpack.c.b16 %v11002, %v11001
    %v11045 = vpack.c.b16 %v11004, %v11003
    %v11046 = vpack.c.b16 %v11006, %v11005
    %v11047 = vpack.c.b16 %v11008, %v11007
    %v11048 = vpack.c.b16 %v11010, %v11009
    %v11049 = vpack.c.b16 %v11012, %v11011
    %v11050 = vpack.c.b16 %v11014, %v11013
    %v11051 = vpack.c.b16 %v11016, %v11015
    %v11052 = vpack.c.b16 %v11018, %v11017
    %v11053 = vpack.c.b16 %v11020, %v11019
    %v11054 = vpack.c.b16 %v11022, %v11021
    %11087 = vmatpush.bf16.msra.mxu0 %v11030
    %11088 = vmatpush.bf16.msra.mxu0 %v11029
    %11089 = vmatpush.bf16.msra.mxu0 %v11028
    %11090 = vmatpush.bf16.msra.mxu0 %v11027
    %11091 = vmatpush.bf16.msra.mxu0 %v11026
    %11092 = vmatpush.bf16.msra.mxu0 %v11025
    %11093 = vmatpush.bf16.msra.mxu0 %v11024
    %11094 = vmatpush.bf16.msra.mxu0 %v11023
    %11095 = vmatmul.bf16.gmra.mxu0 %v10823
    %v11096 = vpop.f32.mrf.mxu0
    %v11097 = vadd.f32 %v10893, %v11096
    %v11098 = vpop.f32.mrf.mxu0
    %11099 = vdwg.mxu0
    %11100 = vmatpush.bf16.msra.mxu0 %v11038
    %11101 = vmatpush.bf16.msra.mxu0 %v11037
    %11102 = vmatpush.bf16.msra.mxu0 %v11036
    %11103 = vmatpush.bf16.msra.mxu0 %v11035
    %11104 = vmatpush.bf16.msra.mxu0 %v11034
    %11105 = vmatpush.bf16.msra.mxu0 %v11033
    %11106 = vmatpush.bf16.msra.mxu0 %v11032
    %11107 = vmatpush.bf16.msra.mxu0 %v11031
    %11108 = vmatmul.bf16.gmra.mxu0 %v10824
    %v11109 = vpop.f32.mrf.mxu0
    %v11110 = vadd.f32 %v11097, %v11109
    %v11111 = vpop.f32.mrf.mxu0
    %11112 = vdwg.mxu0
    %11113 = vmatpush.bf16.msra.mxu0 %v11046
    %11114 = vmatpush.bf16.msra.mxu0 %v11045
    %11115 = vmatpush.bf16.msra.mxu0 %v11044
    %11116 = vmatpush.bf16.msra.mxu0 %v11043
    %11117 = vmatpush.bf16.msra.mxu0 %v11042
    %11118 = vmatpush.bf16.msra.mxu0 %v11041
    %11119 = vmatpush.bf16.msra.mxu0 %v11040
    %11120 = vmatpush.bf16.msra.mxu0 %v11039
    %11121 = vmatmul.bf16.gmra.mxu0 %v10825
    %v11122 = vpop.f32.mrf.mxu0
    %v11123 = vadd.f32 %v11110, %v11122
    %v11124 = vpop.f32.mrf.mxu0
    %11125 = vdwg.mxu0
    %11126 = vmatpush.bf16.msra.mxu0 %v11054
    %11127 = vmatpush.bf16.msra.mxu0 %v11053
    %11128 = vmatpush.bf16.msra.mxu0 %v11052
    %11129 = vmatpush.bf16.msra.mxu0 %v11051
    %11130 = vmatpush.bf16.msra.mxu0 %v11050
    %11131 = vmatpush.bf16.msra.mxu0 %v11049
    %11132 = vmatpush.bf16.msra.mxu0 %v11048
    %11133 = vmatpush.bf16.msra.mxu0 %v11047
    %11134 = vmatmul.bf16.gmra.mxu0 %v10826
    %v11135 = vpop.f32.mrf.mxu0
    %v11136 = vadd.f32 %v11123, %v11135
    %v11137 = vpop.f32.mrf.mxu0
    %11138 = vdwg.mxu0
    %vm11139 = vcmask 1024
    %11140 = vst.msk [vmem:[%s13] sm:$0x3] %vm11139, %v11136
    // Predicated region
    $region94: #{forward.3} parent=1 // pred_check
      _
    $region95: #{forward.3} parent=1 // pred_check_branch
      %11142 = sbr.rel (0) target = $region97
    $region96: #{forward.3} parent=1 // pred_region
      _
    $region97: #{forward.3} parent=1 // pred_fallthru
      _
    // Predicated region
    $region98: #{forward.3} parent=1 // pred_check
      _
    $region99: #{forward.3} parent=1 // pred_check_branch
      %11144 = sbr.rel (0) target = $region101
    $region100: #{forward.3} parent=1 // pred_region
      _
    $region101: #{forward.3} parent=1 // pred_fallthru
      _
    %11145 = vsyncpa [#allocation4], 1
    %11146 = vsyncpa [#allocation6], 1
    %11147 = vsyncpa [#allocation9], 1
    %11148 = vsyncpa [#allocation12], 1
    %11149 = vsyncpa [#allocation15], 1
    %11150 = vsyncpa [#allocation18], 1

</llo_original>
